<compile_context>
chip_gen: v5e
topology: v5e:2x2
jax: 0.10.0
libtpu: 0.0.40
codegen_flags: <defaults>
</compile_context>

<pallas_src>
import math

import numpy as np
import jax
import jax.numpy as jnp
from jax.experimental import pallas as pl
from jax.experimental.pallas import tpu as pltpu

# ----------------------- MKD constants (from mkd_pytorch) -----------------------
SQRT2 = 1.4142135623730951
COEFFS = {
    "xy":     [0.38214156, 0.48090413],                        # n=1 -> 3 dims
    "rhophi": [0.14343168, 0.268285, 0.21979234],              # n=2 -> 5 dims
    "theta":  [0.14343168, 0.268285, 0.21979234, 0.15838885],  # n=3 -> 7 dims
}
EPS = 1e-8
POWER_T = 0.7            # 'pcawt' power-law exponent
IN_DIMS = 7              # orientation (theta) embedding dims
D_POLAR = 25             # 5*5 polar spatial kernel dims
D_CART = 9               # 3*3 cartesian spatial kernel dims
ODIMS = IN_DIMS * (D_POLAR + D_CART)   # 238  (dtype='concat')
PAD_DIMS = 256                          # lane-dense padded descriptor width


# ----------------------- parameter construction (glue, numpy) -----------------------
def _vm_weights(coeffs):
    w = [math.sqrt(coeffs[0])]
    w += [math.sqrt(c) for c in coeffs[1:]]
    w += [math.sqrt(c) for c in coeffs[1:]]
    return np.asarray(w, np.float64)          # (2n+1,)


def _vm_embed_np(t, coeffs):
    """Weighted von-Mises Fourier embedding [1, cos k*t, sin k*t] -> (2n+1, ...)."""
    n = len(coeffs) - 1
    chans = [np.ones_like(t)]
    chans += [np.cos(k * t) for k in range(1, n + 1)]
    chans += [np.sin(k * t) for k in range(1, n + 1)]
    emb = np.stack(chans, 0)
    w = _vm_weights(coeffs).reshape(-1, *([1] * t.ndim))
    return emb * w


def _grid_np(ps):
    lin = np.linspace(-1.0, 1.0, ps)
    y, x = np.meshgrid(lin, lin, indexing="ij")   # y along rows, x along cols (NCHW)
    rho = np.sqrt(x * x + y * y + EPS)
    phi = np.arctan2(y, x)
    return x, y, rho, phi


def _spatial_kernel_np(ps, kind, do_gmask=True, gmask_sigma=1.0):
    """ExplicitSpacialEncoding spatial kernel (kron of two von-Mises embeddings)."""
    x, y, rho, phi = _grid_np(ps)
    if kind == "cart":
        ea = _vm_embed_np(math.pi * x, COEFFS["xy"])               # (3, ps, ps)
        eb = _vm_embed_np(math.pi * y, COEFFS["xy"])
    else:  # polar
        ea = _vm_embed_np(phi, COEFFS["rhophi"])                   # (5, ps, ps)
        eb = _vm_embed_np(math.pi * rho / SQRT2, COEFFS["rhophi"])
    d = ea.shape[0]
    emb = (ea[:, None] * eb[None, :]).reshape(d * d, ps, ps)        # kron order a*d + b
    if do_gmask:
        nrho = rho / rho.max()
        emb = emb * np.exp(-(nrho ** 2) / (gmask_sigma ** 2))[None]
    return emb.reshape(d * d, ps * ps)                              # (d_emb, P) float64


def build_params(ps=32, reduce_dims=128, seed=0):
    P = ps * ps
    _, _, _, phi2d = _grid_np(ps)
    phi = phi2d.reshape(P)
    tw = _vm_weights(COEFFS["theta"])                                # (7,)
    embp = _spatial_kernel_np(ps, "polar")                           # (25, P)
    embc = _spatial_kernel_np(ps, "cart")                            # (9, P)

    params = {
        "ps": ps,
        "reduce_dims": reduce_dims,
        # reference-path constants
        "theta_w": tw.astype(np.float32),
        "phi": jnp.asarray(phi.reshape(1, P), jnp.float32),
        "emb_polar_T": jnp.asarray(embp.T, jnp.float32),             # (P, 25)
        "emb_cart_T": jnp.asarray(embc.T, jnp.float32),              # (P, 9)
    }

    # ---- Fused pooling constant K (IN_DIMS, P, PAD_DIMS) -> (IN_DIMS*P, PAD_DIMS) ----
    # Absolute feature order f = [1, cos t, cos 2t, cos 3t, sin t, sin 2t, sin 3t].
    # Polar columns [0,175): relative angle (t - phi) folded in via angle subtraction.
    # Cart  columns [175,238): absolute angle. Columns [238,256) are zero padding.
    K = np.zeros((IN_DIMS, P, PAD_DIMS), np.float64)
    # polar, constant channel
    K[0, :, 0:D_POLAR] = tw[0] * embp.T
    for k in range(1, 4):
        cph = np.cos(k * phi)[:, None]
        sph = np.sin(k * phi)[:, None]
        # cos(k*(t - phi)) = cos(kt)cos(kphi) + sin(kt)sin(kphi)   (channel i = k)
        colc = slice(k * D_POLAR, (k + 1) * D_POLAR)
        K[k,     :, colc] += tw[k] * cph * embp.T
        K[3 + k, :, colc] += tw[k] * sph * embp.T
        # sin(k*(t - phi)) = sin(kt)cos(kphi) - cos(kt)sin(kphi)   (channel i = 3+k)
        cols = slice((3 + k) * D_POLAR, (4 + k) * D_POLAR)
        K[3 + k, :, cols] += tw[3 + k] * cph * embp.T
        K[k,     :, cols] += -tw[3 + k] * sph * embp.T
    # cart block
    for i in range(IN_DIMS):
        cc = slice(IN_DIMS * D_POLAR + i * D_CART, IN_DIMS * D_POLAR + (i + 1) * D_CART)
        K[i, :, cc] = tw[i] * embc.T
    # bf16 weights for the pooling MXU dots (f32 accumulation in-kernel); halves VMEM/HBM.
    params["k_big"] = jnp.asarray(K.reshape(IN_DIMS * P, PAD_DIMS), jnp.bfloat16)

    # per-branch l2-norm masks over the padded 256 lanes
    maskp = np.zeros((1, PAD_DIMS), np.float32)
    maskp[0, :IN_DIMS * D_POLAR] = 1.0
    maskc = np.zeros((1, PAD_DIMS), np.float32)
    maskc[0, IN_DIMS * D_POLAR:ODIMS] = 1.0
    params["mask_polar"] = jnp.asarray(maskp)
    params["mask_cart"] = jnp.asarray(maskc)

    # ---- Synthetic deterministic 'pcawt' whitening model ----
    # TODO(synk): real MKD loads PhotoTourism-trained PCA mean/eigvecs/eigvals from mkd-concat-64.pkl.
    key = jax.random.PRNGKey(seed)
    k1, k2 = jax.random.split(key)
    a = jax.random.normal(k1, (ODIMS, ODIMS), jnp.float32)
    q, _ = jnp.linalg.qr(a)
    evecs = q[:, :reduce_dims]                                            # (238, 128)
    evals = jnp.exp(-jnp.arange(reduce_dims, dtype=jnp.float32) / 64.0) + 0.01
    params["wh_mean"] = 0.05 * jax.random.normal(k2, (1, ODIMS), jnp.float32)
    params["wh_proj"] = evecs * jnp.power(evals, -0.5 * POWER_T)[None, :]  # (238, 128)

    # kernel-side: zero-row padded projection with the exact final-l2 1/sqrt(2) folded in,
    # and the mean folded into a (1, rd) bias.  Kept in f32 (small matmul, accuracy).
    proj = np.asarray(params["wh_proj"], np.float64)
    mean = np.asarray(params["wh_mean"], np.float64)
    proj_pad = np.zeros((PAD_DIMS, reduce_dims), np.float64)
    proj_pad[:ODIMS] = proj / math.sqrt(2.0)
    params["wh_proj_pad"] = jnp.asarray(proj_pad, jnp.float32)            # (256, 128)
    params["wh_bias"] = jnp.asarray(mean @ proj, jnp.float32)             # (1, 128)
    return params


# ----------------------- preprocessing glue (Gradients module convs) -----------------------
def _replicate_pad(x, n, axis):
    idx = np.clip(np.arange(-n, x.shape[axis] + n), 0, x.shape[axis] - 1)
    return jnp.take(x, jnp.asarray(idx), axis=axis)


def _sep_filter(x, taps, axis):
    n = (len(taps) - 1) // 2
    xp = _replicate_pad(x, n, axis)
    L = x.shape[axis]
    out = taps[0] * jax.lax.slice_in_dim(xp, 0, L, axis=axis)
    for k in range(1, len(taps)):
        out = out + taps[k] * jax.lax.slice_in_dim(xp, k, k + L, axis=axis)
    return out


def gradients_preproc(patches, ps):
    """MKD `Gradients`: 5x5 gaussian smoothing (replicate pad, sigma=1.4*ps/64)
    followed by [1,0,-1] differences (replicate pad)."""
    x = patches[:, 0].astype(jnp.float32)              # (B, ps, ps)
    sigma = 1.4 * (ps / 64.0)
    r = np.arange(5, dtype=np.float64) - 2.0
    g = np.exp(-(r ** 2) / (2.0 * sigma ** 2))
    g = (g / g.sum()).astype(np.float32)
    x = _sep_filter(x, list(g), axis=2)
    x = _sep_filter(x, list(g), axis=1)
    gx = _sep_filter(x, [1.0, 0.0, -1.0], axis=2)      # x[..., j-1] - x[..., j+1]
    gy = _sep_filter(x, [1.0, 0.0, -1.0], axis=1)      # x[..., i-1, :] - x[..., i+1, :]
    b = x.shape[0]
    return gx.reshape(b, -1), gy.reshape(b, -1)        # (B, ps*ps) each
    # TODO(synk): fuse in-kernel (pltpu.roll lane shifts +-1/+-32 with replicate-boundary
    # masks) to halve kernel input HBM traffic; kept as tiny plain-JAX glue for robustness.


# ----------------------- Pallas kernel: descriptor hot path -----------------------
def _mkd_kernel(gx_ref, gy_ref, kbig_ref, maskp_ref, maskc_ref,
                proj_ref, bias_ref, out_ref):
    gx = gx_ref[...]                                   # (BT, P) f32
    gy = gy_ref[...]
    P = gx.shape[1]

    # divide-free magnitudes (rsqrt -> EUP slot), trig-free orientation features (VPU)
    r2 = gx * gx + gy * gy + EPS
    inv = jax.lax.rsqrt(r2)                            # 1/|g|
    mag = r2 * inv                                     # |g| == mags
    wm = jnp.sqrt(mag + EPS)                           # sqrt-magnitude weighting
    c1 = gx * inv                                      # cos(theta)
    s1 = gy * inv                                      # sin(theta)
    c2 = c1 * c1 - s1 * s1                             # cos(2 theta)
    s2 = (c1 + c1) * s1                                # sin(2 theta)
    c3 = c1 * c2 - s1 * s2                             # cos(3 theta)
    s3 = s1 * c2 + c1 * s2                             # sin(3 theta)

    # 7 accumulated lane-dense MXU dots (bf16 inputs, f32 accumulate) against static
    # slices of the fused pooling weight; no (BT, 7*P) concat buffer is materialized.
    kdt = kbig_ref.dtype
    pooled = jnp.dot(wm.astype(kdt), kbig_ref[0:P, :],
                     preferred_element_type=jnp.float32)
    for i, f in enumerate((wm * c1, wm * c2, wm * c3, wm * s1, wm * s2, wm * s3)):
        ks = kbig_ref[(i + 1) * P:(i + 2) * P, :]      # static slice, zero-cost view
        pooled = pooled + jnp.dot(f.astype(kdt), ks,
                                  preferred_element_type=jnp.float32)

    # per-branch l2 normalization (do_l2=True). Pad lanes of pooled are exactly zero
    # (zero weight columns), so ||polar||^2 = total - ||cart||^2.
    maskp = maskp_ref[...]                             # (1, 256)
    maskc = maskc_ref[...]
    sq = pooled * pooled
    tot = jnp.sum(sq, axis=1, keepdims=True)
    nc2 = jnp.sum(sq * maskc, axis=1, keepdims=True)   # ||cart||^2
    np2 = tot - nc2                                    # ||polar||^2
    inv_p = jax.lax.rsqrt(jnp.maximum(np2, 1e-24))
    inv_c = jax.lax.rsqrt(jnp.maximum(nc2, 1e-24))
    y = pooled * (inv_p * maskp + inv_c * maskc)       # concat(pe, ce), padded lanes stay 0

    # 'pcawt' whitening: final-l2 (exact 1/sqrt(2)) and mean are folded into proj/bias (f32).
    z = jnp.dot(y, proj_ref[...], preferred_element_type=jnp.float32) - bias_ref[...]
    sgn = jnp.where(z < 0.0, -1.0, 1.0)
    zp = sgn * jnp.exp(POWER_T * jnp.log(jnp.abs(z) + 1e-20))
    zn2 = jnp.sum(zp * zp, axis=1, keepdims=True)
    out_ref[...] = zp * jax.lax.rsqrt(jnp.maximum(zn2, 1e-24))


def _round_up(x, m):
    return ((x + m - 1) // m) * m


def mkd_forward(patches, params, batch_tile=256):
    ps = params["ps"]
    P = ps * ps
    rd = params["reduce_dims"]
    b = patches.shape[0]

    gx, gy = gradients_preproc(patches, ps)

    # MXU-sized batch tile with ragged-batch zero padding (no divisibility assert).
    bt = _round_up(min(batch_tile, _round_up(b, 8)), 8)
    # Ensure >= 2 grid steps when possible so both v7x TensorCores get work on the
    # single "parallel" grid axis (harmless elsewhere).
    if _round_up(b, bt) == bt and b > 8:
        bt = _round_up((b + 1) // 2, 8)
    b_pad = _round_up(b, bt)
    if b_pad != b:
        pad = ((0, b_pad - b), (0, 0))
        gx = jnp.pad(gx, pad)
        gy = jnp.pad(gy, pad)

    out = pl.pallas_call(
        _mkd_kernel,
        out_shape=jax.ShapeDtypeStruct((b_pad, rd), jnp.float32),
        grid_spec=pltpu.PrefetchScalarGridSpec(
            num_scalar_prefetch=0,
            grid=(b_pad // bt,),
            in_specs=[
                pl.BlockSpec((bt, P), lambda i: (i, 0)),                   # gx
                pl.BlockSpec((bt, P), lambda i: (i, 0)),                   # gy
                pl.BlockSpec((IN_DIMS * P, PAD_DIMS), lambda i: (0, 0)),   # fused pooling kernel (bf16)
                pl.BlockSpec((1, PAD_DIMS), lambda i: (0, 0)),             # polar-norm mask
                pl.BlockSpec((1, PAD_DIMS), lambda i: (0, 0)),             # cart-norm mask
                pl.BlockSpec((PAD_DIMS, rd), lambda i: (0, 0)),            # padded whitening proj
                pl.BlockSpec((1, rd), lambda i: (0, 0)),                   # folded whitening bias
            ],
            out_specs=pl.BlockSpec((bt, rd), lambda i: (i, 0)),
        ),
        compiler_params=pltpu.CompilerParams(
            dimension_semantics=("parallel",),
            vmem_limit_bytes=48 * 1024 * 1024),
    )(gx, gy, params["k_big"], params["mask_polar"], params["mask_cart"],
      params["wh_proj_pad"], params["wh_bias"])

    return out[:b]


# ----------------------- pure-JAX reference (original MKD math, f32) -----------------------
def _l2n(v):
    n = jnp.sqrt(jnp.sum(v * v, axis=1, keepdims=True))
    return v / jnp.maximum(n, 1e-12)


def mkd_reference(patches, params):
    ps = params["ps"]
    gx, gy = gradients_preproc(patches, ps)
    mags = jnp.sqrt(gx * gx + gy * gy + EPS)
    oris = jnp.arctan2(gy, gx)
    wm = jnp.sqrt(mags + EPS)
    tw = params["theta_w"]
    hi = jax.lax.Precision.HIGHEST

    def pooled(theta, emb_t):
        cols = []
        for i in range(IN_DIMS):
            if i == 0:
                f = jnp.ones_like(theta)
            elif i <= 3:
                f = jnp.cos(float(i) * theta)
            else:
                f = jnp.sin(float(i - 3) * theta)
            cols.append(jnp.dot(float(tw[i]) * f * wm, emb_t, precision=hi))
        return jnp.concatenate(cols, axis=1)

    pe = _l2n(pooled(oris - params["phi"], params["emb_polar_T"]))
    ce = _l2n(pooled(oris, params["emb_cart_T"]))
    y = _l2n(jnp.concatenate([pe, ce], axis=1))
    y = y - params["wh_mean"]
    z = jnp.dot(y, params["wh_proj"], precision=hi)
    sgn = jnp.where(z < 0.0, -1.0, 1.0)
    z = sgn * jnp.exp(POWER_T * jnp.log(jnp.abs(z) + 1e-20))
    return _l2n(z)


if __name__ == "__main__":
    B, PS = 23, 32                                     # (B, 1, 32, 32) patches as in MKD docstring
    params = build_params(ps=PS, reduce_dims=128, seed=0)
    patches = jax.random.uniform(jax.random.PRNGKey(0), (B, 1, PS, PS), jnp.float32)

    out = mkd_forward(patches, params)
    out = jax.block_until_ready(out)
    assert out.shape == (B, 128)
    assert bool(jnp.all(jnp.isfinite(out)))

    # bf16 pooling matmul vs. f32 (HIGHEST) reference: per-element descriptor error is
    # ~1e-4 before whitening; the |z|^0.7 power law near z=0 can amplify it to a few e-3,
    # hence the 5e-3 tolerance (structural errors would be O(0.1-1)).
    ref = jax.block_until_ready(mkd_reference(patches, params))
    np.testing.assert_allclose(np.asarray(out), np.asarray(ref), atol=5e-3, rtol=5e-3)
    print("KERNEL_OK")
</pallas_src>

<mosaic_0001>
module attributes {stable_mosaic.version = 11 : i64} {
  func.func @_mkd_kernel(%arg0: i32, %arg1: memref<16x1024xf32, #tpu.memory_space<vmem>>, %arg2: memref<16x1024xf32, #tpu.memory_space<vmem>>, %arg3: memref<7168x256xbf16, #tpu.memory_space<vmem>>, %arg4: memref<1x256xf32, #tpu.memory_space<vmem>>, %arg5: memref<1x256xf32, #tpu.memory_space<vmem>>, %arg6: memref<256x128xf32, #tpu.memory_space<vmem>>, %arg7: memref<1x128xf32, #tpu.memory_space<vmem>>, %arg8: memref<16x128xf32, #tpu.memory_space<vmem>>) attributes {dimension_semantics = [#tpu.dimension_semantics<parallel>], iteration_bounds = array<i64: 2>, scalar_prefetch = 0 : i64, scratch_operands = 0 : i64, tpu.core_type = #tpu.core_type<tc>, window_params = [{transform_indices = @transform_0, window_bounds = array<i64: 16, 1024>}, {transform_indices = @transform_1, window_bounds = array<i64: 16, 1024>}, {pipeline_mode = #tpu.pipeline_mode<synchronous>, transform_indices = @transform_2, window_bounds = array<i64: 7168, 256>}, {pipeline_mode = #tpu.pipeline_mode<synchronous>, transform_indices = @transform_3, window_bounds = array<i64: 1, 256>}, {pipeline_mode = #tpu.pipeline_mode<synchronous>, transform_indices = @transform_4, window_bounds = array<i64: 1, 256>}, {pipeline_mode = #tpu.pipeline_mode<synchronous>, transform_indices = @transform_5, window_bounds = array<i64: 256, 128>}, {pipeline_mode = #tpu.pipeline_mode<synchronous>, transform_indices = @transform_6, window_bounds = array<i64: 1, 128>}, {transform_indices = @transform_7, window_bounds = array<i64: 16, 128>}]} {
    %c0 = arith.constant 0 : index
    %c0_0 = arith.constant 0 : index
    %0 = vector.load %arg1[%c0, %c0_0] : memref<16x1024xf32, #tpu.memory_space<vmem>>, vector<16x1024xf32>
    %c0_1 = arith.constant 0 : index
    %c0_2 = arith.constant 0 : index
    %1 = vector.load %arg2[%c0_1, %c0_2] : memref<16x1024xf32, #tpu.memory_space<vmem>>, vector<16x1024xf32>
    %2 = arith.mulf %0, %0 : vector<16x1024xf32>
    %3 = arith.mulf %1, %1 : vector<16x1024xf32>
    %4 = arith.addf %2, %3 : vector<16x1024xf32>
    %cst = arith.constant 9.99999993E-9 : f32
    %5 = vector.broadcast %cst : f32 to vector<16x1024xf32>
    %6 = arith.addf %4, %5 : vector<16x1024xf32>
    %7 = math.rsqrt %6 : vector<16x1024xf32>
    %8 = arith.mulf %6, %7 : vector<16x1024xf32>
    %cst_3 = arith.constant 9.99999993E-9 : f32
    %9 = vector.broadcast %cst_3 : f32 to vector<16x1024xf32>
    %10 = arith.addf %8, %9 : vector<16x1024xf32>
    %11 = math.sqrt %10 : vector<16x1024xf32>
    %12 = arith.mulf %0, %7 : vector<16x1024xf32>
    %13 = arith.mulf %1, %7 : vector<16x1024xf32>
    %14 = arith.mulf %12, %12 : vector<16x1024xf32>
    %15 = arith.mulf %13, %13 : vector<16x1024xf32>
    %16 = arith.subf %14, %15 : vector<16x1024xf32>
    %17 = arith.addf %12, %12 : vector<16x1024xf32>
    %18 = arith.mulf %17, %13 : vector<16x1024xf32>
    %19 = arith.mulf %12, %16 : vector<16x1024xf32>
    %20 = arith.mulf %13, %18 : vector<16x1024xf32>
    %21 = arith.subf %19, %20 : vector<16x1024xf32>
    %22 = arith.mulf %13, %16 : vector<16x1024xf32>
    %23 = arith.mulf %12, %18 : vector<16x1024xf32>
    %24 = arith.addf %22, %23 : vector<16x1024xf32>
    %25 = arith.truncf %11 : vector<16x1024xf32> to vector<16x1024xbf16>
    %c0_4 = arith.constant 0 : index
    %c0_5 = arith.constant 0 : index
    %26 = vector.load %arg3[%c0_4, %c0_5] : memref<7168x256xbf16, #tpu.memory_space<vmem>>, vector<1024x256xbf16>
    %cst_6 = arith.constant dense<0.000000e+00> : vector<16x256xf32>
    %27 = tpu.matmul %25, %26, %cst_6 {dimension_numbers = #tpu.dot_dimension_numbers<[1], [0], [0], [1], [0, 0, 1, 1], [], []>} : vector<16x1024xbf16>, vector<1024x256xbf16>, vector<16x256xf32> -> vector<16x256xf32>
    %28 = arith.mulf %11, %12 : vector<16x1024xf32>
    %29 = arith.mulf %11, %16 : vector<16x1024xf32>
    %30 = arith.mulf %11, %21 : vector<16x1024xf32>
    %31 = arith.mulf %11, %13 : vector<16x1024xf32>
    %32 = arith.mulf %11, %18 : vector<16x1024xf32>
    %33 = arith.mulf %11, %24 : vector<16x1024xf32>
    %c1024 = arith.constant 1024 : index
    %c0_7 = arith.constant 0 : index
    %34 = vector.load %arg3[%c1024, %c0_7] : memref<7168x256xbf16, #tpu.memory_space<vmem>>, vector<1024x256xbf16>
    %35 = arith.truncf %28 : vector<16x1024xf32> to vector<16x1024xbf16>
    %cst_8 = arith.constant dense<0.000000e+00> : vector<16x256xf32>
    %36 = tpu.matmul %35, %34, %cst_8 {dimension_numbers = #tpu.dot_dimension_numbers<[1], [0], [0], [1], [0, 0, 1, 1], [], []>} : vector<16x1024xbf16>, vector<1024x256xbf16>, vector<16x256xf32> -> vector<16x256xf32>
    %37 = arith.addf %27, %36 : vector<16x256xf32>
    %c2048 = arith.constant 2048 : index
    %c0_9 = arith.constant 0 : index
    %38 = vector.load %arg3[%c2048, %c0_9] : memref<7168x256xbf16, #tpu.memory_space<vmem>>, vector<1024x256xbf16>
    %39 = arith.truncf %29 : vector<16x1024xf32> to vector<16x1024xbf16>
    %cst_10 = arith.constant dense<0.000000e+00> : vector<16x256xf32>
    %40 = tpu.matmul %39, %38, %cst_10 {dimension_numbers = #tpu.dot_dimension_numbers<[1], [0], [0], [1], [0, 0, 1, 1], [], []>} : vector<16x1024xbf16>, vector<1024x256xbf16>, vector<16x256xf32> -> vector<16x256xf32>
    %41 = arith.addf %37, %40 : vector<16x256xf32>
    %c3072 = arith.constant 3072 : index
    %c0_11 = arith.constant 0 : index
    %42 = vector.load %arg3[%c3072, %c0_11] : memref<7168x256xbf16, #tpu.memory_space<vmem>>, vector<1024x256xbf16>
    %43 = arith.truncf %30 : vector<16x1024xf32> to vector<16x1024xbf16>
    %cst_12 = arith.constant dense<0.000000e+00> : vector<16x256xf32>
    %44 = tpu.matmul %43, %42, %cst_12 {dimension_numbers = #tpu.dot_dimension_numbers<[1], [0], [0], [1], [0, 0, 1, 1], [], []>} : vector<16x1024xbf16>, vector<1024x256xbf16>, vector<16x256xf32> -> vector<16x256xf32>
    %45 = arith.addf %41, %44 : vector<16x256xf32>
    %c4096 = arith.constant 4096 : index
    %c0_13 = arith.constant 0 : index
    %46 = vector.load %arg3[%c4096, %c0_13] : memref<7168x256xbf16, #tpu.memory_space<vmem>>, vector<1024x256xbf16>
    %47 = arith.truncf %31 : vector<16x1024xf32> to vector<16x1024xbf16>
    %cst_14 = arith.constant dense<0.000000e+00> : vector<16x256xf32>
    %48 = tpu.matmul %47, %46, %cst_14 {dimension_numbers = #tpu.dot_dimension_numbers<[1], [0], [0], [1], [0, 0, 1, 1], [], []>} : vector<16x1024xbf16>, vector<1024x256xbf16>, vector<16x256xf32> -> vector<16x256xf32>
    %49 = arith.addf %45, %48 : vector<16x256xf32>
    %c5120 = arith.constant 5120 : index
    %c0_15 = arith.constant 0 : index
    %50 = vector.load %arg3[%c5120, %c0_15] : memref<7168x256xbf16, #tpu.memory_space<vmem>>, vector<1024x256xbf16>
    %51 = arith.truncf %32 : vector<16x1024xf32> to vector<16x1024xbf16>
    %cst_16 = arith.constant dense<0.000000e+00> : vector<16x256xf32>
    %52 = tpu.matmul %51, %50, %cst_16 {dimension_numbers = #tpu.dot_dimension_numbers<[1], [0], [0], [1], [0, 0, 1, 1], [], []>} : vector<16x1024xbf16>, vector<1024x256xbf16>, vector<16x256xf32> -> vector<16x256xf32>
    %53 = arith.addf %49, %52 : vector<16x256xf32>
    %c6144 = arith.constant 6144 : index
    %c0_17 = arith.constant 0 : index
    %54 = vector.load %arg3[%c6144, %c0_17] : memref<7168x256xbf16, #tpu.memory_space<vmem>>, vector<1024x256xbf16>
    %55 = arith.truncf %33 : vector<16x1024xf32> to vector<16x1024xbf16>
    %cst_18 = arith.constant dense<0.000000e+00> : vector<16x256xf32>
    %56 = tpu.matmul %55, %54, %cst_18 {dimension_numbers = #tpu.dot_dimension_numbers<[1], [0], [0], [1], [0, 0, 1, 1], [], []>} : vector<16x1024xbf16>, vector<1024x256xbf16>, vector<16x256xf32> -> vector<16x256xf32>
    %57 = arith.addf %53, %56 : vector<16x256xf32>
    %c0_19 = arith.constant 0 : index
    %c0_20 = arith.constant 0 : index
    %58 = vector.load %arg4[%c0_19, %c0_20] : memref<1x256xf32, #tpu.memory_space<vmem>>, vector<1x256xf32>
    %c0_21 = arith.constant 0 : index
    %c0_22 = arith.constant 0 : index
    %59 = vector.load %arg5[%c0_21, %c0_22] : memref<1x256xf32, #tpu.memory_space<vmem>>, vector<1x256xf32>
    %60 = arith.mulf %57, %57 : vector<16x256xf32>
    %cst_23 = arith.constant dense<0.000000e+00> : vector<16xf32>
    %61 = vector.multi_reduction <add>, %60, %cst_23 [1] : vector<16x256xf32> to vector<16xf32>
    %62 = vector.shape_cast %61 : vector<16xf32> to vector<16x1xf32>
    %63 = vector.broadcast %59 : vector<1x256xf32> to vector<16x256xf32>
    %64 = arith.mulf %60, %63 : vector<16x256xf32>
    %cst_24 = arith.constant dense<0.000000e+00> : vector<16xf32>
    %65 = vector.multi_reduction <add>, %64, %cst_24 [1] : vector<16x256xf32> to vector<16xf32>
    %66 = vector.shape_cast %65 : vector<16xf32> to vector<16x1xf32>
    %67 = arith.subf %62, %66 : vector<16x1xf32>
    %cst_25 = arith.constant 1.000000e-24 : f32
    %68 = vector.broadcast %cst_25 : f32 to vector<16x1xf32>
    %69 = arith.maximumf %67, %68 : vector<16x1xf32>
    %70 = math.rsqrt %69 : vector<16x1xf32>
    %cst_26 = arith.constant 1.000000e-24 : f32
    %71 = vector.broadcast %cst_26 : f32 to vector<16x1xf32>
    %72 = arith.maximumf %66, %71 : vector<16x1xf32>
    %73 = math.rsqrt %72 : vector<16x1xf32>
    %74 = vector.broadcast %70 : vector<16x1xf32> to vector<16x256xf32>
    %75 = vector.broadcast %58 : vector<1x256xf32> to vector<16x256xf32>
    %76 = arith.mulf %74, %75 : vector<16x256xf32>
    %77 = vector.broadcast %73 : vector<16x1xf32> to vector<16x256xf32>
    %78 = vector.broadcast %59 : vector<1x256xf32> to vector<16x256xf32>
    %79 = arith.mulf %77, %78 : vector<16x256xf32>
    %80 = arith.addf %76, %79 : vector<16x256xf32>
    %81 = arith.mulf %57, %80 : vector<16x256xf32>
    %c0_27 = arith.constant 0 : index
    %c0_28 = arith.constant 0 : index
    %82 = vector.load %arg6[%c0_27, %c0_28] : memref<256x128xf32, #tpu.memory_space<vmem>>, vector<256x128xf32>
    %cst_29 = arith.constant dense<0.000000e+00> : vector<16x128xf32>
    %83 = tpu.matmul %81, %82, %cst_29 {dimension_numbers = #tpu.dot_dimension_numbers<[1], [0], [0], [1], [0, 0, 1, 1], [], []>} : vector<16x256xf32>, vector<256x128xf32>, vector<16x128xf32> -> vector<16x128xf32>
    %c0_30 = arith.constant 0 : index
    %c0_31 = arith.constant 0 : index
    %84 = vector.load %arg7[%c0_30, %c0_31] : memref<1x128xf32, #tpu.memory_space<vmem>>, vector<1x128xf32>
    %85 = vector.broadcast %84 : vector<1x128xf32> to vector<16x128xf32>
    %86 = arith.subf %83, %85 : vector<16x128xf32>
    %cst_32 = arith.constant 0.000000e+00 : f32
    %87 = vector.broadcast %cst_32 : f32 to vector<16x128xf32>
    %88 = arith.cmpf olt, %86, %87 : vector<16x128xf32>
    %cst_33 = arith.constant -1.000000e+00 : f32
    %cst_34 = arith.constant 1.000000e+00 : f32
    %89 = vector.broadcast %cst_33 : f32 to vector<16x128xf32>
    %90 = vector.broadcast %cst_34 : f32 to vector<16x128xf32>
    %91 = arith.select %88, %89, %90 : vector<16x128xi1>, vector<16x128xf32>
    %92 = math.absf %86 : vector<16x128xf32>
    %cst_35 = arith.constant 9.99999968E-21 : f32
    %93 = vector.broadcast %cst_35 : f32 to vector<16x128xf32>
    %94 = arith.addf %92, %93 : vector<16x128xf32>
    %95 = math.log %94 : vector<16x128xf32>
    %cst_36 = arith.constant 0.699999988 : f32
    %96 = vector.broadcast %cst_36 : f32 to vector<16x128xf32>
    %97 = arith.mulf %96, %95 : vector<16x128xf32>
    %98 = math.exp %97 : vector<16x128xf32>
    %99 = arith.mulf %91, %98 : vector<16x128xf32>
    %100 = arith.mulf %99, %99 : vector<16x128xf32>
    %cst_37 = arith.constant dense<0.000000e+00> : vector<16xf32>
    %101 = vector.multi_reduction <add>, %100, %cst_37 [1] : vector<16x128xf32> to vector<16xf32>
    %102 = vector.shape_cast %101 : vector<16xf32> to vector<16x1xf32>
    %cst_38 = arith.constant 1.000000e-24 : f32
    %103 = vector.broadcast %cst_38 : f32 to vector<16x1xf32>
    %104 = arith.maximumf %102, %103 : vector<16x1xf32>
    %105 = math.rsqrt %104 : vector<16x1xf32>
    %106 = vector.broadcast %105 : vector<16x1xf32> to vector<16x128xf32>
    %107 = arith.mulf %99, %106 : vector<16x128xf32>
    %c0_39 = arith.constant 0 : index
    %c0_40 = arith.constant 0 : index
    %108 = vector.load %arg8[%c0_39, %c0_40] : memref<16x128xf32, #tpu.memory_space<vmem>>, vector<16x128xf32>
    tpu.vector_store %arg8[%c0_39, %c0_40], %107 {strides = array<i32>} : memref<16x128xf32, #tpu.memory_space<vmem>>, vector<16x128xf32>,
    return
  }
  func.func @transform_0(%arg0: i32) -> (i32, i32) {
    %c0_i32 = arith.constant 0 : i32
    %c0_i32_0 = arith.constant 0 : i32
    return %arg0, %c0_i32 : i32, i32
  }
  func.func @transform_1(%arg0: i32) -> (i32, i32) {
    %c0_i32 = arith.constant 0 : i32
    %c0_i32_0 = arith.constant 0 : i32
    return %arg0, %c0_i32 : i32, i32
  }
  func.func @transform_2(%arg0: i32) -> (i32, i32) {
    %c0_i32 = arith.constant 0 : i32
    %c0_i32_0 = arith.constant 0 : i32
    %c0_i32_1 = arith.constant 0 : i32
    return %c0_i32, %c0_i32_0 : i32, i32
  }
  func.func @transform_3(%arg0: i32) -> (i32, i32) {
    %c0_i32 = arith.constant 0 : i32
    %c0_i32_0 = arith.constant 0 : i32
    %c0_i32_1 = arith.constant 0 : i32
    return %c0_i32, %c0_i32_0 : i32, i32
  }
  func.func @transform_4(%arg0: i32) -> (i32, i32) {
    %c0_i32 = arith.constant 0 : i32
    %c0_i32_0 = arith.constant 0 : i32
    %c0_i32_1 = arith.constant 0 : i32
    return %c0_i32, %c0_i32_0 : i32, i32
  }
  func.func @transform_5(%arg0: i32) -> (i32, i32) {
    %c0_i32 = arith.constant 0 : i32
    %c0_i32_0 = arith.constant 0 : i32
    %c0_i32_1 = arith.constant 0 : i32
    return %c0_i32, %c0_i32_0 : i32, i32
  }
  func.func @transform_6(%arg0: i32) -> (i32, i32) {
    %c0_i32 = arith.constant 0 : i32
    %c0_i32_0 = arith.constant 0 : i32
    %c0_i32_1 = arith.constant 0 : i32
    return %c0_i32, %c0_i32_0 : i32, i32
  }
  func.func @transform_7(%arg0: i32) -> (i32, i32) {
    %c0_i32 = arith.constant 0 : i32
    %c0_i32_0 = arith.constant 0 : i32
    return %arg0, %c0_i32 : i32, i32
  }
}

</mosaic_0001>

<llo_original>
// kernel: tpu_custom_call.1
$region0: #{tpu_custom_call.1}
  #allocation0 [shape = 'u32[]', space=smem, size = 0x4, offset = 0x4, fixed_abs, tag = 'smem constant byte address 0x4 - core index']
  #allocation1 [shape = 'u32[72,128]{1,0:T(1,128)}', space=vmem, size = 0x9000, scoped, tag = 'internal scratch']
  %s0 = inlined_call_operand.hbm [shape: f32[32,1024], index: 0, kind: input, shape index: {}]
  %s1 = inlined_call_operand.hbm [shape: f32[32,1024], index: 1, kind: input, shape index: {}]
  %s2 = inlined_call_operand.hbm [shape: bf16[7168,256], index: 2, kind: input, shape index: {}]
  %s3 = inlined_call_operand.hbm [shape: f32[1,256], index: 3, kind: input, shape index: {}]
  %s4 = inlined_call_operand.hbm [shape: f32[1,256], index: 4, kind: input, shape index: {}]
  %s5 = inlined_call_operand.hbm [shape: f32[256,128], index: 5, kind: input, shape index: {}]
  %s6 = inlined_call_operand.hbm [shape: f32[1,128], index: 6, kind: input, shape index: {}]
  %s7 = inlined_call_operand.hbm [shape: f32[32,128], index: 7, kind: output, shape index: {}]
  %s8 = sld [smem:[#allocation0]]
  $region89: #{tpu_custom_call.1} parent=0
    _
  %s10 = ssub.s32 1, %s8
  %s11 = scalar_select 0, %s10, %s8
  $region1: #{tpu_custom_call.1} parent=0
    #allocation2 [shape = 'u8[131072]{0}', space=vmem, size = 0x20000, scoped, tag = 'input window, operand 0']
    #allocation3 [shape = 's32[2]{0}', space=sflag, size = 0x8, scoped, tag = 'scoped memory for tpu_custom_call.1']
    #allocation4 [shape = 's32[2]{0}', space=sflag, size = 0x8, scoped, tag = 'scoped memory for tpu_custom_call.1']
    #allocation5 [shape = 'u8[131072]{0}', space=vmem, size = 0x20000, scoped, tag = 'input window, operand 1']
    #allocation6 [shape = 's32[2]{0}', space=sflag, size = 0x8, scoped, tag = 'scoped memory for tpu_custom_call.1']
    #allocation7 [shape = 'u8[3670016]{0}', space=vmem, size = 0x380000, scoped, tag = 'input window, operand 2, single buffered']
    #allocation8 [shape = 'u8[1024]{0}', space=vmem, size = 0x400, scoped, tag = 'input window, operand 3, single buffered']
    #allocation9 [shape = 's32[1]{0}', space=sflag, size = 0x4, scoped, tag = 'scoped memory for tpu_custom_call.1']
    #allocation10 [shape = 'u8[1024]{0}', space=vmem, size = 0x400, scoped, tag = 'input window, operand 4, single buffered']
    #allocation11 [shape = 'u8[131072]{0}', space=vmem, size = 0x20000, scoped, tag = 'input window, operand 5, single buffered']
    #allocation12 [shape = 's32[1]{0}', space=sflag, size = 0x4, scoped, tag = 'scoped memory for tpu_custom_call.1']
    #allocation13 [shape = 'u8[512]{0}', space=vmem, size = 0x400, scoped, tag = 'input window, operand 6, single buffered']
    #allocation14 [shape = 'u8[16384]{0}', space=vmem, size = 0x4000, scoped, tag = 'output window, operand 0']
    %12 = vsyncpa [#allocation3], 0
    %s13 = scalar_lea.sflag [#allocation3], 1
    %14 = vsyncpa %s13, 0
    %15 = vsyncpa [#allocation6], 0
    %s16 = scalar_lea.sflag [#allocation6], 1
    %17 = vsyncpa %s16, 0
    %18 = vsyncpa [#allocation9], 0
    %19 = vsyncpa [#allocation12], 0
    %20 = vsyncpa [#allocation4], 0
    %s21 = scalar_lea.sflag [#allocation4], 1
    %22 = vsyncpa %s21, 0
    loop: start=0, step=1, limit=4
    $region2: #{tpu_custom_call.1} parent=1 // loop_pre_header
      _
    $region3: #{tpu_custom_call.1} parent=1 // loop_header
      %s24 = sphi 0, %s28
      %p25 = scmp.ge.s32.totalorder %s24, 4
      %s34 = sphi 0, %s36
      %s37 = sphi 0, %s34
      %s38 = sphi 0, %s37
      %s54 = sphi 0, %s38
      %s60 = sphi 0, %s62
      %s63 = sphi 0, %s60
      %s64 = sphi 0, %s63
      %s80 = sphi 0, %s64
      %s84 = sphi 0, %s84
      %s86 = sphi 0, %s84
      %s87 = sphi 0, %s86
      %s101 = sphi 0, %s87
      %s105 = sphi 0, %s105
      %s107 = sphi 0, %s105
      %s108 = sphi 0, %s107
      %s122 = sphi 0, %s108
      %s126 = sphi 0, %s126
      %s128 = sphi 0, %s126
      %s129 = sphi 0, %s128
      %s143 = sphi 0, %s129
      %s147 = sphi 0, %s147
      %s149 = sphi 0, %s147
      %s150 = sphi 0, %s149
      %s164 = sphi 0, %s150
      %s168 = sphi 0, %s168
      %s170 = sphi 0, %s168
      %s171 = sphi 0, %s170
      %s185 = sphi 0, %s171
      %s191 = sphi 0, %s193
      %s194 = sphi 0, %s191
      %s195 = sphi 0, %s194
      %s211 = sphi 0, %s195
    $region4: #{tpu_custom_call.1} parent=1 // loop_header_branch
      %27 = sbr.rel (%p25) target = $region8
    $region5: #{tpu_custom_call.1} parent=1 // loop_body
      %s29 = ssub.s32 %s24, 1
      %s30 = ssub.s32 %s24, 2
      %s31 = sadd.s32 %s24, 1
      %s32 = ssub.s32 %s24, %s31
      %p33 = scmp.eq.s32.totalorder %s32, 0
      %s35 = sadd.s32 %s34, 1
      %s36 = scalar_select %p33, %s34, %s35
      %p39 = pneg %p33
      %p40 = scmp.eq.s32.totalorder %s24, 1
      %p41 = por %p39, %p40
      %p42 = scmp.ne.s32.totalorder %s34, %s37
      %p43 = scmp.eq.s32.totalorder %s24, 0
      %p44 = por %p42, %p43
      %p45 = scmp.ne.s32.totalorder %s34, %s37
      %p46 = scmp.eq.s32.totalorder %s29, 1
      %p47 = por %p45, %p46
      %p48 = scmp.ne.s32.totalorder %s37, %s38
      %p49 = scmp.eq.s32.totalorder %s29, 0
      %p50 = por %p48, %p49
      %p51 = scmp.ne.s32.totalorder %s37, %s38
      %p52 = scmp.eq.s32.totalorder %s30, 1
      %p53 = por %p51, %p52
      %p55 = scmp.ne.s32.totalorder %s38, %s54
      %p56 = scmp.eq.s32.totalorder %s30, 0
      %p57 = por %p55, %p56
      %s58 = ssub.s32 %s24, %s31
      %p59 = scmp.eq.s32.totalorder %s58, 0
      %s61 = sadd.s32 %s60, 1
      %s62 = scalar_select %p59, %s60, %s61
      %p65 = pneg %p59
      %p66 = scmp.eq.s32.totalorder %s24, 1
      %p67 = por %p65, %p66
      %p68 = scmp.ne.s32.totalorder %s60, %s63
      %p69 = scmp.eq.s32.totalorder %s24, 0
      %p70 = por %p68, %p69
      %p71 = scmp.ne.s32.totalorder %s60, %s63
      %p72 = scmp.eq.s32.totalorder %s29, 1
      %p73 = por %p71, %p72
      %p74 = scmp.ne.s32.totalorder %s63, %s64
      %p75 = scmp.eq.s32.totalorder %s29, 0
      %p76 = por %p74, %p75
      %p77 = scmp.ne.s32.totalorder %s63, %s64
      %p78 = scmp.eq.s32.totalorder %s30, 1
      %p79 = por %p77, %p78
      %p81 = scmp.ne.s32.totalorder %s64, %s80
      %p82 = scmp.eq.s32.totalorder %s30, 0
      %p83 = por %p81, %p82
      %s85 = sadd.s32 %s84, 1
      %p88 = scmp.eq.s32.totalorder %s24, 1
      %p89 = scmp.ne.s32.totalorder %s84, %s86
      %p90 = scmp.eq.s32.totalorder %s24, 0
      %p91 = por %p89, %p90
      %p92 = scmp.ne.s32.totalorder %s84, %s86
      %p93 = scmp.eq.s32.totalorder %s29, 1
      %p94 = por %p92, %p93
      %p95 = scmp.ne.s32.totalorder %s86, %s87
      %p96 = scmp.eq.s32.totalorder %s29, 0
      %p97 = por %p95, %p96
      %p98 = scmp.ne.s32.totalorder %s86, %s87
      %p99 = scmp.eq.s32.totalorder %s30, 1
      %p100 = por %p98, %p99
      %p102 = scmp.ne.s32.totalorder %s87, %s101
      %p103 = scmp.eq.s32.totalorder %s30, 0
      %p104 = por %p102, %p103
      %s106 = sadd.s32 %s105, 1
      %p109 = scmp.eq.s32.totalorder %s24, 1
      %p110 = scmp.ne.s32.totalorder %s105, %s107
      %p111 = scmp.eq.s32.totalorder %s24, 0
      %p112 = por %p110, %p111
      %p113 = scmp.ne.s32.totalorder %s105, %s107
      %p114 = scmp.eq.s32.totalorder %s29, 1
      %p115 = por %p113, %p114
      %p116 = scmp.ne.s32.totalorder %s107, %s108
      %p117 = scmp.eq.s32.totalorder %s29, 0
      %p118 = por %p116, %p117
      %p119 = scmp.ne.s32.totalorder %s107, %s108
      %p120 = scmp.eq.s32.totalorder %s30, 1
      %p121 = por %p119, %p120
      %p123 = scmp.ne.s32.totalorder %s108, %s122
      %p124 = scmp.eq.s32.totalorder %s30, 0
      %p125 = por %p123, %p124
      %s127 = sadd.s32 %s126, 1
      %p130 = scmp.eq.s32.totalorder %s24, 1
      %p131 = scmp.ne.s32.totalorder %s126, %s128
      %p132 = scmp.eq.s32.totalorder %s24, 0
      %p133 = por %p131, %p132
      %p134 = scmp.ne.s32.totalorder %s126, %s128
      %p135 = scmp.eq.s32.totalorder %s29, 1
      %p136 = por %p134, %p135
      %p137 = scmp.ne.s32.totalorder %s128, %s129
      %p138 = scmp.eq.s32.totalorder %s29, 0
      %p139 = por %p137, %p138
      %p140 = scmp.ne.s32.totalorder %s128, %s129
      %p141 = scmp.eq.s32.totalorder %s30, 1
      %p142 = por %p140, %p141
      %p144 = scmp.ne.s32.totalorder %s129, %s143
      %p145 = scmp.eq.s32.totalorder %s30, 0
      %p146 = por %p144, %p145
      %s148 = sadd.s32 %s147, 1
      %p151 = scmp.eq.s32.totalorder %s24, 1
      %p152 = scmp.ne.s32.totalorder %s147, %s149
      %p153 = scmp.eq.s32.totalorder %s24, 0
      %p154 = por %p152, %p153
      %p155 = scmp.ne.s32.totalorder %s147, %s149
      %p156 = scmp.eq.s32.totalorder %s29, 1
      %p157 = por %p155, %p156
      %p158 = scmp.ne.s32.totalorder %s149, %s150
      %p159 = scmp.eq.s32.totalorder %s29, 0
      %p160 = por %p158, %p159
      %p161 = scmp.ne.s32.totalorder %s149, %s150
      %p162 = scmp.eq.s32.totalorder %s30, 1
      %p163 = por %p161, %p162
      %p165 = scmp.ne.s32.totalorder %s150, %s164
      %p166 = scmp.eq.s32.totalorder %s30, 0
      %p167 = por %p165, %p166
      %s169 = sadd.s32 %s168, 1
      %p172 = scmp.eq.s32.totalorder %s24, 1
      %p173 = scmp.ne.s32.totalorder %s168, %s170
      %p174 = scmp.eq.s32.totalorder %s24, 0
      %p175 = por %p173, %p174
      %p176 = scmp.ne.s32.totalorder %s168, %s170
      %p177 = scmp.eq.s32.totalorder %s29, 1
      %p178 = por %p176, %p177
      %p179 = scmp.ne.s32.totalorder %s170, %s171
      %p180 = scmp.eq.s32.totalorder %s29, 0
      %p181 = por %p179, %p180
      %p182 = scmp.ne.s32.totalorder %s170, %s171
      %p183 = scmp.eq.s32.totalorder %s30, 1
      %p184 = por %p182, %p183
      %p186 = scmp.ne.s32.totalorder %s171, %s185
      %p187 = scmp.eq.s32.totalorder %s30, 0
      %p188 = por %p186, %p187
      %s189 = ssub.s32 %s24, %s31
      %p190 = scmp.eq.s32.totalorder %s189, 0
      %s192 = sadd.s32 %s191, 1
      %s193 = scalar_select %p190, %s191, %s192
      %p196 = pneg %p190
      %p197 = scmp.eq.s32.totalorder %s24, 1
      %p198 = por %p196, %p197
      %p199 = scmp.ne.s32.totalorder %s191, %s194
      %p200 = scmp.eq.s32.totalorder %s24, 0
      %p201 = por %p199, %p200
      %p202 = scmp.ne.s32.totalorder %s191, %s194
      %p203 = scmp.eq.s32.totalorder %s29, 1
      %p204 = por %p202, %p203
      %p205 = scmp.ne.s32.totalorder %s194, %s195
      %p206 = scmp.eq.s32.totalorder %s29, 0
      %p207 = por %p205, %p206
      %p208 = scmp.ne.s32.totalorder %s194, %s195
      %p209 = scmp.eq.s32.totalorder %s30, 1
      %p210 = por %p208, %p209
      %p212 = scmp.ne.s32.totalorder %s195, %s211
      %p213 = scmp.eq.s32.totalorder %s30, 0
      %p214 = por %p212, %p213
      %p215 = scmp.le.s32.totalorder 1, %s24
      %p216 = scmp.lt.s32.totalorder %s24, 3
      %p217 = pnand %p215, %p216
      %p218 = pneg %p217
      // Predicated region
      $region9: #{tpu_custom_call.1} parent=5 // pred_check
        _
      $region10: #{tpu_custom_call.1} parent=5 // pred_check_branch
        %220 = sbr.rel (%p217) target = $region12
      $region11: #{tpu_custom_call.1} parent=5 // pred_region
        %s221 = ssub.s32 %s24, 1
        // Predicated region
        $region13: #{tpu_custom_call.1} parent=11 // pred_check
          %p222 = pneg %p97
        $region14: #{tpu_custom_call.1} parent=11 // pred_check_branch
          %224 = sbr.rel (%p222) target = $region16
        $region15: #{tpu_custom_call.1} parent=11 // pred_region
          %226 = vsyncadd [#allocation6], 0
          %s227 = sshll.u32 %s2, 4
          %s228 = int_to_ptr.hbm [resolvable:$true] %s227
          %s229 = sshll.u32 [#allocation7], 4
          %s230 = int_to_ptr.vmem [resolvable:$true] %s229
          %235 = dma.hbm_to_vmem [thread:$0]  %s228, 114688, %s230, [#allocation6], 128, 128, 8
        $region16: #{tpu_custom_call.1} parent=11 // pred_fallthru
          _
        // Predicated region
        $region17: #{tpu_custom_call.1} parent=11 // pred_check
          %p236 = pneg %p118
        $region18: #{tpu_custom_call.1} parent=11 // pred_check_branch
          %238 = sbr.rel (%p236) target = $region20
        $region19: #{tpu_custom_call.1} parent=11 // pred_region
          %240 = vsyncadd [#allocation9], 0
          %s242 = sshll.u32 %s3, 4
          %s243 = int_to_ptr.hbm [resolvable:$true] %s242
          %s244 = sshll.u32 [#allocation8], 4
          %s245 = int_to_ptr.vmem [resolvable:$true] %s244
          %247 = dma.hbm_to_vmem [thread:$0]  %s243, 32, %s245, [#allocation9]
        $region20: #{tpu_custom_call.1} parent=11 // pred_fallthru
          _
        // Predicated region
        $region21: #{tpu_custom_call.1} parent=11 // pred_check
          %p248 = pneg %p139
        $region22: #{tpu_custom_call.1} parent=11 // pred_check_branch
          %250 = sbr.rel (%p248) target = $region24
        $region23: #{tpu_custom_call.1} parent=11 // pred_region
          %252 = vsyncadd [#allocation9], 0
          %s254 = sshll.u32 %s4, 4
          %s255 = int_to_ptr.hbm [resolvable:$true] %s254
          %s256 = sshll.u32 [#allocation10], 4
          %s257 = int_to_ptr.vmem [resolvable:$true] %s256
          %259 = dma.hbm_to_vmem [thread:$0]  %s255, 32, %s257, [#allocation9]
        $region24: #{tpu_custom_call.1} parent=11 // pred_fallthru
          _
        // Predicated region
        $region25: #{tpu_custom_call.1} parent=11 // pred_check
          %p260 = pneg %p160
        $region26: #{tpu_custom_call.1} parent=11 // pred_check_branch
          %262 = sbr.rel (%p260) target = $region28
        $region27: #{tpu_custom_call.1} parent=11 // pred_region
          %264 = vsyncadd [#allocation12], 0
          %s265 = sshll.u32 %s5, 4
          %s266 = int_to_ptr.hbm [resolvable:$true] %s265
          %s267 = sshll.u32 [#allocation11], 4
          %s268 = int_to_ptr.vmem [resolvable:$true] %s267
          %273 = dma.hbm_to_vmem [thread:$0]  %s266, 4096, %s268, [#allocation12], 128, 128, 8
        $region28: #{tpu_custom_call.1} parent=11 // pred_fallthru
          _
        // Predicated region
        $region29: #{tpu_custom_call.1} parent=11 // pred_check
          %p274 = pneg %p181
        $region30: #{tpu_custom_call.1} parent=11 // pred_check_branch
          %276 = sbr.rel (%p274) target = $region32
        $region31: #{tpu_custom_call.1} parent=11 // pred_region
          %278 = vsyncadd [#allocation12], 0
          %s280 = sshll.u32 %s6, 4
          %s281 = int_to_ptr.hbm [resolvable:$true] %s280
          %s282 = sshll.u32 [#allocation13], 4
          %s283 = int_to_ptr.vmem [resolvable:$true] %s282
          %285 = dma.hbm_to_vmem [thread:$0]  %s281, 16, %s283, [#allocation12]
        $region32: #{tpu_custom_call.1} parent=11 // pred_fallthru
          _
      $region12: #{tpu_custom_call.1} parent=5 // pred_fallthru
        _
      %p286 = scmp.lt.s32.totalorder %s24, 2
      // Predicated region
      $region33: #{tpu_custom_call.1} parent=5 // pred_check
        %p287 = pneg %p286
      $region34: #{tpu_custom_call.1} parent=5 // pred_check_branch
        %289 = sbr.rel (%p287) target = $region36
      $region35: #{tpu_custom_call.1} parent=5 // pred_region
        // Predicated region
        $region37: #{tpu_custom_call.1} parent=35 // pred_check
          %p290 = pneg %p44
        $region38: #{tpu_custom_call.1} parent=35 // pred_check_branch
          %292 = sbr.rel (%p290) target = $region40
        $region39: #{tpu_custom_call.1} parent=35 // pred_region
          %s293 = sand.u32 %s34, 1
          %s294 = scalar_lea.sflag [#allocation3], %s293
          %s295 = sand.u32 %s34, 1
          %s296 = smul.addr %s295, 128
          %s297 = scalar_lea.vmem [#allocation2], %s296
          %s298 = smul.u32 2, %s24
          %300 = vsyncadd %s294, 0
          %s301 = smul.addr %s298, 8
          %s302 = smul.addr %s301, 8
          %s303 = scalar_lea.hbm %s0, %s302
          %s304 = sshll.u32 %s303, 4
          %s305 = int_to_ptr.hbm [resolvable:$true] %s304
          %s306 = sshll.u32 %s297, 4
          %s307 = int_to_ptr.vmem [resolvable:$true] %s306
          %312 = dma.hbm_to_vmem [thread:$0]  %s305, 2048, %s307, %s294, 1024, 1024, 64
        $region40: #{tpu_custom_call.1} parent=35 // pred_fallthru
          _
        // Predicated region
        $region41: #{tpu_custom_call.1} parent=35 // pred_check
          %p313 = pneg %p70
        $region42: #{tpu_custom_call.1} parent=35 // pred_check_branch
          %315 = sbr.rel (%p313) target = $region44
        $region43: #{tpu_custom_call.1} parent=35 // pred_region
          %s316 = sand.u32 %s24, 1
          %s317 = scalar_lea.sflag [#allocation6], %s316
          %s318 = sand.u32 %s60, 1
          %s319 = smul.addr %s318, 128
          %s320 = scalar_lea.vmem [#allocation5], %s319
          %s321 = smul.u32 2, %s24
          %323 = vsyncadd %s317, 0
          %s324 = smul.addr %s321, 8
          %s325 = smul.addr %s324, 8
          %s326 = scalar_lea.hbm %s1, %s325
          %s327 = sshll.u32 %s326, 4
          %s328 = int_to_ptr.hbm [resolvable:$true] %s327
          %s329 = sshll.u32 %s320, 4
          %s330 = int_to_ptr.vmem [resolvable:$true] %s329
          %335 = dma.hbm_to_vmem [thread:$0]  %s328, 2048, %s330, %s317, 1024, 1024, 64
        $region44: #{tpu_custom_call.1} parent=35 // pred_fallthru
          _
      $region36: #{tpu_custom_call.1} parent=5 // pred_fallthru
        _
      %p336 = scmp.le.s32.totalorder 1, %s24
      %p337 = scmp.lt.s32.totalorder %s24, 3
      %p338 = pnand %p336, %p337
      %p339 = pneg %p338
      // Predicated region
      $region45: #{tpu_custom_call.1} parent=5 // pred_check
        _
      $region46: #{tpu_custom_call.1} parent=5 // pred_check_branch
        %341 = sbr.rel (%p338) target = $region48
      $region47: #{tpu_custom_call.1} parent=5 // pred_region
        %s342 = ssub.s32 %s24, 1
        %s343 = sand.u32 %s37, 1
        %s344 = scalar_lea.sflag [#allocation3], %s343
        %s345 = sand.u32 %s37, 1
        %s346 = smul.addr %s345, 128
        %s347 = scalar_lea.vmem [#allocation2], %s346
        // Predicated region
        $region49: #{tpu_custom_call.1} parent=47 // pred_check
          %p348 = pneg %p50
        $region50: #{tpu_custom_call.1} parent=47 // pred_check_branch
          %350 = sbr.rel (%p348) target = $region52
        $region51: #{tpu_custom_call.1} parent=47 // pred_region
          %352 = dma.done %s344, 2048
        $region52: #{tpu_custom_call.1} parent=47 // pred_fallthru
          _
        %s353 = sand.u32 %s29, 1
        %s354 = scalar_lea.sflag [#allocation6], %s353
        %s355 = sand.u32 %s63, 1
        %s356 = smul.addr %s355, 128
        %s357 = scalar_lea.vmem [#allocation5], %s356
        // Predicated region
        $region53: #{tpu_custom_call.1} parent=47 // pred_check
          %p358 = pneg %p76
        $region54: #{tpu_custom_call.1} parent=47 // pred_check_branch
          %360 = sbr.rel (%p358) target = $region56
        $region55: #{tpu_custom_call.1} parent=47 // pred_region
          %362 = dma.done %s354, 2048
        $region56: #{tpu_custom_call.1} parent=47 // pred_fallthru
          _
        // Predicated region
        $region57: #{tpu_custom_call.1} parent=47 // pred_check
          %p363 = pneg %p97
        $region58: #{tpu_custom_call.1} parent=47 // pred_check_branch
          %365 = sbr.rel (%p363) target = $region60
        $region59: #{tpu_custom_call.1} parent=47 // pred_region
          %367 = dma.done [#allocation6], 114688
        $region60: #{tpu_custom_call.1} parent=47 // pred_fallthru
          _
        // Predicated region
        $region61: #{tpu_custom_call.1} parent=47 // pred_check
          %p368 = pneg %p118
        $region62: #{tpu_custom_call.1} parent=47 // pred_check_branch
          %370 = sbr.rel (%p368) target = $region64
        $region63: #{tpu_custom_call.1} parent=47 // pred_region
          %372 = dma.done [#allocation9], 32
        $region64: #{tpu_custom_call.1} parent=47 // pred_fallthru
          _
        // Predicated region
        $region65: #{tpu_custom_call.1} parent=47 // pred_check
          %p373 = pneg %p139
        $region66: #{tpu_custom_call.1} parent=47 // pred_check_branch
          %375 = sbr.rel (%p373) target = $region68
        $region67: #{tpu_custom_call.1} parent=47 // pred_region
          %377 = dma.done [#allocation9], 32
        $region68: #{tpu_custom_call.1} parent=47 // pred_fallthru
          _
        // Predicated region
        $region69: #{tpu_custom_call.1} parent=47 // pred_check
          %p378 = pneg %p160
        $region70: #{tpu_custom_call.1} parent=47 // pred_check_branch
          %380 = sbr.rel (%p378) target = $region72
        $region71: #{tpu_custom_call.1} parent=47 // pred_region
          %382 = dma.done [#allocation12], 4096
        $region72: #{tpu_custom_call.1} parent=47 // pred_fallthru
          _
        // Predicated region
        $region73: #{tpu_custom_call.1} parent=47 // pred_check
          %p383 = pneg %p181
        $region74: #{tpu_custom_call.1} parent=47 // pred_check_branch
          %385 = sbr.rel (%p383) target = $region76
        $region75: #{tpu_custom_call.1} parent=47 // pred_region
          %387 = dma.done [#allocation12], 16
        $region76: #{tpu_custom_call.1} parent=47 // pred_fallthru
          _
        %s388 = sand.u32 %s37, 1
        %s389 = scalar_lea.sflag [#allocation3], %s388
        %s390 = sand.u32 %s37, 1
        %s391 = smul.addr %s390, 128
        %s392 = scalar_lea.vmem [#allocation2], %s391
        %p393 = pneg %p50
        %p394 = pneg %p47
        %s395 = sand.u32 %s29, 1
        %s396 = scalar_lea.sflag [#allocation6], %s395
        %s397 = sand.u32 %s63, 1
        %s398 = smul.addr %s397, 128
        %s399 = scalar_lea.vmem [#allocation5], %s398
        %p400 = pneg %p76
        %p401 = pneg %p73
        %p402 = pneg %p97
        %p403 = pneg %p94
        %p404 = pneg %p118
        %p405 = pneg %p115
        %p406 = pneg %p139
        %p407 = pneg %p136
        %p408 = pneg %p160
        %p409 = pneg %p157
        %p410 = pneg %p181
        %p411 = pneg %p178
        %p412 = pneg %p207
        %p413 = pneg %p204
        %s414 = sand.u32 %s194, 1
        %s415 = scalar_lea.sflag [#allocation4], %s414
        %s416 = sand.u32 %s194, 1
        %s417 = smul.addr %s416, 16
        %s418 = scalar_lea.vmem [#allocation14], %s417
        %s419 = smul.u32 2, %s29
        %s420 = smul.u32 2, %s29
        %s421 = smul.u32 2, %s29
        %v422 = vld [vmem:[%s347] sm:$0xff]
        %v423 = vld [vmem:[%s347 + $0x8] sm:$0xff]
        %v424 = vld [vmem:[%s347 + $0x10] sm:$0xff]
        %v425 = vld [vmem:[%s347 + $0x18] sm:$0xff]
        %v426 = vld [vmem:[%s347 + $0x20] sm:$0xff]
        %v427 = vld [vmem:[%s347 + $0x28] sm:$0xff]
        %v428 = vld [vmem:[%s347 + $0x30] sm:$0xff]
        %v429 = vld [vmem:[%s347 + $0x38] sm:$0xff]
        %v430 = vld [vmem:[%s347 + $0x40] sm:$0xff]
        %v431 = vld [vmem:[%s347 + $0x48] sm:$0xff]
        %v432 = vld [vmem:[%s347 + $0x50] sm:$0xff]
        %v433 = vld [vmem:[%s347 + $0x58] sm:$0xff]
        %v434 = vld [vmem:[%s347 + $0x60] sm:$0xff]
        %v435 = vld [vmem:[%s347 + $0x68] sm:$0xff]
        %v436 = vld [vmem:[%s347 + $0x70] sm:$0xff]
        %v437 = vld [vmem:[%s347 + $0x78] sm:$0xff]
        %v438 = vld [vmem:[%s357] sm:$0xff]
        %v439 = vld [vmem:[%s357 + $0x8] sm:$0xff]
        %v440 = vld [vmem:[%s357 + $0x10] sm:$0xff]
        %v441 = vld [vmem:[%s357 + $0x18] sm:$0xff]
        %v442 = vld [vmem:[%s357 + $0x20] sm:$0xff]
        %v443 = vld [vmem:[%s357 + $0x28] sm:$0xff]
        %v444 = vld [vmem:[%s357 + $0x30] sm:$0xff]
        %v445 = vld [vmem:[%s357 + $0x38] sm:$0xff]
        %v446 = vld [vmem:[%s357 + $0x40] sm:$0xff]
        %v447 = vld [vmem:[%s357 + $0x48] sm:$0xff]
        %v448 = vld [vmem:[%s357 + $0x50] sm:$0xff]
        %v449 = vld [vmem:[%s357 + $0x58] sm:$0xff]
        %v450 = vld [vmem:[%s357 + $0x60] sm:$0xff]
        %v451 = vld [vmem:[%s357 + $0x68] sm:$0xff]
        %v452 = vld [vmem:[%s357 + $0x70] sm:$0xff]
        %v453 = vld [vmem:[%s357 + $0x78] sm:$0xff]
        %v454 = vmul.f32 %v422, %v422
        %v455 = vmul.f32 %v423, %v423
        %v456 = vmul.f32 %v424, %v424
        %v457 = vmul.f32 %v425, %v425
        %v458 = vmul.f32 %v426, %v426
        %v459 = vmul.f32 %v427, %v427
        %v460 = vmul.f32 %v428, %v428
        %v461 = vmul.f32 %v429, %v429
        %v462 = vmul.f32 %v430, %v430
        %v463 = vmul.f32 %v431, %v431
        %v464 = vmul.f32 %v432, %v432
        %v465 = vmul.f32 %v433, %v433
        %v466 = vmul.f32 %v434, %v434
        %v467 = vmul.f32 %v435, %v435
        %v468 = vmul.f32 %v436, %v436
        %v469 = vmul.f32 %v437, %v437
        %v470 = vmul.f32 %v438, %v438
        %v471 = vmul.f32 %v439, %v439
        %v472 = vmul.f32 %v440, %v440
        %v473 = vmul.f32 %v441, %v441
        %v474 = vmul.f32 %v442, %v442
        %v475 = vmul.f32 %v443, %v443
        %v476 = vmul.f32 %v444, %v444
        %v477 = vmul.f32 %v445, %v445
        %v478 = vmul.f32 %v446, %v446
        %v479 = vmul.f32 %v447, %v447
        %v480 = vmul.f32 %v448, %v448
        %v481 = vmul.f32 %v449, %v449
        %v482 = vmul.f32 %v450, %v450
        %v483 = vmul.f32 %v451, %v451
        %v484 = vmul.f32 %v452, %v452
        %v485 = vmul.f32 %v453, %v453
        %v486 = vadd.f32 %v454, %v470
        %v487 = vadd.f32 %v455, %v471
        %v488 = vadd.f32 %v456, %v472
        %v489 = vadd.f32 %v457, %v473
        %v490 = vadd.f32 %v458, %v474
        %v491 = vadd.f32 %v459, %v475
        %v492 = vadd.f32 %v460, %v476
        %v493 = vadd.f32 %v461, %v477
        %v494 = vadd.f32 %v462, %v478
        %v495 = vadd.f32 %v463, %v479
        %v496 = vadd.f32 %v464, %v480
        %v497 = vadd.f32 %v465, %v481
        %v498 = vadd.f32 %v466, %v482
        %v499 = vadd.f32 %v467, %v483
        %v500 = vadd.f32 %v468, %v484
        %v501 = vadd.f32 %v469, %v485
        %v502 = vadd.f32 %v486, 1e-08
        %v503 = vadd.f32 %v487, 1e-08
        %v504 = vadd.f32 %v488, 1e-08
        %v505 = vadd.f32 %v489, 1e-08
        %v506 = vadd.f32 %v490, 1e-08
        %v507 = vadd.f32 %v491, 1e-08
        %v508 = vadd.f32 %v492, 1e-08
        %v509 = vadd.f32 %v493, 1e-08
        %v510 = vadd.f32 %v494, 1e-08
        %v511 = vadd.f32 %v495, 1e-08
        %v512 = vadd.f32 %v496, 1e-08
        %v513 = vadd.f32 %v497, 1e-08
        %v514 = vadd.f32 %v498, 1e-08
        %v515 = vadd.f32 %v499, 1e-08
        %v516 = vadd.f32 %v500, 1e-08
        %v517 = vadd.f32 %v501, 1e-08
        %v518 = vrsqrt.pop %v502
        %v519 = vmul.f32 %v518, %v502
        %v520 = vmul.f32 %v519, %v518
        %v521 = vmul.f32 0.5, %v520
        %v522 = vsub.f32 1.5, %v521
        %v523 = vmul.f32 %v518, %v522
        %vm524 = vweird.f32 %v502
        %vm525 = vweird.f32 %v518
        %vm526 = vmor %vm524, %vm525
        %v527 = vsel %vm526, %v518, %v523
        %v528 = vrsqrt.pop %v503
        %v529 = vmul.f32 %v528, %v503
        %v530 = vmul.f32 %v529, %v528
        %v531 = vmul.f32 0.5, %v530
        %v532 = vsub.f32 1.5, %v531
        %v533 = vmul.f32 %v528, %v532
        %vm534 = vweird.f32 %v503
        %vm535 = vweird.f32 %v528
        %vm536 = vmor %vm534, %vm535
        %v537 = vsel %vm536, %v528, %v533
        %v538 = vrsqrt.pop %v504
        %v539 = vmul.f32 %v538, %v504
        %v540 = vmul.f32 %v539, %v538
        %v541 = vmul.f32 0.5, %v540
        %v542 = vsub.f32 1.5, %v541
        %v543 = vmul.f32 %v538, %v542
        %vm544 = vweird.f32 %v504
        %vm545 = vweird.f32 %v538
        %vm546 = vmor %vm544, %vm545
        %v547 = vsel %vm546, %v538, %v543
        %v548 = vrsqrt.pop %v505
        %v549 = vmul.f32 %v548, %v505
        %v550 = vmul.f32 %v549, %v548
        %v551 = vmul.f32 0.5, %v550
        %v552 = vsub.f32 1.5, %v551
        %v553 = vmul.f32 %v548, %v552
        %vm554 = vweird.f32 %v505
        %vm555 = vweird.f32 %v548
        %vm556 = vmor %vm554, %vm555
        %v557 = vsel %vm556, %v548, %v553
        %v558 = vrsqrt.pop %v506
        %v559 = vmul.f32 %v558, %v506
        %v560 = vmul.f32 %v559, %v558
        %v561 = vmul.f32 0.5, %v560
        %v562 = vsub.f32 1.5, %v561
        %v563 = vmul.f32 %v558, %v562
        %vm564 = vweird.f32 %v506
        %vm565 = vweird.f32 %v558
        %vm566 = vmor %vm564, %vm565
        %v567 = vsel %vm566, %v558, %v563
        %v568 = vrsqrt.pop %v507
        %v569 = vmul.f32 %v568, %v507
        %v570 = vmul.f32 %v569, %v568
        %v571 = vmul.f32 0.5, %v570
        %v572 = vsub.f32 1.5, %v571
        %v573 = vmul.f32 %v568, %v572
        %vm574 = vweird.f32 %v507
        %vm575 = vweird.f32 %v568
        %vm576 = vmor %vm574, %vm575
        %v577 = vsel %vm576, %v568, %v573
        %v578 = vrsqrt.pop %v508
        %v579 = vmul.f32 %v578, %v508
        %v580 = vmul.f32 %v579, %v578
        %v581 = vmul.f32 0.5, %v580
        %v582 = vsub.f32 1.5, %v581
        %v583 = vmul.f32 %v578, %v582
        %vm584 = vweird.f32 %v508
        %vm585 = vweird.f32 %v578
        %vm586 = vmor %vm584, %vm585
        %v587 = vsel %vm586, %v578, %v583
        %v588 = vrsqrt.pop %v509
        %v589 = vmul.f32 %v588, %v509
        %v590 = vmul.f32 %v589, %v588
        %v591 = vmul.f32 0.5, %v590
        %v592 = vsub.f32 1.5, %v591
        %v593 = vmul.f32 %v588, %v592
        %vm594 = vweird.f32 %v509
        %vm595 = vweird.f32 %v588
        %vm596 = vmor %vm594, %vm595
        %v597 = vsel %vm596, %v588, %v593
        %v598 = vrsqrt.pop %v510
        %v599 = vmul.f32 %v598, %v510
        %v600 = vmul.f32 %v599, %v598
        %v601 = vmul.f32 0.5, %v600
        %v602 = vsub.f32 1.5, %v601
        %v603 = vmul.f32 %v598, %v602
        %vm604 = vweird.f32 %v510
        %vm605 = vweird.f32 %v598
        %vm606 = vmor %vm604, %vm605
        %v607 = vsel %vm606, %v598, %v603
        %v608 = vrsqrt.pop %v511
        %v609 = vmul.f32 %v608, %v511
        %v610 = vmul.f32 %v609, %v608
        %v611 = vmul.f32 0.5, %v610
        %v612 = vsub.f32 1.5, %v611
        %v613 = vmul.f32 %v608, %v612
        %vm614 = vweird.f32 %v511
        %vm615 = vweird.f32 %v608
        %vm616 = vmor %vm614, %vm615
        %v617 = vsel %vm616, %v608, %v613
        %v618 = vrsqrt.pop %v512
        %v619 = vmul.f32 %v618, %v512
        %v620 = vmul.f32 %v619, %v618
        %v621 = vmul.f32 0.5, %v620
        %v622 = vsub.f32 1.5, %v621
        %v623 = vmul.f32 %v618, %v622
        %vm624 = vweird.f32 %v512
        %vm625 = vweird.f32 %v618
        %vm626 = vmor %vm624, %vm625
        %v627 = vsel %vm626, %v618, %v623
        %v628 = vrsqrt.pop %v513
        %v629 = vmul.f32 %v628, %v513
        %v630 = vmul.f32 %v629, %v628
        %v631 = vmul.f32 0.5, %v630
        %v632 = vsub.f32 1.5, %v631
        %v633 = vmul.f32 %v628, %v632
        %vm634 = vweird.f32 %v513
        %vm635 = vweird.f32 %v628
        %vm636 = vmor %vm634, %vm635
        %v637 = vsel %vm636, %v628, %v633
        %v638 = vrsqrt.pop %v514
        %v639 = vmul.f32 %v638, %v514
        %v640 = vmul.f32 %v639, %v638
        %v641 = vmul.f32 0.5, %v640
        %v642 = vsub.f32 1.5, %v641
        %v643 = vmul.f32 %v638, %v642
        %vm644 = vweird.f32 %v514
        %vm645 = vweird.f32 %v638
        %vm646 = vmor %vm644, %vm645
        %v647 = vsel %vm646, %v638, %v643
        %v648 = vrsqrt.pop %v515
        %v649 = vmul.f32 %v648, %v515
        %v650 = vmul.f32 %v649, %v648
        %v651 = vmul.f32 0.5, %v650
        %v652 = vsub.f32 1.5, %v651
        %v653 = vmul.f32 %v648, %v652
        %vm654 = vweird.f32 %v515
        %vm655 = vweird.f32 %v648
        %vm656 = vmor %vm654, %vm655
        %v657 = vsel %vm656, %v648, %v653
        %v658 = vrsqrt.pop %v516
        %v659 = vmul.f32 %v658, %v516
        %v660 = vmul.f32 %v659, %v658
        %v661 = vmul.f32 0.5, %v660
        %v662 = vsub.f32 1.5, %v661
        %v663 = vmul.f32 %v658, %v662
        %vm664 = vweird.f32 %v516
        %vm665 = vweird.f32 %v658
        %vm666 = vmor %vm664, %vm665
        %v667 = vsel %vm666, %v658, %v663
        %v668 = vrsqrt.pop %v517
        %v669 = vmul.f32 %v668, %v517
        %v670 = vmul.f32 %v669, %v668
        %v671 = vmul.f32 0.5, %v670
        %v672 = vsub.f32 1.5, %v671
        %v673 = vmul.f32 %v668, %v672
        %vm674 = vweird.f32 %v517
        %vm675 = vweird.f32 %v668
        %vm676 = vmor %vm674, %vm675
        %v677 = vsel %vm676, %v668, %v673
        %v678 = vmul.f32 %v502, %v527
        %v679 = vmul.f32 %v503, %v537
        %v680 = vmul.f32 %v504, %v547
        %v681 = vmul.f32 %v505, %v557
        %v682 = vmul.f32 %v506, %v567
        %v683 = vmul.f32 %v507, %v577
        %v684 = vmul.f32 %v508, %v587
        %v685 = vmul.f32 %v509, %v597
        %v686 = vmul.f32 %v510, %v607
        %v687 = vmul.f32 %v511, %v617
        %v688 = vmul.f32 %v512, %v627
        %v689 = vmul.f32 %v513, %v637
        %v690 = vmul.f32 %v514, %v647
        %v691 = vmul.f32 %v515, %v657
        %v692 = vmul.f32 %v516, %v667
        %v693 = vmul.f32 %v517, %v677
        %v694 = vadd.f32 %v678, 1e-08
        %v695 = vadd.f32 %v679, 1e-08
        %v696 = vadd.f32 %v680, 1e-08
        %v697 = vadd.f32 %v681, 1e-08
        %v698 = vadd.f32 %v682, 1e-08
        %v699 = vadd.f32 %v683, 1e-08
        %v700 = vadd.f32 %v684, 1e-08
        %v701 = vadd.f32 %v685, 1e-08
        %v702 = vadd.f32 %v686, 1e-08
        %v703 = vadd.f32 %v687, 1e-08
        %v704 = vadd.f32 %v688, 1e-08
        %v705 = vadd.f32 %v689, 1e-08
        %v706 = vadd.f32 %v690, 1e-08
        %v707 = vadd.f32 %v691, 1e-08
        %v708 = vadd.f32 %v692, 1e-08
        %v709 = vadd.f32 %v693, 1e-08
        %v710 = vrsqrt.pop %v694
        %v711 = vmul.f32 %v710, %v694
        %v712 = vmul.f32 %v711, %v710
        %v713 = vmul.f32 0.5, %v712
        %v714 = vsub.f32 1.5, %v713
        %v715 = vmul.f32 %v710, %v714
        %v716 = vmul.f32 %v694, %v715
        %vm717 = vcmp.eq.f32.partialorder %v694, inf
        %v718 = vsel %vm717, %v694, %v716
        %vm719 = vcmp.eq.f32.partialorder %v694, 0.0
        %v720 = vand.u32 %v694, 2147483648
        %v721 = vsel %vm719, %v720, %v718
        %v722 = vrsqrt.pop %v695
        %v723 = vmul.f32 %v722, %v695
        %v724 = vmul.f32 %v723, %v722
        %v725 = vmul.f32 0.5, %v724
        %v726 = vsub.f32 1.5, %v725
        %v727 = vmul.f32 %v722, %v726
        %v728 = vmul.f32 %v695, %v727
        %vm729 = vcmp.eq.f32.partialorder %v695, inf
        %v730 = vsel %vm729, %v695, %v728
        %vm731 = vcmp.eq.f32.partialorder %v695, 0.0
        %v732 = vand.u32 %v695, 2147483648
        %v733 = vsel %vm731, %v732, %v730
        %v734 = vrsqrt.pop %v696
        %v735 = vmul.f32 %v734, %v696
        %v736 = vmul.f32 %v735, %v734
        %v737 = vmul.f32 0.5, %v736
        %v738 = vsub.f32 1.5, %v737
        %v739 = vmul.f32 %v734, %v738
        %v740 = vmul.f32 %v696, %v739
        %vm741 = vcmp.eq.f32.partialorder %v696, inf
        %v742 = vsel %vm741, %v696, %v740
        %vm743 = vcmp.eq.f32.partialorder %v696, 0.0
        %v744 = vand.u32 %v696, 2147483648
        %v745 = vsel %vm743, %v744, %v742
        %v746 = vrsqrt.pop %v697
        %v747 = vmul.f32 %v746, %v697
        %v748 = vmul.f32 %v747, %v746
        %v749 = vmul.f32 0.5, %v748
        %v750 = vsub.f32 1.5, %v749
        %v751 = vmul.f32 %v746, %v750
        %v752 = vmul.f32 %v697, %v751
        %vm753 = vcmp.eq.f32.partialorder %v697, inf
        %v754 = vsel %vm753, %v697, %v752
        %vm755 = vcmp.eq.f32.partialorder %v697, 0.0
        %v756 = vand.u32 %v697, 2147483648
        %v757 = vsel %vm755, %v756, %v754
        %v758 = vrsqrt.pop %v698
        %v759 = vmul.f32 %v758, %v698
        %v760 = vmul.f32 %v759, %v758
        %v761 = vmul.f32 0.5, %v760
        %v762 = vsub.f32 1.5, %v761
        %v763 = vmul.f32 %v758, %v762
        %v764 = vmul.f32 %v698, %v763
        %vm765 = vcmp.eq.f32.partialorder %v698, inf
        %v766 = vsel %vm765, %v698, %v764
        %vm767 = vcmp.eq.f32.partialorder %v698, 0.0
        %v768 = vand.u32 %v698, 2147483648
        %v769 = vsel %vm767, %v768, %v766
        %v770 = vrsqrt.pop %v699
        %v771 = vmul.f32 %v770, %v699
        %v772 = vmul.f32 %v771, %v770
        %v773 = vmul.f32 0.5, %v772
        %v774 = vsub.f32 1.5, %v773
        %v775 = vmul.f32 %v770, %v774
        %v776 = vmul.f32 %v699, %v775
        %vm777 = vcmp.eq.f32.partialorder %v699, inf
        %v778 = vsel %vm777, %v699, %v776
        %vm779 = vcmp.eq.f32.partialorder %v699, 0.0
        %v780 = vand.u32 %v699, 2147483648
        %v781 = vsel %vm779, %v780, %v778
        %v782 = vrsqrt.pop %v700
        %v783 = vmul.f32 %v782, %v700
        %v784 = vmul.f32 %v783, %v782
        %v785 = vmul.f32 0.5, %v784
        %v786 = vsub.f32 1.5, %v785
        %v787 = vmul.f32 %v782, %v786
        %v788 = vmul.f32 %v700, %v787
        %vm789 = vcmp.eq.f32.partialorder %v700, inf
        %v790 = vsel %vm789, %v700, %v788
        %vm791 = vcmp.eq.f32.partialorder %v700, 0.0
        %v792 = vand.u32 %v700, 2147483648
        %v793 = vsel %vm791, %v792, %v790
        %v794 = vrsqrt.pop %v701
        %v795 = vmul.f32 %v794, %v701
        %v796 = vmul.f32 %v795, %v794
        %v797 = vmul.f32 0.5, %v796
        %v798 = vsub.f32 1.5, %v797
        %v799 = vmul.f32 %v794, %v798
        %v800 = vmul.f32 %v701, %v799
        %vm801 = vcmp.eq.f32.partialorder %v701, inf
        %v802 = vsel %vm801, %v701, %v800
        %vm803 = vcmp.eq.f32.partialorder %v701, 0.0
        %v804 = vand.u32 %v701, 2147483648
        %v805 = vsel %vm803, %v804, %v802
        %v806 = vrsqrt.pop %v702
        %v807 = vmul.f32 %v806, %v702
        %v808 = vmul.f32 %v807, %v806
        %v809 = vmul.f32 0.5, %v808
        %v810 = vsub.f32 1.5, %v809
        %v811 = vmul.f32 %v806, %v810
        %v812 = vmul.f32 %v702, %v811
        %vm813 = vcmp.eq.f32.partialorder %v702, inf
        %v814 = vsel %vm813, %v702, %v812
        %vm815 = vcmp.eq.f32.partialorder %v702, 0.0
        %v816 = vand.u32 %v702, 2147483648
        %v817 = vsel %vm815, %v816, %v814
        %v818 = vrsqrt.pop %v703
        %v819 = vmul.f32 %v818, %v703
        %v820 = vmul.f32 %v819, %v818
        %v821 = vmul.f32 0.5, %v820
        %v822 = vsub.f32 1.5, %v821
        %v823 = vmul.f32 %v818, %v822
        %v824 = vmul.f32 %v703, %v823
        %vm825 = vcmp.eq.f32.partialorder %v703, inf
        %v826 = vsel %vm825, %v703, %v824
        %vm827 = vcmp.eq.f32.partialorder %v703, 0.0
        %v828 = vand.u32 %v703, 2147483648
        %v829 = vsel %vm827, %v828, %v826
        %v830 = vrsqrt.pop %v704
        %v831 = vmul.f32 %v830, %v704
        %v832 = vmul.f32 %v831, %v830
        %v833 = vmul.f32 0.5, %v832
        %v834 = vsub.f32 1.5, %v833
        %v835 = vmul.f32 %v830, %v834
        %v836 = vmul.f32 %v704, %v835
        %vm837 = vcmp.eq.f32.partialorder %v704, inf
        %v838 = vsel %vm837, %v704, %v836
        %vm839 = vcmp.eq.f32.partialorder %v704, 0.0
        %v840 = vand.u32 %v704, 2147483648
        %v841 = vsel %vm839, %v840, %v838
        %v842 = vrsqrt.pop %v705
        %v843 = vmul.f32 %v842, %v705
        %v844 = vmul.f32 %v843, %v842
        %v845 = vmul.f32 0.5, %v844
        %v846 = vsub.f32 1.5, %v845
        %v847 = vmul.f32 %v842, %v846
        %v848 = vmul.f32 %v705, %v847
        %vm849 = vcmp.eq.f32.partialorder %v705, inf
        %v850 = vsel %vm849, %v705, %v848
        %vm851 = vcmp.eq.f32.partialorder %v705, 0.0
        %v852 = vand.u32 %v705, 2147483648
        %v853 = vsel %vm851, %v852, %v850
        %v854 = vrsqrt.pop %v706
        %v855 = vmul.f32 %v854, %v706
        %v856 = vmul.f32 %v855, %v854
        %v857 = vmul.f32 0.5, %v856
        %v858 = vsub.f32 1.5, %v857
        %v859 = vmul.f32 %v854, %v858
        %v860 = vmul.f32 %v706, %v859
        %vm861 = vcmp.eq.f32.partialorder %v706, inf
        %v862 = vsel %vm861, %v706, %v860
        %vm863 = vcmp.eq.f32.partialorder %v706, 0.0
        %v864 = vand.u32 %v706, 2147483648
        %v865 = vsel %vm863, %v864, %v862
        %v866 = vrsqrt.pop %v707
        %v867 = vmul.f32 %v866, %v707
        %v868 = vmul.f32 %v867, %v866
        %v869 = vmul.f32 0.5, %v868
        %v870 = vsub.f32 1.5, %v869
        %v871 = vmul.f32 %v866, %v870
        %v872 = vmul.f32 %v707, %v871
        %vm873 = vcmp.eq.f32.partialorder %v707, inf
        %v874 = vsel %vm873, %v707, %v872
        %vm875 = vcmp.eq.f32.partialorder %v707, 0.0
        %v876 = vand.u32 %v707, 2147483648
        %v877 = vsel %vm875, %v876, %v874
        %v878 = vrsqrt.pop %v708
        %v879 = vmul.f32 %v878, %v708
        %v880 = vmul.f32 %v879, %v878
        %v881 = vmul.f32 0.5, %v880
        %v882 = vsub.f32 1.5, %v881
        %v883 = vmul.f32 %v878, %v882
        %v884 = vmul.f32 %v708, %v883
        %vm885 = vcmp.eq.f32.partialorder %v708, inf
        %v886 = vsel %vm885, %v708, %v884
        %vm887 = vcmp.eq.f32.partialorder %v708, 0.0
        %v888 = vand.u32 %v708, 2147483648
        %v889 = vsel %vm887, %v888, %v886
        %v890 = vrsqrt.pop %v709
        %v891 = vmul.f32 %v890, %v709
        %v892 = vmul.f32 %v891, %v890
        %v893 = vmul.f32 0.5, %v892
        %v894 = vsub.f32 1.5, %v893
        %v895 = vmul.f32 %v890, %v894
        %v896 = vmul.f32 %v709, %v895
        %vm897 = vcmp.eq.f32.partialorder %v709, inf
        %v898 = vsel %vm897, %v709, %v896
        %vm899 = vcmp.eq.f32.partialorder %v709, 0.0
        %v900 = vand.u32 %v709, 2147483648
        %v901 = vsel %vm899, %v900, %v898
        %v902 = vmul.f32 %v422, %v527
        %v903 = vmul.f32 %v423, %v537
        %v904 = vmul.f32 %v424, %v547
        %v905 = vmul.f32 %v425, %v557
        %v906 = vmul.f32 %v426, %v567
        %v907 = vmul.f32 %v427, %v577
        %v908 = vmul.f32 %v428, %v587
        %v909 = vmul.f32 %v429, %v597
        %v910 = vmul.f32 %v430, %v607
        %v911 = vmul.f32 %v431, %v617
        %v912 = vmul.f32 %v432, %v627
        %v913 = vmul.f32 %v433, %v637
        %v914 = vmul.f32 %v434, %v647
        %v915 = vmul.f32 %v435, %v657
        %v916 = vmul.f32 %v436, %v667
        %v917 = vmul.f32 %v437, %v677
        %v918 = vmul.f32 %v438, %v527
        %v919 = vmul.f32 %v439, %v537
        %v920 = vmul.f32 %v440, %v547
        %v921 = vmul.f32 %v441, %v557
        %v922 = vmul.f32 %v442, %v567
        %v923 = vmul.f32 %v443, %v577
        %v924 = vmul.f32 %v444, %v587
        %v925 = vmul.f32 %v445, %v597
        %v926 = vmul.f32 %v446, %v607
        %v927 = vmul.f32 %v447, %v617
        %v928 = vmul.f32 %v448, %v627
        %v929 = vmul.f32 %v449, %v637
        %v930 = vmul.f32 %v450, %v647
        %v931 = vmul.f32 %v451, %v657
        %v932 = vmul.f32 %v452, %v667
        %v933 = vmul.f32 %v453, %v677
        %v934 = vmul.f32 %v902, %v902
        %v935 = vmul.f32 %v903, %v903
        %v936 = vmul.f32 %v904, %v904
        %v937 = vmul.f32 %v905, %v905
        %v938 = vmul.f32 %v906, %v906
        %v939 = vmul.f32 %v907, %v907
        %v940 = vmul.f32 %v908, %v908
        %v941 = vmul.f32 %v909, %v909
        %v942 = vmul.f32 %v910, %v910
        %v943 = vmul.f32 %v911, %v911
        %v944 = vmul.f32 %v912, %v912
        %v945 = vmul.f32 %v913, %v913
        %v946 = vmul.f32 %v914, %v914
        %v947 = vmul.f32 %v915, %v915
        %v948 = vmul.f32 %v916, %v916
        %v949 = vmul.f32 %v917, %v917
        %v950 = vmul.f32 %v918, %v918
        %v951 = vmul.f32 %v919, %v919
        %v952 = vmul.f32 %v920, %v920
        %v953 = vmul.f32 %v921, %v921
        %v954 = vmul.f32 %v922, %v922
        %v955 = vmul.f32 %v923, %v923
        %v956 = vmul.f32 %v924, %v924
        %v957 = vmul.f32 %v925, %v925
        %v958 = vmul.f32 %v926, %v926
        %v959 = vmul.f32 %v927, %v927
        %v960 = vmul.f32 %v928, %v928
        %v961 = vmul.f32 %v929, %v929
        %v962 = vmul.f32 %v930, %v930
        %v963 = vmul.f32 %v931, %v931
        %v964 = vmul.f32 %v932, %v932
        %v965 = vmul.f32 %v933, %v933
        %v966 = vsub.f32 %v934, %v950
        %v967 = vsub.f32 %v935, %v951
        %v968 = vsub.f32 %v936, %v952
        %v969 = vsub.f32 %v937, %v953
        %v970 = vsub.f32 %v938, %v954
        %v971 = vsub.f32 %v939, %v955
        %v972 = vsub.f32 %v940, %v956
        %v973 = vsub.f32 %v941, %v957
        %v974 = vsub.f32 %v942, %v958
        %v975 = vsub.f32 %v943, %v959
        %v976 = vsub.f32 %v944, %v960
        %v977 = vsub.f32 %v945, %v961
        %v978 = vsub.f32 %v946, %v962
        %v979 = vsub.f32 %v947, %v963
        %v980 = vsub.f32 %v948, %v964
        %v981 = vsub.f32 %v949, %v965
        %v982 = vadd.f32 %v902, %v902
        %v983 = vadd.f32 %v903, %v903
        %v984 = vadd.f32 %v904, %v904
        %v985 = vadd.f32 %v905, %v905
        %v986 = vadd.f32 %v906, %v906
        %v987 = vadd.f32 %v907, %v907
        %v988 = vadd.f32 %v908, %v908
        %v989 = vadd.f32 %v909, %v909
        %v990 = vadd.f32 %v910, %v910
        %v991 = vadd.f32 %v911, %v911
        %v992 = vadd.f32 %v912, %v912
        %v993 = vadd.f32 %v913, %v913
        %v994 = vadd.f32 %v914, %v914
        %v995 = vadd.f32 %v915, %v915
        %v996 = vadd.f32 %v916, %v916
        %v997 = vadd.f32 %v917, %v917
        %v998 = vmul.f32 %v982, %v918
        %v999 = vmul.f32 %v983, %v919
        %v1000 = vmul.f32 %v984, %v920
        %v1001 = vmul.f32 %v985, %v921
        %v1002 = vmul.f32 %v986, %v922
        %v1003 = vmul.f32 %v987, %v923
        %v1004 = vmul.f32 %v988, %v924
        %v1005 = vmul.f32 %v989, %v925
        %v1006 = vmul.f32 %v990, %v926
        %v1007 = vmul.f32 %v991, %v927
        %v1008 = vmul.f32 %v992, %v928
        %v1009 = vmul.f32 %v993, %v929
        %v1010 = vmul.f32 %v994, %v930
        %v1011 = vmul.f32 %v995, %v931
        %v1012 = vmul.f32 %v996, %v932
        %v1013 = vmul.f32 %v997, %v933
        %v1014 = vmul.f32 %v902, %v966
        %v1015 = vmul.f32 %v903, %v967
        %v1016 = vmul.f32 %v904, %v968
        %v1017 = vmul.f32 %v905, %v969
        %v1018 = vmul.f32 %v906, %v970
        %v1019 = vmul.f32 %v907, %v971
        %v1020 = vmul.f32 %v908, %v972
        %v1021 = vmul.f32 %v909, %v973
        %v1022 = vmul.f32 %v910, %v974
        %v1023 = vmul.f32 %v911, %v975
        %v1024 = vmul.f32 %v912, %v976
        %v1025 = vmul.f32 %v913, %v977
        %v1026 = vmul.f32 %v914, %v978
        %v1027 = vmul.f32 %v915, %v979
        %v1028 = vmul.f32 %v916, %v980
        %v1029 = vmul.f32 %v917, %v981
        %v1030 = vmul.f32 %v918, %v998
        %v1031 = vmul.f32 %v919, %v999
        %v1032 = vmul.f32 %v920, %v1000
        %v1033 = vmul.f32 %v921, %v1001
        %v1034 = vmul.f32 %v922, %v1002
        %v1035 = vmul.f32 %v923, %v1003
        %v1036 = vmul.f32 %v924, %v1004
        %v1037 = vmul.f32 %v925, %v1005
        %v1038 = vmul.f32 %v926, %v1006
        %v1039 = vmul.f32 %v927, %v1007
        %v1040 = vmul.f32 %v928, %v1008
        %v1041 = vmul.f32 %v929, %v1009
        %v1042 = vmul.f32 %v930, %v1010
        %v1043 = vmul.f32 %v931, %v1011
        %v1044 = vmul.f32 %v932, %v1012
        %v1045 = vmul.f32 %v933, %v1013
        %v1046 = vsub.f32 %v1014, %v1030
        %v1047 = vsub.f32 %v1015, %v1031
        %v1048 = vsub.f32 %v1016, %v1032
        %v1049 = vsub.f32 %v1017, %v1033
        %v1050 = vsub.f32 %v1018, %v1034
        %v1051 = vsub.f32 %v1019, %v1035
        %v1052 = vsub.f32 %v1020, %v1036
        %v1053 = vsub.f32 %v1021, %v1037
        %v1054 = vsub.f32 %v1022, %v1038
        %v1055 = vsub.f32 %v1023, %v1039
        %v1056 = vsub.f32 %v1024, %v1040
        %v1057 = vsub.f32 %v1025, %v1041
        %v1058 = vsub.f32 %v1026, %v1042
        %v1059 = vsub.f32 %v1027, %v1043
        %v1060 = vsub.f32 %v1028, %v1044
        %v1061 = vsub.f32 %v1029, %v1045
        %v1062 = vmul.f32 %v918, %v966
        %v1063 = vmul.f32 %v919, %v967
        %v1064 = vmul.f32 %v920, %v968
        %v1065 = vmul.f32 %v921, %v969
        %v1066 = vmul.f32 %v922, %v970
        %v1067 = vmul.f32 %v923, %v971
        %v1068 = vmul.f32 %v924, %v972
        %v1069 = vmul.f32 %v925, %v973
        %v1070 = vmul.f32 %v926, %v974
        %v1071 = vmul.f32 %v927, %v975
        %v1072 = vmul.f32 %v928, %v976
        %v1073 = vmul.f32 %v929, %v977
        %v1074 = vmul.f32 %v930, %v978
        %v1075 = vmul.f32 %v931, %v979
        %v1076 = vmul.f32 %v932, %v980
        %v1077 = vmul.f32 %v933, %v981
        %v1078 = vmul.f32 %v902, %v998
        %v1079 = vmul.f32 %v903, %v999
        %v1080 = vmul.f32 %v904, %v1000
        %v1081 = vmul.f32 %v905, %v1001
        %v1082 = vmul.f32 %v906, %v1002
        %v1083 = vmul.f32 %v907, %v1003
        %v1084 = vmul.f32 %v908, %v1004
        %v1085 = vmul.f32 %v909, %v1005
        %v1086 = vmul.f32 %v910, %v1006
        %v1087 = vmul.f32 %v911, %v1007
        %v1088 = vmul.f32 %v912, %v1008
        %v1089 = vmul.f32 %v913, %v1009
        %v1090 = vmul.f32 %v914, %v1010
        %v1091 = vmul.f32 %v915, %v1011
        %v1092 = vmul.f32 %v916, %v1012
        %v1093 = vmul.f32 %v917, %v1013
        %v1094 = vadd.f32 %v1062, %v1078
        %v1095 = vadd.f32 %v1063, %v1079
        %v1096 = vadd.f32 %v1064, %v1080
        %v1097 = vadd.f32 %v1065, %v1081
        %v1098 = vadd.f32 %v1066, %v1082
        %v1099 = vadd.f32 %v1067, %v1083
        %v1100 = vadd.f32 %v1068, %v1084
        %v1101 = vadd.f32 %v1069, %v1085
        %v1102 = vadd.f32 %v1070, %v1086
        %v1103 = vadd.f32 %v1071, %v1087
        %v1104 = vadd.f32 %v1072, %v1088
        %v1105 = vadd.f32 %v1073, %v1089
        %v1106 = vadd.f32 %v1074, %v1090
        %v1107 = vadd.f32 %v1075, %v1091
        %v1108 = vadd.f32 %v1076, %v1092
        %v1109 = vadd.f32 %v1077, %v1093
        %v1110 = vpack.c.bf16 %v817, %v721
        %v1111 = vpack.c.bf16 %v829, %v733
        %v1112 = vpack.c.bf16 %v841, %v745
        %v1113 = vpack.c.bf16 %v853, %v757
        %v1114 = vpack.c.bf16 %v865, %v769
        %v1115 = vpack.c.bf16 %v877, %v781
        %v1116 = vpack.c.bf16 %v889, %v793
        %v1117 = vpack.c.bf16 %v901, %v805
        %v1118 = vld [vmem:[#allocation7] sm:$0xff]
        %v1119 = vld [vmem:[#allocation7 + $0x8] sm:$0xff]
        %v1120 = vld [vmem:[#allocation7 + $0x10] sm:$0xff]
        %v1121 = vld [vmem:[#allocation7 + $0x18] sm:$0xff]
        %v1122 = vld [vmem:[#allocation7 + $0x20] sm:$0xff]
        %v1123 = vld [vmem:[#allocation7 + $0x28] sm:$0xff]
        %v1124 = vld [vmem:[#allocation7 + $0x30] sm:$0xff]
        %v1125 = vld [vmem:[#allocation7 + $0x38] sm:$0xff]
        %v1126 = vld [vmem:[#allocation7 + $0x40] sm:$0xff]
        %v1127 = vld [vmem:[#allocation7 + $0x48] sm:$0xff]
        %v1128 = vld [vmem:[#allocation7 + $0x50] sm:$0xff]
        %v1129 = vld [vmem:[#allocation7 + $0x58] sm:$0xff]
        %v1130 = vld [vmem:[#allocation7 + $0x60] sm:$0xff]
        %v1131 = vld [vmem:[#allocation7 + $0x68] sm:$0xff]
        %v1132 = vld [vmem:[#allocation7 + $0x70] sm:$0xff]
        %v1133 = vld [vmem:[#allocation7 + $0x78] sm:$0xff]
        %v1134 = vld [vmem:[#allocation7 + $0x80] sm:$0xff]
        %v1135 = vld [vmem:[#allocation7 + $0x88] sm:$0xff]
        %v1136 = vld [vmem:[#allocation7 + $0x90] sm:$0xff]
        %v1137 = vld [vmem:[#allocation7 + $0x98] sm:$0xff]
        %v1138 = vld [vmem:[#allocation7 + $0xa0] sm:$0xff]
        %v1139 = vld [vmem:[#allocation7 + $0xa8] sm:$0xff]
        %v1140 = vld [vmem:[#allocation7 + $0xb0] sm:$0xff]
        %v1141 = vld [vmem:[#allocation7 + $0xb8] sm:$0xff]
        %v1142 = vld [vmem:[#allocation7 + $0xc0] sm:$0xff]
        %v1143 = vld [vmem:[#allocation7 + $0xc8] sm:$0xff]
        %v1144 = vld [vmem:[#allocation7 + $0xd0] sm:$0xff]
        %v1145 = vld [vmem:[#allocation7 + $0xd8] sm:$0xff]
        %v1146 = vld [vmem:[#allocation7 + $0xe0] sm:$0xff]
        %v1147 = vld [vmem:[#allocation7 + $0xe8] sm:$0xff]
        %v1148 = vld [vmem:[#allocation7 + $0xf0] sm:$0xff]
        %v1149 = vld [vmem:[#allocation7 + $0xf8] sm:$0xff]
        %v1150 = vld [vmem:[#allocation7 + $0x100] sm:$0xff]
        %v1151 = vld [vmem:[#allocation7 + $0x108] sm:$0xff]
        %v1152 = vld [vmem:[#allocation7 + $0x110] sm:$0xff]
        %v1153 = vld [vmem:[#allocation7 + $0x118] sm:$0xff]
        %v1154 = vld [vmem:[#allocation7 + $0x120] sm:$0xff]
        %v1155 = vld [vmem:[#allocation7 + $0x128] sm:$0xff]
        %v1156 = vld [vmem:[#allocation7 + $0x130] sm:$0xff]
        %v1157 = vld [vmem:[#allocation7 + $0x138] sm:$0xff]
        %v1158 = vld [vmem:[#allocation7 + $0x140] sm:$0xff]
        %v1159 = vld [vmem:[#allocation7 + $0x148] sm:$0xff]
        %v1160 = vld [vmem:[#allocation7 + $0x150] sm:$0xff]
        %v1161 = vld [vmem:[#allocation7 + $0x158] sm:$0xff]
        %v1162 = vld [vmem:[#allocation7 + $0x160] sm:$0xff]
        %v1163 = vld [vmem:[#allocation7 + $0x168] sm:$0xff]
        %v1164 = vld [vmem:[#allocation7 + $0x170] sm:$0xff]
        %v1165 = vld [vmem:[#allocation7 + $0x178] sm:$0xff]
        %v1166 = vld [vmem:[#allocation7 + $0x180] sm:$0xff]
        %v1167 = vld [vmem:[#allocation7 + $0x188] sm:$0xff]
        %v1168 = vld [vmem:[#allocation7 + $0x190] sm:$0xff]
        %v1169 = vld [vmem:[#allocation7 + $0x198] sm:$0xff]
        %v1170 = vld [vmem:[#allocation7 + $0x1a0] sm:$0xff]
        %v1171 = vld [vmem:[#allocation7 + $0x1a8] sm:$0xff]
        %v1172 = vld [vmem:[#allocation7 + $0x1b0] sm:$0xff]
        %v1173 = vld [vmem:[#allocation7 + $0x1b8] sm:$0xff]
        %v1174 = vld [vmem:[#allocation7 + $0x1c0] sm:$0xff]
        %v1175 = vld [vmem:[#allocation7 + $0x1c8] sm:$0xff]
        %v1176 = vld [vmem:[#allocation7 + $0x1d0] sm:$0xff]
        %v1177 = vld [vmem:[#allocation7 + $0x1d8] sm:$0xff]
        %v1178 = vld [vmem:[#allocation7 + $0x1e0] sm:$0xff]
        %v1179 = vld [vmem:[#allocation7 + $0x1e8] sm:$0xff]
        %v1180 = vld [vmem:[#allocation7 + $0x1f0] sm:$0xff]
        %v1181 = vld [vmem:[#allocation7 + $0x1f8] sm:$0xff]
        %v1182 = vld [vmem:[#allocation7 + $0x200] sm:$0xff]
        %v1183 = vld [vmem:[#allocation7 + $0x208] sm:$0xff]
        %v1184 = vld [vmem:[#allocation7 + $0x210] sm:$0xff]
        %v1185 = vld [vmem:[#allocation7 + $0x218] sm:$0xff]
        %v1186 = vld [vmem:[#allocation7 + $0x220] sm:$0xff]
        %v1187 = vld [vmem:[#allocation7 + $0x228] sm:$0xff]
        %v1188 = vld [vmem:[#allocation7 + $0x230] sm:$0xff]
        %v1189 = vld [vmem:[#allocation7 + $0x238] sm:$0xff]
        %v1190 = vld [vmem:[#allocation7 + $0x240] sm:$0xff]
        %v1191 = vld [vmem:[#allocation7 + $0x248] sm:$0xff]
        %v1192 = vld [vmem:[#allocation7 + $0x250] sm:$0xff]
        %v1193 = vld [vmem:[#allocation7 + $0x258] sm:$0xff]
        %v1194 = vld [vmem:[#allocation7 + $0x260] sm:$0xff]
        %v1195 = vld [vmem:[#allocation7 + $0x268] sm:$0xff]
        %v1196 = vld [vmem:[#allocation7 + $0x270] sm:$0xff]
        %v1197 = vld [vmem:[#allocation7 + $0x278] sm:$0xff]
        %v1198 = vld [vmem:[#allocation7 + $0x280] sm:$0xff]
        %v1199 = vld [vmem:[#allocation7 + $0x288] sm:$0xff]
        %v1200 = vld [vmem:[#allocation7 + $0x290] sm:$0xff]
        %v1201 = vld [vmem:[#allocation7 + $0x298] sm:$0xff]
        %v1202 = vld [vmem:[#allocation7 + $0x2a0] sm:$0xff]
        %v1203 = vld [vmem:[#allocation7 + $0x2a8] sm:$0xff]
        %v1204 = vld [vmem:[#allocation7 + $0x2b0] sm:$0xff]
        %v1205 = vld [vmem:[#allocation7 + $0x2b8] sm:$0xff]
        %v1206 = vld [vmem:[#allocation7 + $0x2c0] sm:$0xff]
        %v1207 = vld [vmem:[#allocation7 + $0x2c8] sm:$0xff]
        %v1208 = vld [vmem:[#allocation7 + $0x2d0] sm:$0xff]
        %v1209 = vld [vmem:[#allocation7 + $0x2d8] sm:$0xff]
        %v1210 = vld [vmem:[#allocation7 + $0x2e0] sm:$0xff]
        %v1211 = vld [vmem:[#allocation7 + $0x2e8] sm:$0xff]
        %v1212 = vld [vmem:[#allocation7 + $0x2f0] sm:$0xff]
        %v1213 = vld [vmem:[#allocation7 + $0x2f8] sm:$0xff]
        %v1214 = vld [vmem:[#allocation7 + $0x300] sm:$0xff]
        %v1215 = vld [vmem:[#allocation7 + $0x308] sm:$0xff]
        %v1216 = vld [vmem:[#allocation7 + $0x310] sm:$0xff]
        %v1217 = vld [vmem:[#allocation7 + $0x318] sm:$0xff]
        %v1218 = vld [vmem:[#allocation7 + $0x320] sm:$0xff]
        %v1219 = vld [vmem:[#allocation7 + $0x328] sm:$0xff]
        %v1220 = vld [vmem:[#allocation7 + $0x330] sm:$0xff]
        %v1221 = vld [vmem:[#allocation7 + $0x338] sm:$0xff]
        %v1222 = vld [vmem:[#allocation7 + $0x340] sm:$0xff]
        %v1223 = vld [vmem:[#allocation7 + $0x348] sm:$0xff]
        %v1224 = vld [vmem:[#allocation7 + $0x350] sm:$0xff]
        %v1225 = vld [vmem:[#allocation7 + $0x358] sm:$0xff]
        %v1226 = vld [vmem:[#allocation7 + $0x360] sm:$0xff]
        %v1227 = vld [vmem:[#allocation7 + $0x368] sm:$0xff]
        %v1228 = vld [vmem:[#allocation7 + $0x370] sm:$0xff]
        %v1229 = vld [vmem:[#allocation7 + $0x378] sm:$0xff]
        %v1230 = vld [vmem:[#allocation7 + $0x380] sm:$0xff]
        %v1231 = vld [vmem:[#allocation7 + $0x388] sm:$0xff]
        %v1232 = vld [vmem:[#allocation7 + $0x390] sm:$0xff]
        %v1233 = vld [vmem:[#allocation7 + $0x398] sm:$0xff]
        %v1234 = vld [vmem:[#allocation7 + $0x3a0] sm:$0xff]
        %v1235 = vld [vmem:[#allocation7 + $0x3a8] sm:$0xff]
        %v1236 = vld [vmem:[#allocation7 + $0x3b0] sm:$0xff]
        %v1237 = vld [vmem:[#allocation7 + $0x3b8] sm:$0xff]
        %v1238 = vld [vmem:[#allocation7 + $0x3c0] sm:$0xff]
        %v1239 = vld [vmem:[#allocation7 + $0x3c8] sm:$0xff]
        %v1240 = vld [vmem:[#allocation7 + $0x3d0] sm:$0xff]
        %v1241 = vld [vmem:[#allocation7 + $0x3d8] sm:$0xff]
        %v1242 = vld [vmem:[#allocation7 + $0x3e0] sm:$0xff]
        %v1243 = vld [vmem:[#allocation7 + $0x3e8] sm:$0xff]
        %v1244 = vld [vmem:[#allocation7 + $0x3f0] sm:$0xff]
        %v1245 = vld [vmem:[#allocation7 + $0x3f8] sm:$0xff]
        %v1246 = vmul.f32 %v721, %v902
        %v1247 = vmul.f32 %v733, %v903
        %v1248 = vmul.f32 %v745, %v904
        %v1249 = vmul.f32 %v757, %v905
        %v1250 = vmul.f32 %v769, %v906
        %v1251 = vmul.f32 %v781, %v907
        %v1252 = vmul.f32 %v793, %v908
        %v1253 = vmul.f32 %v805, %v909
        %v1254 = vmul.f32 %v817, %v910
        %v1255 = vmul.f32 %v829, %v911
        %v1256 = vmul.f32 %v841, %v912
        %v1257 = vmul.f32 %v853, %v913
        %v1258 = vmul.f32 %v865, %v914
        %v1259 = vmul.f32 %v877, %v915
        %v1260 = vmul.f32 %v889, %v916
        %v1261 = vmul.f32 %v901, %v917
        %v1262 = vmul.f32 %v721, %v966
        %v1263 = vmul.f32 %v733, %v967
        %v1264 = vmul.f32 %v745, %v968
        %v1265 = vmul.f32 %v757, %v969
        %v1266 = vmul.f32 %v769, %v970
        %v1267 = vmul.f32 %v781, %v971
        %v1268 = vmul.f32 %v793, %v972
        %v1269 = vmul.f32 %v805, %v973
        %v1270 = vmul.f32 %v817, %v974
        %v1271 = vmul.f32 %v829, %v975
        %v1272 = vmul.f32 %v841, %v976
        %v1273 = vmul.f32 %v853, %v977
        %v1274 = vmul.f32 %v865, %v978
        %v1275 = vmul.f32 %v877, %v979
        %v1276 = vmul.f32 %v889, %v980
        %v1277 = vmul.f32 %v901, %v981
        %v1278 = vmul.f32 %v721, %v1046
        %v1279 = vmul.f32 %v733, %v1047
        %v1280 = vmul.f32 %v745, %v1048
        %v1281 = vmul.f32 %v757, %v1049
        %v1282 = vmul.f32 %v769, %v1050
        %v1283 = vmul.f32 %v781, %v1051
        %v1284 = vmul.f32 %v793, %v1052
        %v1285 = vmul.f32 %v805, %v1053
        %v1286 = vmul.f32 %v817, %v1054
        %v1287 = vmul.f32 %v829, %v1055
        %v1288 = vmul.f32 %v841, %v1056
        %v1289 = vmul.f32 %v853, %v1057
        %v1290 = vmul.f32 %v865, %v1058
        %v1291 = vmul.f32 %v877, %v1059
        %v1292 = vmul.f32 %v889, %v1060
        %v1293 = vmul.f32 %v901, %v1061
        %v1294 = vmul.f32 %v721, %v918
        %v1295 = vmul.f32 %v733, %v919
        %v1296 = vmul.f32 %v745, %v920
        %v1297 = vmul.f32 %v757, %v921
        %v1298 = vmul.f32 %v769, %v922
        %v1299 = vmul.f32 %v781, %v923
        %v1300 = vmul.f32 %v793, %v924
        %v1301 = vmul.f32 %v805, %v925
        %v1302 = vmul.f32 %v817, %v926
        %v1303 = vmul.f32 %v829, %v927
        %v1304 = vmul.f32 %v841, %v928
        %v1305 = vmul.f32 %v853, %v929
        %v1306 = vmul.f32 %v865, %v930
        %v1307 = vmul.f32 %v877, %v931
        %v1308 = vmul.f32 %v889, %v932
        %v1309 = vmul.f32 %v901, %v933
        %v1310 = vmul.f32 %v721, %v998
        %v1311 = vmul.f32 %v733, %v999
        %v1312 = vmul.f32 %v745, %v1000
        %v1313 = vmul.f32 %v757, %v1001
        %v1314 = vmul.f32 %v769, %v1002
        %v1315 = vmul.f32 %v781, %v1003
        %v1316 = vmul.f32 %v793, %v1004
        %v1317 = vmul.f32 %v805, %v1005
        %v1318 = vmul.f32 %v817, %v1006
        %v1319 = vmul.f32 %v829, %v1007
        %v1320 = vmul.f32 %v841, %v1008
        %v1321 = vmul.f32 %v853, %v1009
        %v1322 = vmul.f32 %v865, %v1010
        %v1323 = vmul.f32 %v877, %v1011
        %v1324 = vmul.f32 %v889, %v1012
        %v1325 = vmul.f32 %v901, %v1013
        %v1326 = vmul.f32 %v721, %v1094
        %v1327 = vmul.f32 %v733, %v1095
        %v1328 = vmul.f32 %v745, %v1096
        %v1329 = vmul.f32 %v757, %v1097
        %v1330 = vmul.f32 %v769, %v1098
        %v1331 = vmul.f32 %v781, %v1099
        %v1332 = vmul.f32 %v793, %v1100
        %v1333 = vmul.f32 %v805, %v1101
        %v1334 = vmul.f32 %v817, %v1102
        %v1335 = vmul.f32 %v829, %v1103
        %v1336 = vmul.f32 %v841, %v1104
        %v1337 = vmul.f32 %v853, %v1105
        %v1338 = vmul.f32 %v865, %v1106
        %v1339 = vmul.f32 %v877, %v1107
        %v1340 = vmul.f32 %v889, %v1108
        %v1341 = vmul.f32 %v901, %v1109
        %v1342 = vld [vmem:[#allocation7 + $0x400] sm:$0xff]
        %v1343 = vld [vmem:[#allocation7 + $0x408] sm:$0xff]
        %v1344 = vld [vmem:[#allocation7 + $0x410] sm:$0xff]
        %v1345 = vld [vmem:[#allocation7 + $0x418] sm:$0xff]
        %v1346 = vld [vmem:[#allocation7 + $0x420] sm:$0xff]
        %v1347 = vld [vmem:[#allocation7 + $0x428] sm:$0xff]
        %v1348 = vld [vmem:[#allocation7 + $0x430] sm:$0xff]
        %v1349 = vld [vmem:[#allocation7 + $0x438] sm:$0xff]
        %v1350 = vld [vmem:[#allocation7 + $0x440] sm:$0xff]
        %v1351 = vld [vmem:[#allocation7 + $0x448] sm:$0xff]
        %v1352 = vld [vmem:[#allocation7 + $0x450] sm:$0xff]
        %v1353 = vld [vmem:[#allocation7 + $0x458] sm:$0xff]
        %v1354 = vld [vmem:[#allocation7 + $0x460] sm:$0xff]
        %v1355 = vld [vmem:[#allocation7 + $0x468] sm:$0xff]
        %v1356 = vld [vmem:[#allocation7 + $0x470] sm:$0xff]
        %v1357 = vld [vmem:[#allocation7 + $0x478] sm:$0xff]
        %v1358 = vld [vmem:[#allocation7 + $0x480] sm:$0xff]
        %v1359 = vld [vmem:[#allocation7 + $0x488] sm:$0xff]
        %v1360 = vld [vmem:[#allocation7 + $0x490] sm:$0xff]
        %v1361 = vld [vmem:[#allocation7 + $0x498] sm:$0xff]
        %v1362 = vld [vmem:[#allocation7 + $0x4a0] sm:$0xff]
        %v1363 = vld [vmem:[#allocation7 + $0x4a8] sm:$0xff]
        %v1364 = vld [vmem:[#allocation7 + $0x4b0] sm:$0xff]
        %v1365 = vld [vmem:[#allocation7 + $0x4b8] sm:$0xff]
        %v1366 = vld [vmem:[#allocation7 + $0x4c0] sm:$0xff]
        %v1367 = vld [vmem:[#allocation7 + $0x4c8] sm:$0xff]
        %v1368 = vld [vmem:[#allocation7 + $0x4d0] sm:$0xff]
        %v1369 = vld [vmem:[#allocation7 + $0x4d8] sm:$0xff]
        %v1370 = vld [vmem:[#allocation7 + $0x4e0] sm:$0xff]
        %v1371 = vld [vmem:[#allocation7 + $0x4e8] sm:$0xff]
        %v1372 = vld [vmem:[#allocation7 + $0x4f0] sm:$0xff]
        %v1373 = vld [vmem:[#allocation7 + $0x4f8] sm:$0xff]
        %v1374 = vld [vmem:[#allocation7 + $0x500] sm:$0xff]
        %v1375 = vld [vmem:[#allocation7 + $0x508] sm:$0xff]
        %v1376 = vld [vmem:[#allocation7 + $0x510] sm:$0xff]
        %v1377 = vld [vmem:[#allocation7 + $0x518] sm:$0xff]
        %v1378 = vld [vmem:[#allocation7 + $0x520] sm:$0xff]
        %v1379 = vld [vmem:[#allocation7 + $0x528] sm:$0xff]
        %v1380 = vld [vmem:[#allocation7 + $0x530] sm:$0xff]
        %v1381 = vld [vmem:[#allocation7 + $0x538] sm:$0xff]
        %v1382 = vld [vmem:[#allocation7 + $0x540] sm:$0xff]
        %v1383 = vld [vmem:[#allocation7 + $0x548] sm:$0xff]
        %v1384 = vld [vmem:[#allocation7 + $0x550] sm:$0xff]
        %v1385 = vld [vmem:[#allocation7 + $0x558] sm:$0xff]
        %v1386 = vld [vmem:[#allocation7 + $0x560] sm:$0xff]
        %v1387 = vld [vmem:[#allocation7 + $0x568] sm:$0xff]
        %v1388 = vld [vmem:[#allocation7 + $0x570] sm:$0xff]
        %v1389 = vld [vmem:[#allocation7 + $0x578] sm:$0xff]
        %v1390 = vld [vmem:[#allocation7 + $0x580] sm:$0xff]
        %v1391 = vld [vmem:[#allocation7 + $0x588] sm:$0xff]
        %v1392 = vld [vmem:[#allocation7 + $0x590] sm:$0xff]
        %v1393 = vld [vmem:[#allocation7 + $0x598] sm:$0xff]
        %v1394 = vld [vmem:[#allocation7 + $0x5a0] sm:$0xff]
        %v1395 = vld [vmem:[#allocation7 + $0x5a8] sm:$0xff]
        %v1396 = vld [vmem:[#allocation7 + $0x5b0] sm:$0xff]
        %v1397 = vld [vmem:[#allocation7 + $0x5b8] sm:$0xff]
        %v1398 = vld [vmem:[#allocation7 + $0x5c0] sm:$0xff]
        %v1399 = vld [vmem:[#allocation7 + $0x5c8] sm:$0xff]
        %v1400 = vld [vmem:[#allocation7 + $0x5d0] sm:$0xff]
        %v1401 = vld [vmem:[#allocation7 + $0x5d8] sm:$0xff]
        %v1402 = vld [vmem:[#allocation7 + $0x5e0] sm:$0xff]
        %v1403 = vld [vmem:[#allocation7 + $0x5e8] sm:$0xff]
        %v1404 = vld [vmem:[#allocation7 + $0x5f0] sm:$0xff]
        %v1405 = vld [vmem:[#allocation7 + $0x5f8] sm:$0xff]
        %v1406 = vld [vmem:[#allocation7 + $0x600] sm:$0xff]
        %v1407 = vld [vmem:[#allocation7 + $0x608] sm:$0xff]
        %v1408 = vld [vmem:[#allocation7 + $0x610] sm:$0xff]
        %v1409 = vld [vmem:[#allocation7 + $0x618] sm:$0xff]
        %v1410 = vld [vmem:[#allocation7 + $0x620] sm:$0xff]
        %v1411 = vld [vmem:[#allocation7 + $0x628] sm:$0xff]
        %v1412 = vld [vmem:[#allocation7 + $0x630] sm:$0xff]
        %v1413 = vld [vmem:[#allocation7 + $0x638] sm:$0xff]
        %v1414 = vld [vmem:[#allocation7 + $0x640] sm:$0xff]
        %v1415 = vld [vmem:[#allocation7 + $0x648] sm:$0xff]
        %v1416 = vld [vmem:[#allocation7 + $0x650] sm:$0xff]
        %v1417 = vld [vmem:[#allocation7 + $0x658] sm:$0xff]
        %v1418 = vld [vmem:[#allocation7 + $0x660] sm:$0xff]
        %v1419 = vld [vmem:[#allocation7 + $0x668] sm:$0xff]
        %v1420 = vld [vmem:[#allocation7 + $0x670] sm:$0xff]
        %v1421 = vld [vmem:[#allocation7 + $0x678] sm:$0xff]
        %v1422 = vld [vmem:[#allocation7 + $0x680] sm:$0xff]
        %v1423 = vld [vmem:[#allocation7 + $0x688] sm:$0xff]
        %v1424 = vld [vmem:[#allocation7 + $0x690] sm:$0xff]
        %v1425 = vld [vmem:[#allocation7 + $0x698] sm:$0xff]
        %v1426 = vld [vmem:[#allocation7 + $0x6a0] sm:$0xff]
        %v1427 = vld [vmem:[#allocation7 + $0x6a8] sm:$0xff]
        %v1428 = vld [vmem:[#allocation7 + $0x6b0] sm:$0xff]
        %v1429 = vld [vmem:[#allocation7 + $0x6b8] sm:$0xff]
        %v1430 = vld [vmem:[#allocation7 + $0x6c0] sm:$0xff]
        %v1431 = vld [vmem:[#allocation7 + $0x6c8] sm:$0xff]
        %v1432 = vld [vmem:[#allocation7 + $0x6d0] sm:$0xff]
        %v1433 = vld [vmem:[#allocation7 + $0x6d8] sm:$0xff]
        %v1434 = vld [vmem:[#allocation7 + $0x6e0] sm:$0xff]
        %v1435 = vld [vmem:[#allocation7 + $0x6e8] sm:$0xff]
        %v1436 = vld [vmem:[#allocation7 + $0x6f0] sm:$0xff]
        %v1437 = vld [vmem:[#allocation7 + $0x6f8] sm:$0xff]
        %v1438 = vld [vmem:[#allocation7 + $0x700] sm:$0xff]
        %v1439 = vld [vmem:[#allocation7 + $0x708] sm:$0xff]
        %v1440 = vld [vmem:[#allocation7 + $0x710] sm:$0xff]
        %v1441 = vld [vmem:[#allocation7 + $0x718] sm:$0xff]
        %v1442 = vld [vmem:[#allocation7 + $0x720] sm:$0xff]
        %v1443 = vld [vmem:[#allocation7 + $0x728] sm:$0xff]
        %v1444 = vld [vmem:[#allocation7 + $0x730] sm:$0xff]
        %v1445 = vld [vmem:[#allocation7 + $0x738] sm:$0xff]
        %v1446 = vld [vmem:[#allocation7 + $0x740] sm:$0xff]
        %v1447 = vld [vmem:[#allocation7 + $0x748] sm:$0xff]
        %v1448 = vld [vmem:[#allocation7 + $0x750] sm:$0xff]
        %v1449 = vld [vmem:[#allocation7 + $0x758] sm:$0xff]
        %v1450 = vld [vmem:[#allocation7 + $0x760] sm:$0xff]
        %v1451 = vld [vmem:[#allocation7 + $0x768] sm:$0xff]
        %v1452 = vld [vmem:[#allocation7 + $0x770] sm:$0xff]
        %v1453 = vld [vmem:[#allocation7 + $0x778] sm:$0xff]
        %v1454 = vld [vmem:[#allocation7 + $0x780] sm:$0xff]
        %v1455 = vld [vmem:[#allocation7 + $0x788] sm:$0xff]
        %v1456 = vld [vmem:[#allocation7 + $0x790] sm:$0xff]
        %v1457 = vld [vmem:[#allocation7 + $0x798] sm:$0xff]
        %v1458 = vld [vmem:[#allocation7 + $0x7a0] sm:$0xff]
        %v1459 = vld [vmem:[#allocation7 + $0x7a8] sm:$0xff]
        %v1460 = vld [vmem:[#allocation7 + $0x7b0] sm:$0xff]
        %v1461 = vld [vmem:[#allocation7 + $0x7b8] sm:$0xff]
        %v1462 = vld [vmem:[#allocation7 + $0x7c0] sm:$0xff]
        %v1463 = vld [vmem:[#allocation7 + $0x7c8] sm:$0xff]
        %v1464 = vld [vmem:[#allocation7 + $0x7d0] sm:$0xff]
        %v1465 = vld [vmem:[#allocation7 + $0x7d8] sm:$0xff]
        %v1466 = vld [vmem:[#allocation7 + $0x7e0] sm:$0xff]
        %v1467 = vld [vmem:[#allocation7 + $0x7e8] sm:$0xff]
        %v1468 = vld [vmem:[#allocation7 + $0x7f0] sm:$0xff]
        %v1469 = vld [vmem:[#allocation7 + $0x7f8] sm:$0xff]
        %v1470 = vpack.c.bf16 %v1254, %v1246
        %v1471 = vpack.c.bf16 %v1255, %v1247
        %v1472 = vpack.c.bf16 %v1256, %v1248
        %v1473 = vpack.c.bf16 %v1257, %v1249
        %v1474 = vpack.c.bf16 %v1258, %v1250
        %v1475 = vpack.c.bf16 %v1259, %v1251
        %v1476 = vpack.c.bf16 %v1260, %v1252
        %v1477 = vpack.c.bf16 %v1261, %v1253
        %v1606 = vunpack.c.l.b16 %v1342
        %v1607 = vunpack.c.h.b16 %v1342
        %v1608 = vunpack.c.l.b16 %v1343
        %v1609 = vunpack.c.h.b16 %v1343
        %v1610 = vunpack.c.l.b16 %v1344
        %v1611 = vunpack.c.h.b16 %v1344
        %v1612 = vunpack.c.l.b16 %v1345
        %v1613 = vunpack.c.h.b16 %v1345
        %v1614 = vunpack.c.l.b16 %v1346
        %v1615 = vunpack.c.h.b16 %v1346
        %v1616 = vunpack.c.l.b16 %v1347
        %v1617 = vunpack.c.h.b16 %v1347
        %v1618 = vunpack.c.l.b16 %v1348
        %v1619 = vunpack.c.h.b16 %v1348
        %v1620 = vunpack.c.l.b16 %v1349
        %v1621 = vunpack.c.h.b16 %v1349
        %v1622 = vunpack.c.l.b16 %v1350
        %v1623 = vunpack.c.h.b16 %v1350
        %v1624 = vunpack.c.l.b16 %v1351
        %v1625 = vunpack.c.h.b16 %v1351
        %v1626 = vunpack.c.l.b16 %v1352
        %v1627 = vunpack.c.h.b16 %v1352
        %v1628 = vunpack.c.l.b16 %v1353
        %v1629 = vunpack.c.h.b16 %v1353
        %v1630 = vunpack.c.l.b16 %v1354
        %v1631 = vunpack.c.h.b16 %v1354
        %v1632 = vunpack.c.l.b16 %v1355
        %v1633 = vunpack.c.h.b16 %v1355
        %v1634 = vunpack.c.l.b16 %v1356
        %v1635 = vunpack.c.h.b16 %v1356
        %v1636 = vunpack.c.l.b16 %v1357
        %v1637 = vunpack.c.h.b16 %v1357
        %v1638 = vunpack.c.l.b16 %v1358
        %v1639 = vunpack.c.h.b16 %v1358
        %v1640 = vunpack.c.l.b16 %v1359
        %v1641 = vunpack.c.h.b16 %v1359
        %v1642 = vunpack.c.l.b16 %v1360
        %v1643 = vunpack.c.h.b16 %v1360
        %v1644 = vunpack.c.l.b16 %v1361
        %v1645 = vunpack.c.h.b16 %v1361
        %v1646 = vunpack.c.l.b16 %v1362
        %v1647 = vunpack.c.h.b16 %v1362
        %v1648 = vunpack.c.l.b16 %v1363
        %v1649 = vunpack.c.h.b16 %v1363
        %v1650 = vunpack.c.l.b16 %v1364
        %v1651 = vunpack.c.h.b16 %v1364
        %v1652 = vunpack.c.l.b16 %v1365
        %v1653 = vunpack.c.h.b16 %v1365
        %v1654 = vunpack.c.l.b16 %v1366
        %v1655 = vunpack.c.h.b16 %v1366
        %v1656 = vunpack.c.l.b16 %v1367
        %v1657 = vunpack.c.h.b16 %v1367
        %v1658 = vunpack.c.l.b16 %v1368
        %v1659 = vunpack.c.h.b16 %v1368
        %v1660 = vunpack.c.l.b16 %v1369
        %v1661 = vunpack.c.h.b16 %v1369
        %v1662 = vunpack.c.l.b16 %v1370
        %v1663 = vunpack.c.h.b16 %v1370
        %v1664 = vunpack.c.l.b16 %v1371
        %v1665 = vunpack.c.h.b16 %v1371
        %v1666 = vunpack.c.l.b16 %v1372
        %v1667 = vunpack.c.h.b16 %v1372
        %v1668 = vunpack.c.l.b16 %v1373
        %v1669 = vunpack.c.h.b16 %v1373
        %v1670 = vunpack.c.l.b16 %v1374
        %v1671 = vunpack.c.h.b16 %v1374
        %v1672 = vunpack.c.l.b16 %v1375
        %v1673 = vunpack.c.h.b16 %v1375
        %v1674 = vunpack.c.l.b16 %v1376
        %v1675 = vunpack.c.h.b16 %v1376
        %v1676 = vunpack.c.l.b16 %v1377
        %v1677 = vunpack.c.h.b16 %v1377
        %v1678 = vunpack.c.l.b16 %v1378
        %v1679 = vunpack.c.h.b16 %v1378
        %v1680 = vunpack.c.l.b16 %v1379
        %v1681 = vunpack.c.h.b16 %v1379
        %v1682 = vunpack.c.l.b16 %v1380
        %v1683 = vunpack.c.h.b16 %v1380
        %v1684 = vunpack.c.l.b16 %v1381
        %v1685 = vunpack.c.h.b16 %v1381
        %v1686 = vunpack.c.l.b16 %v1382
        %v1687 = vunpack.c.h.b16 %v1382
        %v1688 = vunpack.c.l.b16 %v1383
        %v1689 = vunpack.c.h.b16 %v1383
        %v1690 = vunpack.c.l.b16 %v1384
        %v1691 = vunpack.c.h.b16 %v1384
        %v1692 = vunpack.c.l.b16 %v1385
        %v1693 = vunpack.c.h.b16 %v1385
        %v1694 = vunpack.c.l.b16 %v1386
        %v1695 = vunpack.c.h.b16 %v1386
        %v1696 = vunpack.c.l.b16 %v1387
        %v1697 = vunpack.c.h.b16 %v1387
        %v1698 = vunpack.c.l.b16 %v1388
        %v1699 = vunpack.c.h.b16 %v1388
        %v1700 = vunpack.c.l.b16 %v1389
        %v1701 = vunpack.c.h.b16 %v1389
        %v1702 = vunpack.c.l.b16 %v1390
        %v1703 = vunpack.c.h.b16 %v1390
        %v1704 = vunpack.c.l.b16 %v1391
        %v1705 = vunpack.c.h.b16 %v1391
        %v1706 = vunpack.c.l.b16 %v1392
        %v1707 = vunpack.c.h.b16 %v1392
        %v1708 = vunpack.c.l.b16 %v1393
        %v1709 = vunpack.c.h.b16 %v1393
        %v1710 = vunpack.c.l.b16 %v1394
        %v1711 = vunpack.c.h.b16 %v1394
        %v1712 = vunpack.c.l.b16 %v1395
        %v1713 = vunpack.c.h.b16 %v1395
        %v1714 = vunpack.c.l.b16 %v1396
        %v1715 = vunpack.c.h.b16 %v1396
        %v1716 = vunpack.c.l.b16 %v1397
        %v1717 = vunpack.c.h.b16 %v1397
        %v1718 = vunpack.c.l.b16 %v1398
        %v1719 = vunpack.c.h.b16 %v1398
        %v1720 = vunpack.c.l.b16 %v1399
        %v1721 = vunpack.c.h.b16 %v1399
        %v1722 = vunpack.c.l.b16 %v1400
        %v1723 = vunpack.c.h.b16 %v1400
        %v1724 = vunpack.c.l.b16 %v1401
        %v1725 = vunpack.c.h.b16 %v1401
        %v1726 = vunpack.c.l.b16 %v1402
        %v1727 = vunpack.c.h.b16 %v1402
        %v1728 = vunpack.c.l.b16 %v1403
        %v1729 = vunpack.c.h.b16 %v1403
        %v1730 = vunpack.c.l.b16 %v1404
        %v1731 = vunpack.c.h.b16 %v1404
        %v1732 = vunpack.c.l.b16 %v1405
        %v1733 = vunpack.c.h.b16 %v1405
        %v1734 = vunpack.c.l.b16 %v1406
        %v1735 = vunpack.c.h.b16 %v1406
        %v1736 = vunpack.c.l.b16 %v1407
        %v1737 = vunpack.c.h.b16 %v1407
        %v1738 = vunpack.c.l.b16 %v1408
        %v1739 = vunpack.c.h.b16 %v1408
        %v1740 = vunpack.c.l.b16 %v1409
        %v1741 = vunpack.c.h.b16 %v1409
        %v1742 = vunpack.c.l.b16 %v1410
        %v1743 = vunpack.c.h.b16 %v1410
        %v1744 = vunpack.c.l.b16 %v1411
        %v1745 = vunpack.c.h.b16 %v1411
        %v1746 = vunpack.c.l.b16 %v1412
        %v1747 = vunpack.c.h.b16 %v1412
        %v1748 = vunpack.c.l.b16 %v1413
        %v1749 = vunpack.c.h.b16 %v1413
        %v1750 = vunpack.c.l.b16 %v1414
        %v1751 = vunpack.c.h.b16 %v1414
        %v1752 = vunpack.c.l.b16 %v1415
        %v1753 = vunpack.c.h.b16 %v1415
        %v1754 = vunpack.c.l.b16 %v1416
        %v1755 = vunpack.c.h.b16 %v1416
        %v1756 = vunpack.c.l.b16 %v1417
        %v1757 = vunpack.c.h.b16 %v1417
        %v1758 = vunpack.c.l.b16 %v1418
        %v1759 = vunpack.c.h.b16 %v1418
        %v1760 = vunpack.c.l.b16 %v1419
        %v1761 = vunpack.c.h.b16 %v1419
        %v1762 = vunpack.c.l.b16 %v1420
        %v1763 = vunpack.c.h.b16 %v1420
        %v1764 = vunpack.c.l.b16 %v1421
        %v1765 = vunpack.c.h.b16 %v1421
        %v1766 = vunpack.c.l.b16 %v1422
        %v1767 = vunpack.c.h.b16 %v1422
        %v1768 = vunpack.c.l.b16 %v1423
        %v1769 = vunpack.c.h.b16 %v1423
        %v1770 = vunpack.c.l.b16 %v1424
        %v1771 = vunpack.c.h.b16 %v1424
        %v1772 = vunpack.c.l.b16 %v1425
        %v1773 = vunpack.c.h.b16 %v1425
        %v1774 = vunpack.c.l.b16 %v1426
        %v1775 = vunpack.c.h.b16 %v1426
        %v1776 = vunpack.c.l.b16 %v1427
        %v1777 = vunpack.c.h.b16 %v1427
        %v1778 = vunpack.c.l.b16 %v1428
        %v1779 = vunpack.c.h.b16 %v1428
        %v1780 = vunpack.c.l.b16 %v1429
        %v1781 = vunpack.c.h.b16 %v1429
        %v1782 = vunpack.c.l.b16 %v1430
        %v1783 = vunpack.c.h.b16 %v1430
        %v1784 = vunpack.c.l.b16 %v1431
        %v1785 = vunpack.c.h.b16 %v1431
        %v1786 = vunpack.c.l.b16 %v1432
        %v1787 = vunpack.c.h.b16 %v1432
        %v1788 = vunpack.c.l.b16 %v1433
        %v1789 = vunpack.c.h.b16 %v1433
        %v1790 = vunpack.c.l.b16 %v1434
        %v1791 = vunpack.c.h.b16 %v1434
        %v1792 = vunpack.c.l.b16 %v1435
        %v1793 = vunpack.c.h.b16 %v1435
        %v1794 = vunpack.c.l.b16 %v1436
        %v1795 = vunpack.c.h.b16 %v1436
        %v1796 = vunpack.c.l.b16 %v1437
        %v1797 = vunpack.c.h.b16 %v1437
        %v1798 = vunpack.c.l.b16 %v1438
        %v1799 = vunpack.c.h.b16 %v1438
        %v1800 = vunpack.c.l.b16 %v1439
        %v1801 = vunpack.c.h.b16 %v1439
        %v1802 = vunpack.c.l.b16 %v1440
        %v1803 = vunpack.c.h.b16 %v1440
        %v1804 = vunpack.c.l.b16 %v1441
        %v1805 = vunpack.c.h.b16 %v1441
        %v1806 = vunpack.c.l.b16 %v1442
        %v1807 = vunpack.c.h.b16 %v1442
        %v1808 = vunpack.c.l.b16 %v1443
        %v1809 = vunpack.c.h.b16 %v1443
        %v1810 = vunpack.c.l.b16 %v1444
        %v1811 = vunpack.c.h.b16 %v1444
        %v1812 = vunpack.c.l.b16 %v1445
        %v1813 = vunpack.c.h.b16 %v1445
        %v1814 = vunpack.c.l.b16 %v1446
        %v1815 = vunpack.c.h.b16 %v1446
        %v1816 = vunpack.c.l.b16 %v1447
        %v1817 = vunpack.c.h.b16 %v1447
        %v1818 = vunpack.c.l.b16 %v1448
        %v1819 = vunpack.c.h.b16 %v1448
        %v1820 = vunpack.c.l.b16 %v1449
        %v1821 = vunpack.c.h.b16 %v1449
        %v1822 = vunpack.c.l.b16 %v1450
        %v1823 = vunpack.c.h.b16 %v1450
        %v1824 = vunpack.c.l.b16 %v1451
        %v1825 = vunpack.c.h.b16 %v1451
        %v1826 = vunpack.c.l.b16 %v1452
        %v1827 = vunpack.c.h.b16 %v1452
        %v1828 = vunpack.c.l.b16 %v1453
        %v1829 = vunpack.c.h.b16 %v1453
        %v1830 = vunpack.c.l.b16 %v1454
        %v1831 = vunpack.c.h.b16 %v1454
        %v1832 = vunpack.c.l.b16 %v1455
        %v1833 = vunpack.c.h.b16 %v1455
        %v1834 = vunpack.c.l.b16 %v1456
        %v1835 = vunpack.c.h.b16 %v1456
        %v1836 = vunpack.c.l.b16 %v1457
        %v1837 = vunpack.c.h.b16 %v1457
        %v1838 = vunpack.c.l.b16 %v1458
        %v1839 = vunpack.c.h.b16 %v1458
        %v1840 = vunpack.c.l.b16 %v1459
        %v1841 = vunpack.c.h.b16 %v1459
        %v1842 = vunpack.c.l.b16 %v1460
        %v1843 = vunpack.c.h.b16 %v1460
        %v1844 = vunpack.c.l.b16 %v1461
        %v1845 = vunpack.c.h.b16 %v1461
        %v1846 = vunpack.c.l.b16 %v1462
        %v1847 = vunpack.c.h.b16 %v1462
        %v1848 = vunpack.c.l.b16 %v1463
        %v1849 = vunpack.c.h.b16 %v1463
        %v1850 = vunpack.c.l.b16 %v1464
        %v1851 = vunpack.c.h.b16 %v1464
        %v1852 = vunpack.c.l.b16 %v1465
        %v1853 = vunpack.c.h.b16 %v1465
        %v1854 = vunpack.c.l.b16 %v1466
        %v1855 = vunpack.c.h.b16 %v1466
        %v1856 = vunpack.c.l.b16 %v1467
        %v1857 = vunpack.c.h.b16 %v1467
        %v1858 = vunpack.c.l.b16 %v1468
        %v1859 = vunpack.c.h.b16 %v1468
        %v1860 = vunpack.c.l.b16 %v1469
        %v1861 = vunpack.c.h.b16 %v1469
        %v1862 = vpack.c.b16 %v1608, %v1606
        %v1863 = vpack.c.b16 %v1609, %v1607
        %v1864 = vpack.c.b16 %v1612, %v1610
        %v1865 = vpack.c.b16 %v1613, %v1611
        %v1866 = vpack.c.b16 %v1616, %v1614
        %v1867 = vpack.c.b16 %v1617, %v1615
        %v1868 = vpack.c.b16 %v1620, %v1618
        %v1869 = vpack.c.b16 %v1621, %v1619
        %v1870 = vpack.c.b16 %v1624, %v1622
        %v1871 = vpack.c.b16 %v1625, %v1623
        %v1872 = vpack.c.b16 %v1628, %v1626
        %v1873 = vpack.c.b16 %v1629, %v1627
        %v1874 = vpack.c.b16 %v1632, %v1630
        %v1875 = vpack.c.b16 %v1633, %v1631
        %v1876 = vpack.c.b16 %v1636, %v1634
        %v1877 = vpack.c.b16 %v1637, %v1635
        %v1878 = vpack.c.b16 %v1640, %v1638
        %v1879 = vpack.c.b16 %v1641, %v1639
        %v1880 = vpack.c.b16 %v1644, %v1642
        %v1881 = vpack.c.b16 %v1645, %v1643
        %v1882 = vpack.c.b16 %v1648, %v1646
        %v1883 = vpack.c.b16 %v1649, %v1647
        %v1884 = vpack.c.b16 %v1652, %v1650
        %v1885 = vpack.c.b16 %v1653, %v1651
        %v1886 = vpack.c.b16 %v1656, %v1654
        %v1887 = vpack.c.b16 %v1657, %v1655
        %v1888 = vpack.c.b16 %v1660, %v1658
        %v1889 = vpack.c.b16 %v1661, %v1659
        %v1890 = vpack.c.b16 %v1664, %v1662
        %v1891 = vpack.c.b16 %v1665, %v1663
        %v1892 = vpack.c.b16 %v1668, %v1666
        %v1893 = vpack.c.b16 %v1669, %v1667
        %v1894 = vpack.c.b16 %v1672, %v1670
        %v1895 = vpack.c.b16 %v1673, %v1671
        %v1896 = vpack.c.b16 %v1676, %v1674
        %v1897 = vpack.c.b16 %v1677, %v1675
        %v1898 = vpack.c.b16 %v1680, %v1678
        %v1899 = vpack.c.b16 %v1681, %v1679
        %v1900 = vpack.c.b16 %v1684, %v1682
        %v1901 = vpack.c.b16 %v1685, %v1683
        %v1902 = vpack.c.b16 %v1688, %v1686
        %v1903 = vpack.c.b16 %v1689, %v1687
        %v1904 = vpack.c.b16 %v1692, %v1690
        %v1905 = vpack.c.b16 %v1693, %v1691
        %v1906 = vpack.c.b16 %v1696, %v1694
        %v1907 = vpack.c.b16 %v1697, %v1695
        %v1908 = vpack.c.b16 %v1700, %v1698
        %v1909 = vpack.c.b16 %v1701, %v1699
        %v1910 = vpack.c.b16 %v1704, %v1702
        %v1911 = vpack.c.b16 %v1705, %v1703
        %v1912 = vpack.c.b16 %v1708, %v1706
        %v1913 = vpack.c.b16 %v1709, %v1707
        %v1914 = vpack.c.b16 %v1712, %v1710
        %v1915 = vpack.c.b16 %v1713, %v1711
        %v1916 = vpack.c.b16 %v1716, %v1714
        %v1917 = vpack.c.b16 %v1717, %v1715
        %v1918 = vpack.c.b16 %v1720, %v1718
        %v1919 = vpack.c.b16 %v1721, %v1719
        %v1920 = vpack.c.b16 %v1724, %v1722
        %v1921 = vpack.c.b16 %v1725, %v1723
        %v1922 = vpack.c.b16 %v1728, %v1726
        %v1923 = vpack.c.b16 %v1729, %v1727
        %v1924 = vpack.c.b16 %v1732, %v1730
        %v1925 = vpack.c.b16 %v1733, %v1731
        %v1926 = vpack.c.b16 %v1736, %v1734
        %v1927 = vpack.c.b16 %v1737, %v1735
        %v1928 = vpack.c.b16 %v1740, %v1738
        %v1929 = vpack.c.b16 %v1741, %v1739
        %v1930 = vpack.c.b16 %v1744, %v1742
        %v1931 = vpack.c.b16 %v1745, %v1743
        %v1932 = vpack.c.b16 %v1748, %v1746
        %v1933 = vpack.c.b16 %v1749, %v1747
        %v1934 = vpack.c.b16 %v1752, %v1750
        %v1935 = vpack.c.b16 %v1753, %v1751
        %v1936 = vpack.c.b16 %v1756, %v1754
        %v1937 = vpack.c.b16 %v1757, %v1755
        %v1938 = vpack.c.b16 %v1760, %v1758
        %v1939 = vpack.c.b16 %v1761, %v1759
        %v1940 = vpack.c.b16 %v1764, %v1762
        %v1941 = vpack.c.b16 %v1765, %v1763
        %v1942 = vpack.c.b16 %v1768, %v1766
        %v1943 = vpack.c.b16 %v1769, %v1767
        %v1944 = vpack.c.b16 %v1772, %v1770
        %v1945 = vpack.c.b16 %v1773, %v1771
        %v1946 = vpack.c.b16 %v1776, %v1774
        %v1947 = vpack.c.b16 %v1777, %v1775
        %v1948 = vpack.c.b16 %v1780, %v1778
        %v1949 = vpack.c.b16 %v1781, %v1779
        %v1950 = vpack.c.b16 %v1784, %v1782
        %v1951 = vpack.c.b16 %v1785, %v1783
        %v1952 = vpack.c.b16 %v1788, %v1786
        %v1953 = vpack.c.b16 %v1789, %v1787
        %v1954 = vpack.c.b16 %v1792, %v1790
        %v1955 = vpack.c.b16 %v1793, %v1791
        %v1956 = vpack.c.b16 %v1796, %v1794
        %v1957 = vpack.c.b16 %v1797, %v1795
        %v1958 = vpack.c.b16 %v1800, %v1798
        %v1959 = vpack.c.b16 %v1801, %v1799
        %v1960 = vpack.c.b16 %v1804, %v1802
        %v1961 = vpack.c.b16 %v1805, %v1803
        %v1962 = vpack.c.b16 %v1808, %v1806
        %v1963 = vpack.c.b16 %v1809, %v1807
        %v1964 = vpack.c.b16 %v1812, %v1810
        %v1965 = vpack.c.b16 %v1813, %v1811
        %v1966 = vpack.c.b16 %v1816, %v1814
        %v1967 = vpack.c.b16 %v1817, %v1815
        %v1968 = vpack.c.b16 %v1820, %v1818
        %v1969 = vpack.c.b16 %v1821, %v1819
        %v1970 = vpack.c.b16 %v1824, %v1822
        %v1971 = vpack.c.b16 %v1825, %v1823
        %v1972 = vpack.c.b16 %v1828, %v1826
        %v1973 = vpack.c.b16 %v1829, %v1827
        %v1974 = vpack.c.b16 %v1832, %v1830
        %v1975 = vpack.c.b16 %v1833, %v1831
        %v1976 = vpack.c.b16 %v1836, %v1834
        %v1977 = vpack.c.b16 %v1837, %v1835
        %v1978 = vpack.c.b16 %v1840, %v1838
        %v1979 = vpack.c.b16 %v1841, %v1839
        %v1980 = vpack.c.b16 %v1844, %v1842
        %v1981 = vpack.c.b16 %v1845, %v1843
        %v1982 = vpack.c.b16 %v1848, %v1846
        %v1983 = vpack.c.b16 %v1849, %v1847
        %v1984 = vpack.c.b16 %v1852, %v1850
        %v1985 = vpack.c.b16 %v1853, %v1851
        %v1986 = vpack.c.b16 %v1856, %v1854
        %v1987 = vpack.c.b16 %v1857, %v1855
        %v1988 = vpack.c.b16 %v1860, %v1858
        %v1989 = vpack.c.b16 %v1861, %v1859
        %2118 = vmatpush.bf16.msra.mxu0 %v1876
        %2119 = vmatpush.bf16.msra.mxu0 %v1874
        %2120 = vmatpush.bf16.msra.mxu0 %v1872
        %2121 = vmatpush.bf16.msra.mxu0 %v1870
        %2122 = vmatpush.bf16.msra.mxu0 %v1868
        %2123 = vmatpush.bf16.msra.mxu0 %v1866
        %2124 = vmatpush.bf16.msra.mxu0 %v1864
        %2125 = vmatpush.bf16.msra.mxu0 %v1862
        %2126 = vmatmul.bf16.gmra.mxu0 %v1470
        %v2127 = vpop.f32.mrf.mxu0
        %v2128 = vadd.f32 0.0, %v2127
        %v2129 = vpop.f32.mrf.mxu0
        %v2130 = vadd.f32 0.0, %v2129
        %2131 = vdwg.mxu0
        %2132 = vmatpush.bf16.msra.mxu0 %v1892
        %2133 = vmatpush.bf16.msra.mxu0 %v1890
        %2134 = vmatpush.bf16.msra.mxu0 %v1888
        %2135 = vmatpush.bf16.msra.mxu0 %v1886
        %2136 = vmatpush.bf16.msra.mxu0 %v1884
        %2137 = vmatpush.bf16.msra.mxu0 %v1882
        %2138 = vmatpush.bf16.msra.mxu0 %v1880
        %2139 = vmatpush.bf16.msra.mxu0 %v1878
        %2140 = vmatmul.bf16.gmra.mxu0 %v1471
        %v2141 = vpop.f32.mrf.mxu0
        %v2142 = vadd.f32 %v2128, %v2141
        %v2143 = vpop.f32.mrf.mxu0
        %v2144 = vadd.f32 %v2130, %v2143
        %2145 = vdwg.mxu0
        %2146 = vmatpush.bf16.msra.mxu0 %v1908
        %2147 = vmatpush.bf16.msra.mxu0 %v1906
        %2148 = vmatpush.bf16.msra.mxu0 %v1904
        %2149 = vmatpush.bf16.msra.mxu0 %v1902
        %2150 = vmatpush.bf16.msra.mxu0 %v1900
        %2151 = vmatpush.bf16.msra.mxu0 %v1898
        %2152 = vmatpush.bf16.msra.mxu0 %v1896
        %2153 = vmatpush.bf16.msra.mxu0 %v1894
        %2154 = vmatmul.bf16.gmra.mxu0 %v1472
        %v2155 = vpop.f32.mrf.mxu0
        %v2156 = vadd.f32 %v2142, %v2155
        %v2157 = vpop.f32.mrf.mxu0
        %v2158 = vadd.f32 %v2144, %v2157
        %2159 = vdwg.mxu0
        %2160 = vmatpush.bf16.msra.mxu0 %v1924
        %2161 = vmatpush.bf16.msra.mxu0 %v1922
        %2162 = vmatpush.bf16.msra.mxu0 %v1920
        %2163 = vmatpush.bf16.msra.mxu0 %v1918
        %2164 = vmatpush.bf16.msra.mxu0 %v1916
        %2165 = vmatpush.bf16.msra.mxu0 %v1914
        %2166 = vmatpush.bf16.msra.mxu0 %v1912
        %2167 = vmatpush.bf16.msra.mxu0 %v1910
        %2168 = vmatmul.bf16.gmra.mxu0 %v1473
        %v2169 = vpop.f32.mrf.mxu0
        %v2170 = vadd.f32 %v2156, %v2169
        %v2171 = vpop.f32.mrf.mxu0
        %v2172 = vadd.f32 %v2158, %v2171
        %2173 = vdwg.mxu0
        %2174 = vmatpush.bf16.msra.mxu0 %v1940
        %2175 = vmatpush.bf16.msra.mxu0 %v1938
        %2176 = vmatpush.bf16.msra.mxu0 %v1936
        %2177 = vmatpush.bf16.msra.mxu0 %v1934
        %2178 = vmatpush.bf16.msra.mxu0 %v1932
        %2179 = vmatpush.bf16.msra.mxu0 %v1930
        %2180 = vmatpush.bf16.msra.mxu0 %v1928
        %2181 = vmatpush.bf16.msra.mxu0 %v1926
        %2182 = vmatmul.bf16.gmra.mxu0 %v1474
        %v2183 = vpop.f32.mrf.mxu0
        %v2184 = vadd.f32 %v2170, %v2183
        %v2185 = vpop.f32.mrf.mxu0
        %v2186 = vadd.f32 %v2172, %v2185
        %2187 = vdwg.mxu0
        %2188 = vmatpush.bf16.msra.mxu0 %v1956
        %2189 = vmatpush.bf16.msra.mxu0 %v1954
        %2190 = vmatpush.bf16.msra.mxu0 %v1952
        %2191 = vmatpush.bf16.msra.mxu0 %v1950
        %2192 = vmatpush.bf16.msra.mxu0 %v1948
        %2193 = vmatpush.bf16.msra.mxu0 %v1946
        %2194 = vmatpush.bf16.msra.mxu0 %v1944
        %2195 = vmatpush.bf16.msra.mxu0 %v1942
        %2196 = vmatmul.bf16.gmra.mxu0 %v1475
        %v2197 = vpop.f32.mrf.mxu0
        %v2198 = vadd.f32 %v2184, %v2197
        %v2199 = vpop.f32.mrf.mxu0
        %v2200 = vadd.f32 %v2186, %v2199
        %2201 = vdwg.mxu0
        %2202 = vmatpush.bf16.msra.mxu0 %v1972
        %2203 = vmatpush.bf16.msra.mxu0 %v1970
        %2204 = vmatpush.bf16.msra.mxu0 %v1968
        %2205 = vmatpush.bf16.msra.mxu0 %v1966
        %2206 = vmatpush.bf16.msra.mxu0 %v1964
        %2207 = vmatpush.bf16.msra.mxu0 %v1962
        %2208 = vmatpush.bf16.msra.mxu0 %v1960
        %2209 = vmatpush.bf16.msra.mxu0 %v1958
        %2210 = vmatmul.bf16.gmra.mxu0 %v1476
        %v2211 = vpop.f32.mrf.mxu0
        %v2212 = vadd.f32 %v2198, %v2211
        %v2213 = vpop.f32.mrf.mxu0
        %v2214 = vadd.f32 %v2200, %v2213
        %2215 = vdwg.mxu0
        %2216 = vmatpush.bf16.msra.mxu0 %v1988
        %2217 = vmatpush.bf16.msra.mxu0 %v1986
        %2218 = vmatpush.bf16.msra.mxu0 %v1984
        %2219 = vmatpush.bf16.msra.mxu0 %v1982
        %2220 = vmatpush.bf16.msra.mxu0 %v1980
        %2221 = vmatpush.bf16.msra.mxu0 %v1978
        %2222 = vmatpush.bf16.msra.mxu0 %v1976
        %2223 = vmatpush.bf16.msra.mxu0 %v1974
        %2224 = vmatmul.bf16.gmra.mxu0 %v1477
        %v2225 = vpop.f32.mrf.mxu0
        %v2226 = vadd.f32 %v2212, %v2225
        %v2227 = vpop.f32.mrf.mxu0
        %v2228 = vadd.f32 %v2214, %v2227
        %2229 = vdwg.mxu0
        %2230 = vmatpush.bf16.msra.mxu0 %v1877
        %2231 = vmatpush.bf16.msra.mxu0 %v1875
        %2232 = vmatpush.bf16.msra.mxu0 %v1873
        %2233 = vmatpush.bf16.msra.mxu0 %v1871
        %2234 = vmatpush.bf16.msra.mxu0 %v1869
        %2235 = vmatpush.bf16.msra.mxu0 %v1867
        %2236 = vmatpush.bf16.msra.mxu0 %v1865
        %2237 = vmatpush.bf16.msra.mxu0 %v1863
        %2238 = vmatmul.bf16.gmra.mxu0 %v1470
        %v2239 = vpop.f32.mrf.mxu0
        %v2240 = vadd.f32 0.0, %v2239
        %v2241 = vpop.f32.mrf.mxu0
        %v2242 = vadd.f32 0.0, %v2241
        %2243 = vdwg.mxu0
        %2244 = vmatpush.bf16.msra.mxu0 %v1893
        %2245 = vmatpush.bf16.msra.mxu0 %v1891
        %2246 = vmatpush.bf16.msra.mxu0 %v1889
        %2247 = vmatpush.bf16.msra.mxu0 %v1887
        %2248 = vmatpush.bf16.msra.mxu0 %v1885
        %2249 = vmatpush.bf16.msra.mxu0 %v1883
        %2250 = vmatpush.bf16.msra.mxu0 %v1881
        %2251 = vmatpush.bf16.msra.mxu0 %v1879
        %2252 = vmatmul.bf16.gmra.mxu0 %v1471
        %v2253 = vpop.f32.mrf.mxu0
        %v2254 = vadd.f32 %v2240, %v2253
        %v2255 = vpop.f32.mrf.mxu0
        %v2256 = vadd.f32 %v2242, %v2255
        %2257 = vdwg.mxu0
        %2258 = vmatpush.bf16.msra.mxu0 %v1909
        %2259 = vmatpush.bf16.msra.mxu0 %v1907
        %2260 = vmatpush.bf16.msra.mxu0 %v1905
        %2261 = vmatpush.bf16.msra.mxu0 %v1903
        %2262 = vmatpush.bf16.msra.mxu0 %v1901
        %2263 = vmatpush.bf16.msra.mxu0 %v1899
        %2264 = vmatpush.bf16.msra.mxu0 %v1897
        %2265 = vmatpush.bf16.msra.mxu0 %v1895
        %2266 = vmatmul.bf16.gmra.mxu0 %v1472
        %v2267 = vpop.f32.mrf.mxu0
        %v2268 = vadd.f32 %v2254, %v2267
        %v2269 = vpop.f32.mrf.mxu0
        %v2270 = vadd.f32 %v2256, %v2269
        %2271 = vdwg.mxu0
        %2272 = vmatpush.bf16.msra.mxu0 %v1925
        %2273 = vmatpush.bf16.msra.mxu0 %v1923
        %2274 = vmatpush.bf16.msra.mxu0 %v1921
        %2275 = vmatpush.bf16.msra.mxu0 %v1919
        %2276 = vmatpush.bf16.msra.mxu0 %v1917
        %2277 = vmatpush.bf16.msra.mxu0 %v1915
        %2278 = vmatpush.bf16.msra.mxu0 %v1913
        %2279 = vmatpush.bf16.msra.mxu0 %v1911
        %2280 = vmatmul.bf16.gmra.mxu0 %v1473
        %v2281 = vpop.f32.mrf.mxu0
        %v2282 = vadd.f32 %v2268, %v2281
        %v2283 = vpop.f32.mrf.mxu0
        %v2284 = vadd.f32 %v2270, %v2283
        %2285 = vdwg.mxu0
        %2286 = vmatpush.bf16.msra.mxu0 %v1941
        %2287 = vmatpush.bf16.msra.mxu0 %v1939
        %2288 = vmatpush.bf16.msra.mxu0 %v1937
        %2289 = vmatpush.bf16.msra.mxu0 %v1935
        %2290 = vmatpush.bf16.msra.mxu0 %v1933
        %2291 = vmatpush.bf16.msra.mxu0 %v1931
        %2292 = vmatpush.bf16.msra.mxu0 %v1929
        %2293 = vmatpush.bf16.msra.mxu0 %v1927
        %2294 = vmatmul.bf16.gmra.mxu0 %v1474
        %v2295 = vpop.f32.mrf.mxu0
        %v2296 = vadd.f32 %v2282, %v2295
        %v2297 = vpop.f32.mrf.mxu0
        %v2298 = vadd.f32 %v2284, %v2297
        %2299 = vdwg.mxu0
        %2300 = vmatpush.bf16.msra.mxu0 %v1957
        %2301 = vmatpush.bf16.msra.mxu0 %v1955
        %2302 = vmatpush.bf16.msra.mxu0 %v1953
        %2303 = vmatpush.bf16.msra.mxu0 %v1951
        %2304 = vmatpush.bf16.msra.mxu0 %v1949
        %2305 = vmatpush.bf16.msra.mxu0 %v1947
        %2306 = vmatpush.bf16.msra.mxu0 %v1945
        %2307 = vmatpush.bf16.msra.mxu0 %v1943
        %2308 = vmatmul.bf16.gmra.mxu0 %v1475
        %v2309 = vpop.f32.mrf.mxu0
        %v2310 = vadd.f32 %v2296, %v2309
        %v2311 = vpop.f32.mrf.mxu0
        %v2312 = vadd.f32 %v2298, %v2311
        %2313 = vdwg.mxu0
        %2314 = vmatpush.bf16.msra.mxu0 %v1973
        %2315 = vmatpush.bf16.msra.mxu0 %v1971
        %2316 = vmatpush.bf16.msra.mxu0 %v1969
        %2317 = vmatpush.bf16.msra.mxu0 %v1967
        %2318 = vmatpush.bf16.msra.mxu0 %v1965
        %2319 = vmatpush.bf16.msra.mxu0 %v1963
        %2320 = vmatpush.bf16.msra.mxu0 %v1961
        %2321 = vmatpush.bf16.msra.mxu0 %v1959
        %2322 = vmatmul.bf16.gmra.mxu0 %v1476
        %v2323 = vpop.f32.mrf.mxu0
        %v2324 = vadd.f32 %v2310, %v2323
        %v2325 = vpop.f32.mrf.mxu0
        %v2326 = vadd.f32 %v2312, %v2325
        %2327 = vdwg.mxu0
        %2328 = vmatpush.bf16.msra.mxu0 %v1989
        %2329 = vmatpush.bf16.msra.mxu0 %v1987
        %2330 = vmatpush.bf16.msra.mxu0 %v1985
        %2331 = vmatpush.bf16.msra.mxu0 %v1983
        %2332 = vmatpush.bf16.msra.mxu0 %v1981
        %2333 = vmatpush.bf16.msra.mxu0 %v1979
        %2334 = vmatpush.bf16.msra.mxu0 %v1977
        %2335 = vmatpush.bf16.msra.mxu0 %v1975
        %2336 = vmatmul.bf16.gmra.mxu0 %v1477
        %v2337 = vpop.f32.mrf.mxu0
        %v2338 = vadd.f32 %v2324, %v2337
        %v2339 = vpop.f32.mrf.mxu0
        %v2340 = vadd.f32 %v2326, %v2339
        %2341 = vdwg.mxu0
        %v2470 = vunpack.c.l.b16 %v1118
        %v2471 = vunpack.c.h.b16 %v1118
        %v2472 = vunpack.c.l.b16 %v1119
        %v2473 = vunpack.c.h.b16 %v1119
        %v2474 = vunpack.c.l.b16 %v1120
        %v2475 = vunpack.c.h.b16 %v1120
        %v2476 = vunpack.c.l.b16 %v1121
        %v2477 = vunpack.c.h.b16 %v1121
        %v2478 = vunpack.c.l.b16 %v1122
        %v2479 = vunpack.c.h.b16 %v1122
        %v2480 = vunpack.c.l.b16 %v1123
        %v2481 = vunpack.c.h.b16 %v1123
        %v2482 = vunpack.c.l.b16 %v1124
        %v2483 = vunpack.c.h.b16 %v1124
        %v2484 = vunpack.c.l.b16 %v1125
        %v2485 = vunpack.c.h.b16 %v1125
        %v2486 = vunpack.c.l.b16 %v1126
        %v2487 = vunpack.c.h.b16 %v1126
        %v2488 = vunpack.c.l.b16 %v1127
        %v2489 = vunpack.c.h.b16 %v1127
        %v2490 = vunpack.c.l.b16 %v1128
        %v2491 = vunpack.c.h.b16 %v1128
        %v2492 = vunpack.c.l.b16 %v1129
        %v2493 = vunpack.c.h.b16 %v1129
        %v2494 = vunpack.c.l.b16 %v1130
        %v2495 = vunpack.c.h.b16 %v1130
        %v2496 = vunpack.c.l.b16 %v1131
        %v2497 = vunpack.c.h.b16 %v1131
        %v2498 = vunpack.c.l.b16 %v1132
        %v2499 = vunpack.c.h.b16 %v1132
        %v2500 = vunpack.c.l.b16 %v1133
        %v2501 = vunpack.c.h.b16 %v1133
        %v2502 = vunpack.c.l.b16 %v1134
        %v2503 = vunpack.c.h.b16 %v1134
        %v2504 = vunpack.c.l.b16 %v1135
        %v2505 = vunpack.c.h.b16 %v1135
        %v2506 = vunpack.c.l.b16 %v1136
        %v2507 = vunpack.c.h.b16 %v1136
        %v2508 = vunpack.c.l.b16 %v1137
        %v2509 = vunpack.c.h.b16 %v1137
        %v2510 = vunpack.c.l.b16 %v1138
        %v2511 = vunpack.c.h.b16 %v1138
        %v2512 = vunpack.c.l.b16 %v1139
        %v2513 = vunpack.c.h.b16 %v1139
        %v2514 = vunpack.c.l.b16 %v1140
        %v2515 = vunpack.c.h.b16 %v1140
        %v2516 = vunpack.c.l.b16 %v1141
        %v2517 = vunpack.c.h.b16 %v1141
        %v2518 = vunpack.c.l.b16 %v1142
        %v2519 = vunpack.c.h.b16 %v1142
        %v2520 = vunpack.c.l.b16 %v1143
        %v2521 = vunpack.c.h.b16 %v1143
        %v2522 = vunpack.c.l.b16 %v1144
        %v2523 = vunpack.c.h.b16 %v1144
        %v2524 = vunpack.c.l.b16 %v1145
        %v2525 = vunpack.c.h.b16 %v1145
        %v2526 = vunpack.c.l.b16 %v1146
        %v2527 = vunpack.c.h.b16 %v1146
        %v2528 = vunpack.c.l.b16 %v1147
        %v2529 = vunpack.c.h.b16 %v1147
        %v2530 = vunpack.c.l.b16 %v1148
        %v2531 = vunpack.c.h.b16 %v1148
        %v2532 = vunpack.c.l.b16 %v1149
        %v2533 = vunpack.c.h.b16 %v1149
        %v2534 = vunpack.c.l.b16 %v1150
        %v2535 = vunpack.c.h.b16 %v1150
        %v2536 = vunpack.c.l.b16 %v1151
        %v2537 = vunpack.c.h.b16 %v1151
        %v2538 = vunpack.c.l.b16 %v1152
        %v2539 = vunpack.c.h.b16 %v1152
        %v2540 = vunpack.c.l.b16 %v1153
        %v2541 = vunpack.c.h.b16 %v1153
        %v2542 = vunpack.c.l.b16 %v1154
        %v2543 = vunpack.c.h.b16 %v1154
        %v2544 = vunpack.c.l.b16 %v1155
        %v2545 = vunpack.c.h.b16 %v1155
        %v2546 = vunpack.c.l.b16 %v1156
        %v2547 = vunpack.c.h.b16 %v1156
        %v2548 = vunpack.c.l.b16 %v1157
        %v2549 = vunpack.c.h.b16 %v1157
        %v2550 = vunpack.c.l.b16 %v1158
        %v2551 = vunpack.c.h.b16 %v1158
        %v2552 = vunpack.c.l.b16 %v1159
        %v2553 = vunpack.c.h.b16 %v1159
        %v2554 = vunpack.c.l.b16 %v1160
        %v2555 = vunpack.c.h.b16 %v1160
        %v2556 = vunpack.c.l.b16 %v1161
        %v2557 = vunpack.c.h.b16 %v1161
        %v2558 = vunpack.c.l.b16 %v1162
        %v2559 = vunpack.c.h.b16 %v1162
        %v2560 = vunpack.c.l.b16 %v1163
        %v2561 = vunpack.c.h.b16 %v1163
        %v2562 = vunpack.c.l.b16 %v1164
        %v2563 = vunpack.c.h.b16 %v1164
        %v2564 = vunpack.c.l.b16 %v1165
        %v2565 = vunpack.c.h.b16 %v1165
        %v2566 = vunpack.c.l.b16 %v1166
        %v2567 = vunpack.c.h.b16 %v1166
        %v2568 = vunpack.c.l.b16 %v1167
        %v2569 = vunpack.c.h.b16 %v1167
        %v2570 = vunpack.c.l.b16 %v1168
        %v2571 = vunpack.c.h.b16 %v1168
        %v2572 = vunpack.c.l.b16 %v1169
        %v2573 = vunpack.c.h.b16 %v1169
        %v2574 = vunpack.c.l.b16 %v1170
        %v2575 = vunpack.c.h.b16 %v1170
        %v2576 = vunpack.c.l.b16 %v1171
        %v2577 = vunpack.c.h.b16 %v1171
        %v2578 = vunpack.c.l.b16 %v1172
        %v2579 = vunpack.c.h.b16 %v1172
        %v2580 = vunpack.c.l.b16 %v1173
        %v2581 = vunpack.c.h.b16 %v1173
        %v2582 = vunpack.c.l.b16 %v1174
        %v2583 = vunpack.c.h.b16 %v1174
        %v2584 = vunpack.c.l.b16 %v1175
        %v2585 = vunpack.c.h.b16 %v1175
        %v2586 = vunpack.c.l.b16 %v1176
        %v2587 = vunpack.c.h.b16 %v1176
        %v2588 = vunpack.c.l.b16 %v1177
        %v2589 = vunpack.c.h.b16 %v1177
        %v2590 = vunpack.c.l.b16 %v1178
        %v2591 = vunpack.c.h.b16 %v1178
        %v2592 = vunpack.c.l.b16 %v1179
        %v2593 = vunpack.c.h.b16 %v1179
        %v2594 = vunpack.c.l.b16 %v1180
        %v2595 = vunpack.c.h.b16 %v1180
        %v2596 = vunpack.c.l.b16 %v1181
        %v2597 = vunpack.c.h.b16 %v1181
        %v2598 = vunpack.c.l.b16 %v1182
        %v2599 = vunpack.c.h.b16 %v1182
        %v2600 = vunpack.c.l.b16 %v1183
        %v2601 = vunpack.c.h.b16 %v1183
        %v2602 = vunpack.c.l.b16 %v1184
        %v2603 = vunpack.c.h.b16 %v1184
        %v2604 = vunpack.c.l.b16 %v1185
        %v2605 = vunpack.c.h.b16 %v1185
        %v2606 = vunpack.c.l.b16 %v1186
        %v2607 = vunpack.c.h.b16 %v1186
        %v2608 = vunpack.c.l.b16 %v1187
        %v2609 = vunpack.c.h.b16 %v1187
        %v2610 = vunpack.c.l.b16 %v1188
        %v2611 = vunpack.c.h.b16 %v1188
        %v2612 = vunpack.c.l.b16 %v1189
        %v2613 = vunpack.c.h.b16 %v1189
        %v2614 = vunpack.c.l.b16 %v1190
        %v2615 = vunpack.c.h.b16 %v1190
        %v2616 = vunpack.c.l.b16 %v1191
        %v2617 = vunpack.c.h.b16 %v1191
        %v2618 = vunpack.c.l.b16 %v1192
        %v2619 = vunpack.c.h.b16 %v1192
        %v2620 = vunpack.c.l.b16 %v1193
        %v2621 = vunpack.c.h.b16 %v1193
        %v2622 = vunpack.c.l.b16 %v1194
        %v2623 = vunpack.c.h.b16 %v1194
        %v2624 = vunpack.c.l.b16 %v1195
        %v2625 = vunpack.c.h.b16 %v1195
        %v2626 = vunpack.c.l.b16 %v1196
        %v2627 = vunpack.c.h.b16 %v1196
        %v2628 = vunpack.c.l.b16 %v1197
        %v2629 = vunpack.c.h.b16 %v1197
        %v2630 = vunpack.c.l.b16 %v1198
        %v2631 = vunpack.c.h.b16 %v1198
        %v2632 = vunpack.c.l.b16 %v1199
        %v2633 = vunpack.c.h.b16 %v1199
        %v2634 = vunpack.c.l.b16 %v1200
        %v2635 = vunpack.c.h.b16 %v1200
        %v2636 = vunpack.c.l.b16 %v1201
        %v2637 = vunpack.c.h.b16 %v1201
        %v2638 = vunpack.c.l.b16 %v1202
        %v2639 = vunpack.c.h.b16 %v1202
        %v2640 = vunpack.c.l.b16 %v1203
        %v2641 = vunpack.c.h.b16 %v1203
        %v2642 = vunpack.c.l.b16 %v1204
        %v2643 = vunpack.c.h.b16 %v1204
        %v2644 = vunpack.c.l.b16 %v1205
        %v2645 = vunpack.c.h.b16 %v1205
        %v2646 = vunpack.c.l.b16 %v1206
        %v2647 = vunpack.c.h.b16 %v1206
        %v2648 = vunpack.c.l.b16 %v1207
        %v2649 = vunpack.c.h.b16 %v1207
        %v2650 = vunpack.c.l.b16 %v1208
        %v2651 = vunpack.c.h.b16 %v1208
        %v2652 = vunpack.c.l.b16 %v1209
        %v2653 = vunpack.c.h.b16 %v1209
        %v2654 = vunpack.c.l.b16 %v1210
        %v2655 = vunpack.c.h.b16 %v1210
        %v2656 = vunpack.c.l.b16 %v1211
        %v2657 = vunpack.c.h.b16 %v1211
        %v2658 = vunpack.c.l.b16 %v1212
        %v2659 = vunpack.c.h.b16 %v1212
        %v2660 = vunpack.c.l.b16 %v1213
        %v2661 = vunpack.c.h.b16 %v1213
        %v2662 = vunpack.c.l.b16 %v1214
        %v2663 = vunpack.c.h.b16 %v1214
        %v2664 = vunpack.c.l.b16 %v1215
        %v2665 = vunpack.c.h.b16 %v1215
        %v2666 = vunpack.c.l.b16 %v1216
        %v2667 = vunpack.c.h.b16 %v1216
        %v2668 = vunpack.c.l.b16 %v1217
        %v2669 = vunpack.c.h.b16 %v1217
        %v2670 = vunpack.c.l.b16 %v1218
        %v2671 = vunpack.c.h.b16 %v1218
        %v2672 = vunpack.c.l.b16 %v1219
        %v2673 = vunpack.c.h.b16 %v1219
        %v2674 = vunpack.c.l.b16 %v1220
        %v2675 = vunpack.c.h.b16 %v1220
        %v2676 = vunpack.c.l.b16 %v1221
        %v2677 = vunpack.c.h.b16 %v1221
        %v2678 = vunpack.c.l.b16 %v1222
        %v2679 = vunpack.c.h.b16 %v1222
        %v2680 = vunpack.c.l.b16 %v1223
        %v2681 = vunpack.c.h.b16 %v1223
        %v2682 = vunpack.c.l.b16 %v1224
        %v2683 = vunpack.c.h.b16 %v1224
        %v2684 = vunpack.c.l.b16 %v1225
        %v2685 = vunpack.c.h.b16 %v1225
        %v2686 = vunpack.c.l.b16 %v1226
        %v2687 = vunpack.c.h.b16 %v1226
        %v2688 = vunpack.c.l.b16 %v1227
        %v2689 = vunpack.c.h.b16 %v1227
        %v2690 = vunpack.c.l.b16 %v1228
        %v2691 = vunpack.c.h.b16 %v1228
        %v2692 = vunpack.c.l.b16 %v1229
        %v2693 = vunpack.c.h.b16 %v1229
        %v2694 = vunpack.c.l.b16 %v1230
        %v2695 = vunpack.c.h.b16 %v1230
        %v2696 = vunpack.c.l.b16 %v1231
        %v2697 = vunpack.c.h.b16 %v1231
        %v2698 = vunpack.c.l.b16 %v1232
        %v2699 = vunpack.c.h.b16 %v1232
        %v2700 = vunpack.c.l.b16 %v1233
        %v2701 = vunpack.c.h.b16 %v1233
        %v2702 = vunpack.c.l.b16 %v1234
        %v2703 = vunpack.c.h.b16 %v1234
        %v2704 = vunpack.c.l.b16 %v1235
        %v2705 = vunpack.c.h.b16 %v1235
        %v2706 = vunpack.c.l.b16 %v1236
        %v2707 = vunpack.c.h.b16 %v1236
        %v2708 = vunpack.c.l.b16 %v1237
        %v2709 = vunpack.c.h.b16 %v1237
        %v2710 = vunpack.c.l.b16 %v1238
        %v2711 = vunpack.c.h.b16 %v1238
        %v2712 = vunpack.c.l.b16 %v1239
        %v2713 = vunpack.c.h.b16 %v1239
        %v2714 = vunpack.c.l.b16 %v1240
        %v2715 = vunpack.c.h.b16 %v1240
        %v2716 = vunpack.c.l.b16 %v1241
        %v2717 = vunpack.c.h.b16 %v1241
        %v2718 = vunpack.c.l.b16 %v1242
        %v2719 = vunpack.c.h.b16 %v1242
        %v2720 = vunpack.c.l.b16 %v1243
        %v2721 = vunpack.c.h.b16 %v1243
        %v2722 = vunpack.c.l.b16 %v1244
        %v2723 = vunpack.c.h.b16 %v1244
        %v2724 = vunpack.c.l.b16 %v1245
        %v2725 = vunpack.c.h.b16 %v1245
        %v2726 = vpack.c.b16 %v2472, %v2470
        %v2727 = vpack.c.b16 %v2473, %v2471
        %v2728 = vpack.c.b16 %v2476, %v2474
        %v2729 = vpack.c.b16 %v2477, %v2475
        %v2730 = vpack.c.b16 %v2480, %v2478
        %v2731 = vpack.c.b16 %v2481, %v2479
        %v2732 = vpack.c.b16 %v2484, %v2482
        %v2733 = vpack.c.b16 %v2485, %v2483
        %v2734 = vpack.c.b16 %v2488, %v2486
        %v2735 = vpack.c.b16 %v2489, %v2487
        %v2736 = vpack.c.b16 %v2492, %v2490
        %v2737 = vpack.c.b16 %v2493, %v2491
        %v2738 = vpack.c.b16 %v2496, %v2494
        %v2739 = vpack.c.b16 %v2497, %v2495
        %v2740 = vpack.c.b16 %v2500, %v2498
        %v2741 = vpack.c.b16 %v2501, %v2499
        %v2742 = vpack.c.b16 %v2504, %v2502
        %v2743 = vpack.c.b16 %v2505, %v2503
        %v2744 = vpack.c.b16 %v2508, %v2506
        %v2745 = vpack.c.b16 %v2509, %v2507
        %v2746 = vpack.c.b16 %v2512, %v2510
        %v2747 = vpack.c.b16 %v2513, %v2511
        %v2748 = vpack.c.b16 %v2516, %v2514
        %v2749 = vpack.c.b16 %v2517, %v2515
        %v2750 = vpack.c.b16 %v2520, %v2518
        %v2751 = vpack.c.b16 %v2521, %v2519
        %v2752 = vpack.c.b16 %v2524, %v2522
        %v2753 = vpack.c.b16 %v2525, %v2523
        %v2754 = vpack.c.b16 %v2528, %v2526
        %v2755 = vpack.c.b16 %v2529, %v2527
        %v2756 = vpack.c.b16 %v2532, %v2530
        %v2757 = vpack.c.b16 %v2533, %v2531
        %v2758 = vpack.c.b16 %v2536, %v2534
        %v2759 = vpack.c.b16 %v2537, %v2535
        %v2760 = vpack.c.b16 %v2540, %v2538
        %v2761 = vpack.c.b16 %v2541, %v2539
        %v2762 = vpack.c.b16 %v2544, %v2542
        %v2763 = vpack.c.b16 %v2545, %v2543
        %v2764 = vpack.c.b16 %v2548, %v2546
        %v2765 = vpack.c.b16 %v2549, %v2547
        %v2766 = vpack.c.b16 %v2552, %v2550
        %v2767 = vpack.c.b16 %v2553, %v2551
        %v2768 = vpack.c.b16 %v2556, %v2554
        %v2769 = vpack.c.b16 %v2557, %v2555
        %v2770 = vpack.c.b16 %v2560, %v2558
        %v2771 = vpack.c.b16 %v2561, %v2559
        %v2772 = vpack.c.b16 %v2564, %v2562
        %v2773 = vpack.c.b16 %v2565, %v2563
        %v2774 = vpack.c.b16 %v2568, %v2566
        %v2775 = vpack.c.b16 %v2569, %v2567
        %v2776 = vpack.c.b16 %v2572, %v2570
        %v2777 = vpack.c.b16 %v2573, %v2571
        %v2778 = vpack.c.b16 %v2576, %v2574
        %v2779 = vpack.c.b16 %v2577, %v2575
        %v2780 = vpack.c.b16 %v2580, %v2578
        %v2781 = vpack.c.b16 %v2581, %v2579
        %v2782 = vpack.c.b16 %v2584, %v2582
        %v2783 = vpack.c.b16 %v2585, %v2583
        %v2784 = vpack.c.b16 %v2588, %v2586
        %v2785 = vpack.c.b16 %v2589, %v2587
        %v2786 = vpack.c.b16 %v2592, %v2590
        %v2787 = vpack.c.b16 %v2593, %v2591
        %v2788 = vpack.c.b16 %v2596, %v2594
        %v2789 = vpack.c.b16 %v2597, %v2595
        %v2790 = vpack.c.b16 %v2600, %v2598
        %v2791 = vpack.c.b16 %v2601, %v2599
        %v2792 = vpack.c.b16 %v2604, %v2602
        %v2793 = vpack.c.b16 %v2605, %v2603
        %v2794 = vpack.c.b16 %v2608, %v2606
        %v2795 = vpack.c.b16 %v2609, %v2607
        %v2796 = vpack.c.b16 %v2612, %v2610
        %v2797 = vpack.c.b16 %v2613, %v2611
        %v2798 = vpack.c.b16 %v2616, %v2614
        %v2799 = vpack.c.b16 %v2617, %v2615
        %v2800 = vpack.c.b16 %v2620, %v2618
        %v2801 = vpack.c.b16 %v2621, %v2619
        %v2802 = vpack.c.b16 %v2624, %v2622
        %v2803 = vpack.c.b16 %v2625, %v2623
        %v2804 = vpack.c.b16 %v2628, %v2626
        %v2805 = vpack.c.b16 %v2629, %v2627
        %v2806 = vpack.c.b16 %v2632, %v2630
        %v2807 = vpack.c.b16 %v2633, %v2631
        %v2808 = vpack.c.b16 %v2636, %v2634
        %v2809 = vpack.c.b16 %v2637, %v2635
        %v2810 = vpack.c.b16 %v2640, %v2638
        %v2811 = vpack.c.b16 %v2641, %v2639
        %v2812 = vpack.c.b16 %v2644, %v2642
        %v2813 = vpack.c.b16 %v2645, %v2643
        %v2814 = vpack.c.b16 %v2648, %v2646
        %v2815 = vpack.c.b16 %v2649, %v2647
        %v2816 = vpack.c.b16 %v2652, %v2650
        %v2817 = vpack.c.b16 %v2653, %v2651
        %v2818 = vpack.c.b16 %v2656, %v2654
        %v2819 = vpack.c.b16 %v2657, %v2655
        %v2820 = vpack.c.b16 %v2660, %v2658
        %v2821 = vpack.c.b16 %v2661, %v2659
        %v2822 = vpack.c.b16 %v2664, %v2662
        %v2823 = vpack.c.b16 %v2665, %v2663
        %v2824 = vpack.c.b16 %v2668, %v2666
        %v2825 = vpack.c.b16 %v2669, %v2667
        %v2826 = vpack.c.b16 %v2672, %v2670
        %v2827 = vpack.c.b16 %v2673, %v2671
        %v2828 = vpack.c.b16 %v2676, %v2674
        %v2829 = vpack.c.b16 %v2677, %v2675
        %v2830 = vpack.c.b16 %v2680, %v2678
        %v2831 = vpack.c.b16 %v2681, %v2679
        %v2832 = vpack.c.b16 %v2684, %v2682
        %v2833 = vpack.c.b16 %v2685, %v2683
        %v2834 = vpack.c.b16 %v2688, %v2686
        %v2835 = vpack.c.b16 %v2689, %v2687
        %v2836 = vpack.c.b16 %v2692, %v2690
        %v2837 = vpack.c.b16 %v2693, %v2691
        %v2838 = vpack.c.b16 %v2696, %v2694
        %v2839 = vpack.c.b16 %v2697, %v2695
        %v2840 = vpack.c.b16 %v2700, %v2698
        %v2841 = vpack.c.b16 %v2701, %v2699
        %v2842 = vpack.c.b16 %v2704, %v2702
        %v2843 = vpack.c.b16 %v2705, %v2703
        %v2844 = vpack.c.b16 %v2708, %v2706
        %v2845 = vpack.c.b16 %v2709, %v2707
        %v2846 = vpack.c.b16 %v2712, %v2710
        %v2847 = vpack.c.b16 %v2713, %v2711
        %v2848 = vpack.c.b16 %v2716, %v2714
        %v2849 = vpack.c.b16 %v2717, %v2715
        %v2850 = vpack.c.b16 %v2720, %v2718
        %v2851 = vpack.c.b16 %v2721, %v2719
        %v2852 = vpack.c.b16 %v2724, %v2722
        %v2853 = vpack.c.b16 %v2725, %v2723
        %2982 = vmatpush.bf16.msra.mxu0 %v2740
        %2983 = vmatpush.bf16.msra.mxu0 %v2738
        %2984 = vmatpush.bf16.msra.mxu0 %v2736
        %2985 = vmatpush.bf16.msra.mxu0 %v2734
        %2986 = vmatpush.bf16.msra.mxu0 %v2732
        %2987 = vmatpush.bf16.msra.mxu0 %v2730
        %2988 = vmatpush.bf16.msra.mxu0 %v2728
        %2989 = vmatpush.bf16.msra.mxu0 %v2726
        %2990 = vmatmul.bf16.gmra.mxu0 %v1110
        %v2991 = vpop.f32.mrf.mxu0
        %v2992 = vadd.f32 %v2226, %v2991
        %v2993 = vpop.f32.mrf.mxu0
        %v2994 = vadd.f32 %v2228, %v2993
        %2995 = vdwg.mxu0
        %2996 = vmatpush.bf16.msra.mxu0 %v2756
        %2997 = vmatpush.bf16.msra.mxu0 %v2754
        %2998 = vmatpush.bf16.msra.mxu0 %v2752
        %2999 = vmatpush.bf16.msra.mxu0 %v2750
        %3000 = vmatpush.bf16.msra.mxu0 %v2748
        %3001 = vmatpush.bf16.msra.mxu0 %v2746
        %3002 = vmatpush.bf16.msra.mxu0 %v2744
        %3003 = vmatpush.bf16.msra.mxu0 %v2742
        %3004 = vmatmul.bf16.gmra.mxu0 %v1111
        %v3005 = vpop.f32.mrf.mxu0
        %v3006 = vadd.f32 %v2992, %v3005
        %v3007 = vpop.f32.mrf.mxu0
        %v3008 = vadd.f32 %v2994, %v3007
        %3009 = vdwg.mxu0
        %3010 = vmatpush.bf16.msra.mxu0 %v2772
        %3011 = vmatpush.bf16.msra.mxu0 %v2770
        %3012 = vmatpush.bf16.msra.mxu0 %v2768
        %3013 = vmatpush.bf16.msra.mxu0 %v2766
        %3014 = vmatpush.bf16.msra.mxu0 %v2764
        %3015 = vmatpush.bf16.msra.mxu0 %v2762
        %3016 = vmatpush.bf16.msra.mxu0 %v2760
        %3017 = vmatpush.bf16.msra.mxu0 %v2758
        %3018 = vmatmul.bf16.gmra.mxu0 %v1112
        %v3019 = vpop.f32.mrf.mxu0
        %v3020 = vadd.f32 %v3006, %v3019
        %v3021 = vpop.f32.mrf.mxu0
        %v3022 = vadd.f32 %v3008, %v3021
        %3023 = vdwg.mxu0
        %3024 = vmatpush.bf16.msra.mxu0 %v2788
        %3025 = vmatpush.bf16.msra.mxu0 %v2786
        %3026 = vmatpush.bf16.msra.mxu0 %v2784
        %3027 = vmatpush.bf16.msra.mxu0 %v2782
        %3028 = vmatpush.bf16.msra.mxu0 %v2780
        %3029 = vmatpush.bf16.msra.mxu0 %v2778
        %3030 = vmatpush.bf16.msra.mxu0 %v2776
        %3031 = vmatpush.bf16.msra.mxu0 %v2774
        %3032 = vmatmul.bf16.gmra.mxu0 %v1113
        %v3033 = vpop.f32.mrf.mxu0
        %v3034 = vadd.f32 %v3020, %v3033
        %v3035 = vpop.f32.mrf.mxu0
        %v3036 = vadd.f32 %v3022, %v3035
        %3037 = vdwg.mxu0
        %3038 = vmatpush.bf16.msra.mxu0 %v2804
        %3039 = vmatpush.bf16.msra.mxu0 %v2802
        %3040 = vmatpush.bf16.msra.mxu0 %v2800
        %3041 = vmatpush.bf16.msra.mxu0 %v2798
        %3042 = vmatpush.bf16.msra.mxu0 %v2796
        %3043 = vmatpush.bf16.msra.mxu0 %v2794
        %3044 = vmatpush.bf16.msra.mxu0 %v2792
        %3045 = vmatpush.bf16.msra.mxu0 %v2790
        %3046 = vmatmul.bf16.gmra.mxu0 %v1114
        %v3047 = vpop.f32.mrf.mxu0
        %v3048 = vadd.f32 %v3034, %v3047
        %v3049 = vpop.f32.mrf.mxu0
        %v3050 = vadd.f32 %v3036, %v3049
        %3051 = vdwg.mxu0
        %3052 = vmatpush.bf16.msra.mxu0 %v2820
        %3053 = vmatpush.bf16.msra.mxu0 %v2818
        %3054 = vmatpush.bf16.msra.mxu0 %v2816
        %3055 = vmatpush.bf16.msra.mxu0 %v2814
        %3056 = vmatpush.bf16.msra.mxu0 %v2812
        %3057 = vmatpush.bf16.msra.mxu0 %v2810
        %3058 = vmatpush.bf16.msra.mxu0 %v2808
        %3059 = vmatpush.bf16.msra.mxu0 %v2806
        %3060 = vmatmul.bf16.gmra.mxu0 %v1115
        %v3061 = vpop.f32.mrf.mxu0
        %v3062 = vadd.f32 %v3048, %v3061
        %v3063 = vpop.f32.mrf.mxu0
        %v3064 = vadd.f32 %v3050, %v3063
        %3065 = vdwg.mxu0
        %3066 = vmatpush.bf16.msra.mxu0 %v2836
        %3067 = vmatpush.bf16.msra.mxu0 %v2834
        %3068 = vmatpush.bf16.msra.mxu0 %v2832
        %3069 = vmatpush.bf16.msra.mxu0 %v2830
        %3070 = vmatpush.bf16.msra.mxu0 %v2828
        %3071 = vmatpush.bf16.msra.mxu0 %v2826
        %3072 = vmatpush.bf16.msra.mxu0 %v2824
        %3073 = vmatpush.bf16.msra.mxu0 %v2822
        %3074 = vmatmul.bf16.gmra.mxu0 %v1116
        %v3075 = vpop.f32.mrf.mxu0
        %v3076 = vadd.f32 %v3062, %v3075
        %v3077 = vpop.f32.mrf.mxu0
        %v3078 = vadd.f32 %v3064, %v3077
        %3079 = vdwg.mxu0
        %3080 = vmatpush.bf16.msra.mxu0 %v2852
        %3081 = vmatpush.bf16.msra.mxu0 %v2850
        %3082 = vmatpush.bf16.msra.mxu0 %v2848
        %3083 = vmatpush.bf16.msra.mxu0 %v2846
        %3084 = vmatpush.bf16.msra.mxu0 %v2844
        %3085 = vmatpush.bf16.msra.mxu0 %v2842
        %3086 = vmatpush.bf16.msra.mxu0 %v2840
        %3087 = vmatpush.bf16.msra.mxu0 %v2838
        %3088 = vmatmul.bf16.gmra.mxu0 %v1117
        %v3089 = vpop.f32.mrf.mxu0
        %v3090 = vadd.f32 %v3076, %v3089
        %v3091 = vpop.f32.mrf.mxu0
        %v3092 = vadd.f32 %v3078, %v3091
        %3093 = vdwg.mxu0
        %3094 = vmatpush.bf16.msra.mxu0 %v2741
        %3095 = vmatpush.bf16.msra.mxu0 %v2739
        %3096 = vmatpush.bf16.msra.mxu0 %v2737
        %3097 = vmatpush.bf16.msra.mxu0 %v2735
        %3098 = vmatpush.bf16.msra.mxu0 %v2733
        %3099 = vmatpush.bf16.msra.mxu0 %v2731
        %3100 = vmatpush.bf16.msra.mxu0 %v2729
        %3101 = vmatpush.bf16.msra.mxu0 %v2727
        %3102 = vmatmul.bf16.gmra.mxu0 %v1110
        %v3103 = vpop.f32.mrf.mxu0
        %v3104 = vadd.f32 %v2338, %v3103
        %v3105 = vpop.f32.mrf.mxu0
        %v3106 = vadd.f32 %v2340, %v3105
        %3107 = vdwg.mxu0
        %3108 = vmatpush.bf16.msra.mxu0 %v2757
        %3109 = vmatpush.bf16.msra.mxu0 %v2755
        %3110 = vmatpush.bf16.msra.mxu0 %v2753
        %3111 = vmatpush.bf16.msra.mxu0 %v2751
        %3112 = vmatpush.bf16.msra.mxu0 %v2749
        %3113 = vmatpush.bf16.msra.mxu0 %v2747
        %3114 = vmatpush.bf16.msra.mxu0 %v2745
        %3115 = vmatpush.bf16.msra.mxu0 %v2743
        %3116 = vmatmul.bf16.gmra.mxu0 %v1111
        %v3117 = vpop.f32.mrf.mxu0
        %v3118 = vadd.f32 %v3104, %v3117
        %v3119 = vpop.f32.mrf.mxu0
        %v3120 = vadd.f32 %v3106, %v3119
        %3121 = vdwg.mxu0
        %3122 = vmatpush.bf16.msra.mxu0 %v2773
        %3123 = vmatpush.bf16.msra.mxu0 %v2771
        %3124 = vmatpush.bf16.msra.mxu0 %v2769
        %3125 = vmatpush.bf16.msra.mxu0 %v2767
        %3126 = vmatpush.bf16.msra.mxu0 %v2765
        %3127 = vmatpush.bf16.msra.mxu0 %v2763
        %3128 = vmatpush.bf16.msra.mxu0 %v2761
        %3129 = vmatpush.bf16.msra.mxu0 %v2759
        %3130 = vmatmul.bf16.gmra.mxu0 %v1112
        %v3131 = vpop.f32.mrf.mxu0
        %v3132 = vadd.f32 %v3118, %v3131
        %v3133 = vpop.f32.mrf.mxu0
        %v3134 = vadd.f32 %v3120, %v3133
        %3135 = vdwg.mxu0
        %3136 = vmatpush.bf16.msra.mxu0 %v2789
        %3137 = vmatpush.bf16.msra.mxu0 %v2787
        %3138 = vmatpush.bf16.msra.mxu0 %v2785
        %3139 = vmatpush.bf16.msra.mxu0 %v2783
        %3140 = vmatpush.bf16.msra.mxu0 %v2781
        %3141 = vmatpush.bf16.msra.mxu0 %v2779
        %3142 = vmatpush.bf16.msra.mxu0 %v2777
        %3143 = vmatpush.bf16.msra.mxu0 %v2775
        %3144 = vmatmul.bf16.gmra.mxu0 %v1113
        %v3145 = vpop.f32.mrf.mxu0
        %v3146 = vadd.f32 %v3132, %v3145
        %v3147 = vpop.f32.mrf.mxu0
        %v3148 = vadd.f32 %v3134, %v3147
        %3149 = vdwg.mxu0
        %3150 = vmatpush.bf16.msra.mxu0 %v2805
        %3151 = vmatpush.bf16.msra.mxu0 %v2803
        %3152 = vmatpush.bf16.msra.mxu0 %v2801
        %3153 = vmatpush.bf16.msra.mxu0 %v2799
        %3154 = vmatpush.bf16.msra.mxu0 %v2797
        %3155 = vmatpush.bf16.msra.mxu0 %v2795
        %3156 = vmatpush.bf16.msra.mxu0 %v2793
        %3157 = vmatpush.bf16.msra.mxu0 %v2791
        %3158 = vmatmul.bf16.gmra.mxu0 %v1114
        %v3159 = vpop.f32.mrf.mxu0
        %v3160 = vadd.f32 %v3146, %v3159
        %v3161 = vpop.f32.mrf.mxu0
        %v3162 = vadd.f32 %v3148, %v3161
        %3163 = vdwg.mxu0
        %3164 = vmatpush.bf16.msra.mxu0 %v2821
        %3165 = vmatpush.bf16.msra.mxu0 %v2819
        %3166 = vmatpush.bf16.msra.mxu0 %v2817
        %3167 = vmatpush.bf16.msra.mxu0 %v2815
        %3168 = vmatpush.bf16.msra.mxu0 %v2813
        %3169 = vmatpush.bf16.msra.mxu0 %v2811
        %3170 = vmatpush.bf16.msra.mxu0 %v2809
        %3171 = vmatpush.bf16.msra.mxu0 %v2807
        %3172 = vmatmul.bf16.gmra.mxu0 %v1115
        %v3173 = vpop.f32.mrf.mxu0
        %v3174 = vadd.f32 %v3160, %v3173
        %v3175 = vpop.f32.mrf.mxu0
        %v3176 = vadd.f32 %v3162, %v3175
        %3177 = vdwg.mxu0
        %3178 = vmatpush.bf16.msra.mxu0 %v2837
        %3179 = vmatpush.bf16.msra.mxu0 %v2835
        %3180 = vmatpush.bf16.msra.mxu0 %v2833
        %3181 = vmatpush.bf16.msra.mxu0 %v2831
        %3182 = vmatpush.bf16.msra.mxu0 %v2829
        %3183 = vmatpush.bf16.msra.mxu0 %v2827
        %3184 = vmatpush.bf16.msra.mxu0 %v2825
        %3185 = vmatpush.bf16.msra.mxu0 %v2823
        %3186 = vmatmul.bf16.gmra.mxu0 %v1116
        %v3187 = vpop.f32.mrf.mxu0
        %v3188 = vadd.f32 %v3174, %v3187
        %v3189 = vpop.f32.mrf.mxu0
        %v3190 = vadd.f32 %v3176, %v3189
        %3191 = vdwg.mxu0
        %3192 = vmatpush.bf16.msra.mxu0 %v2853
        %3193 = vmatpush.bf16.msra.mxu0 %v2851
        %3194 = vmatpush.bf16.msra.mxu0 %v2849
        %3195 = vmatpush.bf16.msra.mxu0 %v2847
        %3196 = vmatpush.bf16.msra.mxu0 %v2845
        %3197 = vmatpush.bf16.msra.mxu0 %v2843
        %3198 = vmatpush.bf16.msra.mxu0 %v2841
        %3199 = vmatpush.bf16.msra.mxu0 %v2839
        %3200 = vmatmul.bf16.gmra.mxu0 %v1117
        %v3201 = vpop.f32.mrf.mxu0
        %v3202 = vadd.f32 %v3188, %v3201
        %v3203 = vpop.f32.mrf.mxu0
        %v3204 = vadd.f32 %v3190, %v3203
        %3205 = vdwg.mxu0
        %v3206 = vld [vmem:[#allocation7 + $0x800] sm:$0xff]
        %v3207 = vld [vmem:[#allocation7 + $0x808] sm:$0xff]
        %v3208 = vld [vmem:[#allocation7 + $0x810] sm:$0xff]
        %v3209 = vld [vmem:[#allocation7 + $0x818] sm:$0xff]
        %v3210 = vld [vmem:[#allocation7 + $0x820] sm:$0xff]
        %v3211 = vld [vmem:[#allocation7 + $0x828] sm:$0xff]
        %v3212 = vld [vmem:[#allocation7 + $0x830] sm:$0xff]
        %v3213 = vld [vmem:[#allocation7 + $0x838] sm:$0xff]
        %v3214 = vld [vmem:[#allocation7 + $0x840] sm:$0xff]
        %v3215 = vld [vmem:[#allocation7 + $0x848] sm:$0xff]
        %v3216 = vld [vmem:[#allocation7 + $0x850] sm:$0xff]
        %v3217 = vld [vmem:[#allocation7 + $0x858] sm:$0xff]
        %v3218 = vld [vmem:[#allocation7 + $0x860] sm:$0xff]
        %v3219 = vld [vmem:[#allocation7 + $0x868] sm:$0xff]
        %v3220 = vld [vmem:[#allocation7 + $0x870] sm:$0xff]
        %v3221 = vld [vmem:[#allocation7 + $0x878] sm:$0xff]
        %v3222 = vld [vmem:[#allocation7 + $0x880] sm:$0xff]
        %v3223 = vld [vmem:[#allocation7 + $0x888] sm:$0xff]
        %v3224 = vld [vmem:[#allocation7 + $0x890] sm:$0xff]
        %v3225 = vld [vmem:[#allocation7 + $0x898] sm:$0xff]
        %v3226 = vld [vmem:[#allocation7 + $0x8a0] sm:$0xff]
        %v3227 = vld [vmem:[#allocation7 + $0x8a8] sm:$0xff]
        %v3228 = vld [vmem:[#allocation7 + $0x8b0] sm:$0xff]
        %v3229 = vld [vmem:[#allocation7 + $0x8b8] sm:$0xff]
        %v3230 = vld [vmem:[#allocation7 + $0x8c0] sm:$0xff]
        %v3231 = vld [vmem:[#allocation7 + $0x8c8] sm:$0xff]
        %v3232 = vld [vmem:[#allocation7 + $0x8d0] sm:$0xff]
        %v3233 = vld [vmem:[#allocation7 + $0x8d8] sm:$0xff]
        %v3234 = vld [vmem:[#allocation7 + $0x8e0] sm:$0xff]
        %v3235 = vld [vmem:[#allocation7 + $0x8e8] sm:$0xff]
        %v3236 = vld [vmem:[#allocation7 + $0x8f0] sm:$0xff]
        %v3237 = vld [vmem:[#allocation7 + $0x8f8] sm:$0xff]
        %v3238 = vld [vmem:[#allocation7 + $0x900] sm:$0xff]
        %v3239 = vld [vmem:[#allocation7 + $0x908] sm:$0xff]
        %v3240 = vld [vmem:[#allocation7 + $0x910] sm:$0xff]
        %v3241 = vld [vmem:[#allocation7 + $0x918] sm:$0xff]
        %v3242 = vld [vmem:[#allocation7 + $0x920] sm:$0xff]
        %v3243 = vld [vmem:[#allocation7 + $0x928] sm:$0xff]
        %v3244 = vld [vmem:[#allocation7 + $0x930] sm:$0xff]
        %v3245 = vld [vmem:[#allocation7 + $0x938] sm:$0xff]
        %v3246 = vld [vmem:[#allocation7 + $0x940] sm:$0xff]
        %v3247 = vld [vmem:[#allocation7 + $0x948] sm:$0xff]
        %v3248 = vld [vmem:[#allocation7 + $0x950] sm:$0xff]
        %v3249 = vld [vmem:[#allocation7 + $0x958] sm:$0xff]
        %v3250 = vld [vmem:[#allocation7 + $0x960] sm:$0xff]
        %v3251 = vld [vmem:[#allocation7 + $0x968] sm:$0xff]
        %v3252 = vld [vmem:[#allocation7 + $0x970] sm:$0xff]
        %v3253 = vld [vmem:[#allocation7 + $0x978] sm:$0xff]
        %v3254 = vld [vmem:[#allocation7 + $0x980] sm:$0xff]
        %v3255 = vld [vmem:[#allocation7 + $0x988] sm:$0xff]
        %v3256 = vld [vmem:[#allocation7 + $0x990] sm:$0xff]
        %v3257 = vld [vmem:[#allocation7 + $0x998] sm:$0xff]
        %v3258 = vld [vmem:[#allocation7 + $0x9a0] sm:$0xff]
        %v3259 = vld [vmem:[#allocation7 + $0x9a8] sm:$0xff]
        %v3260 = vld [vmem:[#allocation7 + $0x9b0] sm:$0xff]
        %v3261 = vld [vmem:[#allocation7 + $0x9b8] sm:$0xff]
        %v3262 = vld [vmem:[#allocation7 + $0x9c0] sm:$0xff]
        %v3263 = vld [vmem:[#allocation7 + $0x9c8] sm:$0xff]
        %v3264 = vld [vmem:[#allocation7 + $0x9d0] sm:$0xff]
        %v3265 = vld [vmem:[#allocation7 + $0x9d8] sm:$0xff]
        %v3266 = vld [vmem:[#allocation7 + $0x9e0] sm:$0xff]
        %v3267 = vld [vmem:[#allocation7 + $0x9e8] sm:$0xff]
        %v3268 = vld [vmem:[#allocation7 + $0x9f0] sm:$0xff]
        %v3269 = vld [vmem:[#allocation7 + $0x9f8] sm:$0xff]
        %v3270 = vld [vmem:[#allocation7 + $0xa00] sm:$0xff]
        %v3271 = vld [vmem:[#allocation7 + $0xa08] sm:$0xff]
        %v3272 = vld [vmem:[#allocation7 + $0xa10] sm:$0xff]
        %v3273 = vld [vmem:[#allocation7 + $0xa18] sm:$0xff]
        %v3274 = vld [vmem:[#allocation7 + $0xa20] sm:$0xff]
        %v3275 = vld [vmem:[#allocation7 + $0xa28] sm:$0xff]
        %v3276 = vld [vmem:[#allocation7 + $0xa30] sm:$0xff]
        %v3277 = vld [vmem:[#allocation7 + $0xa38] sm:$0xff]
        %v3278 = vld [vmem:[#allocation7 + $0xa40] sm:$0xff]
        %v3279 = vld [vmem:[#allocation7 + $0xa48] sm:$0xff]
        %v3280 = vld [vmem:[#allocation7 + $0xa50] sm:$0xff]
        %v3281 = vld [vmem:[#allocation7 + $0xa58] sm:$0xff]
        %v3282 = vld [vmem:[#allocation7 + $0xa60] sm:$0xff]
        %v3283 = vld [vmem:[#allocation7 + $0xa68] sm:$0xff]
        %v3284 = vld [vmem:[#allocation7 + $0xa70] sm:$0xff]
        %v3285 = vld [vmem:[#allocation7 + $0xa78] sm:$0xff]
        %v3286 = vld [vmem:[#allocation7 + $0xa80] sm:$0xff]
        %v3287 = vld [vmem:[#allocation7 + $0xa88] sm:$0xff]
        %v3288 = vld [vmem:[#allocation7 + $0xa90] sm:$0xff]
        %v3289 = vld [vmem:[#allocation7 + $0xa98] sm:$0xff]
        %v3290 = vld [vmem:[#allocation7 + $0xaa0] sm:$0xff]
        %v3291 = vld [vmem:[#allocation7 + $0xaa8] sm:$0xff]
        %v3292 = vld [vmem:[#allocation7 + $0xab0] sm:$0xff]
        %v3293 = vld [vmem:[#allocation7 + $0xab8] sm:$0xff]
        %v3294 = vld [vmem:[#allocation7 + $0xac0] sm:$0xff]
        %v3295 = vld [vmem:[#allocation7 + $0xac8] sm:$0xff]
        %v3296 = vld [vmem:[#allocation7 + $0xad0] sm:$0xff]
        %v3297 = vld [vmem:[#allocation7 + $0xad8] sm:$0xff]
        %v3298 = vld [vmem:[#allocation7 + $0xae0] sm:$0xff]
        %v3299 = vld [vmem:[#allocation7 + $0xae8] sm:$0xff]
        %v3300 = vld [vmem:[#allocation7 + $0xaf0] sm:$0xff]
        %v3301 = vld [vmem:[#allocation7 + $0xaf8] sm:$0xff]
        %v3302 = vld [vmem:[#allocation7 + $0xb00] sm:$0xff]
        %v3303 = vld [vmem:[#allocation7 + $0xb08] sm:$0xff]
        %v3304 = vld [vmem:[#allocation7 + $0xb10] sm:$0xff]
        %v3305 = vld [vmem:[#allocation7 + $0xb18] sm:$0xff]
        %v3306 = vld [vmem:[#allocation7 + $0xb20] sm:$0xff]
        %v3307 = vld [vmem:[#allocation7 + $0xb28] sm:$0xff]
        %v3308 = vld [vmem:[#allocation7 + $0xb30] sm:$0xff]
        %v3309 = vld [vmem:[#allocation7 + $0xb38] sm:$0xff]
        %v3310 = vld [vmem:[#allocation7 + $0xb40] sm:$0xff]
        %v3311 = vld [vmem:[#allocation7 + $0xb48] sm:$0xff]
        %v3312 = vld [vmem:[#allocation7 + $0xb50] sm:$0xff]
        %v3313 = vld [vmem:[#allocation7 + $0xb58] sm:$0xff]
        %v3314 = vld [vmem:[#allocation7 + $0xb60] sm:$0xff]
        %v3315 = vld [vmem:[#allocation7 + $0xb68] sm:$0xff]
        %v3316 = vld [vmem:[#allocation7 + $0xb70] sm:$0xff]
        %v3317 = vld [vmem:[#allocation7 + $0xb78] sm:$0xff]
        %v3318 = vld [vmem:[#allocation7 + $0xb80] sm:$0xff]
        %v3319 = vld [vmem:[#allocation7 + $0xb88] sm:$0xff]
        %v3320 = vld [vmem:[#allocation7 + $0xb90] sm:$0xff]
        %v3321 = vld [vmem:[#allocation7 + $0xb98] sm:$0xff]
        %v3322 = vld [vmem:[#allocation7 + $0xba0] sm:$0xff]
        %v3323 = vld [vmem:[#allocation7 + $0xba8] sm:$0xff]
        %v3324 = vld [vmem:[#allocation7 + $0xbb0] sm:$0xff]
        %v3325 = vld [vmem:[#allocation7 + $0xbb8] sm:$0xff]
        %v3326 = vld [vmem:[#allocation7 + $0xbc0] sm:$0xff]
        %v3327 = vld [vmem:[#allocation7 + $0xbc8] sm:$0xff]
        %v3328 = vld [vmem:[#allocation7 + $0xbd0] sm:$0xff]
        %v3329 = vld [vmem:[#allocation7 + $0xbd8] sm:$0xff]
        %v3330 = vld [vmem:[#allocation7 + $0xbe0] sm:$0xff]
        %v3331 = vld [vmem:[#allocation7 + $0xbe8] sm:$0xff]
        %v3332 = vld [vmem:[#allocation7 + $0xbf0] sm:$0xff]
        %v3333 = vld [vmem:[#allocation7 + $0xbf8] sm:$0xff]
        %v3334 = vpack.c.bf16 %v1270, %v1262
        %v3335 = vpack.c.bf16 %v1271, %v1263
        %v3336 = vpack.c.bf16 %v1272, %v1264
        %v3337 = vpack.c.bf16 %v1273, %v1265
        %v3338 = vpack.c.bf16 %v1274, %v1266
        %v3339 = vpack.c.bf16 %v1275, %v1267
        %v3340 = vpack.c.bf16 %v1276, %v1268
        %v3341 = vpack.c.bf16 %v1277, %v1269
        %v3470 = vunpack.c.l.b16 %v3206
        %v3471 = vunpack.c.h.b16 %v3206
        %v3472 = vunpack.c.l.b16 %v3207
        %v3473 = vunpack.c.h.b16 %v3207
        %v3474 = vunpack.c.l.b16 %v3208
        %v3475 = vunpack.c.h.b16 %v3208
        %v3476 = vunpack.c.l.b16 %v3209
        %v3477 = vunpack.c.h.b16 %v3209
        %v3478 = vunpack.c.l.b16 %v3210
        %v3479 = vunpack.c.h.b16 %v3210
        %v3480 = vunpack.c.l.b16 %v3211
        %v3481 = vunpack.c.h.b16 %v3211
        %v3482 = vunpack.c.l.b16 %v3212
        %v3483 = vunpack.c.h.b16 %v3212
        %v3484 = vunpack.c.l.b16 %v3213
        %v3485 = vunpack.c.h.b16 %v3213
        %v3486 = vunpack.c.l.b16 %v3214
        %v3487 = vunpack.c.h.b16 %v3214
        %v3488 = vunpack.c.l.b16 %v3215
        %v3489 = vunpack.c.h.b16 %v3215
        %v3490 = vunpack.c.l.b16 %v3216
        %v3491 = vunpack.c.h.b16 %v3216
        %v3492 = vunpack.c.l.b16 %v3217
        %v3493 = vunpack.c.h.b16 %v3217
        %v3494 = vunpack.c.l.b16 %v3218
        %v3495 = vunpack.c.h.b16 %v3218
        %v3496 = vunpack.c.l.b16 %v3219
        %v3497 = vunpack.c.h.b16 %v3219
        %v3498 = vunpack.c.l.b16 %v3220
        %v3499 = vunpack.c.h.b16 %v3220
        %v3500 = vunpack.c.l.b16 %v3221
        %v3501 = vunpack.c.h.b16 %v3221
        %v3502 = vunpack.c.l.b16 %v3222
        %v3503 = vunpack.c.h.b16 %v3222
        %v3504 = vunpack.c.l.b16 %v3223
        %v3505 = vunpack.c.h.b16 %v3223
        %v3506 = vunpack.c.l.b16 %v3224
        %v3507 = vunpack.c.h.b16 %v3224
        %v3508 = vunpack.c.l.b16 %v3225
        %v3509 = vunpack.c.h.b16 %v3225
        %v3510 = vunpack.c.l.b16 %v3226
        %v3511 = vunpack.c.h.b16 %v3226
        %v3512 = vunpack.c.l.b16 %v3227
        %v3513 = vunpack.c.h.b16 %v3227
        %v3514 = vunpack.c.l.b16 %v3228
        %v3515 = vunpack.c.h.b16 %v3228
        %v3516 = vunpack.c.l.b16 %v3229
        %v3517 = vunpack.c.h.b16 %v3229
        %v3518 = vunpack.c.l.b16 %v3230
        %v3519 = vunpack.c.h.b16 %v3230
        %v3520 = vunpack.c.l.b16 %v3231
        %v3521 = vunpack.c.h.b16 %v3231
        %v3522 = vunpack.c.l.b16 %v3232
        %v3523 = vunpack.c.h.b16 %v3232
        %v3524 = vunpack.c.l.b16 %v3233
        %v3525 = vunpack.c.h.b16 %v3233
        %v3526 = vunpack.c.l.b16 %v3234
        %v3527 = vunpack.c.h.b16 %v3234
        %v3528 = vunpack.c.l.b16 %v3235
        %v3529 = vunpack.c.h.b16 %v3235
        %v3530 = vunpack.c.l.b16 %v3236
        %v3531 = vunpack.c.h.b16 %v3236
        %v3532 = vunpack.c.l.b16 %v3237
        %v3533 = vunpack.c.h.b16 %v3237
        %v3534 = vunpack.c.l.b16 %v3238
        %v3535 = vunpack.c.h.b16 %v3238
        %v3536 = vunpack.c.l.b16 %v3239
        %v3537 = vunpack.c.h.b16 %v3239
        %v3538 = vunpack.c.l.b16 %v3240
        %v3539 = vunpack.c.h.b16 %v3240
        %v3540 = vunpack.c.l.b16 %v3241
        %v3541 = vunpack.c.h.b16 %v3241
        %v3542 = vunpack.c.l.b16 %v3242
        %v3543 = vunpack.c.h.b16 %v3242
        %v3544 = vunpack.c.l.b16 %v3243
        %v3545 = vunpack.c.h.b16 %v3243
        %v3546 = vunpack.c.l.b16 %v3244
        %v3547 = vunpack.c.h.b16 %v3244
        %v3548 = vunpack.c.l.b16 %v3245
        %v3549 = vunpack.c.h.b16 %v3245
        %v3550 = vunpack.c.l.b16 %v3246
        %v3551 = vunpack.c.h.b16 %v3246
        %v3552 = vunpack.c.l.b16 %v3247
        %v3553 = vunpack.c.h.b16 %v3247
        %v3554 = vunpack.c.l.b16 %v3248
        %v3555 = vunpack.c.h.b16 %v3248
        %v3556 = vunpack.c.l.b16 %v3249
        %v3557 = vunpack.c.h.b16 %v3249
        %v3558 = vunpack.c.l.b16 %v3250
        %v3559 = vunpack.c.h.b16 %v3250
        %v3560 = vunpack.c.l.b16 %v3251
        %v3561 = vunpack.c.h.b16 %v3251
        %v3562 = vunpack.c.l.b16 %v3252
        %v3563 = vunpack.c.h.b16 %v3252
        %v3564 = vunpack.c.l.b16 %v3253
        %v3565 = vunpack.c.h.b16 %v3253
        %v3566 = vunpack.c.l.b16 %v3254
        %v3567 = vunpack.c.h.b16 %v3254
        %v3568 = vunpack.c.l.b16 %v3255
        %v3569 = vunpack.c.h.b16 %v3255
        %v3570 = vunpack.c.l.b16 %v3256
        %v3571 = vunpack.c.h.b16 %v3256
        %v3572 = vunpack.c.l.b16 %v3257
        %v3573 = vunpack.c.h.b16 %v3257
        %v3574 = vunpack.c.l.b16 %v3258
        %v3575 = vunpack.c.h.b16 %v3258
        %v3576 = vunpack.c.l.b16 %v3259
        %v3577 = vunpack.c.h.b16 %v3259
        %v3578 = vunpack.c.l.b16 %v3260
        %v3579 = vunpack.c.h.b16 %v3260
        %v3580 = vunpack.c.l.b16 %v3261
        %v3581 = vunpack.c.h.b16 %v3261
        %v3582 = vunpack.c.l.b16 %v3262
        %v3583 = vunpack.c.h.b16 %v3262
        %v3584 = vunpack.c.l.b16 %v3263
        %v3585 = vunpack.c.h.b16 %v3263
        %v3586 = vunpack.c.l.b16 %v3264
        %v3587 = vunpack.c.h.b16 %v3264
        %v3588 = vunpack.c.l.b16 %v3265
        %v3589 = vunpack.c.h.b16 %v3265
        %v3590 = vunpack.c.l.b16 %v3266
        %v3591 = vunpack.c.h.b16 %v3266
        %v3592 = vunpack.c.l.b16 %v3267
        %v3593 = vunpack.c.h.b16 %v3267
        %v3594 = vunpack.c.l.b16 %v3268
        %v3595 = vunpack.c.h.b16 %v3268
        %v3596 = vunpack.c.l.b16 %v3269
        %v3597 = vunpack.c.h.b16 %v3269
        %v3598 = vunpack.c.l.b16 %v3270
        %v3599 = vunpack.c.h.b16 %v3270
        %v3600 = vunpack.c.l.b16 %v3271
        %v3601 = vunpack.c.h.b16 %v3271
        %v3602 = vunpack.c.l.b16 %v3272
        %v3603 = vunpack.c.h.b16 %v3272
        %v3604 = vunpack.c.l.b16 %v3273
        %v3605 = vunpack.c.h.b16 %v3273
        %v3606 = vunpack.c.l.b16 %v3274
        %v3607 = vunpack.c.h.b16 %v3274
        %v3608 = vunpack.c.l.b16 %v3275
        %v3609 = vunpack.c.h.b16 %v3275
        %v3610 = vunpack.c.l.b16 %v3276
        %v3611 = vunpack.c.h.b16 %v3276
        %v3612 = vunpack.c.l.b16 %v3277
        %v3613 = vunpack.c.h.b16 %v3277
        %v3614 = vunpack.c.l.b16 %v3278
        %v3615 = vunpack.c.h.b16 %v3278
        %v3616 = vunpack.c.l.b16 %v3279
        %v3617 = vunpack.c.h.b16 %v3279
        %v3618 = vunpack.c.l.b16 %v3280
        %v3619 = vunpack.c.h.b16 %v3280
        %v3620 = vunpack.c.l.b16 %v3281
        %v3621 = vunpack.c.h.b16 %v3281
        %v3622 = vunpack.c.l.b16 %v3282
        %v3623 = vunpack.c.h.b16 %v3282
        %v3624 = vunpack.c.l.b16 %v3283
        %v3625 = vunpack.c.h.b16 %v3283
        %v3626 = vunpack.c.l.b16 %v3284
        %v3627 = vunpack.c.h.b16 %v3284
        %v3628 = vunpack.c.l.b16 %v3285
        %v3629 = vunpack.c.h.b16 %v3285
        %v3630 = vunpack.c.l.b16 %v3286
        %v3631 = vunpack.c.h.b16 %v3286
        %v3632 = vunpack.c.l.b16 %v3287
        %v3633 = vunpack.c.h.b16 %v3287
        %v3634 = vunpack.c.l.b16 %v3288
        %v3635 = vunpack.c.h.b16 %v3288
        %v3636 = vunpack.c.l.b16 %v3289
        %v3637 = vunpack.c.h.b16 %v3289
        %v3638 = vunpack.c.l.b16 %v3290
        %v3639 = vunpack.c.h.b16 %v3290
        %v3640 = vunpack.c.l.b16 %v3291
        %v3641 = vunpack.c.h.b16 %v3291
        %v3642 = vunpack.c.l.b16 %v3292
        %v3643 = vunpack.c.h.b16 %v3292
        %v3644 = vunpack.c.l.b16 %v3293
        %v3645 = vunpack.c.h.b16 %v3293
        %v3646 = vunpack.c.l.b16 %v3294
        %v3647 = vunpack.c.h.b16 %v3294
        %v3648 = vunpack.c.l.b16 %v3295
        %v3649 = vunpack.c.h.b16 %v3295
        %v3650 = vunpack.c.l.b16 %v3296
        %v3651 = vunpack.c.h.b16 %v3296
        %v3652 = vunpack.c.l.b16 %v3297
        %v3653 = vunpack.c.h.b16 %v3297
        %v3654 = vunpack.c.l.b16 %v3298
        %v3655 = vunpack.c.h.b16 %v3298
        %v3656 = vunpack.c.l.b16 %v3299
        %v3657 = vunpack.c.h.b16 %v3299
        %v3658 = vunpack.c.l.b16 %v3300
        %v3659 = vunpack.c.h.b16 %v3300
        %v3660 = vunpack.c.l.b16 %v3301
        %v3661 = vunpack.c.h.b16 %v3301
        %v3662 = vunpack.c.l.b16 %v3302
        %v3663 = vunpack.c.h.b16 %v3302
        %v3664 = vunpack.c.l.b16 %v3303
        %v3665 = vunpack.c.h.b16 %v3303
        %v3666 = vunpack.c.l.b16 %v3304
        %v3667 = vunpack.c.h.b16 %v3304
        %v3668 = vunpack.c.l.b16 %v3305
        %v3669 = vunpack.c.h.b16 %v3305
        %v3670 = vunpack.c.l.b16 %v3306
        %v3671 = vunpack.c.h.b16 %v3306
        %v3672 = vunpack.c.l.b16 %v3307
        %v3673 = vunpack.c.h.b16 %v3307
        %v3674 = vunpack.c.l.b16 %v3308
        %v3675 = vunpack.c.h.b16 %v3308
        %v3676 = vunpack.c.l.b16 %v3309
        %v3677 = vunpack.c.h.b16 %v3309
        %v3678 = vunpack.c.l.b16 %v3310
        %v3679 = vunpack.c.h.b16 %v3310
        %v3680 = vunpack.c.l.b16 %v3311
        %v3681 = vunpack.c.h.b16 %v3311
        %v3682 = vunpack.c.l.b16 %v3312
        %v3683 = vunpack.c.h.b16 %v3312
        %v3684 = vunpack.c.l.b16 %v3313
        %v3685 = vunpack.c.h.b16 %v3313
        %v3686 = vunpack.c.l.b16 %v3314
        %v3687 = vunpack.c.h.b16 %v3314
        %v3688 = vunpack.c.l.b16 %v3315
        %v3689 = vunpack.c.h.b16 %v3315
        %v3690 = vunpack.c.l.b16 %v3316
        %v3691 = vunpack.c.h.b16 %v3316
        %v3692 = vunpack.c.l.b16 %v3317
        %v3693 = vunpack.c.h.b16 %v3317
        %v3694 = vunpack.c.l.b16 %v3318
        %v3695 = vunpack.c.h.b16 %v3318
        %v3696 = vunpack.c.l.b16 %v3319
        %v3697 = vunpack.c.h.b16 %v3319
        %v3698 = vunpack.c.l.b16 %v3320
        %v3699 = vunpack.c.h.b16 %v3320
        %v3700 = vunpack.c.l.b16 %v3321
        %v3701 = vunpack.c.h.b16 %v3321
        %v3702 = vunpack.c.l.b16 %v3322
        %v3703 = vunpack.c.h.b16 %v3322
        %v3704 = vunpack.c.l.b16 %v3323
        %v3705 = vunpack.c.h.b16 %v3323
        %v3706 = vunpack.c.l.b16 %v3324
        %v3707 = vunpack.c.h.b16 %v3324
        %v3708 = vunpack.c.l.b16 %v3325
        %v3709 = vunpack.c.h.b16 %v3325
        %v3710 = vunpack.c.l.b16 %v3326
        %v3711 = vunpack.c.h.b16 %v3326
        %v3712 = vunpack.c.l.b16 %v3327
        %v3713 = vunpack.c.h.b16 %v3327
        %v3714 = vunpack.c.l.b16 %v3328
        %v3715 = vunpack.c.h.b16 %v3328
        %v3716 = vunpack.c.l.b16 %v3329
        %v3717 = vunpack.c.h.b16 %v3329
        %v3718 = vunpack.c.l.b16 %v3330
        %v3719 = vunpack.c.h.b16 %v3330
        %v3720 = vunpack.c.l.b16 %v3331
        %v3721 = vunpack.c.h.b16 %v3331
        %v3722 = vunpack.c.l.b16 %v3332
        %v3723 = vunpack.c.h.b16 %v3332
        %v3724 = vunpack.c.l.b16 %v3333
        %v3725 = vunpack.c.h.b16 %v3333
        %v3726 = vpack.c.b16 %v3472, %v3470
        %v3727 = vpack.c.b16 %v3473, %v3471
        %v3728 = vpack.c.b16 %v3476, %v3474
        %v3729 = vpack.c.b16 %v3477, %v3475
        %v3730 = vpack.c.b16 %v3480, %v3478
        %v3731 = vpack.c.b16 %v3481, %v3479
        %v3732 = vpack.c.b16 %v3484, %v3482
        %v3733 = vpack.c.b16 %v3485, %v3483
        %v3734 = vpack.c.b16 %v3488, %v3486
        %v3735 = vpack.c.b16 %v3489, %v3487
        %v3736 = vpack.c.b16 %v3492, %v3490
        %v3737 = vpack.c.b16 %v3493, %v3491
        %v3738 = vpack.c.b16 %v3496, %v3494
        %v3739 = vpack.c.b16 %v3497, %v3495
        %v3740 = vpack.c.b16 %v3500, %v3498
        %v3741 = vpack.c.b16 %v3501, %v3499
        %v3742 = vpack.c.b16 %v3504, %v3502
        %v3743 = vpack.c.b16 %v3505, %v3503
        %v3744 = vpack.c.b16 %v3508, %v3506
        %v3745 = vpack.c.b16 %v3509, %v3507
        %v3746 = vpack.c.b16 %v3512, %v3510
        %v3747 = vpack.c.b16 %v3513, %v3511
        %v3748 = vpack.c.b16 %v3516, %v3514
        %v3749 = vpack.c.b16 %v3517, %v3515
        %v3750 = vpack.c.b16 %v3520, %v3518
        %v3751 = vpack.c.b16 %v3521, %v3519
        %v3752 = vpack.c.b16 %v3524, %v3522
        %v3753 = vpack.c.b16 %v3525, %v3523
        %v3754 = vpack.c.b16 %v3528, %v3526
        %v3755 = vpack.c.b16 %v3529, %v3527
        %v3756 = vpack.c.b16 %v3532, %v3530
        %v3757 = vpack.c.b16 %v3533, %v3531
        %v3758 = vpack.c.b16 %v3536, %v3534
        %v3759 = vpack.c.b16 %v3537, %v3535
        %v3760 = vpack.c.b16 %v3540, %v3538
        %v3761 = vpack.c.b16 %v3541, %v3539
        %v3762 = vpack.c.b16 %v3544, %v3542
        %v3763 = vpack.c.b16 %v3545, %v3543
        %v3764 = vpack.c.b16 %v3548, %v3546
        %v3765 = vpack.c.b16 %v3549, %v3547
        %v3766 = vpack.c.b16 %v3552, %v3550
        %v3767 = vpack.c.b16 %v3553, %v3551
        %v3768 = vpack.c.b16 %v3556, %v3554
        %v3769 = vpack.c.b16 %v3557, %v3555
        %v3770 = vpack.c.b16 %v3560, %v3558
        %v3771 = vpack.c.b16 %v3561, %v3559
        %v3772 = vpack.c.b16 %v3564, %v3562
        %v3773 = vpack.c.b16 %v3565, %v3563
        %v3774 = vpack.c.b16 %v3568, %v3566
        %v3775 = vpack.c.b16 %v3569, %v3567
        %v3776 = vpack.c.b16 %v3572, %v3570
        %v3777 = vpack.c.b16 %v3573, %v3571
        %v3778 = vpack.c.b16 %v3576, %v3574
        %v3779 = vpack.c.b16 %v3577, %v3575
        %v3780 = vpack.c.b16 %v3580, %v3578
        %v3781 = vpack.c.b16 %v3581, %v3579
        %v3782 = vpack.c.b16 %v3584, %v3582
        %v3783 = vpack.c.b16 %v3585, %v3583
        %v3784 = vpack.c.b16 %v3588, %v3586
        %v3785 = vpack.c.b16 %v3589, %v3587
        %v3786 = vpack.c.b16 %v3592, %v3590
        %v3787 = vpack.c.b16 %v3593, %v3591
        %v3788 = vpack.c.b16 %v3596, %v3594
        %v3789 = vpack.c.b16 %v3597, %v3595
        %v3790 = vpack.c.b16 %v3600, %v3598
        %v3791 = vpack.c.b16 %v3601, %v3599
        %v3792 = vpack.c.b16 %v3604, %v3602
        %v3793 = vpack.c.b16 %v3605, %v3603
        %v3794 = vpack.c.b16 %v3608, %v3606
        %v3795 = vpack.c.b16 %v3609, %v3607
        %v3796 = vpack.c.b16 %v3612, %v3610
        %v3797 = vpack.c.b16 %v3613, %v3611
        %v3798 = vpack.c.b16 %v3616, %v3614
        %v3799 = vpack.c.b16 %v3617, %v3615
        %v3800 = vpack.c.b16 %v3620, %v3618
        %v3801 = vpack.c.b16 %v3621, %v3619
        %v3802 = vpack.c.b16 %v3624, %v3622
        %v3803 = vpack.c.b16 %v3625, %v3623
        %v3804 = vpack.c.b16 %v3628, %v3626
        %v3805 = vpack.c.b16 %v3629, %v3627
        %v3806 = vpack.c.b16 %v3632, %v3630
        %v3807 = vpack.c.b16 %v3633, %v3631
        %v3808 = vpack.c.b16 %v3636, %v3634
        %v3809 = vpack.c.b16 %v3637, %v3635
        %v3810 = vpack.c.b16 %v3640, %v3638
        %v3811 = vpack.c.b16 %v3641, %v3639
        %v3812 = vpack.c.b16 %v3644, %v3642
        %v3813 = vpack.c.b16 %v3645, %v3643
        %v3814 = vpack.c.b16 %v3648, %v3646
        %v3815 = vpack.c.b16 %v3649, %v3647
        %v3816 = vpack.c.b16 %v3652, %v3650
        %v3817 = vpack.c.b16 %v3653, %v3651
        %v3818 = vpack.c.b16 %v3656, %v3654
        %v3819 = vpack.c.b16 %v3657, %v3655
        %v3820 = vpack.c.b16 %v3660, %v3658
        %v3821 = vpack.c.b16 %v3661, %v3659
        %v3822 = vpack.c.b16 %v3664, %v3662
        %v3823 = vpack.c.b16 %v3665, %v3663
        %v3824 = vpack.c.b16 %v3668, %v3666
        %v3825 = vpack.c.b16 %v3669, %v3667
        %v3826 = vpack.c.b16 %v3672, %v3670
        %v3827 = vpack.c.b16 %v3673, %v3671
        %v3828 = vpack.c.b16 %v3676, %v3674
        %v3829 = vpack.c.b16 %v3677, %v3675
        %v3830 = vpack.c.b16 %v3680, %v3678
        %v3831 = vpack.c.b16 %v3681, %v3679
        %v3832 = vpack.c.b16 %v3684, %v3682
        %v3833 = vpack.c.b16 %v3685, %v3683
        %v3834 = vpack.c.b16 %v3688, %v3686
        %v3835 = vpack.c.b16 %v3689, %v3687
        %v3836 = vpack.c.b16 %v3692, %v3690
        %v3837 = vpack.c.b16 %v3693, %v3691
        %v3838 = vpack.c.b16 %v3696, %v3694
        %v3839 = vpack.c.b16 %v3697, %v3695
        %v3840 = vpack.c.b16 %v3700, %v3698
        %v3841 = vpack.c.b16 %v3701, %v3699
        %v3842 = vpack.c.b16 %v3704, %v3702
        %v3843 = vpack.c.b16 %v3705, %v3703
        %v3844 = vpack.c.b16 %v3708, %v3706
        %v3845 = vpack.c.b16 %v3709, %v3707
        %v3846 = vpack.c.b16 %v3712, %v3710
        %v3847 = vpack.c.b16 %v3713, %v3711
        %v3848 = vpack.c.b16 %v3716, %v3714
        %v3849 = vpack.c.b16 %v3717, %v3715
        %v3850 = vpack.c.b16 %v3720, %v3718
        %v3851 = vpack.c.b16 %v3721, %v3719
        %v3852 = vpack.c.b16 %v3724, %v3722
        %v3853 = vpack.c.b16 %v3725, %v3723
        %3982 = vmatpush.bf16.msra.mxu0 %v3740
        %3983 = vmatpush.bf16.msra.mxu0 %v3738
        %3984 = vmatpush.bf16.msra.mxu0 %v3736
        %3985 = vmatpush.bf16.msra.mxu0 %v3734
        %3986 = vmatpush.bf16.msra.mxu0 %v3732
        %3987 = vmatpush.bf16.msra.mxu0 %v3730
        %3988 = vmatpush.bf16.msra.mxu0 %v3728
        %3989 = vmatpush.bf16.msra.mxu0 %v3726
        %3990 = vmatmul.bf16.gmra.mxu0 %v3334
        %v3991 = vpop.f32.mrf.mxu0
        %v3992 = vadd.f32 0.0, %v3991
        %v3993 = vpop.f32.mrf.mxu0
        %v3994 = vadd.f32 0.0, %v3993
        %3995 = vdwg.mxu0
        %3996 = vmatpush.bf16.msra.mxu0 %v3756
        %3997 = vmatpush.bf16.msra.mxu0 %v3754
        %3998 = vmatpush.bf16.msra.mxu0 %v3752
        %3999 = vmatpush.bf16.msra.mxu0 %v3750
        %4000 = vmatpush.bf16.msra.mxu0 %v3748
        %4001 = vmatpush.bf16.msra.mxu0 %v3746
        %4002 = vmatpush.bf16.msra.mxu0 %v3744
        %4003 = vmatpush.bf16.msra.mxu0 %v3742
        %4004 = vmatmul.bf16.gmra.mxu0 %v3335
        %v4005 = vpop.f32.mrf.mxu0
        %v4006 = vadd.f32 %v3992, %v4005
        %v4007 = vpop.f32.mrf.mxu0
        %v4008 = vadd.f32 %v3994, %v4007
        %4009 = vdwg.mxu0
        %4010 = vmatpush.bf16.msra.mxu0 %v3772
        %4011 = vmatpush.bf16.msra.mxu0 %v3770
        %4012 = vmatpush.bf16.msra.mxu0 %v3768
        %4013 = vmatpush.bf16.msra.mxu0 %v3766
        %4014 = vmatpush.bf16.msra.mxu0 %v3764
        %4015 = vmatpush.bf16.msra.mxu0 %v3762
        %4016 = vmatpush.bf16.msra.mxu0 %v3760
        %4017 = vmatpush.bf16.msra.mxu0 %v3758
        %4018 = vmatmul.bf16.gmra.mxu0 %v3336
        %v4019 = vpop.f32.mrf.mxu0
        %v4020 = vadd.f32 %v4006, %v4019
        %v4021 = vpop.f32.mrf.mxu0
        %v4022 = vadd.f32 %v4008, %v4021
        %4023 = vdwg.mxu0
        %4024 = vmatpush.bf16.msra.mxu0 %v3788
        %4025 = vmatpush.bf16.msra.mxu0 %v3786
        %4026 = vmatpush.bf16.msra.mxu0 %v3784
        %4027 = vmatpush.bf16.msra.mxu0 %v3782
        %4028 = vmatpush.bf16.msra.mxu0 %v3780
        %4029 = vmatpush.bf16.msra.mxu0 %v3778
        %4030 = vmatpush.bf16.msra.mxu0 %v3776
        %4031 = vmatpush.bf16.msra.mxu0 %v3774
        %4032 = vmatmul.bf16.gmra.mxu0 %v3337
        %v4033 = vpop.f32.mrf.mxu0
        %v4034 = vadd.f32 %v4020, %v4033
        %v4035 = vpop.f32.mrf.mxu0
        %v4036 = vadd.f32 %v4022, %v4035
        %4037 = vdwg.mxu0
        %4038 = vmatpush.bf16.msra.mxu0 %v3804
        %4039 = vmatpush.bf16.msra.mxu0 %v3802
        %4040 = vmatpush.bf16.msra.mxu0 %v3800
        %4041 = vmatpush.bf16.msra.mxu0 %v3798
        %4042 = vmatpush.bf16.msra.mxu0 %v3796
        %4043 = vmatpush.bf16.msra.mxu0 %v3794
        %4044 = vmatpush.bf16.msra.mxu0 %v3792
        %4045 = vmatpush.bf16.msra.mxu0 %v3790
        %4046 = vmatmul.bf16.gmra.mxu0 %v3338
        %v4047 = vpop.f32.mrf.mxu0
        %v4048 = vadd.f32 %v4034, %v4047
        %v4049 = vpop.f32.mrf.mxu0
        %v4050 = vadd.f32 %v4036, %v4049
        %4051 = vdwg.mxu0
        %4052 = vmatpush.bf16.msra.mxu0 %v3820
        %4053 = vmatpush.bf16.msra.mxu0 %v3818
        %4054 = vmatpush.bf16.msra.mxu0 %v3816
        %4055 = vmatpush.bf16.msra.mxu0 %v3814
        %4056 = vmatpush.bf16.msra.mxu0 %v3812
        %4057 = vmatpush.bf16.msra.mxu0 %v3810
        %4058 = vmatpush.bf16.msra.mxu0 %v3808
        %4059 = vmatpush.bf16.msra.mxu0 %v3806
        %4060 = vmatmul.bf16.gmra.mxu0 %v3339
        %v4061 = vpop.f32.mrf.mxu0
        %v4062 = vadd.f32 %v4048, %v4061
        %v4063 = vpop.f32.mrf.mxu0
        %v4064 = vadd.f32 %v4050, %v4063
        %4065 = vdwg.mxu0
        %4066 = vmatpush.bf16.msra.mxu0 %v3836
        %4067 = vmatpush.bf16.msra.mxu0 %v3834
        %4068 = vmatpush.bf16.msra.mxu0 %v3832
        %4069 = vmatpush.bf16.msra.mxu0 %v3830
        %4070 = vmatpush.bf16.msra.mxu0 %v3828
        %4071 = vmatpush.bf16.msra.mxu0 %v3826
        %4072 = vmatpush.bf16.msra.mxu0 %v3824
        %4073 = vmatpush.bf16.msra.mxu0 %v3822
        %4074 = vmatmul.bf16.gmra.mxu0 %v3340
        %v4075 = vpop.f32.mrf.mxu0
        %v4076 = vadd.f32 %v4062, %v4075
        %v4077 = vpop.f32.mrf.mxu0
        %v4078 = vadd.f32 %v4064, %v4077
        %4079 = vdwg.mxu0
        %4080 = vmatpush.bf16.msra.mxu0 %v3852
        %4081 = vmatpush.bf16.msra.mxu0 %v3850
        %4082 = vmatpush.bf16.msra.mxu0 %v3848
        %4083 = vmatpush.bf16.msra.mxu0 %v3846
        %4084 = vmatpush.bf16.msra.mxu0 %v3844
        %4085 = vmatpush.bf16.msra.mxu0 %v3842
        %4086 = vmatpush.bf16.msra.mxu0 %v3840
        %4087 = vmatpush.bf16.msra.mxu0 %v3838
        %4088 = vmatmul.bf16.gmra.mxu0 %v3341
        %v4089 = vpop.f32.mrf.mxu0
        %v4090 = vadd.f32 %v4076, %v4089
        %v4091 = vpop.f32.mrf.mxu0
        %v4092 = vadd.f32 %v4078, %v4091
        %4093 = vdwg.mxu0
        %4094 = vmatpush.bf16.msra.mxu0 %v3741
        %4095 = vmatpush.bf16.msra.mxu0 %v3739
        %4096 = vmatpush.bf16.msra.mxu0 %v3737
        %4097 = vmatpush.bf16.msra.mxu0 %v3735
        %4098 = vmatpush.bf16.msra.mxu0 %v3733
        %4099 = vmatpush.bf16.msra.mxu0 %v3731
        %4100 = vmatpush.bf16.msra.mxu0 %v3729
        %4101 = vmatpush.bf16.msra.mxu0 %v3727
        %4102 = vmatmul.bf16.gmra.mxu0 %v3334
        %v4103 = vpop.f32.mrf.mxu0
        %v4104 = vadd.f32 0.0, %v4103
        %v4105 = vpop.f32.mrf.mxu0
        %v4106 = vadd.f32 0.0, %v4105
        %4107 = vdwg.mxu0
        %4108 = vmatpush.bf16.msra.mxu0 %v3757
        %4109 = vmatpush.bf16.msra.mxu0 %v3755
        %4110 = vmatpush.bf16.msra.mxu0 %v3753
        %4111 = vmatpush.bf16.msra.mxu0 %v3751
        %4112 = vmatpush.bf16.msra.mxu0 %v3749
        %4113 = vmatpush.bf16.msra.mxu0 %v3747
        %4114 = vmatpush.bf16.msra.mxu0 %v3745
        %4115 = vmatpush.bf16.msra.mxu0 %v3743
        %4116 = vmatmul.bf16.gmra.mxu0 %v3335
        %v4117 = vpop.f32.mrf.mxu0
        %v4118 = vadd.f32 %v4104, %v4117
        %v4119 = vpop.f32.mrf.mxu0
        %v4120 = vadd.f32 %v4106, %v4119
        %4121 = vdwg.mxu0
        %4122 = vmatpush.bf16.msra.mxu0 %v3773
        %4123 = vmatpush.bf16.msra.mxu0 %v3771
        %4124 = vmatpush.bf16.msra.mxu0 %v3769
        %4125 = vmatpush.bf16.msra.mxu0 %v3767
        %4126 = vmatpush.bf16.msra.mxu0 %v3765
        %4127 = vmatpush.bf16.msra.mxu0 %v3763
        %4128 = vmatpush.bf16.msra.mxu0 %v3761
        %4129 = vmatpush.bf16.msra.mxu0 %v3759
        %4130 = vmatmul.bf16.gmra.mxu0 %v3336
        %v4131 = vpop.f32.mrf.mxu0
        %v4132 = vadd.f32 %v4118, %v4131
        %v4133 = vpop.f32.mrf.mxu0
        %v4134 = vadd.f32 %v4120, %v4133
        %4135 = vdwg.mxu0
        %4136 = vmatpush.bf16.msra.mxu0 %v3789
        %4137 = vmatpush.bf16.msra.mxu0 %v3787
        %4138 = vmatpush.bf16.msra.mxu0 %v3785
        %4139 = vmatpush.bf16.msra.mxu0 %v3783
        %4140 = vmatpush.bf16.msra.mxu0 %v3781
        %4141 = vmatpush.bf16.msra.mxu0 %v3779
        %4142 = vmatpush.bf16.msra.mxu0 %v3777
        %4143 = vmatpush.bf16.msra.mxu0 %v3775
        %4144 = vmatmul.bf16.gmra.mxu0 %v3337
        %v4145 = vpop.f32.mrf.mxu0
        %v4146 = vadd.f32 %v4132, %v4145
        %v4147 = vpop.f32.mrf.mxu0
        %v4148 = vadd.f32 %v4134, %v4147
        %4149 = vdwg.mxu0
        %4150 = vmatpush.bf16.msra.mxu0 %v3805
        %4151 = vmatpush.bf16.msra.mxu0 %v3803
        %4152 = vmatpush.bf16.msra.mxu0 %v3801
        %4153 = vmatpush.bf16.msra.mxu0 %v3799
        %4154 = vmatpush.bf16.msra.mxu0 %v3797
        %4155 = vmatpush.bf16.msra.mxu0 %v3795
        %4156 = vmatpush.bf16.msra.mxu0 %v3793
        %4157 = vmatpush.bf16.msra.mxu0 %v3791
        %4158 = vmatmul.bf16.gmra.mxu0 %v3338
        %v4159 = vpop.f32.mrf.mxu0
        %v4160 = vadd.f32 %v4146, %v4159
        %v4161 = vpop.f32.mrf.mxu0
        %v4162 = vadd.f32 %v4148, %v4161
        %4163 = vdwg.mxu0
        %4164 = vmatpush.bf16.msra.mxu0 %v3821
        %4165 = vmatpush.bf16.msra.mxu0 %v3819
        %4166 = vmatpush.bf16.msra.mxu0 %v3817
        %4167 = vmatpush.bf16.msra.mxu0 %v3815
        %4168 = vmatpush.bf16.msra.mxu0 %v3813
        %4169 = vmatpush.bf16.msra.mxu0 %v3811
        %4170 = vmatpush.bf16.msra.mxu0 %v3809
        %4171 = vmatpush.bf16.msra.mxu0 %v3807
        %4172 = vmatmul.bf16.gmra.mxu0 %v3339
        %v4173 = vpop.f32.mrf.mxu0
        %v4174 = vadd.f32 %v4160, %v4173
        %v4175 = vpop.f32.mrf.mxu0
        %v4176 = vadd.f32 %v4162, %v4175
        %4177 = vdwg.mxu0
        %4178 = vmatpush.bf16.msra.mxu0 %v3837
        %4179 = vmatpush.bf16.msra.mxu0 %v3835
        %4180 = vmatpush.bf16.msra.mxu0 %v3833
        %4181 = vmatpush.bf16.msra.mxu0 %v3831
        %4182 = vmatpush.bf16.msra.mxu0 %v3829
        %4183 = vmatpush.bf16.msra.mxu0 %v3827
        %4184 = vmatpush.bf16.msra.mxu0 %v3825
        %4185 = vmatpush.bf16.msra.mxu0 %v3823
        %4186 = vmatmul.bf16.gmra.mxu0 %v3340
        %v4187 = vpop.f32.mrf.mxu0
        %v4188 = vadd.f32 %v4174, %v4187
        %v4189 = vpop.f32.mrf.mxu0
        %v4190 = vadd.f32 %v4176, %v4189
        %4191 = vdwg.mxu0
        %4192 = vmatpush.bf16.msra.mxu0 %v3853
        %4193 = vmatpush.bf16.msra.mxu0 %v3851
        %4194 = vmatpush.bf16.msra.mxu0 %v3849
        %4195 = vmatpush.bf16.msra.mxu0 %v3847
        %4196 = vmatpush.bf16.msra.mxu0 %v3845
        %4197 = vmatpush.bf16.msra.mxu0 %v3843
        %4198 = vmatpush.bf16.msra.mxu0 %v3841
        %4199 = vmatpush.bf16.msra.mxu0 %v3839
        %4200 = vmatmul.bf16.gmra.mxu0 %v3341
        %v4201 = vpop.f32.mrf.mxu0
        %v4202 = vadd.f32 %v4188, %v4201
        %v4203 = vpop.f32.mrf.mxu0
        %v4204 = vadd.f32 %v4190, %v4203
        %4205 = vdwg.mxu0
        %v4206 = vadd.f32 %v3090, %v4090
        %v4207 = vadd.f32 %v3202, %v4202
        %v4208 = vadd.f32 %v3092, %v4092
        %v4209 = vadd.f32 %v3204, %v4204
        %v4210 = vld [vmem:[#allocation7 + $0xc00] sm:$0xff]
        %v4211 = vld [vmem:[#allocation7 + $0xc08] sm:$0xff]
        %v4212 = vld [vmem:[#allocation7 + $0xc10] sm:$0xff]
        %v4213 = vld [vmem:[#allocation7 + $0xc18] sm:$0xff]
        %v4214 = vld [vmem:[#allocation7 + $0xc20] sm:$0xff]
        %v4215 = vld [vmem:[#allocation7 + $0xc28] sm:$0xff]
        %v4216 = vld [vmem:[#allocation7 + $0xc30] sm:$0xff]
        %v4217 = vld [vmem:[#allocation7 + $0xc38] sm:$0xff]
        %v4218 = vld [vmem:[#allocation7 + $0xc40] sm:$0xff]
        %v4219 = vld [vmem:[#allocation7 + $0xc48] sm:$0xff]
        %v4220 = vld [vmem:[#allocation7 + $0xc50] sm:$0xff]
        %v4221 = vld [vmem:[#allocation7 + $0xc58] sm:$0xff]
        %v4222 = vld [vmem:[#allocation7 + $0xc60] sm:$0xff]
        %v4223 = vld [vmem:[#allocation7 + $0xc68] sm:$0xff]
        %v4224 = vld [vmem:[#allocation7 + $0xc70] sm:$0xff]
        %v4225 = vld [vmem:[#allocation7 + $0xc78] sm:$0xff]
        %v4226 = vld [vmem:[#allocation7 + $0xc80] sm:$0xff]
        %v4227 = vld [vmem:[#allocation7 + $0xc88] sm:$0xff]
        %v4228 = vld [vmem:[#allocation7 + $0xc90] sm:$0xff]
        %v4229 = vld [vmem:[#allocation7 + $0xc98] sm:$0xff]
        %v4230 = vld [vmem:[#allocation7 + $0xca0] sm:$0xff]
        %v4231 = vld [vmem:[#allocation7 + $0xca8] sm:$0xff]
        %v4232 = vld [vmem:[#allocation7 + $0xcb0] sm:$0xff]
        %v4233 = vld [vmem:[#allocation7 + $0xcb8] sm:$0xff]
        %v4234 = vld [vmem:[#allocation7 + $0xcc0] sm:$0xff]
        %v4235 = vld [vmem:[#allocation7 + $0xcc8] sm:$0xff]
        %v4236 = vld [vmem:[#allocation7 + $0xcd0] sm:$0xff]
        %v4237 = vld [vmem:[#allocation7 + $0xcd8] sm:$0xff]
        %v4238 = vld [vmem:[#allocation7 + $0xce0] sm:$0xff]
        %v4239 = vld [vmem:[#allocation7 + $0xce8] sm:$0xff]
        %v4240 = vld [vmem:[#allocation7 + $0xcf0] sm:$0xff]
        %v4241 = vld [vmem:[#allocation7 + $0xcf8] sm:$0xff]
        %v4242 = vld [vmem:[#allocation7 + $0xd00] sm:$0xff]
        %v4243 = vld [vmem:[#allocation7 + $0xd08] sm:$0xff]
        %v4244 = vld [vmem:[#allocation7 + $0xd10] sm:$0xff]
        %v4245 = vld [vmem:[#allocation7 + $0xd18] sm:$0xff]
        %v4246 = vld [vmem:[#allocation7 + $0xd20] sm:$0xff]
        %v4247 = vld [vmem:[#allocation7 + $0xd28] sm:$0xff]
        %v4248 = vld [vmem:[#allocation7 + $0xd30] sm:$0xff]
        %v4249 = vld [vmem:[#allocation7 + $0xd38] sm:$0xff]
        %v4250 = vld [vmem:[#allocation7 + $0xd40] sm:$0xff]
        %v4251 = vld [vmem:[#allocation7 + $0xd48] sm:$0xff]
        %v4252 = vld [vmem:[#allocation7 + $0xd50] sm:$0xff]
        %v4253 = vld [vmem:[#allocation7 + $0xd58] sm:$0xff]
        %v4254 = vld [vmem:[#allocation7 + $0xd60] sm:$0xff]
        %v4255 = vld [vmem:[#allocation7 + $0xd68] sm:$0xff]
        %v4256 = vld [vmem:[#allocation7 + $0xd70] sm:$0xff]
        %v4257 = vld [vmem:[#allocation7 + $0xd78] sm:$0xff]
        %v4258 = vld [vmem:[#allocation7 + $0xd80] sm:$0xff]
        %v4259 = vld [vmem:[#allocation7 + $0xd88] sm:$0xff]
        %v4260 = vld [vmem:[#allocation7 + $0xd90] sm:$0xff]
        %v4261 = vld [vmem:[#allocation7 + $0xd98] sm:$0xff]
        %v4262 = vld [vmem:[#allocation7 + $0xda0] sm:$0xff]
        %v4263 = vld [vmem:[#allocation7 + $0xda8] sm:$0xff]
        %v4264 = vld [vmem:[#allocation7 + $0xdb0] sm:$0xff]
        %v4265 = vld [vmem:[#allocation7 + $0xdb8] sm:$0xff]
        %v4266 = vld [vmem:[#allocation7 + $0xdc0] sm:$0xff]
        %v4267 = vld [vmem:[#allocation7 + $0xdc8] sm:$0xff]
        %v4268 = vld [vmem:[#allocation7 + $0xdd0] sm:$0xff]
        %v4269 = vld [vmem:[#allocation7 + $0xdd8] sm:$0xff]
        %v4270 = vld [vmem:[#allocation7 + $0xde0] sm:$0xff]
        %v4271 = vld [vmem:[#allocation7 + $0xde8] sm:$0xff]
        %v4272 = vld [vmem:[#allocation7 + $0xdf0] sm:$0xff]
        %v4273 = vld [vmem:[#allocation7 + $0xdf8] sm:$0xff]
        %v4274 = vld [vmem:[#allocation7 + $0xe00] sm:$0xff]
        %v4275 = vld [vmem:[#allocation7 + $0xe08] sm:$0xff]
        %v4276 = vld [vmem:[#allocation7 + $0xe10] sm:$0xff]
        %v4277 = vld [vmem:[#allocation7 + $0xe18] sm:$0xff]
        %v4278 = vld [vmem:[#allocation7 + $0xe20] sm:$0xff]
        %v4279 = vld [vmem:[#allocation7 + $0xe28] sm:$0xff]
        %v4280 = vld [vmem:[#allocation7 + $0xe30] sm:$0xff]
        %v4281 = vld [vmem:[#allocation7 + $0xe38] sm:$0xff]
        %v4282 = vld [vmem:[#allocation7 + $0xe40] sm:$0xff]
        %v4283 = vld [vmem:[#allocation7 + $0xe48] sm:$0xff]
        %v4284 = vld [vmem:[#allocation7 + $0xe50] sm:$0xff]
        %v4285 = vld [vmem:[#allocation7 + $0xe58] sm:$0xff]
        %v4286 = vld [vmem:[#allocation7 + $0xe60] sm:$0xff]
        %v4287 = vld [vmem:[#allocation7 + $0xe68] sm:$0xff]
        %v4288 = vld [vmem:[#allocation7 + $0xe70] sm:$0xff]
        %v4289 = vld [vmem:[#allocation7 + $0xe78] sm:$0xff]
        %v4290 = vld [vmem:[#allocation7 + $0xe80] sm:$0xff]
        %v4291 = vld [vmem:[#allocation7 + $0xe88] sm:$0xff]
        %v4292 = vld [vmem:[#allocation7 + $0xe90] sm:$0xff]
        %v4293 = vld [vmem:[#allocation7 + $0xe98] sm:$0xff]
        %v4294 = vld [vmem:[#allocation7 + $0xea0] sm:$0xff]
        %v4295 = vld [vmem:[#allocation7 + $0xea8] sm:$0xff]
        %v4296 = vld [vmem:[#allocation7 + $0xeb0] sm:$0xff]
        %v4297 = vld [vmem:[#allocation7 + $0xeb8] sm:$0xff]
        %v4298 = vld [vmem:[#allocation7 + $0xec0] sm:$0xff]
        %v4299 = vld [vmem:[#allocation7 + $0xec8] sm:$0xff]
        %v4300 = vld [vmem:[#allocation7 + $0xed0] sm:$0xff]
        %v4301 = vld [vmem:[#allocation7 + $0xed8] sm:$0xff]
        %v4302 = vld [vmem:[#allocation7 + $0xee0] sm:$0xff]
        %v4303 = vld [vmem:[#allocation7 + $0xee8] sm:$0xff]
        %v4304 = vld [vmem:[#allocation7 + $0xef0] sm:$0xff]
        %v4305 = vld [vmem:[#allocation7 + $0xef8] sm:$0xff]
        %v4306 = vld [vmem:[#allocation7 + $0xf00] sm:$0xff]
        %v4307 = vld [vmem:[#allocation7 + $0xf08] sm:$0xff]
        %v4308 = vld [vmem:[#allocation7 + $0xf10] sm:$0xff]
        %v4309 = vld [vmem:[#allocation7 + $0xf18] sm:$0xff]
        %v4310 = vld [vmem:[#allocation7 + $0xf20] sm:$0xff]
        %v4311 = vld [vmem:[#allocation7 + $0xf28] sm:$0xff]
        %v4312 = vld [vmem:[#allocation7 + $0xf30] sm:$0xff]
        %v4313 = vld [vmem:[#allocation7 + $0xf38] sm:$0xff]
        %v4314 = vld [vmem:[#allocation7 + $0xf40] sm:$0xff]
        %v4315 = vld [vmem:[#allocation7 + $0xf48] sm:$0xff]
        %v4316 = vld [vmem:[#allocation7 + $0xf50] sm:$0xff]
        %v4317 = vld [vmem:[#allocation7 + $0xf58] sm:$0xff]
        %v4318 = vld [vmem:[#allocation7 + $0xf60] sm:$0xff]
        %v4319 = vld [vmem:[#allocation7 + $0xf68] sm:$0xff]
        %v4320 = vld [vmem:[#allocation7 + $0xf70] sm:$0xff]
        %v4321 = vld [vmem:[#allocation7 + $0xf78] sm:$0xff]
        %v4322 = vld [vmem:[#allocation7 + $0xf80] sm:$0xff]
        %v4323 = vld [vmem:[#allocation7 + $0xf88] sm:$0xff]
        %v4324 = vld [vmem:[#allocation7 + $0xf90] sm:$0xff]
        %v4325 = vld [vmem:[#allocation7 + $0xf98] sm:$0xff]
        %v4326 = vld [vmem:[#allocation7 + $0xfa0] sm:$0xff]
        %v4327 = vld [vmem:[#allocation7 + $0xfa8] sm:$0xff]
        %v4328 = vld [vmem:[#allocation7 + $0xfb0] sm:$0xff]
        %v4329 = vld [vmem:[#allocation7 + $0xfb8] sm:$0xff]
        %v4330 = vld [vmem:[#allocation7 + $0xfc0] sm:$0xff]
        %v4331 = vld [vmem:[#allocation7 + $0xfc8] sm:$0xff]
        %v4332 = vld [vmem:[#allocation7 + $0xfd0] sm:$0xff]
        %v4333 = vld [vmem:[#allocation7 + $0xfd8] sm:$0xff]
        %v4334 = vld [vmem:[#allocation7 + $0xfe0] sm:$0xff]
        %v4335 = vld [vmem:[#allocation7 + $0xfe8] sm:$0xff]
        %v4336 = vld [vmem:[#allocation7 + $0xff0] sm:$0xff]
        %v4337 = vld [vmem:[#allocation7 + $0xff8] sm:$0xff]
        %v4338 = vpack.c.bf16 %v1286, %v1278
        %v4339 = vpack.c.bf16 %v1287, %v1279
        %v4340 = vpack.c.bf16 %v1288, %v1280
        %v4341 = vpack.c.bf16 %v1289, %v1281
        %v4342 = vpack.c.bf16 %v1290, %v1282
        %v4343 = vpack.c.bf16 %v1291, %v1283
        %v4344 = vpack.c.bf16 %v1292, %v1284
        %v4345 = vpack.c.bf16 %v1293, %v1285
        %v4474 = vunpack.c.l.b16 %v4210
        %v4475 = vunpack.c.h.b16 %v4210
        %v4476 = vunpack.c.l.b16 %v4211
        %v4477 = vunpack.c.h.b16 %v4211
        %v4478 = vunpack.c.l.b16 %v4212
        %v4479 = vunpack.c.h.b16 %v4212
        %v4480 = vunpack.c.l.b16 %v4213
        %v4481 = vunpack.c.h.b16 %v4213
        %v4482 = vunpack.c.l.b16 %v4214
        %v4483 = vunpack.c.h.b16 %v4214
        %v4484 = vunpack.c.l.b16 %v4215
        %v4485 = vunpack.c.h.b16 %v4215
        %v4486 = vunpack.c.l.b16 %v4216
        %v4487 = vunpack.c.h.b16 %v4216
        %v4488 = vunpack.c.l.b16 %v4217
        %v4489 = vunpack.c.h.b16 %v4217
        %v4490 = vunpack.c.l.b16 %v4218
        %v4491 = vunpack.c.h.b16 %v4218
        %v4492 = vunpack.c.l.b16 %v4219
        %v4493 = vunpack.c.h.b16 %v4219
        %v4494 = vunpack.c.l.b16 %v4220
        %v4495 = vunpack.c.h.b16 %v4220
        %v4496 = vunpack.c.l.b16 %v4221
        %v4497 = vunpack.c.h.b16 %v4221
        %v4498 = vunpack.c.l.b16 %v4222
        %v4499 = vunpack.c.h.b16 %v4222
        %v4500 = vunpack.c.l.b16 %v4223
        %v4501 = vunpack.c.h.b16 %v4223
        %v4502 = vunpack.c.l.b16 %v4224
        %v4503 = vunpack.c.h.b16 %v4224
        %v4504 = vunpack.c.l.b16 %v4225
        %v4505 = vunpack.c.h.b16 %v4225
        %v4506 = vunpack.c.l.b16 %v4226
        %v4507 = vunpack.c.h.b16 %v4226
        %v4508 = vunpack.c.l.b16 %v4227
        %v4509 = vunpack.c.h.b16 %v4227
        %v4510 = vunpack.c.l.b16 %v4228
        %v4511 = vunpack.c.h.b16 %v4228
        %v4512 = vunpack.c.l.b16 %v4229
        %v4513 = vunpack.c.h.b16 %v4229
        %v4514 = vunpack.c.l.b16 %v4230
        %v4515 = vunpack.c.h.b16 %v4230
        %v4516 = vunpack.c.l.b16 %v4231
        %v4517 = vunpack.c.h.b16 %v4231
        %v4518 = vunpack.c.l.b16 %v4232
        %v4519 = vunpack.c.h.b16 %v4232
        %v4520 = vunpack.c.l.b16 %v4233
        %v4521 = vunpack.c.h.b16 %v4233
        %v4522 = vunpack.c.l.b16 %v4234
        %v4523 = vunpack.c.h.b16 %v4234
        %v4524 = vunpack.c.l.b16 %v4235
        %v4525 = vunpack.c.h.b16 %v4235
        %v4526 = vunpack.c.l.b16 %v4236
        %v4527 = vunpack.c.h.b16 %v4236
        %v4528 = vunpack.c.l.b16 %v4237
        %v4529 = vunpack.c.h.b16 %v4237
        %v4530 = vunpack.c.l.b16 %v4238
        %v4531 = vunpack.c.h.b16 %v4238
        %v4532 = vunpack.c.l.b16 %v4239
        %v4533 = vunpack.c.h.b16 %v4239
        %v4534 = vunpack.c.l.b16 %v4240
        %v4535 = vunpack.c.h.b16 %v4240
        %v4536 = vunpack.c.l.b16 %v4241
        %v4537 = vunpack.c.h.b16 %v4241
        %v4538 = vunpack.c.l.b16 %v4242
        %v4539 = vunpack.c.h.b16 %v4242
        %v4540 = vunpack.c.l.b16 %v4243
        %v4541 = vunpack.c.h.b16 %v4243
        %v4542 = vunpack.c.l.b16 %v4244
        %v4543 = vunpack.c.h.b16 %v4244
        %v4544 = vunpack.c.l.b16 %v4245
        %v4545 = vunpack.c.h.b16 %v4245
        %v4546 = vunpack.c.l.b16 %v4246
        %v4547 = vunpack.c.h.b16 %v4246
        %v4548 = vunpack.c.l.b16 %v4247
        %v4549 = vunpack.c.h.b16 %v4247
        %v4550 = vunpack.c.l.b16 %v4248
        %v4551 = vunpack.c.h.b16 %v4248
        %v4552 = vunpack.c.l.b16 %v4249
        %v4553 = vunpack.c.h.b16 %v4249
        %v4554 = vunpack.c.l.b16 %v4250
        %v4555 = vunpack.c.h.b16 %v4250
        %v4556 = vunpack.c.l.b16 %v4251
        %v4557 = vunpack.c.h.b16 %v4251
        %v4558 = vunpack.c.l.b16 %v4252
        %v4559 = vunpack.c.h.b16 %v4252
        %v4560 = vunpack.c.l.b16 %v4253
        %v4561 = vunpack.c.h.b16 %v4253
        %v4562 = vunpack.c.l.b16 %v4254
        %v4563 = vunpack.c.h.b16 %v4254
        %v4564 = vunpack.c.l.b16 %v4255
        %v4565 = vunpack.c.h.b16 %v4255
        %v4566 = vunpack.c.l.b16 %v4256
        %v4567 = vunpack.c.h.b16 %v4256
        %v4568 = vunpack.c.l.b16 %v4257
        %v4569 = vunpack.c.h.b16 %v4257
        %v4570 = vunpack.c.l.b16 %v4258
        %v4571 = vunpack.c.h.b16 %v4258
        %v4572 = vunpack.c.l.b16 %v4259
        %v4573 = vunpack.c.h.b16 %v4259
        %v4574 = vunpack.c.l.b16 %v4260
        %v4575 = vunpack.c.h.b16 %v4260
        %v4576 = vunpack.c.l.b16 %v4261
        %v4577 = vunpack.c.h.b16 %v4261
        %v4578 = vunpack.c.l.b16 %v4262
        %v4579 = vunpack.c.h.b16 %v4262
        %v4580 = vunpack.c.l.b16 %v4263
        %v4581 = vunpack.c.h.b16 %v4263
        %v4582 = vunpack.c.l.b16 %v4264
        %v4583 = vunpack.c.h.b16 %v4264
        %v4584 = vunpack.c.l.b16 %v4265
        %v4585 = vunpack.c.h.b16 %v4265
        %v4586 = vunpack.c.l.b16 %v4266
        %v4587 = vunpack.c.h.b16 %v4266
        %v4588 = vunpack.c.l.b16 %v4267
        %v4589 = vunpack.c.h.b16 %v4267
        %v4590 = vunpack.c.l.b16 %v4268
        %v4591 = vunpack.c.h.b16 %v4268
        %v4592 = vunpack.c.l.b16 %v4269
        %v4593 = vunpack.c.h.b16 %v4269
        %v4594 = vunpack.c.l.b16 %v4270
        %v4595 = vunpack.c.h.b16 %v4270
        %v4596 = vunpack.c.l.b16 %v4271
        %v4597 = vunpack.c.h.b16 %v4271
        %v4598 = vunpack.c.l.b16 %v4272
        %v4599 = vunpack.c.h.b16 %v4272
        %v4600 = vunpack.c.l.b16 %v4273
        %v4601 = vunpack.c.h.b16 %v4273
        %v4602 = vunpack.c.l.b16 %v4274
        %v4603 = vunpack.c.h.b16 %v4274
        %v4604 = vunpack.c.l.b16 %v4275
        %v4605 = vunpack.c.h.b16 %v4275
        %v4606 = vunpack.c.l.b16 %v4276
        %v4607 = vunpack.c.h.b16 %v4276
        %v4608 = vunpack.c.l.b16 %v4277
        %v4609 = vunpack.c.h.b16 %v4277
        %v4610 = vunpack.c.l.b16 %v4278
        %v4611 = vunpack.c.h.b16 %v4278
        %v4612 = vunpack.c.l.b16 %v4279
        %v4613 = vunpack.c.h.b16 %v4279
        %v4614 = vunpack.c.l.b16 %v4280
        %v4615 = vunpack.c.h.b16 %v4280
        %v4616 = vunpack.c.l.b16 %v4281
        %v4617 = vunpack.c.h.b16 %v4281
        %v4618 = vunpack.c.l.b16 %v4282
        %v4619 = vunpack.c.h.b16 %v4282
        %v4620 = vunpack.c.l.b16 %v4283
        %v4621 = vunpack.c.h.b16 %v4283
        %v4622 = vunpack.c.l.b16 %v4284
        %v4623 = vunpack.c.h.b16 %v4284
        %v4624 = vunpack.c.l.b16 %v4285
        %v4625 = vunpack.c.h.b16 %v4285
        %v4626 = vunpack.c.l.b16 %v4286
        %v4627 = vunpack.c.h.b16 %v4286
        %v4628 = vunpack.c.l.b16 %v4287
        %v4629 = vunpack.c.h.b16 %v4287
        %v4630 = vunpack.c.l.b16 %v4288
        %v4631 = vunpack.c.h.b16 %v4288
        %v4632 = vunpack.c.l.b16 %v4289
        %v4633 = vunpack.c.h.b16 %v4289
        %v4634 = vunpack.c.l.b16 %v4290
        %v4635 = vunpack.c.h.b16 %v4290
        %v4636 = vunpack.c.l.b16 %v4291
        %v4637 = vunpack.c.h.b16 %v4291
        %v4638 = vunpack.c.l.b16 %v4292
        %v4639 = vunpack.c.h.b16 %v4292
        %v4640 = vunpack.c.l.b16 %v4293
        %v4641 = vunpack.c.h.b16 %v4293
        %v4642 = vunpack.c.l.b16 %v4294
        %v4643 = vunpack.c.h.b16 %v4294
        %v4644 = vunpack.c.l.b16 %v4295
        %v4645 = vunpack.c.h.b16 %v4295
        %v4646 = vunpack.c.l.b16 %v4296
        %v4647 = vunpack.c.h.b16 %v4296
        %v4648 = vunpack.c.l.b16 %v4297
        %v4649 = vunpack.c.h.b16 %v4297
        %v4650 = vunpack.c.l.b16 %v4298
        %v4651 = vunpack.c.h.b16 %v4298
        %v4652 = vunpack.c.l.b16 %v4299
        %v4653 = vunpack.c.h.b16 %v4299
        %v4654 = vunpack.c.l.b16 %v4300
        %v4655 = vunpack.c.h.b16 %v4300
        %v4656 = vunpack.c.l.b16 %v4301
        %v4657 = vunpack.c.h.b16 %v4301
        %v4658 = vunpack.c.l.b16 %v4302
        %v4659 = vunpack.c.h.b16 %v4302
        %v4660 = vunpack.c.l.b16 %v4303
        %v4661 = vunpack.c.h.b16 %v4303
        %v4662 = vunpack.c.l.b16 %v4304
        %v4663 = vunpack.c.h.b16 %v4304
        %v4664 = vunpack.c.l.b16 %v4305
        %v4665 = vunpack.c.h.b16 %v4305
        %v4666 = vunpack.c.l.b16 %v4306
        %v4667 = vunpack.c.h.b16 %v4306
        %v4668 = vunpack.c.l.b16 %v4307
        %v4669 = vunpack.c.h.b16 %v4307
        %v4670 = vunpack.c.l.b16 %v4308
        %v4671 = vunpack.c.h.b16 %v4308
        %v4672 = vunpack.c.l.b16 %v4309
        %v4673 = vunpack.c.h.b16 %v4309
        %v4674 = vunpack.c.l.b16 %v4310
        %v4675 = vunpack.c.h.b16 %v4310
        %v4676 = vunpack.c.l.b16 %v4311
        %v4677 = vunpack.c.h.b16 %v4311
        %v4678 = vunpack.c.l.b16 %v4312
        %v4679 = vunpack.c.h.b16 %v4312
        %v4680 = vunpack.c.l.b16 %v4313
        %v4681 = vunpack.c.h.b16 %v4313
        %v4682 = vunpack.c.l.b16 %v4314
        %v4683 = vunpack.c.h.b16 %v4314
        %v4684 = vunpack.c.l.b16 %v4315
        %v4685 = vunpack.c.h.b16 %v4315
        %v4686 = vunpack.c.l.b16 %v4316
        %v4687 = vunpack.c.h.b16 %v4316
        %v4688 = vunpack.c.l.b16 %v4317
        %v4689 = vunpack.c.h.b16 %v4317
        %v4690 = vunpack.c.l.b16 %v4318
        %v4691 = vunpack.c.h.b16 %v4318
        %v4692 = vunpack.c.l.b16 %v4319
        %v4693 = vunpack.c.h.b16 %v4319
        %v4694 = vunpack.c.l.b16 %v4320
        %v4695 = vunpack.c.h.b16 %v4320
        %v4696 = vunpack.c.l.b16 %v4321
        %v4697 = vunpack.c.h.b16 %v4321
        %v4698 = vunpack.c.l.b16 %v4322
        %v4699 = vunpack.c.h.b16 %v4322
        %v4700 = vunpack.c.l.b16 %v4323
        %v4701 = vunpack.c.h.b16 %v4323
        %v4702 = vunpack.c.l.b16 %v4324
        %v4703 = vunpack.c.h.b16 %v4324
        %v4704 = vunpack.c.l.b16 %v4325
        %v4705 = vunpack.c.h.b16 %v4325
        %v4706 = vunpack.c.l.b16 %v4326
        %v4707 = vunpack.c.h.b16 %v4326
        %v4708 = vunpack.c.l.b16 %v4327
        %v4709 = vunpack.c.h.b16 %v4327
        %v4710 = vunpack.c.l.b16 %v4328
        %v4711 = vunpack.c.h.b16 %v4328
        %v4712 = vunpack.c.l.b16 %v4329
        %v4713 = vunpack.c.h.b16 %v4329
        %v4714 = vunpack.c.l.b16 %v4330
        %v4715 = vunpack.c.h.b16 %v4330
        %v4716 = vunpack.c.l.b16 %v4331
        %v4717 = vunpack.c.h.b16 %v4331
        %v4718 = vunpack.c.l.b16 %v4332
        %v4719 = vunpack.c.h.b16 %v4332
        %v4720 = vunpack.c.l.b16 %v4333
        %v4721 = vunpack.c.h.b16 %v4333
        %v4722 = vunpack.c.l.b16 %v4334
        %v4723 = vunpack.c.h.b16 %v4334
        %v4724 = vunpack.c.l.b16 %v4335
        %v4725 = vunpack.c.h.b16 %v4335
        %v4726 = vunpack.c.l.b16 %v4336
        %v4727 = vunpack.c.h.b16 %v4336
        %v4728 = vunpack.c.l.b16 %v4337
        %v4729 = vunpack.c.h.b16 %v4337
        %v4730 = vpack.c.b16 %v4476, %v4474
        %v4731 = vpack.c.b16 %v4477, %v4475
        %v4732 = vpack.c.b16 %v4480, %v4478
        %v4733 = vpack.c.b16 %v4481, %v4479
        %v4734 = vpack.c.b16 %v4484, %v4482
        %v4735 = vpack.c.b16 %v4485, %v4483
        %v4736 = vpack.c.b16 %v4488, %v4486
        %v4737 = vpack.c.b16 %v4489, %v4487
        %v4738 = vpack.c.b16 %v4492, %v4490
        %v4739 = vpack.c.b16 %v4493, %v4491
        %v4740 = vpack.c.b16 %v4496, %v4494
        %v4741 = vpack.c.b16 %v4497, %v4495
        %v4742 = vpack.c.b16 %v4500, %v4498
        %v4743 = vpack.c.b16 %v4501, %v4499
        %v4744 = vpack.c.b16 %v4504, %v4502
        %v4745 = vpack.c.b16 %v4505, %v4503
        %v4746 = vpack.c.b16 %v4508, %v4506
        %v4747 = vpack.c.b16 %v4509, %v4507
        %v4748 = vpack.c.b16 %v4512, %v4510
        %v4749 = vpack.c.b16 %v4513, %v4511
        %v4750 = vpack.c.b16 %v4516, %v4514
        %v4751 = vpack.c.b16 %v4517, %v4515
        %v4752 = vpack.c.b16 %v4520, %v4518
        %v4753 = vpack.c.b16 %v4521, %v4519
        %v4754 = vpack.c.b16 %v4524, %v4522
        %v4755 = vpack.c.b16 %v4525, %v4523
        %v4756 = vpack.c.b16 %v4528, %v4526
        %v4757 = vpack.c.b16 %v4529, %v4527
        %v4758 = vpack.c.b16 %v4532, %v4530
        %v4759 = vpack.c.b16 %v4533, %v4531
        %v4760 = vpack.c.b16 %v4536, %v4534
        %v4761 = vpack.c.b16 %v4537, %v4535
        %v4762 = vpack.c.b16 %v4540, %v4538
        %v4763 = vpack.c.b16 %v4541, %v4539
        %v4764 = vpack.c.b16 %v4544, %v4542
        %v4765 = vpack.c.b16 %v4545, %v4543
        %v4766 = vpack.c.b16 %v4548, %v4546
        %v4767 = vpack.c.b16 %v4549, %v4547
        %v4768 = vpack.c.b16 %v4552, %v4550
        %v4769 = vpack.c.b16 %v4553, %v4551
        %v4770 = vpack.c.b16 %v4556, %v4554
        %v4771 = vpack.c.b16 %v4557, %v4555
        %v4772 = vpack.c.b16 %v4560, %v4558
        %v4773 = vpack.c.b16 %v4561, %v4559
        %v4774 = vpack.c.b16 %v4564, %v4562
        %v4775 = vpack.c.b16 %v4565, %v4563
        %v4776 = vpack.c.b16 %v4568, %v4566
        %v4777 = vpack.c.b16 %v4569, %v4567
        %v4778 = vpack.c.b16 %v4572, %v4570
        %v4779 = vpack.c.b16 %v4573, %v4571
        %v4780 = vpack.c.b16 %v4576, %v4574
        %v4781 = vpack.c.b16 %v4577, %v4575
        %v4782 = vpack.c.b16 %v4580, %v4578
        %v4783 = vpack.c.b16 %v4581, %v4579
        %v4784 = vpack.c.b16 %v4584, %v4582
        %v4785 = vpack.c.b16 %v4585, %v4583
        %v4786 = vpack.c.b16 %v4588, %v4586
        %v4787 = vpack.c.b16 %v4589, %v4587
        %v4788 = vpack.c.b16 %v4592, %v4590
        %v4789 = vpack.c.b16 %v4593, %v4591
        %v4790 = vpack.c.b16 %v4596, %v4594
        %v4791 = vpack.c.b16 %v4597, %v4595
        %v4792 = vpack.c.b16 %v4600, %v4598
        %v4793 = vpack.c.b16 %v4601, %v4599
        %v4794 = vpack.c.b16 %v4604, %v4602
        %v4795 = vpack.c.b16 %v4605, %v4603
        %v4796 = vpack.c.b16 %v4608, %v4606
        %v4797 = vpack.c.b16 %v4609, %v4607
        %v4798 = vpack.c.b16 %v4612, %v4610
        %v4799 = vpack.c.b16 %v4613, %v4611
        %v4800 = vpack.c.b16 %v4616, %v4614
        %v4801 = vpack.c.b16 %v4617, %v4615
        %v4802 = vpack.c.b16 %v4620, %v4618
        %v4803 = vpack.c.b16 %v4621, %v4619
        %v4804 = vpack.c.b16 %v4624, %v4622
        %v4805 = vpack.c.b16 %v4625, %v4623
        %v4806 = vpack.c.b16 %v4628, %v4626
        %v4807 = vpack.c.b16 %v4629, %v4627
        %v4808 = vpack.c.b16 %v4632, %v4630
        %v4809 = vpack.c.b16 %v4633, %v4631
        %v4810 = vpack.c.b16 %v4636, %v4634
        %v4811 = vpack.c.b16 %v4637, %v4635
        %v4812 = vpack.c.b16 %v4640, %v4638
        %v4813 = vpack.c.b16 %v4641, %v4639
        %v4814 = vpack.c.b16 %v4644, %v4642
        %v4815 = vpack.c.b16 %v4645, %v4643
        %v4816 = vpack.c.b16 %v4648, %v4646
        %v4817 = vpack.c.b16 %v4649, %v4647
        %v4818 = vpack.c.b16 %v4652, %v4650
        %v4819 = vpack.c.b16 %v4653, %v4651
        %v4820 = vpack.c.b16 %v4656, %v4654
        %v4821 = vpack.c.b16 %v4657, %v4655
        %v4822 = vpack.c.b16 %v4660, %v4658
        %v4823 = vpack.c.b16 %v4661, %v4659
        %v4824 = vpack.c.b16 %v4664, %v4662
        %v4825 = vpack.c.b16 %v4665, %v4663
        %v4826 = vpack.c.b16 %v4668, %v4666
        %v4827 = vpack.c.b16 %v4669, %v4667
        %v4828 = vpack.c.b16 %v4672, %v4670
        %v4829 = vpack.c.b16 %v4673, %v4671
        %v4830 = vpack.c.b16 %v4676, %v4674
        %v4831 = vpack.c.b16 %v4677, %v4675
        %v4832 = vpack.c.b16 %v4680, %v4678
        %v4833 = vpack.c.b16 %v4681, %v4679
        %v4834 = vpack.c.b16 %v4684, %v4682
        %v4835 = vpack.c.b16 %v4685, %v4683
        %v4836 = vpack.c.b16 %v4688, %v4686
        %v4837 = vpack.c.b16 %v4689, %v4687
        %v4838 = vpack.c.b16 %v4692, %v4690
        %v4839 = vpack.c.b16 %v4693, %v4691
        %v4840 = vpack.c.b16 %v4696, %v4694
        %v4841 = vpack.c.b16 %v4697, %v4695
        %v4842 = vpack.c.b16 %v4700, %v4698
        %v4843 = vpack.c.b16 %v4701, %v4699
        %v4844 = vpack.c.b16 %v4704, %v4702
        %v4845 = vpack.c.b16 %v4705, %v4703
        %v4846 = vpack.c.b16 %v4708, %v4706
        %v4847 = vpack.c.b16 %v4709, %v4707
        %v4848 = vpack.c.b16 %v4712, %v4710
        %v4849 = vpack.c.b16 %v4713, %v4711
        %v4850 = vpack.c.b16 %v4716, %v4714
        %v4851 = vpack.c.b16 %v4717, %v4715
        %v4852 = vpack.c.b16 %v4720, %v4718
        %v4853 = vpack.c.b16 %v4721, %v4719
        %v4854 = vpack.c.b16 %v4724, %v4722
        %v4855 = vpack.c.b16 %v4725, %v4723
        %v4856 = vpack.c.b16 %v4728, %v4726
        %v4857 = vpack.c.b16 %v4729, %v4727
        %4986 = vmatpush.bf16.msra.mxu0 %v4744
        %4987 = vmatpush.bf16.msra.mxu0 %v4742
        %4988 = vmatpush.bf16.msra.mxu0 %v4740
        %4989 = vmatpush.bf16.msra.mxu0 %v4738
        %4990 = vmatpush.bf16.msra.mxu0 %v4736
        %4991 = vmatpush.bf16.msra.mxu0 %v4734
        %4992 = vmatpush.bf16.msra.mxu0 %v4732
        %4993 = vmatpush.bf16.msra.mxu0 %v4730
        %4994 = vmatmul.bf16.gmra.mxu0 %v4338
        %v4995 = vpop.f32.mrf.mxu0
        %v4996 = vadd.f32 0.0, %v4995
        %v4997 = vpop.f32.mrf.mxu0
        %v4998 = vadd.f32 0.0, %v4997
        %4999 = vdwg.mxu0
        %5000 = vmatpush.bf16.msra.mxu0 %v4760
        %5001 = vmatpush.bf16.msra.mxu0 %v4758
        %5002 = vmatpush.bf16.msra.mxu0 %v4756
        %5003 = vmatpush.bf16.msra.mxu0 %v4754
        %5004 = vmatpush.bf16.msra.mxu0 %v4752
        %5005 = vmatpush.bf16.msra.mxu0 %v4750
        %5006 = vmatpush.bf16.msra.mxu0 %v4748
        %5007 = vmatpush.bf16.msra.mxu0 %v4746
        %5008 = vmatmul.bf16.gmra.mxu0 %v4339
        %v5009 = vpop.f32.mrf.mxu0
        %v5010 = vadd.f32 %v4996, %v5009
        %v5011 = vpop.f32.mrf.mxu0
        %v5012 = vadd.f32 %v4998, %v5011
        %5013 = vdwg.mxu0
        %5014 = vmatpush.bf16.msra.mxu0 %v4776
        %5015 = vmatpush.bf16.msra.mxu0 %v4774
        %5016 = vmatpush.bf16.msra.mxu0 %v4772
        %5017 = vmatpush.bf16.msra.mxu0 %v4770
        %5018 = vmatpush.bf16.msra.mxu0 %v4768
        %5019 = vmatpush.bf16.msra.mxu0 %v4766
        %5020 = vmatpush.bf16.msra.mxu0 %v4764
        %5021 = vmatpush.bf16.msra.mxu0 %v4762
        %5022 = vmatmul.bf16.gmra.mxu0 %v4340
        %v5023 = vpop.f32.mrf.mxu0
        %v5024 = vadd.f32 %v5010, %v5023
        %v5025 = vpop.f32.mrf.mxu0
        %v5026 = vadd.f32 %v5012, %v5025
        %5027 = vdwg.mxu0
        %5028 = vmatpush.bf16.msra.mxu0 %v4792
        %5029 = vmatpush.bf16.msra.mxu0 %v4790
        %5030 = vmatpush.bf16.msra.mxu0 %v4788
        %5031 = vmatpush.bf16.msra.mxu0 %v4786
        %5032 = vmatpush.bf16.msra.mxu0 %v4784
        %5033 = vmatpush.bf16.msra.mxu0 %v4782
        %5034 = vmatpush.bf16.msra.mxu0 %v4780
        %5035 = vmatpush.bf16.msra.mxu0 %v4778
        %5036 = vmatmul.bf16.gmra.mxu0 %v4341
        %v5037 = vpop.f32.mrf.mxu0
        %v5038 = vadd.f32 %v5024, %v5037
        %v5039 = vpop.f32.mrf.mxu0
        %v5040 = vadd.f32 %v5026, %v5039
        %5041 = vdwg.mxu0
        %5042 = vmatpush.bf16.msra.mxu0 %v4808
        %5043 = vmatpush.bf16.msra.mxu0 %v4806
        %5044 = vmatpush.bf16.msra.mxu0 %v4804
        %5045 = vmatpush.bf16.msra.mxu0 %v4802
        %5046 = vmatpush.bf16.msra.mxu0 %v4800
        %5047 = vmatpush.bf16.msra.mxu0 %v4798
        %5048 = vmatpush.bf16.msra.mxu0 %v4796
        %5049 = vmatpush.bf16.msra.mxu0 %v4794
        %5050 = vmatmul.bf16.gmra.mxu0 %v4342
        %v5051 = vpop.f32.mrf.mxu0
        %v5052 = vadd.f32 %v5038, %v5051
        %v5053 = vpop.f32.mrf.mxu0
        %v5054 = vadd.f32 %v5040, %v5053
        %5055 = vdwg.mxu0
        %5056 = vmatpush.bf16.msra.mxu0 %v4824
        %5057 = vmatpush.bf16.msra.mxu0 %v4822
        %5058 = vmatpush.bf16.msra.mxu0 %v4820
        %5059 = vmatpush.bf16.msra.mxu0 %v4818
        %5060 = vmatpush.bf16.msra.mxu0 %v4816
        %5061 = vmatpush.bf16.msra.mxu0 %v4814
        %5062 = vmatpush.bf16.msra.mxu0 %v4812
        %5063 = vmatpush.bf16.msra.mxu0 %v4810
        %5064 = vmatmul.bf16.gmra.mxu0 %v4343
        %v5065 = vpop.f32.mrf.mxu0
        %v5066 = vadd.f32 %v5052, %v5065
        %v5067 = vpop.f32.mrf.mxu0
        %v5068 = vadd.f32 %v5054, %v5067
        %5069 = vdwg.mxu0
        %5070 = vmatpush.bf16.msra.mxu0 %v4840
        %5071 = vmatpush.bf16.msra.mxu0 %v4838
        %5072 = vmatpush.bf16.msra.mxu0 %v4836
        %5073 = vmatpush.bf16.msra.mxu0 %v4834
        %5074 = vmatpush.bf16.msra.mxu0 %v4832
        %5075 = vmatpush.bf16.msra.mxu0 %v4830
        %5076 = vmatpush.bf16.msra.mxu0 %v4828
        %5077 = vmatpush.bf16.msra.mxu0 %v4826
        %5078 = vmatmul.bf16.gmra.mxu0 %v4344
        %v5079 = vpop.f32.mrf.mxu0
        %v5080 = vadd.f32 %v5066, %v5079
        %v5081 = vpop.f32.mrf.mxu0
        %v5082 = vadd.f32 %v5068, %v5081
        %5083 = vdwg.mxu0
        %5084 = vmatpush.bf16.msra.mxu0 %v4856
        %5085 = vmatpush.bf16.msra.mxu0 %v4854
        %5086 = vmatpush.bf16.msra.mxu0 %v4852
        %5087 = vmatpush.bf16.msra.mxu0 %v4850
        %5088 = vmatpush.bf16.msra.mxu0 %v4848
        %5089 = vmatpush.bf16.msra.mxu0 %v4846
        %5090 = vmatpush.bf16.msra.mxu0 %v4844
        %5091 = vmatpush.bf16.msra.mxu0 %v4842
        %5092 = vmatmul.bf16.gmra.mxu0 %v4345
        %v5093 = vpop.f32.mrf.mxu0
        %v5094 = vadd.f32 %v5080, %v5093
        %v5095 = vpop.f32.mrf.mxu0
        %v5096 = vadd.f32 %v5082, %v5095
        %5097 = vdwg.mxu0
        %5098 = vmatpush.bf16.msra.mxu0 %v4745
        %5099 = vmatpush.bf16.msra.mxu0 %v4743
        %5100 = vmatpush.bf16.msra.mxu0 %v4741
        %5101 = vmatpush.bf16.msra.mxu0 %v4739
        %5102 = vmatpush.bf16.msra.mxu0 %v4737
        %5103 = vmatpush.bf16.msra.mxu0 %v4735
        %5104 = vmatpush.bf16.msra.mxu0 %v4733
        %5105 = vmatpush.bf16.msra.mxu0 %v4731
        %5106 = vmatmul.bf16.gmra.mxu0 %v4338
        %v5107 = vpop.f32.mrf.mxu0
        %v5108 = vadd.f32 0.0, %v5107
        %v5109 = vpop.f32.mrf.mxu0
        %v5110 = vadd.f32 0.0, %v5109
        %5111 = vdwg.mxu0
        %5112 = vmatpush.bf16.msra.mxu0 %v4761
        %5113 = vmatpush.bf16.msra.mxu0 %v4759
        %5114 = vmatpush.bf16.msra.mxu0 %v4757
        %5115 = vmatpush.bf16.msra.mxu0 %v4755
        %5116 = vmatpush.bf16.msra.mxu0 %v4753
        %5117 = vmatpush.bf16.msra.mxu0 %v4751
        %5118 = vmatpush.bf16.msra.mxu0 %v4749
        %5119 = vmatpush.bf16.msra.mxu0 %v4747
        %5120 = vmatmul.bf16.gmra.mxu0 %v4339
        %v5121 = vpop.f32.mrf.mxu0
        %v5122 = vadd.f32 %v5108, %v5121
        %v5123 = vpop.f32.mrf.mxu0
        %v5124 = vadd.f32 %v5110, %v5123
        %5125 = vdwg.mxu0
        %5126 = vmatpush.bf16.msra.mxu0 %v4777
        %5127 = vmatpush.bf16.msra.mxu0 %v4775
        %5128 = vmatpush.bf16.msra.mxu0 %v4773
        %5129 = vmatpush.bf16.msra.mxu0 %v4771
        %5130 = vmatpush.bf16.msra.mxu0 %v4769
        %5131 = vmatpush.bf16.msra.mxu0 %v4767
        %5132 = vmatpush.bf16.msra.mxu0 %v4765
        %5133 = vmatpush.bf16.msra.mxu0 %v4763
        %5134 = vmatmul.bf16.gmra.mxu0 %v4340
        %v5135 = vpop.f32.mrf.mxu0
        %v5136 = vadd.f32 %v5122, %v5135
        %v5137 = vpop.f32.mrf.mxu0
        %v5138 = vadd.f32 %v5124, %v5137
        %5139 = vdwg.mxu0
        %5140 = vmatpush.bf16.msra.mxu0 %v4793
        %5141 = vmatpush.bf16.msra.mxu0 %v4791
        %5142 = vmatpush.bf16.msra.mxu0 %v4789
        %5143 = vmatpush.bf16.msra.mxu0 %v4787
        %5144 = vmatpush.bf16.msra.mxu0 %v4785
        %5145 = vmatpush.bf16.msra.mxu0 %v4783
        %5146 = vmatpush.bf16.msra.mxu0 %v4781
        %5147 = vmatpush.bf16.msra.mxu0 %v4779
        %5148 = vmatmul.bf16.gmra.mxu0 %v4341
        %v5149 = vpop.f32.mrf.mxu0
        %v5150 = vadd.f32 %v5136, %v5149
        %v5151 = vpop.f32.mrf.mxu0
        %v5152 = vadd.f32 %v5138, %v5151
        %5153 = vdwg.mxu0
        %5154 = vmatpush.bf16.msra.mxu0 %v4809
        %5155 = vmatpush.bf16.msra.mxu0 %v4807
        %5156 = vmatpush.bf16.msra.mxu0 %v4805
        %5157 = vmatpush.bf16.msra.mxu0 %v4803
        %5158 = vmatpush.bf16.msra.mxu0 %v4801
        %5159 = vmatpush.bf16.msra.mxu0 %v4799
        %5160 = vmatpush.bf16.msra.mxu0 %v4797
        %5161 = vmatpush.bf16.msra.mxu0 %v4795
        %5162 = vmatmul.bf16.gmra.mxu0 %v4342
        %v5163 = vpop.f32.mrf.mxu0
        %v5164 = vadd.f32 %v5150, %v5163
        %v5165 = vpop.f32.mrf.mxu0
        %v5166 = vadd.f32 %v5152, %v5165
        %5167 = vdwg.mxu0
        %5168 = vmatpush.bf16.msra.mxu0 %v4825
        %5169 = vmatpush.bf16.msra.mxu0 %v4823
        %5170 = vmatpush.bf16.msra.mxu0 %v4821
        %5171 = vmatpush.bf16.msra.mxu0 %v4819
        %5172 = vmatpush.bf16.msra.mxu0 %v4817
        %5173 = vmatpush.bf16.msra.mxu0 %v4815
        %5174 = vmatpush.bf16.msra.mxu0 %v4813
        %5175 = vmatpush.bf16.msra.mxu0 %v4811
        %5176 = vmatmul.bf16.gmra.mxu0 %v4343
        %v5177 = vpop.f32.mrf.mxu0
        %v5178 = vadd.f32 %v5164, %v5177
        %v5179 = vpop.f32.mrf.mxu0
        %v5180 = vadd.f32 %v5166, %v5179
        %5181 = vdwg.mxu0
        %5182 = vmatpush.bf16.msra.mxu0 %v4841
        %5183 = vmatpush.bf16.msra.mxu0 %v4839
        %5184 = vmatpush.bf16.msra.mxu0 %v4837
        %5185 = vmatpush.bf16.msra.mxu0 %v4835
        %5186 = vmatpush.bf16.msra.mxu0 %v4833
        %5187 = vmatpush.bf16.msra.mxu0 %v4831
        %5188 = vmatpush.bf16.msra.mxu0 %v4829
        %5189 = vmatpush.bf16.msra.mxu0 %v4827
        %5190 = vmatmul.bf16.gmra.mxu0 %v4344
        %v5191 = vpop.f32.mrf.mxu0
        %v5192 = vadd.f32 %v5178, %v5191
        %v5193 = vpop.f32.mrf.mxu0
        %v5194 = vadd.f32 %v5180, %v5193
        %5195 = vdwg.mxu0
        %5196 = vmatpush.bf16.msra.mxu0 %v4857
        %5197 = vmatpush.bf16.msra.mxu0 %v4855
        %5198 = vmatpush.bf16.msra.mxu0 %v4853
        %5199 = vmatpush.bf16.msra.mxu0 %v4851
        %5200 = vmatpush.bf16.msra.mxu0 %v4849
        %5201 = vmatpush.bf16.msra.mxu0 %v4847
        %5202 = vmatpush.bf16.msra.mxu0 %v4845
        %5203 = vmatpush.bf16.msra.mxu0 %v4843
        %5204 = vmatmul.bf16.gmra.mxu0 %v4345
        %v5205 = vpop.f32.mrf.mxu0
        %v5206 = vadd.f32 %v5192, %v5205
        %v5207 = vpop.f32.mrf.mxu0
        %v5208 = vadd.f32 %v5194, %v5207
        %5209 = vdwg.mxu0
        %v5210 = vadd.f32 %v4206, %v5094
        %v5211 = vadd.f32 %v4207, %v5206
        %v5212 = vadd.f32 %v4208, %v5096
        %v5213 = vadd.f32 %v4209, %v5208
        %v5214 = vld [vmem:[#allocation7 + $0x1000] sm:$0xff]
        %v5215 = vld [vmem:[#allocation7 + $0x1008] sm:$0xff]
        %v5216 = vld [vmem:[#allocation7 + $0x1010] sm:$0xff]
        %v5217 = vld [vmem:[#allocation7 + $0x1018] sm:$0xff]
        %v5218 = vld [vmem:[#allocation7 + $0x1020] sm:$0xff]
        %v5219 = vld [vmem:[#allocation7 + $0x1028] sm:$0xff]
        %v5220 = vld [vmem:[#allocation7 + $0x1030] sm:$0xff]
        %v5221 = vld [vmem:[#allocation7 + $0x1038] sm:$0xff]
        %v5222 = vld [vmem:[#allocation7 + $0x1040] sm:$0xff]
        %v5223 = vld [vmem:[#allocation7 + $0x1048] sm:$0xff]
        %v5224 = vld [vmem:[#allocation7 + $0x1050] sm:$0xff]
        %v5225 = vld [vmem:[#allocation7 + $0x1058] sm:$0xff]
        %v5226 = vld [vmem:[#allocation7 + $0x1060] sm:$0xff]
        %v5227 = vld [vmem:[#allocation7 + $0x1068] sm:$0xff]
        %v5228 = vld [vmem:[#allocation7 + $0x1070] sm:$0xff]
        %v5229 = vld [vmem:[#allocation7 + $0x1078] sm:$0xff]
        %v5230 = vld [vmem:[#allocation7 + $0x1080] sm:$0xff]
        %v5231 = vld [vmem:[#allocation7 + $0x1088] sm:$0xff]
        %v5232 = vld [vmem:[#allocation7 + $0x1090] sm:$0xff]
        %v5233 = vld [vmem:[#allocation7 + $0x1098] sm:$0xff]
        %v5234 = vld [vmem:[#allocation7 + $0x10a0] sm:$0xff]
        %v5235 = vld [vmem:[#allocation7 + $0x10a8] sm:$0xff]
        %v5236 = vld [vmem:[#allocation7 + $0x10b0] sm:$0xff]
        %v5237 = vld [vmem:[#allocation7 + $0x10b8] sm:$0xff]
        %v5238 = vld [vmem:[#allocation7 + $0x10c0] sm:$0xff]
        %v5239 = vld [vmem:[#allocation7 + $0x10c8] sm:$0xff]
        %v5240 = vld [vmem:[#allocation7 + $0x10d0] sm:$0xff]
        %v5241 = vld [vmem:[#allocation7 + $0x10d8] sm:$0xff]
        %v5242 = vld [vmem:[#allocation7 + $0x10e0] sm:$0xff]
        %v5243 = vld [vmem:[#allocation7 + $0x10e8] sm:$0xff]
        %v5244 = vld [vmem:[#allocation7 + $0x10f0] sm:$0xff]
        %v5245 = vld [vmem:[#allocation7 + $0x10f8] sm:$0xff]
        %v5246 = vld [vmem:[#allocation7 + $0x1100] sm:$0xff]
        %v5247 = vld [vmem:[#allocation7 + $0x1108] sm:$0xff]
        %v5248 = vld [vmem:[#allocation7 + $0x1110] sm:$0xff]
        %v5249 = vld [vmem:[#allocation7 + $0x1118] sm:$0xff]
        %v5250 = vld [vmem:[#allocation7 + $0x1120] sm:$0xff]
        %v5251 = vld [vmem:[#allocation7 + $0x1128] sm:$0xff]
        %v5252 = vld [vmem:[#allocation7 + $0x1130] sm:$0xff]
        %v5253 = vld [vmem:[#allocation7 + $0x1138] sm:$0xff]
        %v5254 = vld [vmem:[#allocation7 + $0x1140] sm:$0xff]
        %v5255 = vld [vmem:[#allocation7 + $0x1148] sm:$0xff]
        %v5256 = vld [vmem:[#allocation7 + $0x1150] sm:$0xff]
        %v5257 = vld [vmem:[#allocation7 + $0x1158] sm:$0xff]
        %v5258 = vld [vmem:[#allocation7 + $0x1160] sm:$0xff]
        %v5259 = vld [vmem:[#allocation7 + $0x1168] sm:$0xff]
        %v5260 = vld [vmem:[#allocation7 + $0x1170] sm:$0xff]
        %v5261 = vld [vmem:[#allocation7 + $0x1178] sm:$0xff]
        %v5262 = vld [vmem:[#allocation7 + $0x1180] sm:$0xff]
        %v5263 = vld [vmem:[#allocation7 + $0x1188] sm:$0xff]
        %v5264 = vld [vmem:[#allocation7 + $0x1190] sm:$0xff]
        %v5265 = vld [vmem:[#allocation7 + $0x1198] sm:$0xff]
        %v5266 = vld [vmem:[#allocation7 + $0x11a0] sm:$0xff]
        %v5267 = vld [vmem:[#allocation7 + $0x11a8] sm:$0xff]
        %v5268 = vld [vmem:[#allocation7 + $0x11b0] sm:$0xff]
        %v5269 = vld [vmem:[#allocation7 + $0x11b8] sm:$0xff]
        %v5270 = vld [vmem:[#allocation7 + $0x11c0] sm:$0xff]
        %v5271 = vld [vmem:[#allocation7 + $0x11c8] sm:$0xff]
        %v5272 = vld [vmem:[#allocation7 + $0x11d0] sm:$0xff]
        %v5273 = vld [vmem:[#allocation7 + $0x11d8] sm:$0xff]
        %v5274 = vld [vmem:[#allocation7 + $0x11e0] sm:$0xff]
        %v5275 = vld [vmem:[#allocation7 + $0x11e8] sm:$0xff]
        %v5276 = vld [vmem:[#allocation7 + $0x11f0] sm:$0xff]
        %v5277 = vld [vmem:[#allocation7 + $0x11f8] sm:$0xff]
        %v5278 = vld [vmem:[#allocation7 + $0x1200] sm:$0xff]
        %v5279 = vld [vmem:[#allocation7 + $0x1208] sm:$0xff]
        %v5280 = vld [vmem:[#allocation7 + $0x1210] sm:$0xff]
        %v5281 = vld [vmem:[#allocation7 + $0x1218] sm:$0xff]
        %v5282 = vld [vmem:[#allocation7 + $0x1220] sm:$0xff]
        %v5283 = vld [vmem:[#allocation7 + $0x1228] sm:$0xff]
        %v5284 = vld [vmem:[#allocation7 + $0x1230] sm:$0xff]
        %v5285 = vld [vmem:[#allocation7 + $0x1238] sm:$0xff]
        %v5286 = vld [vmem:[#allocation7 + $0x1240] sm:$0xff]
        %v5287 = vld [vmem:[#allocation7 + $0x1248] sm:$0xff]
        %v5288 = vld [vmem:[#allocation7 + $0x1250] sm:$0xff]
        %v5289 = vld [vmem:[#allocation7 + $0x1258] sm:$0xff]
        %v5290 = vld [vmem:[#allocation7 + $0x1260] sm:$0xff]
        %v5291 = vld [vmem:[#allocation7 + $0x1268] sm:$0xff]
        %v5292 = vld [vmem:[#allocation7 + $0x1270] sm:$0xff]
        %v5293 = vld [vmem:[#allocation7 + $0x1278] sm:$0xff]
        %v5294 = vld [vmem:[#allocation7 + $0x1280] sm:$0xff]
        %v5295 = vld [vmem:[#allocation7 + $0x1288] sm:$0xff]
        %v5296 = vld [vmem:[#allocation7 + $0x1290] sm:$0xff]
        %v5297 = vld [vmem:[#allocation7 + $0x1298] sm:$0xff]
        %v5298 = vld [vmem:[#allocation7 + $0x12a0] sm:$0xff]
        %v5299 = vld [vmem:[#allocation7 + $0x12a8] sm:$0xff]
        %v5300 = vld [vmem:[#allocation7 + $0x12b0] sm:$0xff]
        %v5301 = vld [vmem:[#allocation7 + $0x12b8] sm:$0xff]
        %v5302 = vld [vmem:[#allocation7 + $0x12c0] sm:$0xff]
        %v5303 = vld [vmem:[#allocation7 + $0x12c8] sm:$0xff]
        %v5304 = vld [vmem:[#allocation7 + $0x12d0] sm:$0xff]
        %v5305 = vld [vmem:[#allocation7 + $0x12d8] sm:$0xff]
        %v5306 = vld [vmem:[#allocation7 + $0x12e0] sm:$0xff]
        %v5307 = vld [vmem:[#allocation7 + $0x12e8] sm:$0xff]
        %v5308 = vld [vmem:[#allocation7 + $0x12f0] sm:$0xff]
        %v5309 = vld [vmem:[#allocation7 + $0x12f8] sm:$0xff]
        %v5310 = vld [vmem:[#allocation7 + $0x1300] sm:$0xff]
        %v5311 = vld [vmem:[#allocation7 + $0x1308] sm:$0xff]
        %v5312 = vld [vmem:[#allocation7 + $0x1310] sm:$0xff]
        %v5313 = vld [vmem:[#allocation7 + $0x1318] sm:$0xff]
        %v5314 = vld [vmem:[#allocation7 + $0x1320] sm:$0xff]
        %v5315 = vld [vmem:[#allocation7 + $0x1328] sm:$0xff]
        %v5316 = vld [vmem:[#allocation7 + $0x1330] sm:$0xff]
        %v5317 = vld [vmem:[#allocation7 + $0x1338] sm:$0xff]
        %v5318 = vld [vmem:[#allocation7 + $0x1340] sm:$0xff]
        %v5319 = vld [vmem:[#allocation7 + $0x1348] sm:$0xff]
        %v5320 = vld [vmem:[#allocation7 + $0x1350] sm:$0xff]
        %v5321 = vld [vmem:[#allocation7 + $0x1358] sm:$0xff]
        %v5322 = vld [vmem:[#allocation7 + $0x1360] sm:$0xff]
        %v5323 = vld [vmem:[#allocation7 + $0x1368] sm:$0xff]
        %v5324 = vld [vmem:[#allocation7 + $0x1370] sm:$0xff]
        %v5325 = vld [vmem:[#allocation7 + $0x1378] sm:$0xff]
        %v5326 = vld [vmem:[#allocation7 + $0x1380] sm:$0xff]
        %v5327 = vld [vmem:[#allocation7 + $0x1388] sm:$0xff]
        %v5328 = vld [vmem:[#allocation7 + $0x1390] sm:$0xff]
        %v5329 = vld [vmem:[#allocation7 + $0x1398] sm:$0xff]
        %v5330 = vld [vmem:[#allocation7 + $0x13a0] sm:$0xff]
        %v5331 = vld [vmem:[#allocation7 + $0x13a8] sm:$0xff]
        %v5332 = vld [vmem:[#allocation7 + $0x13b0] sm:$0xff]
        %v5333 = vld [vmem:[#allocation7 + $0x13b8] sm:$0xff]
        %v5334 = vld [vmem:[#allocation7 + $0x13c0] sm:$0xff]
        %v5335 = vld [vmem:[#allocation7 + $0x13c8] sm:$0xff]
        %v5336 = vld [vmem:[#allocation7 + $0x13d0] sm:$0xff]
        %v5337 = vld [vmem:[#allocation7 + $0x13d8] sm:$0xff]
        %v5338 = vld [vmem:[#allocation7 + $0x13e0] sm:$0xff]
        %v5339 = vld [vmem:[#allocation7 + $0x13e8] sm:$0xff]
        %v5340 = vld [vmem:[#allocation7 + $0x13f0] sm:$0xff]
        %v5341 = vld [vmem:[#allocation7 + $0x13f8] sm:$0xff]
        %v5342 = vpack.c.bf16 %v1302, %v1294
        %v5343 = vpack.c.bf16 %v1303, %v1295
        %v5344 = vpack.c.bf16 %v1304, %v1296
        %v5345 = vpack.c.bf16 %v1305, %v1297
        %v5346 = vpack.c.bf16 %v1306, %v1298
        %v5347 = vpack.c.bf16 %v1307, %v1299
        %v5348 = vpack.c.bf16 %v1308, %v1300
        %v5349 = vpack.c.bf16 %v1309, %v1301
        %v5478 = vunpack.c.l.b16 %v5214
        %v5479 = vunpack.c.h.b16 %v5214
        %v5480 = vunpack.c.l.b16 %v5215
        %v5481 = vunpack.c.h.b16 %v5215
        %v5482 = vunpack.c.l.b16 %v5216
        %v5483 = vunpack.c.h.b16 %v5216
        %v5484 = vunpack.c.l.b16 %v5217
        %v5485 = vunpack.c.h.b16 %v5217
        %v5486 = vunpack.c.l.b16 %v5218
        %v5487 = vunpack.c.h.b16 %v5218
        %v5488 = vunpack.c.l.b16 %v5219
        %v5489 = vunpack.c.h.b16 %v5219
        %v5490 = vunpack.c.l.b16 %v5220
        %v5491 = vunpack.c.h.b16 %v5220
        %v5492 = vunpack.c.l.b16 %v5221
        %v5493 = vunpack.c.h.b16 %v5221
        %v5494 = vunpack.c.l.b16 %v5222
        %v5495 = vunpack.c.h.b16 %v5222
        %v5496 = vunpack.c.l.b16 %v5223
        %v5497 = vunpack.c.h.b16 %v5223
        %v5498 = vunpack.c.l.b16 %v5224
        %v5499 = vunpack.c.h.b16 %v5224
        %v5500 = vunpack.c.l.b16 %v5225
        %v5501 = vunpack.c.h.b16 %v5225
        %v5502 = vunpack.c.l.b16 %v5226
        %v5503 = vunpack.c.h.b16 %v5226
        %v5504 = vunpack.c.l.b16 %v5227
        %v5505 = vunpack.c.h.b16 %v5227
        %v5506 = vunpack.c.l.b16 %v5228
        %v5507 = vunpack.c.h.b16 %v5228
        %v5508 = vunpack.c.l.b16 %v5229
        %v5509 = vunpack.c.h.b16 %v5229
        %v5510 = vunpack.c.l.b16 %v5230
        %v5511 = vunpack.c.h.b16 %v5230
        %v5512 = vunpack.c.l.b16 %v5231
        %v5513 = vunpack.c.h.b16 %v5231
        %v5514 = vunpack.c.l.b16 %v5232
        %v5515 = vunpack.c.h.b16 %v5232
        %v5516 = vunpack.c.l.b16 %v5233
        %v5517 = vunpack.c.h.b16 %v5233
        %v5518 = vunpack.c.l.b16 %v5234
        %v5519 = vunpack.c.h.b16 %v5234
        %v5520 = vunpack.c.l.b16 %v5235
        %v5521 = vunpack.c.h.b16 %v5235
        %v5522 = vunpack.c.l.b16 %v5236
        %v5523 = vunpack.c.h.b16 %v5236
        %v5524 = vunpack.c.l.b16 %v5237
        %v5525 = vunpack.c.h.b16 %v5237
        %v5526 = vunpack.c.l.b16 %v5238
        %v5527 = vunpack.c.h.b16 %v5238
        %v5528 = vunpack.c.l.b16 %v5239
        %v5529 = vunpack.c.h.b16 %v5239
        %v5530 = vunpack.c.l.b16 %v5240
        %v5531 = vunpack.c.h.b16 %v5240
        %v5532 = vunpack.c.l.b16 %v5241
        %v5533 = vunpack.c.h.b16 %v5241
        %v5534 = vunpack.c.l.b16 %v5242
        %v5535 = vunpack.c.h.b16 %v5242
        %v5536 = vunpack.c.l.b16 %v5243
        %v5537 = vunpack.c.h.b16 %v5243
        %v5538 = vunpack.c.l.b16 %v5244
        %v5539 = vunpack.c.h.b16 %v5244
        %v5540 = vunpack.c.l.b16 %v5245
        %v5541 = vunpack.c.h.b16 %v5245
        %v5542 = vunpack.c.l.b16 %v5246
        %v5543 = vunpack.c.h.b16 %v5246
        %v5544 = vunpack.c.l.b16 %v5247
        %v5545 = vunpack.c.h.b16 %v5247
        %v5546 = vunpack.c.l.b16 %v5248
        %v5547 = vunpack.c.h.b16 %v5248
        %v5548 = vunpack.c.l.b16 %v5249
        %v5549 = vunpack.c.h.b16 %v5249
        %v5550 = vunpack.c.l.b16 %v5250
        %v5551 = vunpack.c.h.b16 %v5250
        %v5552 = vunpack.c.l.b16 %v5251
        %v5553 = vunpack.c.h.b16 %v5251
        %v5554 = vunpack.c.l.b16 %v5252
        %v5555 = vunpack.c.h.b16 %v5252
        %v5556 = vunpack.c.l.b16 %v5253
        %v5557 = vunpack.c.h.b16 %v5253
        %v5558 = vunpack.c.l.b16 %v5254
        %v5559 = vunpack.c.h.b16 %v5254
        %v5560 = vunpack.c.l.b16 %v5255
        %v5561 = vunpack.c.h.b16 %v5255
        %v5562 = vunpack.c.l.b16 %v5256
        %v5563 = vunpack.c.h.b16 %v5256
        %v5564 = vunpack.c.l.b16 %v5257
        %v5565 = vunpack.c.h.b16 %v5257
        %v5566 = vunpack.c.l.b16 %v5258
        %v5567 = vunpack.c.h.b16 %v5258
        %v5568 = vunpack.c.l.b16 %v5259
        %v5569 = vunpack.c.h.b16 %v5259
        %v5570 = vunpack.c.l.b16 %v5260
        %v5571 = vunpack.c.h.b16 %v5260
        %v5572 = vunpack.c.l.b16 %v5261
        %v5573 = vunpack.c.h.b16 %v5261
        %v5574 = vunpack.c.l.b16 %v5262
        %v5575 = vunpack.c.h.b16 %v5262
        %v5576 = vunpack.c.l.b16 %v5263
        %v5577 = vunpack.c.h.b16 %v5263
        %v5578 = vunpack.c.l.b16 %v5264
        %v5579 = vunpack.c.h.b16 %v5264
        %v5580 = vunpack.c.l.b16 %v5265
        %v5581 = vunpack.c.h.b16 %v5265
        %v5582 = vunpack.c.l.b16 %v5266
        %v5583 = vunpack.c.h.b16 %v5266
        %v5584 = vunpack.c.l.b16 %v5267
        %v5585 = vunpack.c.h.b16 %v5267
        %v5586 = vunpack.c.l.b16 %v5268
        %v5587 = vunpack.c.h.b16 %v5268
        %v5588 = vunpack.c.l.b16 %v5269
        %v5589 = vunpack.c.h.b16 %v5269
        %v5590 = vunpack.c.l.b16 %v5270
        %v5591 = vunpack.c.h.b16 %v5270
        %v5592 = vunpack.c.l.b16 %v5271
        %v5593 = vunpack.c.h.b16 %v5271
        %v5594 = vunpack.c.l.b16 %v5272
        %v5595 = vunpack.c.h.b16 %v5272
        %v5596 = vunpack.c.l.b16 %v5273
        %v5597 = vunpack.c.h.b16 %v5273
        %v5598 = vunpack.c.l.b16 %v5274
        %v5599 = vunpack.c.h.b16 %v5274
        %v5600 = vunpack.c.l.b16 %v5275
        %v5601 = vunpack.c.h.b16 %v5275
        %v5602 = vunpack.c.l.b16 %v5276
        %v5603 = vunpack.c.h.b16 %v5276
        %v5604 = vunpack.c.l.b16 %v5277
        %v5605 = vunpack.c.h.b16 %v5277
        %v5606 = vunpack.c.l.b16 %v5278
        %v5607 = vunpack.c.h.b16 %v5278
        %v5608 = vunpack.c.l.b16 %v5279
        %v5609 = vunpack.c.h.b16 %v5279
        %v5610 = vunpack.c.l.b16 %v5280
        %v5611 = vunpack.c.h.b16 %v5280
        %v5612 = vunpack.c.l.b16 %v5281
        %v5613 = vunpack.c.h.b16 %v5281
        %v5614 = vunpack.c.l.b16 %v5282
        %v5615 = vunpack.c.h.b16 %v5282
        %v5616 = vunpack.c.l.b16 %v5283
        %v5617 = vunpack.c.h.b16 %v5283
        %v5618 = vunpack.c.l.b16 %v5284
        %v5619 = vunpack.c.h.b16 %v5284
        %v5620 = vunpack.c.l.b16 %v5285
        %v5621 = vunpack.c.h.b16 %v5285
        %v5622 = vunpack.c.l.b16 %v5286
        %v5623 = vunpack.c.h.b16 %v5286
        %v5624 = vunpack.c.l.b16 %v5287
        %v5625 = vunpack.c.h.b16 %v5287
        %v5626 = vunpack.c.l.b16 %v5288
        %v5627 = vunpack.c.h.b16 %v5288
        %v5628 = vunpack.c.l.b16 %v5289
        %v5629 = vunpack.c.h.b16 %v5289
        %v5630 = vunpack.c.l.b16 %v5290
        %v5631 = vunpack.c.h.b16 %v5290
        %v5632 = vunpack.c.l.b16 %v5291
        %v5633 = vunpack.c.h.b16 %v5291
        %v5634 = vunpack.c.l.b16 %v5292
        %v5635 = vunpack.c.h.b16 %v5292
        %v5636 = vunpack.c.l.b16 %v5293
        %v5637 = vunpack.c.h.b16 %v5293
        %v5638 = vunpack.c.l.b16 %v5294
        %v5639 = vunpack.c.h.b16 %v5294
        %v5640 = vunpack.c.l.b16 %v5295
        %v5641 = vunpack.c.h.b16 %v5295
        %v5642 = vunpack.c.l.b16 %v5296
        %v5643 = vunpack.c.h.b16 %v5296
        %v5644 = vunpack.c.l.b16 %v5297
        %v5645 = vunpack.c.h.b16 %v5297
        %v5646 = vunpack.c.l.b16 %v5298
        %v5647 = vunpack.c.h.b16 %v5298
        %v5648 = vunpack.c.l.b16 %v5299
        %v5649 = vunpack.c.h.b16 %v5299
        %v5650 = vunpack.c.l.b16 %v5300
        %v5651 = vunpack.c.h.b16 %v5300
        %v5652 = vunpack.c.l.b16 %v5301
        %v5653 = vunpack.c.h.b16 %v5301
        %v5654 = vunpack.c.l.b16 %v5302
        %v5655 = vunpack.c.h.b16 %v5302
        %v5656 = vunpack.c.l.b16 %v5303
        %v5657 = vunpack.c.h.b16 %v5303
        %v5658 = vunpack.c.l.b16 %v5304
        %v5659 = vunpack.c.h.b16 %v5304
        %v5660 = vunpack.c.l.b16 %v5305
        %v5661 = vunpack.c.h.b16 %v5305
        %v5662 = vunpack.c.l.b16 %v5306
        %v5663 = vunpack.c.h.b16 %v5306
        %v5664 = vunpack.c.l.b16 %v5307
        %v5665 = vunpack.c.h.b16 %v5307
        %v5666 = vunpack.c.l.b16 %v5308
        %v5667 = vunpack.c.h.b16 %v5308
        %v5668 = vunpack.c.l.b16 %v5309
        %v5669 = vunpack.c.h.b16 %v5309
        %v5670 = vunpack.c.l.b16 %v5310
        %v5671 = vunpack.c.h.b16 %v5310
        %v5672 = vunpack.c.l.b16 %v5311
        %v5673 = vunpack.c.h.b16 %v5311
        %v5674 = vunpack.c.l.b16 %v5312
        %v5675 = vunpack.c.h.b16 %v5312
        %v5676 = vunpack.c.l.b16 %v5313
        %v5677 = vunpack.c.h.b16 %v5313
        %v5678 = vunpack.c.l.b16 %v5314
        %v5679 = vunpack.c.h.b16 %v5314
        %v5680 = vunpack.c.l.b16 %v5315
        %v5681 = vunpack.c.h.b16 %v5315
        %v5682 = vunpack.c.l.b16 %v5316
        %v5683 = vunpack.c.h.b16 %v5316
        %v5684 = vunpack.c.l.b16 %v5317
        %v5685 = vunpack.c.h.b16 %v5317
        %v5686 = vunpack.c.l.b16 %v5318
        %v5687 = vunpack.c.h.b16 %v5318
        %v5688 = vunpack.c.l.b16 %v5319
        %v5689 = vunpack.c.h.b16 %v5319
        %v5690 = vunpack.c.l.b16 %v5320
        %v5691 = vunpack.c.h.b16 %v5320
        %v5692 = vunpack.c.l.b16 %v5321
        %v5693 = vunpack.c.h.b16 %v5321
        %v5694 = vunpack.c.l.b16 %v5322
        %v5695 = vunpack.c.h.b16 %v5322
        %v5696 = vunpack.c.l.b16 %v5323
        %v5697 = vunpack.c.h.b16 %v5323
        %v5698 = vunpack.c.l.b16 %v5324
        %v5699 = vunpack.c.h.b16 %v5324
        %v5700 = vunpack.c.l.b16 %v5325
        %v5701 = vunpack.c.h.b16 %v5325
        %v5702 = vunpack.c.l.b16 %v5326
        %v5703 = vunpack.c.h.b16 %v5326
        %v5704 = vunpack.c.l.b16 %v5327
        %v5705 = vunpack.c.h.b16 %v5327
        %v5706 = vunpack.c.l.b16 %v5328
        %v5707 = vunpack.c.h.b16 %v5328
        %v5708 = vunpack.c.l.b16 %v5329
        %v5709 = vunpack.c.h.b16 %v5329
        %v5710 = vunpack.c.l.b16 %v5330
        %v5711 = vunpack.c.h.b16 %v5330
        %v5712 = vunpack.c.l.b16 %v5331
        %v5713 = vunpack.c.h.b16 %v5331
        %v5714 = vunpack.c.l.b16 %v5332
        %v5715 = vunpack.c.h.b16 %v5332
        %v5716 = vunpack.c.l.b16 %v5333
        %v5717 = vunpack.c.h.b16 %v5333
        %v5718 = vunpack.c.l.b16 %v5334
        %v5719 = vunpack.c.h.b16 %v5334
        %v5720 = vunpack.c.l.b16 %v5335
        %v5721 = vunpack.c.h.b16 %v5335
        %v5722 = vunpack.c.l.b16 %v5336
        %v5723 = vunpack.c.h.b16 %v5336
        %v5724 = vunpack.c.l.b16 %v5337
        %v5725 = vunpack.c.h.b16 %v5337
        %v5726 = vunpack.c.l.b16 %v5338
        %v5727 = vunpack.c.h.b16 %v5338
        %v5728 = vunpack.c.l.b16 %v5339
        %v5729 = vunpack.c.h.b16 %v5339
        %v5730 = vunpack.c.l.b16 %v5340
        %v5731 = vunpack.c.h.b16 %v5340
        %v5732 = vunpack.c.l.b16 %v5341
        %v5733 = vunpack.c.h.b16 %v5341
        %v5734 = vpack.c.b16 %v5480, %v5478
        %v5735 = vpack.c.b16 %v5481, %v5479
        %v5736 = vpack.c.b16 %v5484, %v5482
        %v5737 = vpack.c.b16 %v5485, %v5483
        %v5738 = vpack.c.b16 %v5488, %v5486
        %v5739 = vpack.c.b16 %v5489, %v5487
        %v5740 = vpack.c.b16 %v5492, %v5490
        %v5741 = vpack.c.b16 %v5493, %v5491
        %v5742 = vpack.c.b16 %v5496, %v5494
        %v5743 = vpack.c.b16 %v5497, %v5495
        %v5744 = vpack.c.b16 %v5500, %v5498
        %v5745 = vpack.c.b16 %v5501, %v5499
        %v5746 = vpack.c.b16 %v5504, %v5502
        %v5747 = vpack.c.b16 %v5505, %v5503
        %v5748 = vpack.c.b16 %v5508, %v5506
        %v5749 = vpack.c.b16 %v5509, %v5507
        %v5750 = vpack.c.b16 %v5512, %v5510
        %v5751 = vpack.c.b16 %v5513, %v5511
        %v5752 = vpack.c.b16 %v5516, %v5514
        %v5753 = vpack.c.b16 %v5517, %v5515
        %v5754 = vpack.c.b16 %v5520, %v5518
        %v5755 = vpack.c.b16 %v5521, %v5519
        %v5756 = vpack.c.b16 %v5524, %v5522
        %v5757 = vpack.c.b16 %v5525, %v5523
        %v5758 = vpack.c.b16 %v5528, %v5526
        %v5759 = vpack.c.b16 %v5529, %v5527
        %v5760 = vpack.c.b16 %v5532, %v5530
        %v5761 = vpack.c.b16 %v5533, %v5531
        %v5762 = vpack.c.b16 %v5536, %v5534
        %v5763 = vpack.c.b16 %v5537, %v5535
        %v5764 = vpack.c.b16 %v5540, %v5538
        %v5765 = vpack.c.b16 %v5541, %v5539
        %v5766 = vpack.c.b16 %v5544, %v5542
        %v5767 = vpack.c.b16 %v5545, %v5543
        %v5768 = vpack.c.b16 %v5548, %v5546
        %v5769 = vpack.c.b16 %v5549, %v5547
        %v5770 = vpack.c.b16 %v5552, %v5550
        %v5771 = vpack.c.b16 %v5553, %v5551
        %v5772 = vpack.c.b16 %v5556, %v5554
        %v5773 = vpack.c.b16 %v5557, %v5555
        %v5774 = vpack.c.b16 %v5560, %v5558
        %v5775 = vpack.c.b16 %v5561, %v5559
        %v5776 = vpack.c.b16 %v5564, %v5562
        %v5777 = vpack.c.b16 %v5565, %v5563
        %v5778 = vpack.c.b16 %v5568, %v5566
        %v5779 = vpack.c.b16 %v5569, %v5567
        %v5780 = vpack.c.b16 %v5572, %v5570
        %v5781 = vpack.c.b16 %v5573, %v5571
        %v5782 = vpack.c.b16 %v5576, %v5574
        %v5783 = vpack.c.b16 %v5577, %v5575
        %v5784 = vpack.c.b16 %v5580, %v5578
        %v5785 = vpack.c.b16 %v5581, %v5579
        %v5786 = vpack.c.b16 %v5584, %v5582
        %v5787 = vpack.c.b16 %v5585, %v5583
        %v5788 = vpack.c.b16 %v5588, %v5586
        %v5789 = vpack.c.b16 %v5589, %v5587
        %v5790 = vpack.c.b16 %v5592, %v5590
        %v5791 = vpack.c.b16 %v5593, %v5591
        %v5792 = vpack.c.b16 %v5596, %v5594
        %v5793 = vpack.c.b16 %v5597, %v5595
        %v5794 = vpack.c.b16 %v5600, %v5598
        %v5795 = vpack.c.b16 %v5601, %v5599
        %v5796 = vpack.c.b16 %v5604, %v5602
        %v5797 = vpack.c.b16 %v5605, %v5603
        %v5798 = vpack.c.b16 %v5608, %v5606
        %v5799 = vpack.c.b16 %v5609, %v5607
        %v5800 = vpack.c.b16 %v5612, %v5610
        %v5801 = vpack.c.b16 %v5613, %v5611
        %v5802 = vpack.c.b16 %v5616, %v5614
        %v5803 = vpack.c.b16 %v5617, %v5615
        %v5804 = vpack.c.b16 %v5620, %v5618
        %v5805 = vpack.c.b16 %v5621, %v5619
        %v5806 = vpack.c.b16 %v5624, %v5622
        %v5807 = vpack.c.b16 %v5625, %v5623
        %v5808 = vpack.c.b16 %v5628, %v5626
        %v5809 = vpack.c.b16 %v5629, %v5627
        %v5810 = vpack.c.b16 %v5632, %v5630
        %v5811 = vpack.c.b16 %v5633, %v5631
        %v5812 = vpack.c.b16 %v5636, %v5634
        %v5813 = vpack.c.b16 %v5637, %v5635
        %v5814 = vpack.c.b16 %v5640, %v5638
        %v5815 = vpack.c.b16 %v5641, %v5639
        %v5816 = vpack.c.b16 %v5644, %v5642
        %v5817 = vpack.c.b16 %v5645, %v5643
        %v5818 = vpack.c.b16 %v5648, %v5646
        %v5819 = vpack.c.b16 %v5649, %v5647
        %v5820 = vpack.c.b16 %v5652, %v5650
        %v5821 = vpack.c.b16 %v5653, %v5651
        %v5822 = vpack.c.b16 %v5656, %v5654
        %v5823 = vpack.c.b16 %v5657, %v5655
        %v5824 = vpack.c.b16 %v5660, %v5658
        %v5825 = vpack.c.b16 %v5661, %v5659
        %v5826 = vpack.c.b16 %v5664, %v5662
        %v5827 = vpack.c.b16 %v5665, %v5663
        %v5828 = vpack.c.b16 %v5668, %v5666
        %v5829 = vpack.c.b16 %v5669, %v5667
        %v5830 = vpack.c.b16 %v5672, %v5670
        %v5831 = vpack.c.b16 %v5673, %v5671
        %v5832 = vpack.c.b16 %v5676, %v5674
        %v5833 = vpack.c.b16 %v5677, %v5675
        %v5834 = vpack.c.b16 %v5680, %v5678
        %v5835 = vpack.c.b16 %v5681, %v5679
        %v5836 = vpack.c.b16 %v5684, %v5682
        %v5837 = vpack.c.b16 %v5685, %v5683
        %v5838 = vpack.c.b16 %v5688, %v5686
        %v5839 = vpack.c.b16 %v5689, %v5687
        %v5840 = vpack.c.b16 %v5692, %v5690
        %v5841 = vpack.c.b16 %v5693, %v5691
        %v5842 = vpack.c.b16 %v5696, %v5694
        %v5843 = vpack.c.b16 %v5697, %v5695
        %v5844 = vpack.c.b16 %v5700, %v5698
        %v5845 = vpack.c.b16 %v5701, %v5699
        %v5846 = vpack.c.b16 %v5704, %v5702
        %v5847 = vpack.c.b16 %v5705, %v5703
        %v5848 = vpack.c.b16 %v5708, %v5706
        %v5849 = vpack.c.b16 %v5709, %v5707
        %v5850 = vpack.c.b16 %v5712, %v5710
        %v5851 = vpack.c.b16 %v5713, %v5711
        %v5852 = vpack.c.b16 %v5716, %v5714
        %v5853 = vpack.c.b16 %v5717, %v5715
        %v5854 = vpack.c.b16 %v5720, %v5718
        %v5855 = vpack.c.b16 %v5721, %v5719
        %v5856 = vpack.c.b16 %v5724, %v5722
        %v5857 = vpack.c.b16 %v5725, %v5723
        %v5858 = vpack.c.b16 %v5728, %v5726
        %v5859 = vpack.c.b16 %v5729, %v5727
        %v5860 = vpack.c.b16 %v5732, %v5730
        %v5861 = vpack.c.b16 %v5733, %v5731
        %5990 = vmatpush.bf16.msra.mxu0 %v5748
        %5991 = vmatpush.bf16.msra.mxu0 %v5746
        %5992 = vmatpush.bf16.msra.mxu0 %v5744
        %5993 = vmatpush.bf16.msra.mxu0 %v5742
        %5994 = vmatpush.bf16.msra.mxu0 %v5740
        %5995 = vmatpush.bf16.msra.mxu0 %v5738
        %5996 = vmatpush.bf16.msra.mxu0 %v5736
        %5997 = vmatpush.bf16.msra.mxu0 %v5734
        %5998 = vmatmul.bf16.gmra.mxu0 %v5342
        %v5999 = vpop.f32.mrf.mxu0
        %v6000 = vadd.f32 0.0, %v5999
        %v6001 = vpop.f32.mrf.mxu0
        %v6002 = vadd.f32 0.0, %v6001
        %6003 = vdwg.mxu0
        %6004 = vmatpush.bf16.msra.mxu0 %v5764
        %6005 = vmatpush.bf16.msra.mxu0 %v5762
        %6006 = vmatpush.bf16.msra.mxu0 %v5760
        %6007 = vmatpush.bf16.msra.mxu0 %v5758
        %6008 = vmatpush.bf16.msra.mxu0 %v5756
        %6009 = vmatpush.bf16.msra.mxu0 %v5754
        %6010 = vmatpush.bf16.msra.mxu0 %v5752
        %6011 = vmatpush.bf16.msra.mxu0 %v5750
        %6012 = vmatmul.bf16.gmra.mxu0 %v5343
        %v6013 = vpop.f32.mrf.mxu0
        %v6014 = vadd.f32 %v6000, %v6013
        %v6015 = vpop.f32.mrf.mxu0
        %v6016 = vadd.f32 %v6002, %v6015
        %6017 = vdwg.mxu0
        %6018 = vmatpush.bf16.msra.mxu0 %v5780
        %6019 = vmatpush.bf16.msra.mxu0 %v5778
        %6020 = vmatpush.bf16.msra.mxu0 %v5776
        %6021 = vmatpush.bf16.msra.mxu0 %v5774
        %6022 = vmatpush.bf16.msra.mxu0 %v5772
        %6023 = vmatpush.bf16.msra.mxu0 %v5770
        %6024 = vmatpush.bf16.msra.mxu0 %v5768
        %6025 = vmatpush.bf16.msra.mxu0 %v5766
        %6026 = vmatmul.bf16.gmra.mxu0 %v5344
        %v6027 = vpop.f32.mrf.mxu0
        %v6028 = vadd.f32 %v6014, %v6027
        %v6029 = vpop.f32.mrf.mxu0
        %v6030 = vadd.f32 %v6016, %v6029
        %6031 = vdwg.mxu0
        %6032 = vmatpush.bf16.msra.mxu0 %v5796
        %6033 = vmatpush.bf16.msra.mxu0 %v5794
        %6034 = vmatpush.bf16.msra.mxu0 %v5792
        %6035 = vmatpush.bf16.msra.mxu0 %v5790
        %6036 = vmatpush.bf16.msra.mxu0 %v5788
        %6037 = vmatpush.bf16.msra.mxu0 %v5786
        %6038 = vmatpush.bf16.msra.mxu0 %v5784
        %6039 = vmatpush.bf16.msra.mxu0 %v5782
        %6040 = vmatmul.bf16.gmra.mxu0 %v5345
        %v6041 = vpop.f32.mrf.mxu0
        %v6042 = vadd.f32 %v6028, %v6041
        %v6043 = vpop.f32.mrf.mxu0
        %v6044 = vadd.f32 %v6030, %v6043
        %6045 = vdwg.mxu0
        %6046 = vmatpush.bf16.msra.mxu0 %v5812
        %6047 = vmatpush.bf16.msra.mxu0 %v5810
        %6048 = vmatpush.bf16.msra.mxu0 %v5808
        %6049 = vmatpush.bf16.msra.mxu0 %v5806
        %6050 = vmatpush.bf16.msra.mxu0 %v5804
        %6051 = vmatpush.bf16.msra.mxu0 %v5802
        %6052 = vmatpush.bf16.msra.mxu0 %v5800
        %6053 = vmatpush.bf16.msra.mxu0 %v5798
        %6054 = vmatmul.bf16.gmra.mxu0 %v5346
        %v6055 = vpop.f32.mrf.mxu0
        %v6056 = vadd.f32 %v6042, %v6055
        %v6057 = vpop.f32.mrf.mxu0
        %v6058 = vadd.f32 %v6044, %v6057
        %6059 = vdwg.mxu0
        %6060 = vmatpush.bf16.msra.mxu0 %v5828
        %6061 = vmatpush.bf16.msra.mxu0 %v5826
        %6062 = vmatpush.bf16.msra.mxu0 %v5824
        %6063 = vmatpush.bf16.msra.mxu0 %v5822
        %6064 = vmatpush.bf16.msra.mxu0 %v5820
        %6065 = vmatpush.bf16.msra.mxu0 %v5818
        %6066 = vmatpush.bf16.msra.mxu0 %v5816
        %6067 = vmatpush.bf16.msra.mxu0 %v5814
        %6068 = vmatmul.bf16.gmra.mxu0 %v5347
        %v6069 = vpop.f32.mrf.mxu0
        %v6070 = vadd.f32 %v6056, %v6069
        %v6071 = vpop.f32.mrf.mxu0
        %v6072 = vadd.f32 %v6058, %v6071
        %6073 = vdwg.mxu0
        %6074 = vmatpush.bf16.msra.mxu0 %v5844
        %6075 = vmatpush.bf16.msra.mxu0 %v5842
        %6076 = vmatpush.bf16.msra.mxu0 %v5840
        %6077 = vmatpush.bf16.msra.mxu0 %v5838
        %6078 = vmatpush.bf16.msra.mxu0 %v5836
        %6079 = vmatpush.bf16.msra.mxu0 %v5834
        %6080 = vmatpush.bf16.msra.mxu0 %v5832
        %6081 = vmatpush.bf16.msra.mxu0 %v5830
        %6082 = vmatmul.bf16.gmra.mxu0 %v5348
        %v6083 = vpop.f32.mrf.mxu0
        %v6084 = vadd.f32 %v6070, %v6083
        %v6085 = vpop.f32.mrf.mxu0
        %v6086 = vadd.f32 %v6072, %v6085
        %6087 = vdwg.mxu0
        %6088 = vmatpush.bf16.msra.mxu0 %v5860
        %6089 = vmatpush.bf16.msra.mxu0 %v5858
        %6090 = vmatpush.bf16.msra.mxu0 %v5856
        %6091 = vmatpush.bf16.msra.mxu0 %v5854
        %6092 = vmatpush.bf16.msra.mxu0 %v5852
        %6093 = vmatpush.bf16.msra.mxu0 %v5850
        %6094 = vmatpush.bf16.msra.mxu0 %v5848
        %6095 = vmatpush.bf16.msra.mxu0 %v5846
        %6096 = vmatmul.bf16.gmra.mxu0 %v5349
        %v6097 = vpop.f32.mrf.mxu0
        %v6098 = vadd.f32 %v6084, %v6097
        %v6099 = vpop.f32.mrf.mxu0
        %v6100 = vadd.f32 %v6086, %v6099
        %6101 = vdwg.mxu0
        %6102 = vmatpush.bf16.msra.mxu0 %v5749
        %6103 = vmatpush.bf16.msra.mxu0 %v5747
        %6104 = vmatpush.bf16.msra.mxu0 %v5745
        %6105 = vmatpush.bf16.msra.mxu0 %v5743
        %6106 = vmatpush.bf16.msra.mxu0 %v5741
        %6107 = vmatpush.bf16.msra.mxu0 %v5739
        %6108 = vmatpush.bf16.msra.mxu0 %v5737
        %6109 = vmatpush.bf16.msra.mxu0 %v5735
        %6110 = vmatmul.bf16.gmra.mxu0 %v5342
        %v6111 = vpop.f32.mrf.mxu0
        %v6112 = vadd.f32 0.0, %v6111
        %v6113 = vpop.f32.mrf.mxu0
        %v6114 = vadd.f32 0.0, %v6113
        %6115 = vdwg.mxu0
        %6116 = vmatpush.bf16.msra.mxu0 %v5765
        %6117 = vmatpush.bf16.msra.mxu0 %v5763
        %6118 = vmatpush.bf16.msra.mxu0 %v5761
        %6119 = vmatpush.bf16.msra.mxu0 %v5759
        %6120 = vmatpush.bf16.msra.mxu0 %v5757
        %6121 = vmatpush.bf16.msra.mxu0 %v5755
        %6122 = vmatpush.bf16.msra.mxu0 %v5753
        %6123 = vmatpush.bf16.msra.mxu0 %v5751
        %6124 = vmatmul.bf16.gmra.mxu0 %v5343
        %v6125 = vpop.f32.mrf.mxu0
        %v6126 = vadd.f32 %v6112, %v6125
        %v6127 = vpop.f32.mrf.mxu0
        %v6128 = vadd.f32 %v6114, %v6127
        %6129 = vdwg.mxu0
        %6130 = vmatpush.bf16.msra.mxu0 %v5781
        %6131 = vmatpush.bf16.msra.mxu0 %v5779
        %6132 = vmatpush.bf16.msra.mxu0 %v5777
        %6133 = vmatpush.bf16.msra.mxu0 %v5775
        %6134 = vmatpush.bf16.msra.mxu0 %v5773
        %6135 = vmatpush.bf16.msra.mxu0 %v5771
        %6136 = vmatpush.bf16.msra.mxu0 %v5769
        %6137 = vmatpush.bf16.msra.mxu0 %v5767
        %6138 = vmatmul.bf16.gmra.mxu0 %v5344
        %v6139 = vpop.f32.mrf.mxu0
        %v6140 = vadd.f32 %v6126, %v6139
        %v6141 = vpop.f32.mrf.mxu0
        %v6142 = vadd.f32 %v6128, %v6141
        %6143 = vdwg.mxu0
        %6144 = vmatpush.bf16.msra.mxu0 %v5797
        %6145 = vmatpush.bf16.msra.mxu0 %v5795
        %6146 = vmatpush.bf16.msra.mxu0 %v5793
        %6147 = vmatpush.bf16.msra.mxu0 %v5791
        %6148 = vmatpush.bf16.msra.mxu0 %v5789
        %6149 = vmatpush.bf16.msra.mxu0 %v5787
        %6150 = vmatpush.bf16.msra.mxu0 %v5785
        %6151 = vmatpush.bf16.msra.mxu0 %v5783
        %6152 = vmatmul.bf16.gmra.mxu0 %v5345
        %v6153 = vpop.f32.mrf.mxu0
        %v6154 = vadd.f32 %v6140, %v6153
        %v6155 = vpop.f32.mrf.mxu0
        %v6156 = vadd.f32 %v6142, %v6155
        %6157 = vdwg.mxu0
        %6158 = vmatpush.bf16.msra.mxu0 %v5813
        %6159 = vmatpush.bf16.msra.mxu0 %v5811
        %6160 = vmatpush.bf16.msra.mxu0 %v5809
        %6161 = vmatpush.bf16.msra.mxu0 %v5807
        %6162 = vmatpush.bf16.msra.mxu0 %v5805
        %6163 = vmatpush.bf16.msra.mxu0 %v5803
        %6164 = vmatpush.bf16.msra.mxu0 %v5801
        %6165 = vmatpush.bf16.msra.mxu0 %v5799
        %6166 = vmatmul.bf16.gmra.mxu0 %v5346
        %v6167 = vpop.f32.mrf.mxu0
        %v6168 = vadd.f32 %v6154, %v6167
        %v6169 = vpop.f32.mrf.mxu0
        %v6170 = vadd.f32 %v6156, %v6169
        %6171 = vdwg.mxu0
        %6172 = vmatpush.bf16.msra.mxu0 %v5829
        %6173 = vmatpush.bf16.msra.mxu0 %v5827
        %6174 = vmatpush.bf16.msra.mxu0 %v5825
        %6175 = vmatpush.bf16.msra.mxu0 %v5823
        %6176 = vmatpush.bf16.msra.mxu0 %v5821
        %6177 = vmatpush.bf16.msra.mxu0 %v5819
        %6178 = vmatpush.bf16.msra.mxu0 %v5817
        %6179 = vmatpush.bf16.msra.mxu0 %v5815
        %6180 = vmatmul.bf16.gmra.mxu0 %v5347
        %v6181 = vpop.f32.mrf.mxu0
        %v6182 = vadd.f32 %v6168, %v6181
        %v6183 = vpop.f32.mrf.mxu0
        %v6184 = vadd.f32 %v6170, %v6183
        %6185 = vdwg.mxu0
        %6186 = vmatpush.bf16.msra.mxu0 %v5845
        %6187 = vmatpush.bf16.msra.mxu0 %v5843
        %6188 = vmatpush.bf16.msra.mxu0 %v5841
        %6189 = vmatpush.bf16.msra.mxu0 %v5839
        %6190 = vmatpush.bf16.msra.mxu0 %v5837
        %6191 = vmatpush.bf16.msra.mxu0 %v5835
        %6192 = vmatpush.bf16.msra.mxu0 %v5833
        %6193 = vmatpush.bf16.msra.mxu0 %v5831
        %6194 = vmatmul.bf16.gmra.mxu0 %v5348
        %v6195 = vpop.f32.mrf.mxu0
        %v6196 = vadd.f32 %v6182, %v6195
        %v6197 = vpop.f32.mrf.mxu0
        %v6198 = vadd.f32 %v6184, %v6197
        %6199 = vdwg.mxu0
        %6200 = vmatpush.bf16.msra.mxu0 %v5861
        %6201 = vmatpush.bf16.msra.mxu0 %v5859
        %6202 = vmatpush.bf16.msra.mxu0 %v5857
        %6203 = vmatpush.bf16.msra.mxu0 %v5855
        %6204 = vmatpush.bf16.msra.mxu0 %v5853
        %6205 = vmatpush.bf16.msra.mxu0 %v5851
        %6206 = vmatpush.bf16.msra.mxu0 %v5849
        %6207 = vmatpush.bf16.msra.mxu0 %v5847
        %6208 = vmatmul.bf16.gmra.mxu0 %v5349
        %v6209 = vpop.f32.mrf.mxu0
        %v6210 = vadd.f32 %v6196, %v6209
        %v6211 = vpop.f32.mrf.mxu0
        %v6212 = vadd.f32 %v6198, %v6211
        %6213 = vdwg.mxu0
        %v6214 = vadd.f32 %v5210, %v6098
        %v6215 = vadd.f32 %v5211, %v6210
        %v6216 = vadd.f32 %v5212, %v6100
        %v6217 = vadd.f32 %v5213, %v6212
        %v6218 = vld [vmem:[#allocation7 + $0x1400] sm:$0xff]
        %v6219 = vld [vmem:[#allocation7 + $0x1408] sm:$0xff]
        %v6220 = vld [vmem:[#allocation7 + $0x1410] sm:$0xff]
        %v6221 = vld [vmem:[#allocation7 + $0x1418] sm:$0xff]
        %v6222 = vld [vmem:[#allocation7 + $0x1420] sm:$0xff]
        %v6223 = vld [vmem:[#allocation7 + $0x1428] sm:$0xff]
        %v6224 = vld [vmem:[#allocation7 + $0x1430] sm:$0xff]
        %v6225 = vld [vmem:[#allocation7 + $0x1438] sm:$0xff]
        %v6226 = vld [vmem:[#allocation7 + $0x1440] sm:$0xff]
        %v6227 = vld [vmem:[#allocation7 + $0x1448] sm:$0xff]
        %v6228 = vld [vmem:[#allocation7 + $0x1450] sm:$0xff]
        %v6229 = vld [vmem:[#allocation7 + $0x1458] sm:$0xff]
        %v6230 = vld [vmem:[#allocation7 + $0x1460] sm:$0xff]
        %v6231 = vld [vmem:[#allocation7 + $0x1468] sm:$0xff]
        %v6232 = vld [vmem:[#allocation7 + $0x1470] sm:$0xff]
        %v6233 = vld [vmem:[#allocation7 + $0x1478] sm:$0xff]
        %v6234 = vld [vmem:[#allocation7 + $0x1480] sm:$0xff]
        %v6235 = vld [vmem:[#allocation7 + $0x1488] sm:$0xff]
        %v6236 = vld [vmem:[#allocation7 + $0x1490] sm:$0xff]
        %v6237 = vld [vmem:[#allocation7 + $0x1498] sm:$0xff]
        %v6238 = vld [vmem:[#allocation7 + $0x14a0] sm:$0xff]
        %v6239 = vld [vmem:[#allocation7 + $0x14a8] sm:$0xff]
        %v6240 = vld [vmem:[#allocation7 + $0x14b0] sm:$0xff]
        %v6241 = vld [vmem:[#allocation7 + $0x14b8] sm:$0xff]
        %v6242 = vld [vmem:[#allocation7 + $0x14c0] sm:$0xff]
        %v6243 = vld [vmem:[#allocation7 + $0x14c8] sm:$0xff]
        %v6244 = vld [vmem:[#allocation7 + $0x14d0] sm:$0xff]
        %v6245 = vld [vmem:[#allocation7 + $0x14d8] sm:$0xff]
        %v6246 = vld [vmem:[#allocation7 + $0x14e0] sm:$0xff]
        %v6247 = vld [vmem:[#allocation7 + $0x14e8] sm:$0xff]
        %v6248 = vld [vmem:[#allocation7 + $0x14f0] sm:$0xff]
        %v6249 = vld [vmem:[#allocation7 + $0x14f8] sm:$0xff]
        %v6250 = vld [vmem:[#allocation7 + $0x1500] sm:$0xff]
        %v6251 = vld [vmem:[#allocation7 + $0x1508] sm:$0xff]
        %v6252 = vld [vmem:[#allocation7 + $0x1510] sm:$0xff]
        %v6253 = vld [vmem:[#allocation7 + $0x1518] sm:$0xff]
        %v6254 = vld [vmem:[#allocation7 + $0x1520] sm:$0xff]
        %v6255 = vld [vmem:[#allocation7 + $0x1528] sm:$0xff]
        %v6256 = vld [vmem:[#allocation7 + $0x1530] sm:$0xff]
        %v6257 = vld [vmem:[#allocation7 + $0x1538] sm:$0xff]
        %v6258 = vld [vmem:[#allocation7 + $0x1540] sm:$0xff]
        %v6259 = vld [vmem:[#allocation7 + $0x1548] sm:$0xff]
        %v6260 = vld [vmem:[#allocation7 + $0x1550] sm:$0xff]
        %v6261 = vld [vmem:[#allocation7 + $0x1558] sm:$0xff]
        %v6262 = vld [vmem:[#allocation7 + $0x1560] sm:$0xff]
        %v6263 = vld [vmem:[#allocation7 + $0x1568] sm:$0xff]
        %v6264 = vld [vmem:[#allocation7 + $0x1570] sm:$0xff]
        %v6265 = vld [vmem:[#allocation7 + $0x1578] sm:$0xff]
        %v6266 = vld [vmem:[#allocation7 + $0x1580] sm:$0xff]
        %v6267 = vld [vmem:[#allocation7 + $0x1588] sm:$0xff]
        %v6268 = vld [vmem:[#allocation7 + $0x1590] sm:$0xff]
        %v6269 = vld [vmem:[#allocation7 + $0x1598] sm:$0xff]
        %v6270 = vld [vmem:[#allocation7 + $0x15a0] sm:$0xff]
        %v6271 = vld [vmem:[#allocation7 + $0x15a8] sm:$0xff]
        %v6272 = vld [vmem:[#allocation7 + $0x15b0] sm:$0xff]
        %v6273 = vld [vmem:[#allocation7 + $0x15b8] sm:$0xff]
        %v6274 = vld [vmem:[#allocation7 + $0x15c0] sm:$0xff]
        %v6275 = vld [vmem:[#allocation7 + $0x15c8] sm:$0xff]
        %v6276 = vld [vmem:[#allocation7 + $0x15d0] sm:$0xff]
        %v6277 = vld [vmem:[#allocation7 + $0x15d8] sm:$0xff]
        %v6278 = vld [vmem:[#allocation7 + $0x15e0] sm:$0xff]
        %v6279 = vld [vmem:[#allocation7 + $0x15e8] sm:$0xff]
        %v6280 = vld [vmem:[#allocation7 + $0x15f0] sm:$0xff]
        %v6281 = vld [vmem:[#allocation7 + $0x15f8] sm:$0xff]
        %v6282 = vld [vmem:[#allocation7 + $0x1600] sm:$0xff]
        %v6283 = vld [vmem:[#allocation7 + $0x1608] sm:$0xff]
        %v6284 = vld [vmem:[#allocation7 + $0x1610] sm:$0xff]
        %v6285 = vld [vmem:[#allocation7 + $0x1618] sm:$0xff]
        %v6286 = vld [vmem:[#allocation7 + $0x1620] sm:$0xff]
        %v6287 = vld [vmem:[#allocation7 + $0x1628] sm:$0xff]
        %v6288 = vld [vmem:[#allocation7 + $0x1630] sm:$0xff]
        %v6289 = vld [vmem:[#allocation7 + $0x1638] sm:$0xff]
        %v6290 = vld [vmem:[#allocation7 + $0x1640] sm:$0xff]
        %v6291 = vld [vmem:[#allocation7 + $0x1648] sm:$0xff]
        %v6292 = vld [vmem:[#allocation7 + $0x1650] sm:$0xff]
        %v6293 = vld [vmem:[#allocation7 + $0x1658] sm:$0xff]
        %v6294 = vld [vmem:[#allocation7 + $0x1660] sm:$0xff]
        %v6295 = vld [vmem:[#allocation7 + $0x1668] sm:$0xff]
        %v6296 = vld [vmem:[#allocation7 + $0x1670] sm:$0xff]
        %v6297 = vld [vmem:[#allocation7 + $0x1678] sm:$0xff]
        %v6298 = vld [vmem:[#allocation7 + $0x1680] sm:$0xff]
        %v6299 = vld [vmem:[#allocation7 + $0x1688] sm:$0xff]
        %v6300 = vld [vmem:[#allocation7 + $0x1690] sm:$0xff]
        %v6301 = vld [vmem:[#allocation7 + $0x1698] sm:$0xff]
        %v6302 = vld [vmem:[#allocation7 + $0x16a0] sm:$0xff]
        %v6303 = vld [vmem:[#allocation7 + $0x16a8] sm:$0xff]
        %v6304 = vld [vmem:[#allocation7 + $0x16b0] sm:$0xff]
        %v6305 = vld [vmem:[#allocation7 + $0x16b8] sm:$0xff]
        %v6306 = vld [vmem:[#allocation7 + $0x16c0] sm:$0xff]
        %v6307 = vld [vmem:[#allocation7 + $0x16c8] sm:$0xff]
        %v6308 = vld [vmem:[#allocation7 + $0x16d0] sm:$0xff]
        %v6309 = vld [vmem:[#allocation7 + $0x16d8] sm:$0xff]
        %v6310 = vld [vmem:[#allocation7 + $0x16e0] sm:$0xff]
        %v6311 = vld [vmem:[#allocation7 + $0x16e8] sm:$0xff]
        %v6312 = vld [vmem:[#allocation7 + $0x16f0] sm:$0xff]
        %v6313 = vld [vmem:[#allocation7 + $0x16f8] sm:$0xff]
        %v6314 = vld [vmem:[#allocation7 + $0x1700] sm:$0xff]
        %v6315 = vld [vmem:[#allocation7 + $0x1708] sm:$0xff]
        %v6316 = vld [vmem:[#allocation7 + $0x1710] sm:$0xff]
        %v6317 = vld [vmem:[#allocation7 + $0x1718] sm:$0xff]
        %v6318 = vld [vmem:[#allocation7 + $0x1720] sm:$0xff]
        %v6319 = vld [vmem:[#allocation7 + $0x1728] sm:$0xff]
        %v6320 = vld [vmem:[#allocation7 + $0x1730] sm:$0xff]
        %v6321 = vld [vmem:[#allocation7 + $0x1738] sm:$0xff]
        %v6322 = vld [vmem:[#allocation7 + $0x1740] sm:$0xff]
        %v6323 = vld [vmem:[#allocation7 + $0x1748] sm:$0xff]
        %v6324 = vld [vmem:[#allocation7 + $0x1750] sm:$0xff]
        %v6325 = vld [vmem:[#allocation7 + $0x1758] sm:$0xff]
        %v6326 = vld [vmem:[#allocation7 + $0x1760] sm:$0xff]
        %v6327 = vld [vmem:[#allocation7 + $0x1768] sm:$0xff]
        %v6328 = vld [vmem:[#allocation7 + $0x1770] sm:$0xff]
        %v6329 = vld [vmem:[#allocation7 + $0x1778] sm:$0xff]
        %v6330 = vld [vmem:[#allocation7 + $0x1780] sm:$0xff]
        %v6331 = vld [vmem:[#allocation7 + $0x1788] sm:$0xff]
        %v6332 = vld [vmem:[#allocation7 + $0x1790] sm:$0xff]
        %v6333 = vld [vmem:[#allocation7 + $0x1798] sm:$0xff]
        %v6334 = vld [vmem:[#allocation7 + $0x17a0] sm:$0xff]
        %v6335 = vld [vmem:[#allocation7 + $0x17a8] sm:$0xff]
        %v6336 = vld [vmem:[#allocation7 + $0x17b0] sm:$0xff]
        %v6337 = vld [vmem:[#allocation7 + $0x17b8] sm:$0xff]
        %v6338 = vld [vmem:[#allocation7 + $0x17c0] sm:$0xff]
        %v6339 = vld [vmem:[#allocation7 + $0x17c8] sm:$0xff]
        %v6340 = vld [vmem:[#allocation7 + $0x17d0] sm:$0xff]
        %v6341 = vld [vmem:[#allocation7 + $0x17d8] sm:$0xff]
        %v6342 = vld [vmem:[#allocation7 + $0x17e0] sm:$0xff]
        %v6343 = vld [vmem:[#allocation7 + $0x17e8] sm:$0xff]
        %v6344 = vld [vmem:[#allocation7 + $0x17f0] sm:$0xff]
        %v6345 = vld [vmem:[#allocation7 + $0x17f8] sm:$0xff]
        %v6346 = vpack.c.bf16 %v1318, %v1310
        %v6347 = vpack.c.bf16 %v1319, %v1311
        %v6348 = vpack.c.bf16 %v1320, %v1312
        %v6349 = vpack.c.bf16 %v1321, %v1313
        %v6350 = vpack.c.bf16 %v1322, %v1314
        %v6351 = vpack.c.bf16 %v1323, %v1315
        %v6352 = vpack.c.bf16 %v1324, %v1316
        %v6353 = vpack.c.bf16 %v1325, %v1317
        %v6482 = vunpack.c.l.b16 %v6218
        %v6483 = vunpack.c.h.b16 %v6218
        %v6484 = vunpack.c.l.b16 %v6219
        %v6485 = vunpack.c.h.b16 %v6219
        %v6486 = vunpack.c.l.b16 %v6220
        %v6487 = vunpack.c.h.b16 %v6220
        %v6488 = vunpack.c.l.b16 %v6221
        %v6489 = vunpack.c.h.b16 %v6221
        %v6490 = vunpack.c.l.b16 %v6222
        %v6491 = vunpack.c.h.b16 %v6222
        %v6492 = vunpack.c.l.b16 %v6223
        %v6493 = vunpack.c.h.b16 %v6223
        %v6494 = vunpack.c.l.b16 %v6224
        %v6495 = vunpack.c.h.b16 %v6224
        %v6496 = vunpack.c.l.b16 %v6225
        %v6497 = vunpack.c.h.b16 %v6225
        %v6498 = vunpack.c.l.b16 %v6226
        %v6499 = vunpack.c.h.b16 %v6226
        %v6500 = vunpack.c.l.b16 %v6227
        %v6501 = vunpack.c.h.b16 %v6227
        %v6502 = vunpack.c.l.b16 %v6228
        %v6503 = vunpack.c.h.b16 %v6228
        %v6504 = vunpack.c.l.b16 %v6229
        %v6505 = vunpack.c.h.b16 %v6229
        %v6506 = vunpack.c.l.b16 %v6230
        %v6507 = vunpack.c.h.b16 %v6230
        %v6508 = vunpack.c.l.b16 %v6231
        %v6509 = vunpack.c.h.b16 %v6231
        %v6510 = vunpack.c.l.b16 %v6232
        %v6511 = vunpack.c.h.b16 %v6232
        %v6512 = vunpack.c.l.b16 %v6233
        %v6513 = vunpack.c.h.b16 %v6233
        %v6514 = vunpack.c.l.b16 %v6234
        %v6515 = vunpack.c.h.b16 %v6234
        %v6516 = vunpack.c.l.b16 %v6235
        %v6517 = vunpack.c.h.b16 %v6235
        %v6518 = vunpack.c.l.b16 %v6236
        %v6519 = vunpack.c.h.b16 %v6236
        %v6520 = vunpack.c.l.b16 %v6237
        %v6521 = vunpack.c.h.b16 %v6237
        %v6522 = vunpack.c.l.b16 %v6238
        %v6523 = vunpack.c.h.b16 %v6238
        %v6524 = vunpack.c.l.b16 %v6239
        %v6525 = vunpack.c.h.b16 %v6239
        %v6526 = vunpack.c.l.b16 %v6240
        %v6527 = vunpack.c.h.b16 %v6240
        %v6528 = vunpack.c.l.b16 %v6241
        %v6529 = vunpack.c.h.b16 %v6241
        %v6530 = vunpack.c.l.b16 %v6242
        %v6531 = vunpack.c.h.b16 %v6242
        %v6532 = vunpack.c.l.b16 %v6243
        %v6533 = vunpack.c.h.b16 %v6243
        %v6534 = vunpack.c.l.b16 %v6244
        %v6535 = vunpack.c.h.b16 %v6244
        %v6536 = vunpack.c.l.b16 %v6245
        %v6537 = vunpack.c.h.b16 %v6245
        %v6538 = vunpack.c.l.b16 %v6246
        %v6539 = vunpack.c.h.b16 %v6246
        %v6540 = vunpack.c.l.b16 %v6247
        %v6541 = vunpack.c.h.b16 %v6247
        %v6542 = vunpack.c.l.b16 %v6248
        %v6543 = vunpack.c.h.b16 %v6248
        %v6544 = vunpack.c.l.b16 %v6249
        %v6545 = vunpack.c.h.b16 %v6249
        %v6546 = vunpack.c.l.b16 %v6250
        %v6547 = vunpack.c.h.b16 %v6250
        %v6548 = vunpack.c.l.b16 %v6251
        %v6549 = vunpack.c.h.b16 %v6251
        %v6550 = vunpack.c.l.b16 %v6252
        %v6551 = vunpack.c.h.b16 %v6252
        %v6552 = vunpack.c.l.b16 %v6253
        %v6553 = vunpack.c.h.b16 %v6253
        %v6554 = vunpack.c.l.b16 %v6254
        %v6555 = vunpack.c.h.b16 %v6254
        %v6556 = vunpack.c.l.b16 %v6255
        %v6557 = vunpack.c.h.b16 %v6255
        %v6558 = vunpack.c.l.b16 %v6256
        %v6559 = vunpack.c.h.b16 %v6256
        %v6560 = vunpack.c.l.b16 %v6257
        %v6561 = vunpack.c.h.b16 %v6257
        %v6562 = vunpack.c.l.b16 %v6258
        %v6563 = vunpack.c.h.b16 %v6258
        %v6564 = vunpack.c.l.b16 %v6259
        %v6565 = vunpack.c.h.b16 %v6259
        %v6566 = vunpack.c.l.b16 %v6260
        %v6567 = vunpack.c.h.b16 %v6260
        %v6568 = vunpack.c.l.b16 %v6261
        %v6569 = vunpack.c.h.b16 %v6261
        %v6570 = vunpack.c.l.b16 %v6262
        %v6571 = vunpack.c.h.b16 %v6262
        %v6572 = vunpack.c.l.b16 %v6263
        %v6573 = vunpack.c.h.b16 %v6263
        %v6574 = vunpack.c.l.b16 %v6264
        %v6575 = vunpack.c.h.b16 %v6264
        %v6576 = vunpack.c.l.b16 %v6265
        %v6577 = vunpack.c.h.b16 %v6265
        %v6578 = vunpack.c.l.b16 %v6266
        %v6579 = vunpack.c.h.b16 %v6266
        %v6580 = vunpack.c.l.b16 %v6267
        %v6581 = vunpack.c.h.b16 %v6267
        %v6582 = vunpack.c.l.b16 %v6268
        %v6583 = vunpack.c.h.b16 %v6268
        %v6584 = vunpack.c.l.b16 %v6269
        %v6585 = vunpack.c.h.b16 %v6269
        %v6586 = vunpack.c.l.b16 %v6270
        %v6587 = vunpack.c.h.b16 %v6270
        %v6588 = vunpack.c.l.b16 %v6271
        %v6589 = vunpack.c.h.b16 %v6271
        %v6590 = vunpack.c.l.b16 %v6272
        %v6591 = vunpack.c.h.b16 %v6272
        %v6592 = vunpack.c.l.b16 %v6273
        %v6593 = vunpack.c.h.b16 %v6273
        %v6594 = vunpack.c.l.b16 %v6274
        %v6595 = vunpack.c.h.b16 %v6274
        %v6596 = vunpack.c.l.b16 %v6275
        %v6597 = vunpack.c.h.b16 %v6275
        %v6598 = vunpack.c.l.b16 %v6276
        %v6599 = vunpack.c.h.b16 %v6276
        %v6600 = vunpack.c.l.b16 %v6277
        %v6601 = vunpack.c.h.b16 %v6277
        %v6602 = vunpack.c.l.b16 %v6278
        %v6603 = vunpack.c.h.b16 %v6278
        %v6604 = vunpack.c.l.b16 %v6279
        %v6605 = vunpack.c.h.b16 %v6279
        %v6606 = vunpack.c.l.b16 %v6280
        %v6607 = vunpack.c.h.b16 %v6280
        %v6608 = vunpack.c.l.b16 %v6281
        %v6609 = vunpack.c.h.b16 %v6281
        %v6610 = vunpack.c.l.b16 %v6282
        %v6611 = vunpack.c.h.b16 %v6282
        %v6612 = vunpack.c.l.b16 %v6283
        %v6613 = vunpack.c.h.b16 %v6283
        %v6614 = vunpack.c.l.b16 %v6284
        %v6615 = vunpack.c.h.b16 %v6284
        %v6616 = vunpack.c.l.b16 %v6285
        %v6617 = vunpack.c.h.b16 %v6285
        %v6618 = vunpack.c.l.b16 %v6286
        %v6619 = vunpack.c.h.b16 %v6286
        %v6620 = vunpack.c.l.b16 %v6287
        %v6621 = vunpack.c.h.b16 %v6287
        %v6622 = vunpack.c.l.b16 %v6288
        %v6623 = vunpack.c.h.b16 %v6288
        %v6624 = vunpack.c.l.b16 %v6289
        %v6625 = vunpack.c.h.b16 %v6289
        %v6626 = vunpack.c.l.b16 %v6290
        %v6627 = vunpack.c.h.b16 %v6290
        %v6628 = vunpack.c.l.b16 %v6291
        %v6629 = vunpack.c.h.b16 %v6291
        %v6630 = vunpack.c.l.b16 %v6292
        %v6631 = vunpack.c.h.b16 %v6292
        %v6632 = vunpack.c.l.b16 %v6293
        %v6633 = vunpack.c.h.b16 %v6293
        %v6634 = vunpack.c.l.b16 %v6294
        %v6635 = vunpack.c.h.b16 %v6294
        %v6636 = vunpack.c.l.b16 %v6295
        %v6637 = vunpack.c.h.b16 %v6295
        %v6638 = vunpack.c.l.b16 %v6296
        %v6639 = vunpack.c.h.b16 %v6296
        %v6640 = vunpack.c.l.b16 %v6297
        %v6641 = vunpack.c.h.b16 %v6297
        %v6642 = vunpack.c.l.b16 %v6298
        %v6643 = vunpack.c.h.b16 %v6298
        %v6644 = vunpack.c.l.b16 %v6299
        %v6645 = vunpack.c.h.b16 %v6299
        %v6646 = vunpack.c.l.b16 %v6300
        %v6647 = vunpack.c.h.b16 %v6300
        %v6648 = vunpack.c.l.b16 %v6301
        %v6649 = vunpack.c.h.b16 %v6301
        %v6650 = vunpack.c.l.b16 %v6302
        %v6651 = vunpack.c.h.b16 %v6302
        %v6652 = vunpack.c.l.b16 %v6303
        %v6653 = vunpack.c.h.b16 %v6303
        %v6654 = vunpack.c.l.b16 %v6304
        %v6655 = vunpack.c.h.b16 %v6304
        %v6656 = vunpack.c.l.b16 %v6305
        %v6657 = vunpack.c.h.b16 %v6305
        %v6658 = vunpack.c.l.b16 %v6306
        %v6659 = vunpack.c.h.b16 %v6306
        %v6660 = vunpack.c.l.b16 %v6307
        %v6661 = vunpack.c.h.b16 %v6307
        %v6662 = vunpack.c.l.b16 %v6308
        %v6663 = vunpack.c.h.b16 %v6308
        %v6664 = vunpack.c.l.b16 %v6309
        %v6665 = vunpack.c.h.b16 %v6309
        %v6666 = vunpack.c.l.b16 %v6310
        %v6667 = vunpack.c.h.b16 %v6310
        %v6668 = vunpack.c.l.b16 %v6311
        %v6669 = vunpack.c.h.b16 %v6311
        %v6670 = vunpack.c.l.b16 %v6312
        %v6671 = vunpack.c.h.b16 %v6312
        %v6672 = vunpack.c.l.b16 %v6313
        %v6673 = vunpack.c.h.b16 %v6313
        %v6674 = vunpack.c.l.b16 %v6314
        %v6675 = vunpack.c.h.b16 %v6314
        %v6676 = vunpack.c.l.b16 %v6315
        %v6677 = vunpack.c.h.b16 %v6315
        %v6678 = vunpack.c.l.b16 %v6316
        %v6679 = vunpack.c.h.b16 %v6316
        %v6680 = vunpack.c.l.b16 %v6317
        %v6681 = vunpack.c.h.b16 %v6317
        %v6682 = vunpack.c.l.b16 %v6318
        %v6683 = vunpack.c.h.b16 %v6318
        %v6684 = vunpack.c.l.b16 %v6319
        %v6685 = vunpack.c.h.b16 %v6319
        %v6686 = vunpack.c.l.b16 %v6320
        %v6687 = vunpack.c.h.b16 %v6320
        %v6688 = vunpack.c.l.b16 %v6321
        %v6689 = vunpack.c.h.b16 %v6321
        %v6690 = vunpack.c.l.b16 %v6322
        %v6691 = vunpack.c.h.b16 %v6322
        %v6692 = vunpack.c.l.b16 %v6323
        %v6693 = vunpack.c.h.b16 %v6323
        %v6694 = vunpack.c.l.b16 %v6324
        %v6695 = vunpack.c.h.b16 %v6324
        %v6696 = vunpack.c.l.b16 %v6325
        %v6697 = vunpack.c.h.b16 %v6325
        %v6698 = vunpack.c.l.b16 %v6326
        %v6699 = vunpack.c.h.b16 %v6326
        %v6700 = vunpack.c.l.b16 %v6327
        %v6701 = vunpack.c.h.b16 %v6327
        %v6702 = vunpack.c.l.b16 %v6328
        %v6703 = vunpack.c.h.b16 %v6328
        %v6704 = vunpack.c.l.b16 %v6329
        %v6705 = vunpack.c.h.b16 %v6329
        %v6706 = vunpack.c.l.b16 %v6330
        %v6707 = vunpack.c.h.b16 %v6330
        %v6708 = vunpack.c.l.b16 %v6331
        %v6709 = vunpack.c.h.b16 %v6331
        %v6710 = vunpack.c.l.b16 %v6332
        %v6711 = vunpack.c.h.b16 %v6332
        %v6712 = vunpack.c.l.b16 %v6333
        %v6713 = vunpack.c.h.b16 %v6333
        %v6714 = vunpack.c.l.b16 %v6334
        %v6715 = vunpack.c.h.b16 %v6334
        %v6716 = vunpack.c.l.b16 %v6335
        %v6717 = vunpack.c.h.b16 %v6335
        %v6718 = vunpack.c.l.b16 %v6336
        %v6719 = vunpack.c.h.b16 %v6336
        %v6720 = vunpack.c.l.b16 %v6337
        %v6721 = vunpack.c.h.b16 %v6337
        %v6722 = vunpack.c.l.b16 %v6338
        %v6723 = vunpack.c.h.b16 %v6338
        %v6724 = vunpack.c.l.b16 %v6339
        %v6725 = vunpack.c.h.b16 %v6339
        %v6726 = vunpack.c.l.b16 %v6340
        %v6727 = vunpack.c.h.b16 %v6340
        %v6728 = vunpack.c.l.b16 %v6341
        %v6729 = vunpack.c.h.b16 %v6341
        %v6730 = vunpack.c.l.b16 %v6342
        %v6731 = vunpack.c.h.b16 %v6342
        %v6732 = vunpack.c.l.b16 %v6343
        %v6733 = vunpack.c.h.b16 %v6343
        %v6734 = vunpack.c.l.b16 %v6344
        %v6735 = vunpack.c.h.b16 %v6344
        %v6736 = vunpack.c.l.b16 %v6345
        %v6737 = vunpack.c.h.b16 %v6345
        %v6738 = vpack.c.b16 %v6484, %v6482
        %v6739 = vpack.c.b16 %v6485, %v6483
        %v6740 = vpack.c.b16 %v6488, %v6486
        %v6741 = vpack.c.b16 %v6489, %v6487
        %v6742 = vpack.c.b16 %v6492, %v6490
        %v6743 = vpack.c.b16 %v6493, %v6491
        %v6744 = vpack.c.b16 %v6496, %v6494
        %v6745 = vpack.c.b16 %v6497, %v6495
        %v6746 = vpack.c.b16 %v6500, %v6498
        %v6747 = vpack.c.b16 %v6501, %v6499
        %v6748 = vpack.c.b16 %v6504, %v6502
        %v6749 = vpack.c.b16 %v6505, %v6503
        %v6750 = vpack.c.b16 %v6508, %v6506
        %v6751 = vpack.c.b16 %v6509, %v6507
        %v6752 = vpack.c.b16 %v6512, %v6510
        %v6753 = vpack.c.b16 %v6513, %v6511
        %v6754 = vpack.c.b16 %v6516, %v6514
        %v6755 = vpack.c.b16 %v6517, %v6515
        %v6756 = vpack.c.b16 %v6520, %v6518
        %v6757 = vpack.c.b16 %v6521, %v6519
        %v6758 = vpack.c.b16 %v6524, %v6522
        %v6759 = vpack.c.b16 %v6525, %v6523
        %v6760 = vpack.c.b16 %v6528, %v6526
        %v6761 = vpack.c.b16 %v6529, %v6527
        %v6762 = vpack.c.b16 %v6532, %v6530
        %v6763 = vpack.c.b16 %v6533, %v6531
        %v6764 = vpack.c.b16 %v6536, %v6534
        %v6765 = vpack.c.b16 %v6537, %v6535
        %v6766 = vpack.c.b16 %v6540, %v6538
        %v6767 = vpack.c.b16 %v6541, %v6539
        %v6768 = vpack.c.b16 %v6544, %v6542
        %v6769 = vpack.c.b16 %v6545, %v6543
        %v6770 = vpack.c.b16 %v6548, %v6546
        %v6771 = vpack.c.b16 %v6549, %v6547
        %v6772 = vpack.c.b16 %v6552, %v6550
        %v6773 = vpack.c.b16 %v6553, %v6551
        %v6774 = vpack.c.b16 %v6556, %v6554
        %v6775 = vpack.c.b16 %v6557, %v6555
        %v6776 = vpack.c.b16 %v6560, %v6558
        %v6777 = vpack.c.b16 %v6561, %v6559
        %v6778 = vpack.c.b16 %v6564, %v6562
        %v6779 = vpack.c.b16 %v6565, %v6563
        %v6780 = vpack.c.b16 %v6568, %v6566
        %v6781 = vpack.c.b16 %v6569, %v6567
        %v6782 = vpack.c.b16 %v6572, %v6570
        %v6783 = vpack.c.b16 %v6573, %v6571
        %v6784 = vpack.c.b16 %v6576, %v6574
        %v6785 = vpack.c.b16 %v6577, %v6575
        %v6786 = vpack.c.b16 %v6580, %v6578
        %v6787 = vpack.c.b16 %v6581, %v6579
        %v6788 = vpack.c.b16 %v6584, %v6582
        %v6789 = vpack.c.b16 %v6585, %v6583
        %v6790 = vpack.c.b16 %v6588, %v6586
        %v6791 = vpack.c.b16 %v6589, %v6587
        %v6792 = vpack.c.b16 %v6592, %v6590
        %v6793 = vpack.c.b16 %v6593, %v6591
        %v6794 = vpack.c.b16 %v6596, %v6594
        %v6795 = vpack.c.b16 %v6597, %v6595
        %v6796 = vpack.c.b16 %v6600, %v6598
        %v6797 = vpack.c.b16 %v6601, %v6599
        %v6798 = vpack.c.b16 %v6604, %v6602
        %v6799 = vpack.c.b16 %v6605, %v6603
        %v6800 = vpack.c.b16 %v6608, %v6606
        %v6801 = vpack.c.b16 %v6609, %v6607
        %v6802 = vpack.c.b16 %v6612, %v6610
        %v6803 = vpack.c.b16 %v6613, %v6611
        %v6804 = vpack.c.b16 %v6616, %v6614
        %v6805 = vpack.c.b16 %v6617, %v6615
        %v6806 = vpack.c.b16 %v6620, %v6618
        %v6807 = vpack.c.b16 %v6621, %v6619
        %v6808 = vpack.c.b16 %v6624, %v6622
        %v6809 = vpack.c.b16 %v6625, %v6623
        %v6810 = vpack.c.b16 %v6628, %v6626
        %v6811 = vpack.c.b16 %v6629, %v6627
        %v6812 = vpack.c.b16 %v6632, %v6630
        %v6813 = vpack.c.b16 %v6633, %v6631
        %v6814 = vpack.c.b16 %v6636, %v6634
        %v6815 = vpack.c.b16 %v6637, %v6635
        %v6816 = vpack.c.b16 %v6640, %v6638
        %v6817 = vpack.c.b16 %v6641, %v6639
        %v6818 = vpack.c.b16 %v6644, %v6642
        %v6819 = vpack.c.b16 %v6645, %v6643
        %v6820 = vpack.c.b16 %v6648, %v6646
        %v6821 = vpack.c.b16 %v6649, %v6647
        %v6822 = vpack.c.b16 %v6652, %v6650
        %v6823 = vpack.c.b16 %v6653, %v6651
        %v6824 = vpack.c.b16 %v6656, %v6654
        %v6825 = vpack.c.b16 %v6657, %v6655
        %v6826 = vpack.c.b16 %v6660, %v6658
        %v6827 = vpack.c.b16 %v6661, %v6659
        %v6828 = vpack.c.b16 %v6664, %v6662
        %v6829 = vpack.c.b16 %v6665, %v6663
        %v6830 = vpack.c.b16 %v6668, %v6666
        %v6831 = vpack.c.b16 %v6669, %v6667
        %v6832 = vpack.c.b16 %v6672, %v6670
        %v6833 = vpack.c.b16 %v6673, %v6671
        %v6834 = vpack.c.b16 %v6676, %v6674
        %v6835 = vpack.c.b16 %v6677, %v6675
        %v6836 = vpack.c.b16 %v6680, %v6678
        %v6837 = vpack.c.b16 %v6681, %v6679
        %v6838 = vpack.c.b16 %v6684, %v6682
        %v6839 = vpack.c.b16 %v6685, %v6683
        %v6840 = vpack.c.b16 %v6688, %v6686
        %v6841 = vpack.c.b16 %v6689, %v6687
        %v6842 = vpack.c.b16 %v6692, %v6690
        %v6843 = vpack.c.b16 %v6693, %v6691
        %v6844 = vpack.c.b16 %v6696, %v6694
        %v6845 = vpack.c.b16 %v6697, %v6695
        %v6846 = vpack.c.b16 %v6700, %v6698
        %v6847 = vpack.c.b16 %v6701, %v6699
        %v6848 = vpack.c.b16 %v6704, %v6702
        %v6849 = vpack.c.b16 %v6705, %v6703
        %v6850 = vpack.c.b16 %v6708, %v6706
        %v6851 = vpack.c.b16 %v6709, %v6707
        %v6852 = vpack.c.b16 %v6712, %v6710
        %v6853 = vpack.c.b16 %v6713, %v6711
        %v6854 = vpack.c.b16 %v6716, %v6714
        %v6855 = vpack.c.b16 %v6717, %v6715
        %v6856 = vpack.c.b16 %v6720, %v6718
        %v6857 = vpack.c.b16 %v6721, %v6719
        %v6858 = vpack.c.b16 %v6724, %v6722
        %v6859 = vpack.c.b16 %v6725, %v6723
        %v6860 = vpack.c.b16 %v6728, %v6726
        %v6861 = vpack.c.b16 %v6729, %v6727
        %v6862 = vpack.c.b16 %v6732, %v6730
        %v6863 = vpack.c.b16 %v6733, %v6731
        %v6864 = vpack.c.b16 %v6736, %v6734
        %v6865 = vpack.c.b16 %v6737, %v6735
        %6994 = vmatpush.bf16.msra.mxu0 %v6752
        %6995 = vmatpush.bf16.msra.mxu0 %v6750
        %6996 = vmatpush.bf16.msra.mxu0 %v6748
        %6997 = vmatpush.bf16.msra.mxu0 %v6746
        %6998 = vmatpush.bf16.msra.mxu0 %v6744
        %6999 = vmatpush.bf16.msra.mxu0 %v6742
        %7000 = vmatpush.bf16.msra.mxu0 %v6740
        %7001 = vmatpush.bf16.msra.mxu0 %v6738
        %7002 = vmatmul.bf16.gmra.mxu0 %v6346
        %v7003 = vpop.f32.mrf.mxu0
        %v7004 = vadd.f32 0.0, %v7003
        %v7005 = vpop.f32.mrf.mxu0
        %v7006 = vadd.f32 0.0, %v7005
        %7007 = vdwg.mxu0
        %7008 = vmatpush.bf16.msra.mxu0 %v6768
        %7009 = vmatpush.bf16.msra.mxu0 %v6766
        %7010 = vmatpush.bf16.msra.mxu0 %v6764
        %7011 = vmatpush.bf16.msra.mxu0 %v6762
        %7012 = vmatpush.bf16.msra.mxu0 %v6760
        %7013 = vmatpush.bf16.msra.mxu0 %v6758
        %7014 = vmatpush.bf16.msra.mxu0 %v6756
        %7015 = vmatpush.bf16.msra.mxu0 %v6754
        %7016 = vmatmul.bf16.gmra.mxu0 %v6347
        %v7017 = vpop.f32.mrf.mxu0
        %v7018 = vadd.f32 %v7004, %v7017
        %v7019 = vpop.f32.mrf.mxu0
        %v7020 = vadd.f32 %v7006, %v7019
        %7021 = vdwg.mxu0
        %7022 = vmatpush.bf16.msra.mxu0 %v6784
        %7023 = vmatpush.bf16.msra.mxu0 %v6782
        %7024 = vmatpush.bf16.msra.mxu0 %v6780
        %7025 = vmatpush.bf16.msra.mxu0 %v6778
        %7026 = vmatpush.bf16.msra.mxu0 %v6776
        %7027 = vmatpush.bf16.msra.mxu0 %v6774
        %7028 = vmatpush.bf16.msra.mxu0 %v6772
        %7029 = vmatpush.bf16.msra.mxu0 %v6770
        %7030 = vmatmul.bf16.gmra.mxu0 %v6348
        %v7031 = vpop.f32.mrf.mxu0
        %v7032 = vadd.f32 %v7018, %v7031
        %v7033 = vpop.f32.mrf.mxu0
        %v7034 = vadd.f32 %v7020, %v7033
        %7035 = vdwg.mxu0
        %7036 = vmatpush.bf16.msra.mxu0 %v6800
        %7037 = vmatpush.bf16.msra.mxu0 %v6798
        %7038 = vmatpush.bf16.msra.mxu0 %v6796
        %7039 = vmatpush.bf16.msra.mxu0 %v6794
        %7040 = vmatpush.bf16.msra.mxu0 %v6792
        %7041 = vmatpush.bf16.msra.mxu0 %v6790
        %7042 = vmatpush.bf16.msra.mxu0 %v6788
        %7043 = vmatpush.bf16.msra.mxu0 %v6786
        %7044 = vmatmul.bf16.gmra.mxu0 %v6349
        %v7045 = vpop.f32.mrf.mxu0
        %v7046 = vadd.f32 %v7032, %v7045
        %v7047 = vpop.f32.mrf.mxu0
        %v7048 = vadd.f32 %v7034, %v7047
        %7049 = vdwg.mxu0
        %7050 = vmatpush.bf16.msra.mxu0 %v6816
        %7051 = vmatpush.bf16.msra.mxu0 %v6814
        %7052 = vmatpush.bf16.msra.mxu0 %v6812
        %7053 = vmatpush.bf16.msra.mxu0 %v6810
        %7054 = vmatpush.bf16.msra.mxu0 %v6808
        %7055 = vmatpush.bf16.msra.mxu0 %v6806
        %7056 = vmatpush.bf16.msra.mxu0 %v6804
        %7057 = vmatpush.bf16.msra.mxu0 %v6802
        %7058 = vmatmul.bf16.gmra.mxu0 %v6350
        %v7059 = vpop.f32.mrf.mxu0
        %v7060 = vadd.f32 %v7046, %v7059
        %v7061 = vpop.f32.mrf.mxu0
        %v7062 = vadd.f32 %v7048, %v7061
        %7063 = vdwg.mxu0
        %7064 = vmatpush.bf16.msra.mxu0 %v6832
        %7065 = vmatpush.bf16.msra.mxu0 %v6830
        %7066 = vmatpush.bf16.msra.mxu0 %v6828
        %7067 = vmatpush.bf16.msra.mxu0 %v6826
        %7068 = vmatpush.bf16.msra.mxu0 %v6824
        %7069 = vmatpush.bf16.msra.mxu0 %v6822
        %7070 = vmatpush.bf16.msra.mxu0 %v6820
        %7071 = vmatpush.bf16.msra.mxu0 %v6818
        %7072 = vmatmul.bf16.gmra.mxu0 %v6351
        %v7073 = vpop.f32.mrf.mxu0
        %v7074 = vadd.f32 %v7060, %v7073
        %v7075 = vpop.f32.mrf.mxu0
        %v7076 = vadd.f32 %v7062, %v7075
        %7077 = vdwg.mxu0
        %7078 = vmatpush.bf16.msra.mxu0 %v6848
        %7079 = vmatpush.bf16.msra.mxu0 %v6846
        %7080 = vmatpush.bf16.msra.mxu0 %v6844
        %7081 = vmatpush.bf16.msra.mxu0 %v6842
        %7082 = vmatpush.bf16.msra.mxu0 %v6840
        %7083 = vmatpush.bf16.msra.mxu0 %v6838
        %7084 = vmatpush.bf16.msra.mxu0 %v6836
        %7085 = vmatpush.bf16.msra.mxu0 %v6834
        %7086 = vmatmul.bf16.gmra.mxu0 %v6352
        %v7087 = vpop.f32.mrf.mxu0
        %v7088 = vadd.f32 %v7074, %v7087
        %v7089 = vpop.f32.mrf.mxu0
        %v7090 = vadd.f32 %v7076, %v7089
        %7091 = vdwg.mxu0
        %7092 = vmatpush.bf16.msra.mxu0 %v6864
        %7093 = vmatpush.bf16.msra.mxu0 %v6862
        %7094 = vmatpush.bf16.msra.mxu0 %v6860
        %7095 = vmatpush.bf16.msra.mxu0 %v6858
        %7096 = vmatpush.bf16.msra.mxu0 %v6856
        %7097 = vmatpush.bf16.msra.mxu0 %v6854
        %7098 = vmatpush.bf16.msra.mxu0 %v6852
        %7099 = vmatpush.bf16.msra.mxu0 %v6850
        %7100 = vmatmul.bf16.gmra.mxu0 %v6353
        %v7101 = vpop.f32.mrf.mxu0
        %v7102 = vadd.f32 %v7088, %v7101
        %v7103 = vpop.f32.mrf.mxu0
        %v7104 = vadd.f32 %v7090, %v7103
        %7105 = vdwg.mxu0
        %7106 = vmatpush.bf16.msra.mxu0 %v6753
        %7107 = vmatpush.bf16.msra.mxu0 %v6751
        %7108 = vmatpush.bf16.msra.mxu0 %v6749
        %7109 = vmatpush.bf16.msra.mxu0 %v6747
        %7110 = vmatpush.bf16.msra.mxu0 %v6745
        %7111 = vmatpush.bf16.msra.mxu0 %v6743
        %7112 = vmatpush.bf16.msra.mxu0 %v6741
        %7113 = vmatpush.bf16.msra.mxu0 %v6739
        %7114 = vmatmul.bf16.gmra.mxu0 %v6346
        %v7115 = vpop.f32.mrf.mxu0
        %v7116 = vadd.f32 0.0, %v7115
        %v7117 = vpop.f32.mrf.mxu0
        %v7118 = vadd.f32 0.0, %v7117
        %7119 = vdwg.mxu0
        %7120 = vmatpush.bf16.msra.mxu0 %v6769
        %7121 = vmatpush.bf16.msra.mxu0 %v6767
        %7122 = vmatpush.bf16.msra.mxu0 %v6765
        %7123 = vmatpush.bf16.msra.mxu0 %v6763
        %7124 = vmatpush.bf16.msra.mxu0 %v6761
        %7125 = vmatpush.bf16.msra.mxu0 %v6759
        %7126 = vmatpush.bf16.msra.mxu0 %v6757
        %7127 = vmatpush.bf16.msra.mxu0 %v6755
        %7128 = vmatmul.bf16.gmra.mxu0 %v6347
        %v7129 = vpop.f32.mrf.mxu0
        %v7130 = vadd.f32 %v7116, %v7129
        %v7131 = vpop.f32.mrf.mxu0
        %v7132 = vadd.f32 %v7118, %v7131
        %7133 = vdwg.mxu0
        %7134 = vmatpush.bf16.msra.mxu0 %v6785
        %7135 = vmatpush.bf16.msra.mxu0 %v6783
        %7136 = vmatpush.bf16.msra.mxu0 %v6781
        %7137 = vmatpush.bf16.msra.mxu0 %v6779
        %7138 = vmatpush.bf16.msra.mxu0 %v6777
        %7139 = vmatpush.bf16.msra.mxu0 %v6775
        %7140 = vmatpush.bf16.msra.mxu0 %v6773
        %7141 = vmatpush.bf16.msra.mxu0 %v6771
        %7142 = vmatmul.bf16.gmra.mxu0 %v6348
        %v7143 = vpop.f32.mrf.mxu0
        %v7144 = vadd.f32 %v7130, %v7143
        %v7145 = vpop.f32.mrf.mxu0
        %v7146 = vadd.f32 %v7132, %v7145
        %7147 = vdwg.mxu0
        %7148 = vmatpush.bf16.msra.mxu0 %v6801
        %7149 = vmatpush.bf16.msra.mxu0 %v6799
        %7150 = vmatpush.bf16.msra.mxu0 %v6797
        %7151 = vmatpush.bf16.msra.mxu0 %v6795
        %7152 = vmatpush.bf16.msra.mxu0 %v6793
        %7153 = vmatpush.bf16.msra.mxu0 %v6791
        %7154 = vmatpush.bf16.msra.mxu0 %v6789
        %7155 = vmatpush.bf16.msra.mxu0 %v6787
        %7156 = vmatmul.bf16.gmra.mxu0 %v6349
        %v7157 = vpop.f32.mrf.mxu0
        %v7158 = vadd.f32 %v7144, %v7157
        %v7159 = vpop.f32.mrf.mxu0
        %v7160 = vadd.f32 %v7146, %v7159
        %7161 = vdwg.mxu0
        %7162 = vmatpush.bf16.msra.mxu0 %v6817
        %7163 = vmatpush.bf16.msra.mxu0 %v6815
        %7164 = vmatpush.bf16.msra.mxu0 %v6813
        %7165 = vmatpush.bf16.msra.mxu0 %v6811
        %7166 = vmatpush.bf16.msra.mxu0 %v6809
        %7167 = vmatpush.bf16.msra.mxu0 %v6807
        %7168 = vmatpush.bf16.msra.mxu0 %v6805
        %7169 = vmatpush.bf16.msra.mxu0 %v6803
        %7170 = vmatmul.bf16.gmra.mxu0 %v6350
        %v7171 = vpop.f32.mrf.mxu0
        %v7172 = vadd.f32 %v7158, %v7171
        %v7173 = vpop.f32.mrf.mxu0
        %v7174 = vadd.f32 %v7160, %v7173
        %7175 = vdwg.mxu0
        %7176 = vmatpush.bf16.msra.mxu0 %v6833
        %7177 = vmatpush.bf16.msra.mxu0 %v6831
        %7178 = vmatpush.bf16.msra.mxu0 %v6829
        %7179 = vmatpush.bf16.msra.mxu0 %v6827
        %7180 = vmatpush.bf16.msra.mxu0 %v6825
        %7181 = vmatpush.bf16.msra.mxu0 %v6823
        %7182 = vmatpush.bf16.msra.mxu0 %v6821
        %7183 = vmatpush.bf16.msra.mxu0 %v6819
        %7184 = vmatmul.bf16.gmra.mxu0 %v6351
        %v7185 = vpop.f32.mrf.mxu0
        %v7186 = vadd.f32 %v7172, %v7185
        %v7187 = vpop.f32.mrf.mxu0
        %v7188 = vadd.f32 %v7174, %v7187
        %7189 = vdwg.mxu0
        %7190 = vmatpush.bf16.msra.mxu0 %v6849
        %7191 = vmatpush.bf16.msra.mxu0 %v6847
        %7192 = vmatpush.bf16.msra.mxu0 %v6845
        %7193 = vmatpush.bf16.msra.mxu0 %v6843
        %7194 = vmatpush.bf16.msra.mxu0 %v6841
        %7195 = vmatpush.bf16.msra.mxu0 %v6839
        %7196 = vmatpush.bf16.msra.mxu0 %v6837
        %7197 = vmatpush.bf16.msra.mxu0 %v6835
        %7198 = vmatmul.bf16.gmra.mxu0 %v6352
        %v7199 = vpop.f32.mrf.mxu0
        %v7200 = vadd.f32 %v7186, %v7199
        %v7201 = vpop.f32.mrf.mxu0
        %v7202 = vadd.f32 %v7188, %v7201
        %7203 = vdwg.mxu0
        %7204 = vmatpush.bf16.msra.mxu0 %v6865
        %7205 = vmatpush.bf16.msra.mxu0 %v6863
        %7206 = vmatpush.bf16.msra.mxu0 %v6861
        %7207 = vmatpush.bf16.msra.mxu0 %v6859
        %7208 = vmatpush.bf16.msra.mxu0 %v6857
        %7209 = vmatpush.bf16.msra.mxu0 %v6855
        %7210 = vmatpush.bf16.msra.mxu0 %v6853
        %7211 = vmatpush.bf16.msra.mxu0 %v6851
        %7212 = vmatmul.bf16.gmra.mxu0 %v6353
        %v7213 = vpop.f32.mrf.mxu0
        %v7214 = vadd.f32 %v7200, %v7213
        %v7215 = vpop.f32.mrf.mxu0
        %v7216 = vadd.f32 %v7202, %v7215
        %7217 = vdwg.mxu0
        %v7218 = vadd.f32 %v6214, %v7102
        %v7219 = vadd.f32 %v6215, %v7214
        %v7220 = vadd.f32 %v6216, %v7104
        %v7221 = vadd.f32 %v6217, %v7216
        %v7222 = vld [vmem:[#allocation7 + $0x1800] sm:$0xff]
        %v7223 = vld [vmem:[#allocation7 + $0x1808] sm:$0xff]
        %v7224 = vld [vmem:[#allocation7 + $0x1810] sm:$0xff]
        %v7225 = vld [vmem:[#allocation7 + $0x1818] sm:$0xff]
        %v7226 = vld [vmem:[#allocation7 + $0x1820] sm:$0xff]
        %v7227 = vld [vmem:[#allocation7 + $0x1828] sm:$0xff]
        %v7228 = vld [vmem:[#allocation7 + $0x1830] sm:$0xff]
        %v7229 = vld [vmem:[#allocation7 + $0x1838] sm:$0xff]
        %v7230 = vld [vmem:[#allocation7 + $0x1840] sm:$0xff]
        %v7231 = vld [vmem:[#allocation7 + $0x1848] sm:$0xff]
        %v7232 = vld [vmem:[#allocation7 + $0x1850] sm:$0xff]
        %v7233 = vld [vmem:[#allocation7 + $0x1858] sm:$0xff]
        %v7234 = vld [vmem:[#allocation7 + $0x1860] sm:$0xff]
        %v7235 = vld [vmem:[#allocation7 + $0x1868] sm:$0xff]
        %v7236 = vld [vmem:[#allocation7 + $0x1870] sm:$0xff]
        %v7237 = vld [vmem:[#allocation7 + $0x1878] sm:$0xff]
        %v7238 = vld [vmem:[#allocation7 + $0x1880] sm:$0xff]
        %v7239 = vld [vmem:[#allocation7 + $0x1888] sm:$0xff]
        %v7240 = vld [vmem:[#allocation7 + $0x1890] sm:$0xff]
        %v7241 = vld [vmem:[#allocation7 + $0x1898] sm:$0xff]
        %v7242 = vld [vmem:[#allocation7 + $0x18a0] sm:$0xff]
        %v7243 = vld [vmem:[#allocation7 + $0x18a8] sm:$0xff]
        %v7244 = vld [vmem:[#allocation7 + $0x18b0] sm:$0xff]
        %v7245 = vld [vmem:[#allocation7 + $0x18b8] sm:$0xff]
        %v7246 = vld [vmem:[#allocation7 + $0x18c0] sm:$0xff]
        %v7247 = vld [vmem:[#allocation7 + $0x18c8] sm:$0xff]
        %v7248 = vld [vmem:[#allocation7 + $0x18d0] sm:$0xff]
        %v7249 = vld [vmem:[#allocation7 + $0x18d8] sm:$0xff]
        %v7250 = vld [vmem:[#allocation7 + $0x18e0] sm:$0xff]
        %v7251 = vld [vmem:[#allocation7 + $0x18e8] sm:$0xff]
        %v7252 = vld [vmem:[#allocation7 + $0x18f0] sm:$0xff]
        %v7253 = vld [vmem:[#allocation7 + $0x18f8] sm:$0xff]
        %v7254 = vld [vmem:[#allocation7 + $0x1900] sm:$0xff]
        %v7255 = vld [vmem:[#allocation7 + $0x1908] sm:$0xff]
        %v7256 = vld [vmem:[#allocation7 + $0x1910] sm:$0xff]
        %v7257 = vld [vmem:[#allocation7 + $0x1918] sm:$0xff]
        %v7258 = vld [vmem:[#allocation7 + $0x1920] sm:$0xff]
        %v7259 = vld [vmem:[#allocation7 + $0x1928] sm:$0xff]
        %v7260 = vld [vmem:[#allocation7 + $0x1930] sm:$0xff]
        %v7261 = vld [vmem:[#allocation7 + $0x1938] sm:$0xff]
        %v7262 = vld [vmem:[#allocation7 + $0x1940] sm:$0xff]
        %v7263 = vld [vmem:[#allocation7 + $0x1948] sm:$0xff]
        %v7264 = vld [vmem:[#allocation7 + $0x1950] sm:$0xff]
        %v7265 = vld [vmem:[#allocation7 + $0x1958] sm:$0xff]
        %v7266 = vld [vmem:[#allocation7 + $0x1960] sm:$0xff]
        %v7267 = vld [vmem:[#allocation7 + $0x1968] sm:$0xff]
        %v7268 = vld [vmem:[#allocation7 + $0x1970] sm:$0xff]
        %v7269 = vld [vmem:[#allocation7 + $0x1978] sm:$0xff]
        %v7270 = vld [vmem:[#allocation7 + $0x1980] sm:$0xff]
        %v7271 = vld [vmem:[#allocation7 + $0x1988] sm:$0xff]
        %v7272 = vld [vmem:[#allocation7 + $0x1990] sm:$0xff]
        %v7273 = vld [vmem:[#allocation7 + $0x1998] sm:$0xff]
        %v7274 = vld [vmem:[#allocation7 + $0x19a0] sm:$0xff]
        %v7275 = vld [vmem:[#allocation7 + $0x19a8] sm:$0xff]
        %v7276 = vld [vmem:[#allocation7 + $0x19b0] sm:$0xff]
        %v7277 = vld [vmem:[#allocation7 + $0x19b8] sm:$0xff]
        %v7278 = vld [vmem:[#allocation7 + $0x19c0] sm:$0xff]
        %v7279 = vld [vmem:[#allocation7 + $0x19c8] sm:$0xff]
        %v7280 = vld [vmem:[#allocation7 + $0x19d0] sm:$0xff]
        %v7281 = vld [vmem:[#allocation7 + $0x19d8] sm:$0xff]
        %v7282 = vld [vmem:[#allocation7 + $0x19e0] sm:$0xff]
        %v7283 = vld [vmem:[#allocation7 + $0x19e8] sm:$0xff]
        %v7284 = vld [vmem:[#allocation7 + $0x19f0] sm:$0xff]
        %v7285 = vld [vmem:[#allocation7 + $0x19f8] sm:$0xff]
        %v7286 = vld [vmem:[#allocation7 + $0x1a00] sm:$0xff]
        %v7287 = vld [vmem:[#allocation7 + $0x1a08] sm:$0xff]
        %v7288 = vld [vmem:[#allocation7 + $0x1a10] sm:$0xff]
        %v7289 = vld [vmem:[#allocation7 + $0x1a18] sm:$0xff]
        %v7290 = vld [vmem:[#allocation7 + $0x1a20] sm:$0xff]
        %v7291 = vld [vmem:[#allocation7 + $0x1a28] sm:$0xff]
        %v7292 = vld [vmem:[#allocation7 + $0x1a30] sm:$0xff]
        %v7293 = vld [vmem:[#allocation7 + $0x1a38] sm:$0xff]
        %v7294 = vld [vmem:[#allocation7 + $0x1a40] sm:$0xff]
        %v7295 = vld [vmem:[#allocation7 + $0x1a48] sm:$0xff]
        %v7296 = vld [vmem:[#allocation7 + $0x1a50] sm:$0xff]
        %v7297 = vld [vmem:[#allocation7 + $0x1a58] sm:$0xff]
        %v7298 = vld [vmem:[#allocation7 + $0x1a60] sm:$0xff]
        %v7299 = vld [vmem:[#allocation7 + $0x1a68] sm:$0xff]
        %v7300 = vld [vmem:[#allocation7 + $0x1a70] sm:$0xff]
        %v7301 = vld [vmem:[#allocation7 + $0x1a78] sm:$0xff]
        %v7302 = vld [vmem:[#allocation7 + $0x1a80] sm:$0xff]
        %v7303 = vld [vmem:[#allocation7 + $0x1a88] sm:$0xff]
        %v7304 = vld [vmem:[#allocation7 + $0x1a90] sm:$0xff]
        %v7305 = vld [vmem:[#allocation7 + $0x1a98] sm:$0xff]
        %v7306 = vld [vmem:[#allocation7 + $0x1aa0] sm:$0xff]
        %v7307 = vld [vmem:[#allocation7 + $0x1aa8] sm:$0xff]
        %v7308 = vld [vmem:[#allocation7 + $0x1ab0] sm:$0xff]
        %v7309 = vld [vmem:[#allocation7 + $0x1ab8] sm:$0xff]
        %v7310 = vld [vmem:[#allocation7 + $0x1ac0] sm:$0xff]
        %v7311 = vld [vmem:[#allocation7 + $0x1ac8] sm:$0xff]
        %v7312 = vld [vmem:[#allocation7 + $0x1ad0] sm:$0xff]
        %v7313 = vld [vmem:[#allocation7 + $0x1ad8] sm:$0xff]
        %v7314 = vld [vmem:[#allocation7 + $0x1ae0] sm:$0xff]
        %v7315 = vld [vmem:[#allocation7 + $0x1ae8] sm:$0xff]
        %v7316 = vld [vmem:[#allocation7 + $0x1af0] sm:$0xff]
        %v7317 = vld [vmem:[#allocation7 + $0x1af8] sm:$0xff]
        %v7318 = vld [vmem:[#allocation7 + $0x1b00] sm:$0xff]
        %v7319 = vld [vmem:[#allocation7 + $0x1b08] sm:$0xff]
        %v7320 = vld [vmem:[#allocation7 + $0x1b10] sm:$0xff]
        %v7321 = vld [vmem:[#allocation7 + $0x1b18] sm:$0xff]
        %v7322 = vld [vmem:[#allocation7 + $0x1b20] sm:$0xff]
        %v7323 = vld [vmem:[#allocation7 + $0x1b28] sm:$0xff]
        %v7324 = vld [vmem:[#allocation7 + $0x1b30] sm:$0xff]
        %v7325 = vld [vmem:[#allocation7 + $0x1b38] sm:$0xff]
        %v7326 = vld [vmem:[#allocation7 + $0x1b40] sm:$0xff]
        %v7327 = vld [vmem:[#allocation7 + $0x1b48] sm:$0xff]
        %v7328 = vld [vmem:[#allocation7 + $0x1b50] sm:$0xff]
        %v7329 = vld [vmem:[#allocation7 + $0x1b58] sm:$0xff]
        %v7330 = vld [vmem:[#allocation7 + $0x1b60] sm:$0xff]
        %v7331 = vld [vmem:[#allocation7 + $0x1b68] sm:$0xff]
        %v7332 = vld [vmem:[#allocation7 + $0x1b70] sm:$0xff]
        %v7333 = vld [vmem:[#allocation7 + $0x1b78] sm:$0xff]
        %v7334 = vld [vmem:[#allocation7 + $0x1b80] sm:$0xff]
        %v7335 = vld [vmem:[#allocation7 + $0x1b88] sm:$0xff]
        %v7336 = vld [vmem:[#allocation7 + $0x1b90] sm:$0xff]
        %v7337 = vld [vmem:[#allocation7 + $0x1b98] sm:$0xff]
        %v7338 = vld [vmem:[#allocation7 + $0x1ba0] sm:$0xff]
        %v7339 = vld [vmem:[#allocation7 + $0x1ba8] sm:$0xff]
        %v7340 = vld [vmem:[#allocation7 + $0x1bb0] sm:$0xff]
        %v7341 = vld [vmem:[#allocation7 + $0x1bb8] sm:$0xff]
        %v7342 = vld [vmem:[#allocation7 + $0x1bc0] sm:$0xff]
        %v7343 = vld [vmem:[#allocation7 + $0x1bc8] sm:$0xff]
        %v7344 = vld [vmem:[#allocation7 + $0x1bd0] sm:$0xff]
        %v7345 = vld [vmem:[#allocation7 + $0x1bd8] sm:$0xff]
        %v7346 = vld [vmem:[#allocation7 + $0x1be0] sm:$0xff]
        %v7347 = vld [vmem:[#allocation7 + $0x1be8] sm:$0xff]
        %v7348 = vld [vmem:[#allocation7 + $0x1bf0] sm:$0xff]
        %v7349 = vld [vmem:[#allocation7 + $0x1bf8] sm:$0xff]
        %v7350 = vpack.c.bf16 %v1334, %v1326
        %v7351 = vpack.c.bf16 %v1335, %v1327
        %v7352 = vpack.c.bf16 %v1336, %v1328
        %v7353 = vpack.c.bf16 %v1337, %v1329
        %v7354 = vpack.c.bf16 %v1338, %v1330
        %v7355 = vpack.c.bf16 %v1339, %v1331
        %v7356 = vpack.c.bf16 %v1340, %v1332
        %v7357 = vpack.c.bf16 %v1341, %v1333
        %v7486 = vunpack.c.l.b16 %v7222
        %v7487 = vunpack.c.h.b16 %v7222
        %v7488 = vunpack.c.l.b16 %v7223
        %v7489 = vunpack.c.h.b16 %v7223
        %v7490 = vunpack.c.l.b16 %v7224
        %v7491 = vunpack.c.h.b16 %v7224
        %v7492 = vunpack.c.l.b16 %v7225
        %v7493 = vunpack.c.h.b16 %v7225
        %v7494 = vunpack.c.l.b16 %v7226
        %v7495 = vunpack.c.h.b16 %v7226
        %v7496 = vunpack.c.l.b16 %v7227
        %v7497 = vunpack.c.h.b16 %v7227
        %v7498 = vunpack.c.l.b16 %v7228
        %v7499 = vunpack.c.h.b16 %v7228
        %v7500 = vunpack.c.l.b16 %v7229
        %v7501 = vunpack.c.h.b16 %v7229
        %v7502 = vunpack.c.l.b16 %v7230
        %v7503 = vunpack.c.h.b16 %v7230
        %v7504 = vunpack.c.l.b16 %v7231
        %v7505 = vunpack.c.h.b16 %v7231
        %v7506 = vunpack.c.l.b16 %v7232
        %v7507 = vunpack.c.h.b16 %v7232
        %v7508 = vunpack.c.l.b16 %v7233
        %v7509 = vunpack.c.h.b16 %v7233
        %v7510 = vunpack.c.l.b16 %v7234
        %v7511 = vunpack.c.h.b16 %v7234
        %v7512 = vunpack.c.l.b16 %v7235
        %v7513 = vunpack.c.h.b16 %v7235
        %v7514 = vunpack.c.l.b16 %v7236
        %v7515 = vunpack.c.h.b16 %v7236
        %v7516 = vunpack.c.l.b16 %v7237
        %v7517 = vunpack.c.h.b16 %v7237
        %v7518 = vunpack.c.l.b16 %v7238
        %v7519 = vunpack.c.h.b16 %v7238
        %v7520 = vunpack.c.l.b16 %v7239
        %v7521 = vunpack.c.h.b16 %v7239
        %v7522 = vunpack.c.l.b16 %v7240
        %v7523 = vunpack.c.h.b16 %v7240
        %v7524 = vunpack.c.l.b16 %v7241
        %v7525 = vunpack.c.h.b16 %v7241
        %v7526 = vunpack.c.l.b16 %v7242
        %v7527 = vunpack.c.h.b16 %v7242
        %v7528 = vunpack.c.l.b16 %v7243
        %v7529 = vunpack.c.h.b16 %v7243
        %v7530 = vunpack.c.l.b16 %v7244
        %v7531 = vunpack.c.h.b16 %v7244
        %v7532 = vunpack.c.l.b16 %v7245
        %v7533 = vunpack.c.h.b16 %v7245
        %v7534 = vunpack.c.l.b16 %v7246
        %v7535 = vunpack.c.h.b16 %v7246
        %v7536 = vunpack.c.l.b16 %v7247
        %v7537 = vunpack.c.h.b16 %v7247
        %v7538 = vunpack.c.l.b16 %v7248
        %v7539 = vunpack.c.h.b16 %v7248
        %v7540 = vunpack.c.l.b16 %v7249
        %v7541 = vunpack.c.h.b16 %v7249
        %v7542 = vunpack.c.l.b16 %v7250
        %v7543 = vunpack.c.h.b16 %v7250
        %v7544 = vunpack.c.l.b16 %v7251
        %v7545 = vunpack.c.h.b16 %v7251
        %v7546 = vunpack.c.l.b16 %v7252
        %v7547 = vunpack.c.h.b16 %v7252
        %v7548 = vunpack.c.l.b16 %v7253
        %v7549 = vunpack.c.h.b16 %v7253
        %v7550 = vunpack.c.l.b16 %v7254
        %v7551 = vunpack.c.h.b16 %v7254
        %v7552 = vunpack.c.l.b16 %v7255
        %v7553 = vunpack.c.h.b16 %v7255
        %v7554 = vunpack.c.l.b16 %v7256
        %v7555 = vunpack.c.h.b16 %v7256
        %v7556 = vunpack.c.l.b16 %v7257
        %v7557 = vunpack.c.h.b16 %v7257
        %v7558 = vunpack.c.l.b16 %v7258
        %v7559 = vunpack.c.h.b16 %v7258
        %v7560 = vunpack.c.l.b16 %v7259
        %v7561 = vunpack.c.h.b16 %v7259
        %v7562 = vunpack.c.l.b16 %v7260
        %v7563 = vunpack.c.h.b16 %v7260
        %v7564 = vunpack.c.l.b16 %v7261
        %v7565 = vunpack.c.h.b16 %v7261
        %v7566 = vunpack.c.l.b16 %v7262
        %v7567 = vunpack.c.h.b16 %v7262
        %v7568 = vunpack.c.l.b16 %v7263
        %v7569 = vunpack.c.h.b16 %v7263
        %v7570 = vunpack.c.l.b16 %v7264
        %v7571 = vunpack.c.h.b16 %v7264
        %v7572 = vunpack.c.l.b16 %v7265
        %v7573 = vunpack.c.h.b16 %v7265
        %v7574 = vunpack.c.l.b16 %v7266
        %v7575 = vunpack.c.h.b16 %v7266
        %v7576 = vunpack.c.l.b16 %v7267
        %v7577 = vunpack.c.h.b16 %v7267
        %v7578 = vunpack.c.l.b16 %v7268
        %v7579 = vunpack.c.h.b16 %v7268
        %v7580 = vunpack.c.l.b16 %v7269
        %v7581 = vunpack.c.h.b16 %v7269
        %v7582 = vunpack.c.l.b16 %v7270
        %v7583 = vunpack.c.h.b16 %v7270
        %v7584 = vunpack.c.l.b16 %v7271
        %v7585 = vunpack.c.h.b16 %v7271
        %v7586 = vunpack.c.l.b16 %v7272
        %v7587 = vunpack.c.h.b16 %v7272
        %v7588 = vunpack.c.l.b16 %v7273
        %v7589 = vunpack.c.h.b16 %v7273
        %v7590 = vunpack.c.l.b16 %v7274
        %v7591 = vunpack.c.h.b16 %v7274
        %v7592 = vunpack.c.l.b16 %v7275
        %v7593 = vunpack.c.h.b16 %v7275
        %v7594 = vunpack.c.l.b16 %v7276
        %v7595 = vunpack.c.h.b16 %v7276
        %v7596 = vunpack.c.l.b16 %v7277
        %v7597 = vunpack.c.h.b16 %v7277
        %v7598 = vunpack.c.l.b16 %v7278
        %v7599 = vunpack.c.h.b16 %v7278
        %v7600 = vunpack.c.l.b16 %v7279
        %v7601 = vunpack.c.h.b16 %v7279
        %v7602 = vunpack.c.l.b16 %v7280
        %v7603 = vunpack.c.h.b16 %v7280
        %v7604 = vunpack.c.l.b16 %v7281
        %v7605 = vunpack.c.h.b16 %v7281
        %v7606 = vunpack.c.l.b16 %v7282
        %v7607 = vunpack.c.h.b16 %v7282
        %v7608 = vunpack.c.l.b16 %v7283
        %v7609 = vunpack.c.h.b16 %v7283
        %v7610 = vunpack.c.l.b16 %v7284
        %v7611 = vunpack.c.h.b16 %v7284
        %v7612 = vunpack.c.l.b16 %v7285
        %v7613 = vunpack.c.h.b16 %v7285
        %v7614 = vunpack.c.l.b16 %v7286
        %v7615 = vunpack.c.h.b16 %v7286
        %v7616 = vunpack.c.l.b16 %v7287
        %v7617 = vunpack.c.h.b16 %v7287
        %v7618 = vunpack.c.l.b16 %v7288
        %v7619 = vunpack.c.h.b16 %v7288
        %v7620 = vunpack.c.l.b16 %v7289
        %v7621 = vunpack.c.h.b16 %v7289
        %v7622 = vunpack.c.l.b16 %v7290
        %v7623 = vunpack.c.h.b16 %v7290
        %v7624 = vunpack.c.l.b16 %v7291
        %v7625 = vunpack.c.h.b16 %v7291
        %v7626 = vunpack.c.l.b16 %v7292
        %v7627 = vunpack.c.h.b16 %v7292
        %v7628 = vunpack.c.l.b16 %v7293
        %v7629 = vunpack.c.h.b16 %v7293
        %v7630 = vunpack.c.l.b16 %v7294
        %v7631 = vunpack.c.h.b16 %v7294
        %v7632 = vunpack.c.l.b16 %v7295
        %v7633 = vunpack.c.h.b16 %v7295
        %v7634 = vunpack.c.l.b16 %v7296
        %v7635 = vunpack.c.h.b16 %v7296
        %v7636 = vunpack.c.l.b16 %v7297
        %v7637 = vunpack.c.h.b16 %v7297
        %v7638 = vunpack.c.l.b16 %v7298
        %v7639 = vunpack.c.h.b16 %v7298
        %v7640 = vunpack.c.l.b16 %v7299
        %v7641 = vunpack.c.h.b16 %v7299
        %v7642 = vunpack.c.l.b16 %v7300
        %v7643 = vunpack.c.h.b16 %v7300
        %v7644 = vunpack.c.l.b16 %v7301
        %v7645 = vunpack.c.h.b16 %v7301
        %v7646 = vunpack.c.l.b16 %v7302
        %v7647 = vunpack.c.h.b16 %v7302
        %v7648 = vunpack.c.l.b16 %v7303
        %v7649 = vunpack.c.h.b16 %v7303
        %v7650 = vunpack.c.l.b16 %v7304
        %v7651 = vunpack.c.h.b16 %v7304
        %v7652 = vunpack.c.l.b16 %v7305
        %v7653 = vunpack.c.h.b16 %v7305
        %v7654 = vunpack.c.l.b16 %v7306
        %v7655 = vunpack.c.h.b16 %v7306
        %v7656 = vunpack.c.l.b16 %v7307
        %v7657 = vunpack.c.h.b16 %v7307
        %v7658 = vunpack.c.l.b16 %v7308
        %v7659 = vunpack.c.h.b16 %v7308
        %v7660 = vunpack.c.l.b16 %v7309
        %v7661 = vunpack.c.h.b16 %v7309
        %v7662 = vunpack.c.l.b16 %v7310
        %v7663 = vunpack.c.h.b16 %v7310
        %v7664 = vunpack.c.l.b16 %v7311
        %v7665 = vunpack.c.h.b16 %v7311
        %v7666 = vunpack.c.l.b16 %v7312
        %v7667 = vunpack.c.h.b16 %v7312
        %v7668 = vunpack.c.l.b16 %v7313
        %v7669 = vunpack.c.h.b16 %v7313
        %v7670 = vunpack.c.l.b16 %v7314
        %v7671 = vunpack.c.h.b16 %v7314
        %v7672 = vunpack.c.l.b16 %v7315
        %v7673 = vunpack.c.h.b16 %v7315
        %v7674 = vunpack.c.l.b16 %v7316
        %v7675 = vunpack.c.h.b16 %v7316
        %v7676 = vunpack.c.l.b16 %v7317
        %v7677 = vunpack.c.h.b16 %v7317
        %v7678 = vunpack.c.l.b16 %v7318
        %v7679 = vunpack.c.h.b16 %v7318
        %v7680 = vunpack.c.l.b16 %v7319
        %v7681 = vunpack.c.h.b16 %v7319
        %v7682 = vunpack.c.l.b16 %v7320
        %v7683 = vunpack.c.h.b16 %v7320
        %v7684 = vunpack.c.l.b16 %v7321
        %v7685 = vunpack.c.h.b16 %v7321
        %v7686 = vunpack.c.l.b16 %v7322
        %v7687 = vunpack.c.h.b16 %v7322
        %v7688 = vunpack.c.l.b16 %v7323
        %v7689 = vunpack.c.h.b16 %v7323
        %v7690 = vunpack.c.l.b16 %v7324
        %v7691 = vunpack.c.h.b16 %v7324
        %v7692 = vunpack.c.l.b16 %v7325
        %v7693 = vunpack.c.h.b16 %v7325
        %v7694 = vunpack.c.l.b16 %v7326
        %v7695 = vunpack.c.h.b16 %v7326
        %v7696 = vunpack.c.l.b16 %v7327
        %v7697 = vunpack.c.h.b16 %v7327
        %v7698 = vunpack.c.l.b16 %v7328
        %v7699 = vunpack.c.h.b16 %v7328
        %v7700 = vunpack.c.l.b16 %v7329
        %v7701 = vunpack.c.h.b16 %v7329
        %v7702 = vunpack.c.l.b16 %v7330
        %v7703 = vunpack.c.h.b16 %v7330
        %v7704 = vunpack.c.l.b16 %v7331
        %v7705 = vunpack.c.h.b16 %v7331
        %v7706 = vunpack.c.l.b16 %v7332
        %v7707 = vunpack.c.h.b16 %v7332
        %v7708 = vunpack.c.l.b16 %v7333
        %v7709 = vunpack.c.h.b16 %v7333
        %v7710 = vunpack.c.l.b16 %v7334
        %v7711 = vunpack.c.h.b16 %v7334
        %v7712 = vunpack.c.l.b16 %v7335
        %v7713 = vunpack.c.h.b16 %v7335
        %v7714 = vunpack.c.l.b16 %v7336
        %v7715 = vunpack.c.h.b16 %v7336
        %v7716 = vunpack.c.l.b16 %v7337
        %v7717 = vunpack.c.h.b16 %v7337
        %v7718 = vunpack.c.l.b16 %v7338
        %v7719 = vunpack.c.h.b16 %v7338
        %v7720 = vunpack.c.l.b16 %v7339
        %v7721 = vunpack.c.h.b16 %v7339
        %v7722 = vunpack.c.l.b16 %v7340
        %v7723 = vunpack.c.h.b16 %v7340
        %v7724 = vunpack.c.l.b16 %v7341
        %v7725 = vunpack.c.h.b16 %v7341
        %v7726 = vunpack.c.l.b16 %v7342
        %v7727 = vunpack.c.h.b16 %v7342
        %v7728 = vunpack.c.l.b16 %v7343
        %v7729 = vunpack.c.h.b16 %v7343
        %v7730 = vunpack.c.l.b16 %v7344
        %v7731 = vunpack.c.h.b16 %v7344
        %v7732 = vunpack.c.l.b16 %v7345
        %v7733 = vunpack.c.h.b16 %v7345
        %v7734 = vunpack.c.l.b16 %v7346
        %v7735 = vunpack.c.h.b16 %v7346
        %v7736 = vunpack.c.l.b16 %v7347
        %v7737 = vunpack.c.h.b16 %v7347
        %v7738 = vunpack.c.l.b16 %v7348
        %v7739 = vunpack.c.h.b16 %v7348
        %v7740 = vunpack.c.l.b16 %v7349
        %v7741 = vunpack.c.h.b16 %v7349
        %v7742 = vpack.c.b16 %v7488, %v7486
        %v7743 = vpack.c.b16 %v7489, %v7487
        %v7744 = vpack.c.b16 %v7492, %v7490
        %v7745 = vpack.c.b16 %v7493, %v7491
        %v7746 = vpack.c.b16 %v7496, %v7494
        %v7747 = vpack.c.b16 %v7497, %v7495
        %v7748 = vpack.c.b16 %v7500, %v7498
        %v7749 = vpack.c.b16 %v7501, %v7499
        %v7750 = vpack.c.b16 %v7504, %v7502
        %v7751 = vpack.c.b16 %v7505, %v7503
        %v7752 = vpack.c.b16 %v7508, %v7506
        %v7753 = vpack.c.b16 %v7509, %v7507
        %v7754 = vpack.c.b16 %v7512, %v7510
        %v7755 = vpack.c.b16 %v7513, %v7511
        %v7756 = vpack.c.b16 %v7516, %v7514
        %v7757 = vpack.c.b16 %v7517, %v7515
        %v7758 = vpack.c.b16 %v7520, %v7518
        %v7759 = vpack.c.b16 %v7521, %v7519
        %v7760 = vpack.c.b16 %v7524, %v7522
        %v7761 = vpack.c.b16 %v7525, %v7523
        %v7762 = vpack.c.b16 %v7528, %v7526
        %v7763 = vpack.c.b16 %v7529, %v7527
        %v7764 = vpack.c.b16 %v7532, %v7530
        %v7765 = vpack.c.b16 %v7533, %v7531
        %v7766 = vpack.c.b16 %v7536, %v7534
        %v7767 = vpack.c.b16 %v7537, %v7535
        %v7768 = vpack.c.b16 %v7540, %v7538
        %v7769 = vpack.c.b16 %v7541, %v7539
        %v7770 = vpack.c.b16 %v7544, %v7542
        %v7771 = vpack.c.b16 %v7545, %v7543
        %v7772 = vpack.c.b16 %v7548, %v7546
        %v7773 = vpack.c.b16 %v7549, %v7547
        %v7774 = vpack.c.b16 %v7552, %v7550
        %v7775 = vpack.c.b16 %v7553, %v7551
        %v7776 = vpack.c.b16 %v7556, %v7554
        %v7777 = vpack.c.b16 %v7557, %v7555
        %v7778 = vpack.c.b16 %v7560, %v7558
        %v7779 = vpack.c.b16 %v7561, %v7559
        %v7780 = vpack.c.b16 %v7564, %v7562
        %v7781 = vpack.c.b16 %v7565, %v7563
        %v7782 = vpack.c.b16 %v7568, %v7566
        %v7783 = vpack.c.b16 %v7569, %v7567
        %v7784 = vpack.c.b16 %v7572, %v7570
        %v7785 = vpack.c.b16 %v7573, %v7571
        %v7786 = vpack.c.b16 %v7576, %v7574
        %v7787 = vpack.c.b16 %v7577, %v7575
        %v7788 = vpack.c.b16 %v7580, %v7578
        %v7789 = vpack.c.b16 %v7581, %v7579
        %v7790 = vpack.c.b16 %v7584, %v7582
        %v7791 = vpack.c.b16 %v7585, %v7583
        %v7792 = vpack.c.b16 %v7588, %v7586
        %v7793 = vpack.c.b16 %v7589, %v7587
        %v7794 = vpack.c.b16 %v7592, %v7590
        %v7795 = vpack.c.b16 %v7593, %v7591
        %v7796 = vpack.c.b16 %v7596, %v7594
        %v7797 = vpack.c.b16 %v7597, %v7595
        %v7798 = vpack.c.b16 %v7600, %v7598
        %v7799 = vpack.c.b16 %v7601, %v7599
        %v7800 = vpack.c.b16 %v7604, %v7602
        %v7801 = vpack.c.b16 %v7605, %v7603
        %v7802 = vpack.c.b16 %v7608, %v7606
        %v7803 = vpack.c.b16 %v7609, %v7607
        %v7804 = vpack.c.b16 %v7612, %v7610
        %v7805 = vpack.c.b16 %v7613, %v7611
        %v7806 = vpack.c.b16 %v7616, %v7614
        %v7807 = vpack.c.b16 %v7617, %v7615
        %v7808 = vpack.c.b16 %v7620, %v7618
        %v7809 = vpack.c.b16 %v7621, %v7619
        %v7810 = vpack.c.b16 %v7624, %v7622
        %v7811 = vpack.c.b16 %v7625, %v7623
        %v7812 = vpack.c.b16 %v7628, %v7626
        %v7813 = vpack.c.b16 %v7629, %v7627
        %v7814 = vpack.c.b16 %v7632, %v7630
        %v7815 = vpack.c.b16 %v7633, %v7631
        %v7816 = vpack.c.b16 %v7636, %v7634
        %v7817 = vpack.c.b16 %v7637, %v7635
        %v7818 = vpack.c.b16 %v7640, %v7638
        %v7819 = vpack.c.b16 %v7641, %v7639
        %v7820 = vpack.c.b16 %v7644, %v7642
        %v7821 = vpack.c.b16 %v7645, %v7643
        %v7822 = vpack.c.b16 %v7648, %v7646
        %v7823 = vpack.c.b16 %v7649, %v7647
        %v7824 = vpack.c.b16 %v7652, %v7650
        %v7825 = vpack.c.b16 %v7653, %v7651
        %v7826 = vpack.c.b16 %v7656, %v7654
        %v7827 = vpack.c.b16 %v7657, %v7655
        %v7828 = vpack.c.b16 %v7660, %v7658
        %v7829 = vpack.c.b16 %v7661, %v7659
        %v7830 = vpack.c.b16 %v7664, %v7662
        %v7831 = vpack.c.b16 %v7665, %v7663
        %v7832 = vpack.c.b16 %v7668, %v7666
        %v7833 = vpack.c.b16 %v7669, %v7667
        %v7834 = vpack.c.b16 %v7672, %v7670
        %v7835 = vpack.c.b16 %v7673, %v7671
        %v7836 = vpack.c.b16 %v7676, %v7674
        %v7837 = vpack.c.b16 %v7677, %v7675
        %v7838 = vpack.c.b16 %v7680, %v7678
        %v7839 = vpack.c.b16 %v7681, %v7679
        %v7840 = vpack.c.b16 %v7684, %v7682
        %v7841 = vpack.c.b16 %v7685, %v7683
        %v7842 = vpack.c.b16 %v7688, %v7686
        %v7843 = vpack.c.b16 %v7689, %v7687
        %v7844 = vpack.c.b16 %v7692, %v7690
        %v7845 = vpack.c.b16 %v7693, %v7691
        %v7846 = vpack.c.b16 %v7696, %v7694
        %v7847 = vpack.c.b16 %v7697, %v7695
        %v7848 = vpack.c.b16 %v7700, %v7698
        %v7849 = vpack.c.b16 %v7701, %v7699
        %v7850 = vpack.c.b16 %v7704, %v7702
        %v7851 = vpack.c.b16 %v7705, %v7703
        %v7852 = vpack.c.b16 %v7708, %v7706
        %v7853 = vpack.c.b16 %v7709, %v7707
        %v7854 = vpack.c.b16 %v7712, %v7710
        %v7855 = vpack.c.b16 %v7713, %v7711
        %v7856 = vpack.c.b16 %v7716, %v7714
        %v7857 = vpack.c.b16 %v7717, %v7715
        %v7858 = vpack.c.b16 %v7720, %v7718
        %v7859 = vpack.c.b16 %v7721, %v7719
        %v7860 = vpack.c.b16 %v7724, %v7722
        %v7861 = vpack.c.b16 %v7725, %v7723
        %v7862 = vpack.c.b16 %v7728, %v7726
        %v7863 = vpack.c.b16 %v7729, %v7727
        %v7864 = vpack.c.b16 %v7732, %v7730
        %v7865 = vpack.c.b16 %v7733, %v7731
        %v7866 = vpack.c.b16 %v7736, %v7734
        %v7867 = vpack.c.b16 %v7737, %v7735
        %v7868 = vpack.c.b16 %v7740, %v7738
        %v7869 = vpack.c.b16 %v7741, %v7739
        %7998 = vmatpush.bf16.msra.mxu0 %v7756
        %7999 = vmatpush.bf16.msra.mxu0 %v7754
        %8000 = vmatpush.bf16.msra.mxu0 %v7752
        %8001 = vmatpush.bf16.msra.mxu0 %v7750
        %8002 = vmatpush.bf16.msra.mxu0 %v7748
        %8003 = vmatpush.bf16.msra.mxu0 %v7746
        %8004 = vmatpush.bf16.msra.mxu0 %v7744
        %8005 = vmatpush.bf16.msra.mxu0 %v7742
        %8006 = vmatmul.bf16.gmra.mxu0 %v7350
        %v8007 = vpop.f32.mrf.mxu0
        %v8008 = vadd.f32 0.0, %v8007
        %v8009 = vpop.f32.mrf.mxu0
        %v8010 = vadd.f32 0.0, %v8009
        %8011 = vdwg.mxu0
        %8012 = vmatpush.bf16.msra.mxu0 %v7772
        %8013 = vmatpush.bf16.msra.mxu0 %v7770
        %8014 = vmatpush.bf16.msra.mxu0 %v7768
        %8015 = vmatpush.bf16.msra.mxu0 %v7766
        %8016 = vmatpush.bf16.msra.mxu0 %v7764
        %8017 = vmatpush.bf16.msra.mxu0 %v7762
        %8018 = vmatpush.bf16.msra.mxu0 %v7760
        %8019 = vmatpush.bf16.msra.mxu0 %v7758
        %8020 = vmatmul.bf16.gmra.mxu0 %v7351
        %v8021 = vpop.f32.mrf.mxu0
        %v8022 = vadd.f32 %v8008, %v8021
        %v8023 = vpop.f32.mrf.mxu0
        %v8024 = vadd.f32 %v8010, %v8023
        %8025 = vdwg.mxu0
        %8026 = vmatpush.bf16.msra.mxu0 %v7788
        %8027 = vmatpush.bf16.msra.mxu0 %v7786
        %8028 = vmatpush.bf16.msra.mxu0 %v7784
        %8029 = vmatpush.bf16.msra.mxu0 %v7782
        %8030 = vmatpush.bf16.msra.mxu0 %v7780
        %8031 = vmatpush.bf16.msra.mxu0 %v7778
        %8032 = vmatpush.bf16.msra.mxu0 %v7776
        %8033 = vmatpush.bf16.msra.mxu0 %v7774
        %8034 = vmatmul.bf16.gmra.mxu0 %v7352
        %v8035 = vpop.f32.mrf.mxu0
        %v8036 = vadd.f32 %v8022, %v8035
        %v8037 = vpop.f32.mrf.mxu0
        %v8038 = vadd.f32 %v8024, %v8037
        %8039 = vdwg.mxu0
        %8040 = vmatpush.bf16.msra.mxu0 %v7804
        %8041 = vmatpush.bf16.msra.mxu0 %v7802
        %8042 = vmatpush.bf16.msra.mxu0 %v7800
        %8043 = vmatpush.bf16.msra.mxu0 %v7798
        %8044 = vmatpush.bf16.msra.mxu0 %v7796
        %8045 = vmatpush.bf16.msra.mxu0 %v7794
        %8046 = vmatpush.bf16.msra.mxu0 %v7792
        %8047 = vmatpush.bf16.msra.mxu0 %v7790
        %8048 = vmatmul.bf16.gmra.mxu0 %v7353
        %v8049 = vpop.f32.mrf.mxu0
        %v8050 = vadd.f32 %v8036, %v8049
        %v8051 = vpop.f32.mrf.mxu0
        %v8052 = vadd.f32 %v8038, %v8051
        %8053 = vdwg.mxu0
        %8054 = vmatpush.bf16.msra.mxu0 %v7820
        %8055 = vmatpush.bf16.msra.mxu0 %v7818
        %8056 = vmatpush.bf16.msra.mxu0 %v7816
        %8057 = vmatpush.bf16.msra.mxu0 %v7814
        %8058 = vmatpush.bf16.msra.mxu0 %v7812
        %8059 = vmatpush.bf16.msra.mxu0 %v7810
        %8060 = vmatpush.bf16.msra.mxu0 %v7808
        %8061 = vmatpush.bf16.msra.mxu0 %v7806
        %8062 = vmatmul.bf16.gmra.mxu0 %v7354
        %v8063 = vpop.f32.mrf.mxu0
        %v8064 = vadd.f32 %v8050, %v8063
        %v8065 = vpop.f32.mrf.mxu0
        %v8066 = vadd.f32 %v8052, %v8065
        %8067 = vdwg.mxu0
        %8068 = vmatpush.bf16.msra.mxu0 %v7836
        %8069 = vmatpush.bf16.msra.mxu0 %v7834
        %8070 = vmatpush.bf16.msra.mxu0 %v7832
        %8071 = vmatpush.bf16.msra.mxu0 %v7830
        %8072 = vmatpush.bf16.msra.mxu0 %v7828
        %8073 = vmatpush.bf16.msra.mxu0 %v7826
        %8074 = vmatpush.bf16.msra.mxu0 %v7824
        %8075 = vmatpush.bf16.msra.mxu0 %v7822
        %8076 = vmatmul.bf16.gmra.mxu0 %v7355
        %v8077 = vpop.f32.mrf.mxu0
        %v8078 = vadd.f32 %v8064, %v8077
        %v8079 = vpop.f32.mrf.mxu0
        %v8080 = vadd.f32 %v8066, %v8079
        %8081 = vdwg.mxu0
        %8082 = vmatpush.bf16.msra.mxu0 %v7852
        %8083 = vmatpush.bf16.msra.mxu0 %v7850
        %8084 = vmatpush.bf16.msra.mxu0 %v7848
        %8085 = vmatpush.bf16.msra.mxu0 %v7846
        %8086 = vmatpush.bf16.msra.mxu0 %v7844
        %8087 = vmatpush.bf16.msra.mxu0 %v7842
        %8088 = vmatpush.bf16.msra.mxu0 %v7840
        %8089 = vmatpush.bf16.msra.mxu0 %v7838
        %8090 = vmatmul.bf16.gmra.mxu0 %v7356
        %v8091 = vpop.f32.mrf.mxu0
        %v8092 = vadd.f32 %v8078, %v8091
        %v8093 = vpop.f32.mrf.mxu0
        %v8094 = vadd.f32 %v8080, %v8093
        %8095 = vdwg.mxu0
        %8096 = vmatpush.bf16.msra.mxu0 %v7868
        %8097 = vmatpush.bf16.msra.mxu0 %v7866
        %8098 = vmatpush.bf16.msra.mxu0 %v7864
        %8099 = vmatpush.bf16.msra.mxu0 %v7862
        %8100 = vmatpush.bf16.msra.mxu0 %v7860
        %8101 = vmatpush.bf16.msra.mxu0 %v7858
        %8102 = vmatpush.bf16.msra.mxu0 %v7856
        %8103 = vmatpush.bf16.msra.mxu0 %v7854
        %8104 = vmatmul.bf16.gmra.mxu0 %v7357
        %v8105 = vpop.f32.mrf.mxu0
        %v8106 = vadd.f32 %v8092, %v8105
        %v8107 = vpop.f32.mrf.mxu0
        %v8108 = vadd.f32 %v8094, %v8107
        %8109 = vdwg.mxu0
        %8110 = vmatpush.bf16.msra.mxu0 %v7757
        %8111 = vmatpush.bf16.msra.mxu0 %v7755
        %8112 = vmatpush.bf16.msra.mxu0 %v7753
        %8113 = vmatpush.bf16.msra.mxu0 %v7751
        %8114 = vmatpush.bf16.msra.mxu0 %v7749
        %8115 = vmatpush.bf16.msra.mxu0 %v7747
        %8116 = vmatpush.bf16.msra.mxu0 %v7745
        %8117 = vmatpush.bf16.msra.mxu0 %v7743
        %8118 = vmatmul.bf16.gmra.mxu0 %v7350
        %v8119 = vpop.f32.mrf.mxu0
        %v8120 = vadd.f32 0.0, %v8119
        %v8121 = vpop.f32.mrf.mxu0
        %v8122 = vadd.f32 0.0, %v8121
        %8123 = vdwg.mxu0
        %8124 = vmatpush.bf16.msra.mxu0 %v7773
        %8125 = vmatpush.bf16.msra.mxu0 %v7771
        %8126 = vmatpush.bf16.msra.mxu0 %v7769
        %8127 = vmatpush.bf16.msra.mxu0 %v7767
        %8128 = vmatpush.bf16.msra.mxu0 %v7765
        %8129 = vmatpush.bf16.msra.mxu0 %v7763
        %8130 = vmatpush.bf16.msra.mxu0 %v7761
        %8131 = vmatpush.bf16.msra.mxu0 %v7759
        %8132 = vmatmul.bf16.gmra.mxu0 %v7351
        %v8133 = vpop.f32.mrf.mxu0
        %v8134 = vadd.f32 %v8120, %v8133
        %v8135 = vpop.f32.mrf.mxu0
        %v8136 = vadd.f32 %v8122, %v8135
        %8137 = vdwg.mxu0
        %8138 = vmatpush.bf16.msra.mxu0 %v7789
        %8139 = vmatpush.bf16.msra.mxu0 %v7787
        %8140 = vmatpush.bf16.msra.mxu0 %v7785
        %8141 = vmatpush.bf16.msra.mxu0 %v7783
        %8142 = vmatpush.bf16.msra.mxu0 %v7781
        %8143 = vmatpush.bf16.msra.mxu0 %v7779
        %8144 = vmatpush.bf16.msra.mxu0 %v7777
        %8145 = vmatpush.bf16.msra.mxu0 %v7775
        %8146 = vmatmul.bf16.gmra.mxu0 %v7352
        %v8147 = vpop.f32.mrf.mxu0
        %v8148 = vadd.f32 %v8134, %v8147
        %v8149 = vpop.f32.mrf.mxu0
        %v8150 = vadd.f32 %v8136, %v8149
        %8151 = vdwg.mxu0
        %8152 = vmatpush.bf16.msra.mxu0 %v7805
        %8153 = vmatpush.bf16.msra.mxu0 %v7803
        %8154 = vmatpush.bf16.msra.mxu0 %v7801
        %8155 = vmatpush.bf16.msra.mxu0 %v7799
        %8156 = vmatpush.bf16.msra.mxu0 %v7797
        %8157 = vmatpush.bf16.msra.mxu0 %v7795
        %8158 = vmatpush.bf16.msra.mxu0 %v7793
        %8159 = vmatpush.bf16.msra.mxu0 %v7791
        %8160 = vmatmul.bf16.gmra.mxu0 %v7353
        %v8161 = vpop.f32.mrf.mxu0
        %v8162 = vadd.f32 %v8148, %v8161
        %v8163 = vpop.f32.mrf.mxu0
        %v8164 = vadd.f32 %v8150, %v8163
        %8165 = vdwg.mxu0
        %8166 = vmatpush.bf16.msra.mxu0 %v7821
        %8167 = vmatpush.bf16.msra.mxu0 %v7819
        %8168 = vmatpush.bf16.msra.mxu0 %v7817
        %8169 = vmatpush.bf16.msra.mxu0 %v7815
        %8170 = vmatpush.bf16.msra.mxu0 %v7813
        %8171 = vmatpush.bf16.msra.mxu0 %v7811
        %8172 = vmatpush.bf16.msra.mxu0 %v7809
        %8173 = vmatpush.bf16.msra.mxu0 %v7807
        %8174 = vmatmul.bf16.gmra.mxu0 %v7354
        %v8175 = vpop.f32.mrf.mxu0
        %v8176 = vadd.f32 %v8162, %v8175
        %v8177 = vpop.f32.mrf.mxu0
        %v8178 = vadd.f32 %v8164, %v8177
        %8179 = vdwg.mxu0
        %8180 = vmatpush.bf16.msra.mxu0 %v7837
        %8181 = vmatpush.bf16.msra.mxu0 %v7835
        %8182 = vmatpush.bf16.msra.mxu0 %v7833
        %8183 = vmatpush.bf16.msra.mxu0 %v7831
        %8184 = vmatpush.bf16.msra.mxu0 %v7829
        %8185 = vmatpush.bf16.msra.mxu0 %v7827
        %8186 = vmatpush.bf16.msra.mxu0 %v7825
        %8187 = vmatpush.bf16.msra.mxu0 %v7823
        %8188 = vmatmul.bf16.gmra.mxu0 %v7355
        %v8189 = vpop.f32.mrf.mxu0
        %v8190 = vadd.f32 %v8176, %v8189
        %v8191 = vpop.f32.mrf.mxu0
        %v8192 = vadd.f32 %v8178, %v8191
        %8193 = vdwg.mxu0
        %8194 = vmatpush.bf16.msra.mxu0 %v7853
        %8195 = vmatpush.bf16.msra.mxu0 %v7851
        %8196 = vmatpush.bf16.msra.mxu0 %v7849
        %8197 = vmatpush.bf16.msra.mxu0 %v7847
        %8198 = vmatpush.bf16.msra.mxu0 %v7845
        %8199 = vmatpush.bf16.msra.mxu0 %v7843
        %8200 = vmatpush.bf16.msra.mxu0 %v7841
        %8201 = vmatpush.bf16.msra.mxu0 %v7839
        %8202 = vmatmul.bf16.gmra.mxu0 %v7356
        %v8203 = vpop.f32.mrf.mxu0
        %v8204 = vadd.f32 %v8190, %v8203
        %v8205 = vpop.f32.mrf.mxu0
        %v8206 = vadd.f32 %v8192, %v8205
        %8207 = vdwg.mxu0
        %8208 = vmatpush.bf16.msra.mxu0 %v7869
        %8209 = vmatpush.bf16.msra.mxu0 %v7867
        %8210 = vmatpush.bf16.msra.mxu0 %v7865
        %8211 = vmatpush.bf16.msra.mxu0 %v7863
        %8212 = vmatpush.bf16.msra.mxu0 %v7861
        %8213 = vmatpush.bf16.msra.mxu0 %v7859
        %8214 = vmatpush.bf16.msra.mxu0 %v7857
        %8215 = vmatpush.bf16.msra.mxu0 %v7855
        %8216 = vmatmul.bf16.gmra.mxu0 %v7357
        %v8217 = vpop.f32.mrf.mxu0
        %v8218 = vadd.f32 %v8204, %v8217
        %v8219 = vpop.f32.mrf.mxu0
        %v8220 = vadd.f32 %v8206, %v8219
        %8221 = vdwg.mxu0
        %v8222 = vadd.f32 %v7218, %v8106
        %v8223 = vadd.f32 %v7219, %v8218
        %v8224 = vadd.f32 %v7220, %v8108
        %v8225 = vadd.f32 %v7221, %v8220
        %v8226 = vld [vmem:[#allocation8] sm:$0x3]
        %v8227 = vld [vmem:[#allocation10] sm:$0x3]
        %v8228 = vmul.f32 %v8222, %v8222
        %v8229 = vmul.f32 %v8223, %v8223
        %v8230 = vmul.f32 %v8224, %v8224
        %v8231 = vmul.f32 %v8225, %v8225
        %v8232 = vadd.f32 %v8228, %v8229
        %8233 = vadd.xlane.f32.xlu0 %v8232
        %v8234 = vpop.xlane.xlu0 %8233
        %v8235 = vadd.f32 %v8230, %v8231
        %8236 = vadd.xlane.f32.xlu0 %v8235
        %v8237 = vpop.xlane.xlu0 %8236
        %v8239 = vperm.slane %v8227, 0
        %v8240 = vperm.slane %v8227, 1
        %v8243 = vmul.f32 %v8228, %v8239
        %v8244 = vmul.f32 %v8229, %v8240
        %v8245 = vmul.f32 %v8230, %v8239
        %v8246 = vmul.f32 %v8231, %v8240
        %v8247 = vadd.f32 %v8243, %v8244
        %8248 = vadd.xlane.f32.xlu0 %v8247
        %v8249 = vpop.xlane.xlu0 %8248
        %v8250 = vadd.f32 %v8245, %v8246
        %8251 = vadd.xlane.f32.xlu0 %v8250
        %v8252 = vpop.xlane.xlu0 %8251
        %v8253 = vsub.f32 %v8234, %v8249
        %v8254 = vsub.f32 %v8237, %v8252
        %v8255 = vmax.f32 %v8253, 1e-24
        %v8256 = vmax.f32 %v8254, 1e-24
        %v8257 = vrsqrt.pop %v8255
        %v8258 = vmul.f32 %v8257, %v8255
        %v8259 = vmul.f32 %v8258, %v8257
        %v8260 = vmul.f32 0.5, %v8259
        %v8261 = vsub.f32 1.5, %v8260
        %v8262 = vmul.f32 %v8257, %v8261
        %vm8263 = vweird.f32 %v8255
        %vm8264 = vweird.f32 %v8257
        %vm8265 = vmor %vm8263, %vm8264
        %v8266 = vsel %vm8265, %v8257, %v8262
        %v8267 = vrsqrt.pop %v8256
        %v8268 = vmul.f32 %v8267, %v8256
        %v8269 = vmul.f32 %v8268, %v8267
        %v8270 = vmul.f32 0.5, %v8269
        %v8271 = vsub.f32 1.5, %v8270
        %v8272 = vmul.f32 %v8267, %v8271
        %vm8273 = vweird.f32 %v8256
        %vm8274 = vweird.f32 %v8267
        %vm8275 = vmor %vm8273, %vm8274
        %v8276 = vsel %vm8275, %v8267, %v8272
        %v8277 = vmax.f32 %v8249, 1e-24
        %v8278 = vmax.f32 %v8252, 1e-24
        %v8279 = vrsqrt.pop %v8277
        %v8280 = vmul.f32 %v8279, %v8277
        %v8281 = vmul.f32 %v8280, %v8279
        %v8282 = vmul.f32 0.5, %v8281
        %v8283 = vsub.f32 1.5, %v8282
        %v8284 = vmul.f32 %v8279, %v8283
        %vm8285 = vweird.f32 %v8277
        %vm8286 = vweird.f32 %v8279
        %vm8287 = vmor %vm8285, %vm8286
        %v8288 = vsel %vm8287, %v8279, %v8284
        %v8289 = vrsqrt.pop %v8278
        %v8290 = vmul.f32 %v8289, %v8278
        %v8291 = vmul.f32 %v8290, %v8289
        %v8292 = vmul.f32 0.5, %v8291
        %v8293 = vsub.f32 1.5, %v8292
        %v8294 = vmul.f32 %v8289, %v8293
        %vm8295 = vweird.f32 %v8278
        %vm8296 = vweird.f32 %v8289
        %vm8297 = vmor %vm8295, %vm8296
        %v8298 = vsel %vm8297, %v8289, %v8294
        %v8300 = vperm.slane %v8226, 0
        %v8301 = vperm.slane %v8226, 1
        %v8304 = vmul.f32 %v8266, %v8300
        %v8305 = vmul.f32 %v8266, %v8301
        %v8306 = vmul.f32 %v8276, %v8300
        %v8307 = vmul.f32 %v8276, %v8301
        %v8308 = vmul.f32 %v8288, %v8239
        %v8309 = vmul.f32 %v8288, %v8240
        %v8310 = vmul.f32 %v8298, %v8239
        %v8311 = vmul.f32 %v8298, %v8240
        %v8312 = vadd.f32 %v8304, %v8308
        %v8313 = vadd.f32 %v8305, %v8309
        %v8314 = vadd.f32 %v8306, %v8310
        %v8315 = vadd.f32 %v8307, %v8311
        %v8316 = vmul.f32 %v8222, %v8312
        %v8317 = vmul.f32 %v8223, %v8313
        %v8318 = vmul.f32 %v8224, %v8314
        %v8319 = vmul.f32 %v8225, %v8315
        %v8320 = vld [vmem:[#allocation11] sm:$0xff]
        %v8321 = vld [vmem:[#allocation11 + $0x8] sm:$0xff]
        %v8322 = vld [vmem:[#allocation11 + $0x10] sm:$0xff]
        %v8323 = vld [vmem:[#allocation11 + $0x18] sm:$0xff]
        %v8324 = vld [vmem:[#allocation11 + $0x20] sm:$0xff]
        %v8325 = vld [vmem:[#allocation11 + $0x28] sm:$0xff]
        %v8326 = vld [vmem:[#allocation11 + $0x30] sm:$0xff]
        %v8327 = vld [vmem:[#allocation11 + $0x38] sm:$0xff]
        %v8328 = vld [vmem:[#allocation11 + $0x40] sm:$0xff]
        %v8329 = vld [vmem:[#allocation11 + $0x48] sm:$0xff]
        %v8330 = vld [vmem:[#allocation11 + $0x50] sm:$0xff]
        %v8331 = vld [vmem:[#allocation11 + $0x58] sm:$0xff]
        %v8332 = vld [vmem:[#allocation11 + $0x60] sm:$0xff]
        %v8333 = vld [vmem:[#allocation11 + $0x68] sm:$0xff]
        %v8334 = vld [vmem:[#allocation11 + $0x70] sm:$0xff]
        %v8335 = vld [vmem:[#allocation11 + $0x78] sm:$0xff]
        %v8336 = vld [vmem:[#allocation11 + $0x80] sm:$0xff]
        %v8337 = vld [vmem:[#allocation11 + $0x88] sm:$0xff]
        %v8338 = vld [vmem:[#allocation11 + $0x90] sm:$0xff]
        %v8339 = vld [vmem:[#allocation11 + $0x98] sm:$0xff]
        %v8340 = vld [vmem:[#allocation11 + $0xa0] sm:$0xff]
        %v8341 = vld [vmem:[#allocation11 + $0xa8] sm:$0xff]
        %v8342 = vld [vmem:[#allocation11 + $0xb0] sm:$0xff]
        %v8343 = vld [vmem:[#allocation11 + $0xb8] sm:$0xff]
        %v8344 = vld [vmem:[#allocation11 + $0xc0] sm:$0xff]
        %v8345 = vld [vmem:[#allocation11 + $0xc8] sm:$0xff]
        %v8346 = vld [vmem:[#allocation11 + $0xd0] sm:$0xff]
        %v8347 = vld [vmem:[#allocation11 + $0xd8] sm:$0xff]
        %v8348 = vld [vmem:[#allocation11 + $0xe0] sm:$0xff]
        %v8349 = vld [vmem:[#allocation11 + $0xe8] sm:$0xff]
        %v8350 = vld [vmem:[#allocation11 + $0xf0] sm:$0xff]
        %v8351 = vld [vmem:[#allocation11 + $0xf8] sm:$0xff]
        %8352 = vmatpush.msra.mxu0 %v8335
        %8353 = vmatpush.msra.mxu0 %v8334
        %8354 = vmatpush.msra.mxu0 %v8333
        %8355 = vmatpush.msra.mxu0 %v8332
        %8356 = vmatpush.msra.mxu0 %v8331
        %8357 = vmatpush.msra.mxu0 %v8330
        %8358 = vmatpush.msra.mxu0 %v8329
        %8359 = vmatpush.msra.mxu0 %v8328
        %8360 = vmatpush.msra.mxu0 %v8327
        %8361 = vmatpush.msra.mxu0 %v8326
        %8362 = vmatpush.msra.mxu0 %v8325
        %8363 = vmatpush.msra.mxu0 %v8324
        %8364 = vmatpush.msra.mxu0 %v8323
        %8365 = vmatpush.msra.mxu0 %v8322
        %8366 = vmatpush.msra.mxu0 %v8321
        %8367 = vmatpush.msra.mxu0 %v8320
        %8368 = vmatmul.f32.gmra.mxu0 %v8316
        %v8369 = vpop.f32.mrf.mxu0
        %v8370 = vadd.f32 0.0, %v8369
        %8371 = vmatmul.f32.gmra.mxu0 %v8318
        %v8372 = vpop.f32.mrf.mxu0
        %v8373 = vadd.f32 0.0, %v8372
        %8374 = vdwg.mxu0
        %8375 = vmatpush.msra.mxu0 %v8351
        %8376 = vmatpush.msra.mxu0 %v8350
        %8377 = vmatpush.msra.mxu0 %v8349
        %8378 = vmatpush.msra.mxu0 %v8348
        %8379 = vmatpush.msra.mxu0 %v8347
        %8380 = vmatpush.msra.mxu0 %v8346
        %8381 = vmatpush.msra.mxu0 %v8345
        %8382 = vmatpush.msra.mxu0 %v8344
        %8383 = vmatpush.msra.mxu0 %v8343
        %8384 = vmatpush.msra.mxu0 %v8342
        %8385 = vmatpush.msra.mxu0 %v8341
        %8386 = vmatpush.msra.mxu0 %v8340
        %8387 = vmatpush.msra.mxu0 %v8339
        %8388 = vmatpush.msra.mxu0 %v8338
        %8389 = vmatpush.msra.mxu0 %v8337
        %8390 = vmatpush.msra.mxu0 %v8336
        %8391 = vmatmul.f32.gmra.mxu0 %v8317
        %v8392 = vpop.f32.mrf.mxu0
        %v8393 = vadd.f32 %v8370, %v8392
        %8394 = vmatmul.f32.gmra.mxu0 %v8319
        %v8395 = vpop.f32.mrf.mxu0
        %v8396 = vadd.f32 %v8373, %v8395
        %8397 = vdwg.mxu0
        %v8398 = vld [vmem:[#allocation13] sm:$0x1]
        %v8400 = vperm.slane %v8398, 0
        %v8402 = vsub.f32 %v8393, %v8400
        %v8403 = vsub.f32 %v8396, %v8400
        %vm8404 = vcmp.lt.f32.partialorder %v8402, 0.0
        %vm8405 = vcmp.lt.f32.partialorder %v8403, 0.0
        %v8406 = vsel %vm8404, -1.0, 1.0
        %v8407 = vsel %vm8405, -1.0, 1.0
        %v8408 = vand.u32 2147483647, %v8402
        %v8409 = vand.u32 2147483647, %v8403
        %v8410 = vadd.f32 %v8408, 1e-20
        %v8411 = vadd.f32 %v8409, 1e-20
        %v8412 = vlog2.pop %v8410
        %v8413 = vmul.f32 %v8412, 0.6931472
        %v8414 = vlog2.pop %v8411
        %v8415 = vmul.f32 %v8414, 0.6931472
        %v8416 = vmul.f32 %v8413, 0.7
        %v8417 = vmul.f32 %v8415, 0.7
        %v8418 = vmul.f32 %v8416, 1.442695
        %v8419 = vpow.pop %v8418
        %v8420 = vmul.f32 %v8417, 1.442695
        %v8421 = vpow.pop %v8420
        %v8422 = vmul.f32 %v8406, %v8419
        %v8423 = vmul.f32 %v8407, %v8421
        %v8424 = vmul.f32 %v8422, %v8422
        %v8425 = vmul.f32 %v8423, %v8423
        %8426 = vadd.xlane.f32.xlu0 %v8424
        %v8427 = vpop.xlane.xlu0 %8426
        %8428 = vadd.xlane.f32.xlu0 %v8425
        %v8429 = vpop.xlane.xlu0 %8428
        %v8430 = vmax.f32 %v8427, 1e-24
        %v8431 = vmax.f32 %v8429, 1e-24
        %v8432 = vrsqrt.pop %v8430
        %v8433 = vmul.f32 %v8432, %v8430
        %v8434 = vmul.f32 %v8433, %v8432
        %v8435 = vmul.f32 0.5, %v8434
        %v8436 = vsub.f32 1.5, %v8435
        %v8437 = vmul.f32 %v8432, %v8436
        %vm8438 = vweird.f32 %v8430
        %vm8439 = vweird.f32 %v8432
        %vm8440 = vmor %vm8438, %vm8439
        %v8441 = vsel %vm8440, %v8432, %v8437
        %v8442 = vrsqrt.pop %v8431
        %v8443 = vmul.f32 %v8442, %v8431
        %v8444 = vmul.f32 %v8443, %v8442
        %v8445 = vmul.f32 0.5, %v8444
        %v8446 = vsub.f32 1.5, %v8445
        %v8447 = vmul.f32 %v8442, %v8446
        %vm8448 = vweird.f32 %v8431
        %vm8449 = vweird.f32 %v8442
        %vm8450 = vmor %vm8448, %vm8449
        %v8451 = vsel %vm8450, %v8442, %v8447
        %v8452 = vmul.f32 %v8422, %v8441
        %v8453 = vmul.f32 %v8423, %v8451
        %8454 = vst [vmem:[%s418] sm:$0xff] %v8452
        %8455 = vst [vmem:[%s418 + $0x8] sm:$0xff] %v8453
        %s8456 = sand.u32 %s194, 1
        %s8457 = scalar_lea.sflag [#allocation4], %s8456
        %s8458 = sand.u32 %s194, 1
        %s8459 = smul.addr %s8458, 16
        %s8460 = scalar_lea.vmem [#allocation14], %s8459
        // Predicated region
        $region77: #{tpu_custom_call.1} parent=47 // pred_check
          %p8461 = pneg %p204
        $region78: #{tpu_custom_call.1} parent=47 // pred_check_branch
          %8463 = sbr.rel (%p8461) target = $region80
        $region79: #{tpu_custom_call.1} parent=47 // pred_region
          %s8464 = smul.u32 2, %s29
          %8466 = vsyncadd %s8457, 0
          %s8467 = smul.addr %s8464, 8
          %s8468 = scalar_lea.hbm %s7, %s8467
          %s8469 = sshll.u32 %s8460, 4
          %s8470 = int_to_ptr.vmem [resolvable:$true] %s8469
          %s8471 = sshll.u32 %s8468, 4
          %s8472 = int_to_ptr.hbm [resolvable:$true] %s8471
          %8477 = dma.vmem_to_hbm [thread:$0]  %s8470, 256, %s8472, %s8457, 128, 128, 8
        $region80: #{tpu_custom_call.1} parent=47 // pred_fallthru
          _
      $region48: #{tpu_custom_call.1} parent=5 // pred_fallthru
        _
      %p8478 = scmp.le.s32.totalorder 2, %s24
      // Predicated region
      $region81: #{tpu_custom_call.1} parent=5 // pred_check
        %p8479 = pneg %p8478
      $region82: #{tpu_custom_call.1} parent=5 // pred_check_branch
        %8481 = sbr.rel (%p8479) target = $region84
      $region83: #{tpu_custom_call.1} parent=5 // pred_region
        %s8482 = ssub.s32 %s24, 2
        // Predicated region
        $region85: #{tpu_custom_call.1} parent=83 // pred_check
          %p8483 = pneg %p210
        $region86: #{tpu_custom_call.1} parent=83 // pred_check_branch
          %8485 = sbr.rel (%p8483) target = $region88
        $region87: #{tpu_custom_call.1} parent=83 // pred_region
          %s8486 = sand.u32 %s195, 1
          %s8487 = scalar_lea.sflag [#allocation4], %s8486
          %s8488 = sand.u32 %s195, 1
          %s8489 = smul.addr %s8488, 16
          %s8490 = scalar_lea.vmem [#allocation14], %s8489
          %8492 = dma.done %s8487, 256
        $region88: #{tpu_custom_call.1} parent=83 // pred_fallthru
          _
      $region84: #{tpu_custom_call.1} parent=5 // pred_fallthru
        _
    $region6: #{tpu_custom_call.1} parent=1 // loop_footer
      %s28 = sadd.s32 1, %s24
    $region7: #{tpu_custom_call.1} parent=1 // loop_footer_branch
      %23 = sbr.rel target = $region3
    $region8: #{tpu_custom_call.1} parent=1 // loop_exit
      _
    %8493 = vsyncpa [#allocation3], 1
    %s8494 = scalar_lea.sflag [#allocation3], 1
    %8495 = vsyncpa %s8494, 1
    %8496 = vsyncpa [#allocation6], 1
    %s8497 = scalar_lea.sflag [#allocation6], 1
    %8498 = vsyncpa %s8497, 1
    %8499 = vsyncpa [#allocation9], 1
    %8500 = vsyncpa [#allocation12], 1
    %8501 = vsyncpa [#allocation4], 1
    %s8502 = scalar_lea.sflag [#allocation4], 1
    %8503 = vsyncpa %s8502, 1

</llo_original>
